<compile_context>
chip_gen: v5e
topology: v5e:2x2
jax: 0.10.0
libtpu: 0.0.40
codegen_flags: <defaults>
</compile_context>

<pallas_src>
import functools

import numpy as np
import jax
import jax.numpy as jnp
from jax.experimental import pallas as pl
from jax.experimental.pallas import tpu as pltpu

INF = 32752.0        # same constant as the PyTorch code
LN_EPS = 1e-6        # COOT LayerNormalization epsilon (added to std, not var)
SQRT2 = 1.4142135623730951
NUM_HEADS = 8


# ----------------------------- in-kernel math helpers -----------------------------

def _erf(x):
    # Abramowitz & Stegun 7.1.26 (abs err < 1.5e-7 ~= f32 eps); avoids lax.erf lowering.
    a1, a2, a3, a4, a5 = 0.254829592, -0.284496736, 1.421413741, -1.453152027, 1.061405429
    p = 0.3275911
    sgn = jnp.where(x >= 0.0, 1.0, -1.0)
    ax = jnp.abs(x)
    t = 1.0 / (1.0 + p * ax)
    poly = ((((a5 * t + a4) * t + a3) * t + a2) * t + a1) * t
    return sgn * (1.0 - poly * jnp.exp(-ax * ax))


def _gelu(x):
    # exact (erf-based) GELU, matching torch.nn.GELU default
    return 0.5 * x * (1.0 + _erf(x / SQRT2))


def _layer_norm(x, gain, bias, d):
    # COOT LayerNormalization: unbiased std (N-1) and eps added to std (NOT torch.nn.LayerNorm).
    mean = jnp.mean(x, axis=-1, keepdims=True)
    diff = x - mean
    std = jnp.sqrt(jnp.sum(diff * diff, axis=-1, keepdims=True) / float(d - 1))
    return gain * diff / (std + LN_EPS) + bias


def _softmax_last(s):
    m = jnp.max(s, axis=-1, keepdims=True)
    e = jnp.exp(s - m)
    return e / jnp.sum(e, axis=-1, keepdims=True)


# ------------------------------- fused forward kernel ------------------------------

def _fused_kernel(lengths_ref, feat_ref,
                  ln_in_g_ref, ln_in_b_ref, fc_w_ref, fc_b_ref, pe_ref,
                  w_qkv_ref, b_qkv_ref, wo_ref, bo_ref,
                  ln1g_ref, ln1b_ref, ff_w1_ref, ff_b1_ref, ff_w2_ref, ff_b2_ref,
                  ln2g_ref, ln2b_ref,
                  pw1_ref, pb1_ref, pw2_ref, pb2_ref,
                  enc_ref, pooled_ref, *,
                  d_in, d_model, num_heads, pool_heads, d_pool_head, block_b, seq_len):
    L = seq_len
    Bt = block_b
    H = num_heads
    dh = d_model // H
    BtL = Bt * L
    bf16 = jnp.bfloat16

    # ---- padding mask from scalar-prefetched lengths (1.0 = padded, contiguous prefix valid) ----
    b0 = pl.program_id(0)
    iota_row = jax.lax.broadcasted_iota(jnp.int32, (1, L), 1)
    pad_rows = [(iota_row >= lengths_ref[b0 * Bt + j]).astype(jnp.float32)
                for j in range(Bt)]
    pad = pad_rows[0] if Bt == 1 else jnp.concatenate(pad_rows, axis=0)      # (Bt, L)
    key_pad = pad.reshape(Bt, 1, L) > 0.5                                    # True = padded key
    step_pad = pad.reshape(Bt, L, 1) > 0.5                                   # True = padded step

    # ---- stage 1: LayerNormalization(input_dim) -> input_fc (Linear+GELU) -> PE ----
    f = feat_ref[...].reshape(BtL, d_in)
    xn = _layer_norm(f, ln_in_g_ref[...], ln_in_b_ref[...], d_in)
    # TODO(synk): MLP class not provided; COOT uses nn.Sequential(Linear, GELU) here.
    h = jnp.dot(xn.astype(bf16), fc_w_ref[...],
                preferred_element_type=jnp.float32) + fc_b_ref[...]
    # TODO(synk): PositionalEncodingSinCos not provided; standard x*sqrt(D)+PE assumed.
    x = _gelu(h).reshape(Bt, L, d_model) * np.sqrt(float(d_model)) + pe_ref[...][None]
    x_flat = x.reshape(BtL, d_model)                                         # (BtL, D) f32

    # ---- stage 2: TransformerEncoderLayer(384, 8 heads, d_ff=384) -------------------
    # Single lane-dense QKV projection: (BtL, 384) @ (384, 1152).
    qkv = jnp.dot(x_flat.astype(bf16), w_qkv_ref[...],
                  preferred_element_type=jnp.float32) + b_qkv_ref[...]       # (BtL, 3D)

    scale = 1.0 / np.sqrt(float(dh))
    ctx_heads = []
    for hh in range(H):
        q_h = qkv[:, hh * dh:(hh + 1) * dh].reshape(Bt, L, dh).astype(bf16)
        k_h = qkv[:, d_model + hh * dh: d_model + (hh + 1) * dh].reshape(Bt, L, dh).astype(bf16)
        v_h = qkv[:, 2 * d_model + hh * dh: 2 * d_model + (hh + 1) * dh].reshape(Bt, L, dh).astype(bf16)
        s = jnp.einsum('bqd,bkd->bqk', q_h, k_h,
                       preferred_element_type=jnp.float32) * scale           # (Bt, L, L) f32
        # legacy code fills masked positions with +INF (not -INF); reproduced exactly (f32)
        s = jnp.where(key_pad, jnp.float32(INF), s)
        p = _softmax_last(s)                                                 # f32
        ctx_heads.append(jnp.einsum('bqk,bkd->bqd', p.astype(bf16), v_h,
                                    preferred_element_type=jnp.float32))     # (Bt, L, dh)
    ctx = jnp.concatenate(ctx_heads, axis=-1).reshape(BtL, d_model)          # (BtL, D)
    # single K=384 output projection (replaces per-head projection + head sum)
    attn = jnp.dot(ctx.astype(bf16), wo_ref[...],
                   preferred_element_type=jnp.float32) + bo_ref[...]

    x1 = _layer_norm(attn + x_flat, ln1g_ref[...], ln1b_ref[...], d_model)
    hmid = _gelu(jnp.dot(x1.astype(bf16), ff_w1_ref[...],
                         preferred_element_type=jnp.float32) + ff_b1_ref[...])
    ff = jnp.dot(hmid.astype(bf16), ff_w2_ref[...],
                 preferred_element_type=jnp.float32) + ff_b2_ref[...]
    enc_flat = _layer_norm(ff + x1, ln2g_ref[...], ln2b_ref[...], d_model)   # (BtL, D)
    enc = enc_flat.reshape(Bt, L, d_model)
    enc_ref[...] = enc

    # ---- stage 3: MultiGenPool-style 2-head generalized attention pooling ----------
    # TODO(synk): MultiGenPool class not provided; COOT-style generalized attention
    # pooling (2 heads, per-feature softmax weights over the sequence, heads concatenated).
    a = _gelu(jnp.dot(enc_flat.astype(bf16), pw1_ref[...],
                      preferred_element_type=jnp.float32) + pb1_ref[...])    # (BtL, P*dp)
    pooled_heads = []
    for ph in range(pool_heads):
        a_h = a[:, ph * d_pool_head:(ph + 1) * d_pool_head].astype(bf16)
        sc = jnp.dot(a_h, pw2_ref[ph],
                     preferred_element_type=jnp.float32) + pb2_ref[ph]       # (BtL, D) f32
        sc = sc.reshape(Bt, L, d_model)
        sc = jnp.where(step_pad, -jnp.float32(INF), sc)
        m = jnp.max(sc, axis=1, keepdims=True)
        e = jnp.exp(sc - m)
        w = e / jnp.sum(e, axis=1, keepdims=True)                            # (Bt, L, D)
        pooled_heads.append(jnp.sum(w * enc, axis=1))                        # (Bt, D)
    pooled_all = jnp.concatenate(pooled_heads, axis=-1)                      # (Bt, P*D) lane-dense
    pooled_ref[...] = pooled_all.reshape(Bt, 1, pool_heads * d_model)


# --------------------------------- pallas_call glue --------------------------------

def _const_spec(shape):
    nd = len(shape)
    return pl.BlockSpec(shape, lambda i, lens, _nd=nd: (0,) * _nd)


def _choose_block_b(batch, seq_len):
    """Largest divisor of batch with block_b*seq_len <= ~128 sublanes and >=2 grid steps."""
    target = max(1, -(-128 // max(seq_len, 1)))
    best = 1
    for cand in range(1, batch + 1):
        if batch % cand:
            continue
        steps = batch // cand
        if cand <= target and (steps >= 2 or batch == 1):
            best = cand
    return best


def transformer_legacy_forward(params, features, mask, lengths):
    """features: (B, L, input_dim); mask: (B, L) with 1=padded; lengths: (B,).

    Padding is rebuilt in-kernel from `lengths` (mask must correspond to lengths,
    as documented in the original module), so the mask tensor itself is unused.
    """
    del mask
    B, L, d_in = features.shape
    d_model = params["fc_w"].shape[1]
    num_heads = NUM_HEADS
    pool_heads = params["pool_w1"].shape[0]
    d_pool_head = params["pool_w1"].shape[2]
    d_out = pool_heads * d_model
    bf16 = jnp.bfloat16

    block_b = _choose_block_b(B, L)
    grid = (B // block_b,)

    # Lane-dense fused weights (bf16 matmul operands; biases / LN params / PE stay f32).
    w_qkv = jnp.concatenate([params["wq"], params["wk"], params["wv"]], axis=1).astype(bf16)
    b_qkv = jnp.concatenate([params["bq"], params["bk"], params["bv"]], axis=1)
    pw1 = params["pool_w1"].transpose(1, 0, 2).reshape(d_model, pool_heads * d_pool_head).astype(bf16)
    pb1 = params["pool_b1"].transpose(1, 0, 2).reshape(1, pool_heads * d_pool_head)
    pe = params["pe"][:L]

    weights = [params["norm_in_g"], params["norm_in_b"],
               params["fc_w"].astype(bf16), params["fc_b"], pe,
               w_qkv, b_qkv, params["wo"].astype(bf16), params["bo"],
               params["ln1_g"], params["ln1_b"],
               params["ff_w1"].astype(bf16), params["ff_b1"],
               params["ff_w2"].astype(bf16), params["ff_b2"],
               params["ln2_g"], params["ln2_b"],
               pw1, pb1, params["pool_w2"].astype(bf16), params["pool_b2"]]

    kern = functools.partial(_fused_kernel, d_in=d_in, d_model=d_model,
                             num_heads=num_heads, pool_heads=pool_heads,
                             d_pool_head=d_pool_head, block_b=block_b, seq_len=L)

    enc, pooled3 = pl.pallas_call(
        kern,
        grid_spec=pltpu.PrefetchScalarGridSpec(
            num_scalar_prefetch=1,
            grid=grid,
            in_specs=[pl.BlockSpec((block_b, L, d_in), lambda i, lens: (i, 0, 0))]
                     + [_const_spec(w.shape) for w in weights],
            out_specs=[pl.BlockSpec((block_b, L, d_model), lambda i, lens: (i, 0, 0)),
                       pl.BlockSpec((block_b, 1, d_out), lambda i, lens: (i, 0, 0))]),
        out_shape=[jax.ShapeDtypeStruct((B, L, d_model), jnp.float32),
                   jax.ShapeDtypeStruct((B, 1, d_out), jnp.float32)],
        compiler_params=pltpu.CompilerParams(
            dimension_semantics=("parallel",),
            vmem_limit_bytes=32 * 1024 * 1024),
    )(lengths.astype(jnp.int32), features, *weights)

    return pooled3[:, 0, :], enc


# --------------------------------- parameter setup ---------------------------------

def make_sincos_pe(max_len, d_model):
    pos = np.arange(max_len, dtype=np.float32)[:, None]
    div = np.exp(np.arange(0, d_model, 2, dtype=np.float32) * -(np.log(10000.0) / d_model))
    pe = np.zeros((max_len, d_model), np.float32)
    pe[:, 0::2] = np.sin(pos * div)
    pe[:, 1::2] = np.cos(pos * div)
    return jnp.asarray(pe)


def init_params(key, d_in, d_model, max_len, pool_d_attn=768, pool_heads=2):
    # init_network(self, 'truncnorm', 0.01): truncated-normal weights (std=0.01),
    # zero biases, unit LayerNorm gains.
    ks = jax.random.split(key, 9)

    def tn(k, shape, std=0.01):
        return (std * jax.random.truncated_normal(k, -2.0, 2.0, shape)).astype(jnp.float32)

    d_pool_head = pool_d_attn // pool_heads
    return {
        "norm_in_g": jnp.ones((1, d_in), jnp.float32),
        "norm_in_b": jnp.zeros((1, d_in), jnp.float32),
        "fc_w": tn(ks[0], (d_in, d_model)),
        "fc_b": jnp.zeros((1, d_model), jnp.float32),
        "pe": make_sincos_pe(max_len, d_model),
        "wq": tn(ks[1], (d_model, d_model)), "bq": jnp.zeros((1, d_model), jnp.float32),
        "wk": tn(ks[2], (d_model, d_model)), "bk": jnp.zeros((1, d_model), jnp.float32),
        "wv": tn(ks[3], (d_model, d_model)), "bv": jnp.zeros((1, d_model), jnp.float32),
        "wo": tn(ks[4], (d_model, d_model)), "bo": jnp.zeros((1, d_model), jnp.float32),
        "ln1_g": jnp.ones((1, d_model), jnp.float32),
        "ln1_b": jnp.zeros((1, d_model), jnp.float32),
        "ff_w1": tn(ks[5], (d_model, d_model)),   # d_ff == d_model == 384 in TransformerEncoder
        "ff_b1": jnp.zeros((1, d_model), jnp.float32),
        "ff_w2": tn(ks[6], (d_model, d_model)),
        "ff_b2": jnp.zeros((1, d_model), jnp.float32),
        "ln2_g": jnp.ones((1, d_model), jnp.float32),
        "ln2_b": jnp.zeros((1, d_model), jnp.float32),
        "pool_w1": tn(ks[7], (pool_heads, d_model, d_pool_head)),
        "pool_b1": jnp.zeros((pool_heads, 1, d_pool_head), jnp.float32),
        "pool_w2": tn(ks[8], (pool_heads, d_pool_head, d_model)),
        "pool_b2": jnp.zeros((pool_heads, 1, d_model), jnp.float32),
    }


# -------------------------------------- main ---------------------------------------

if __name__ == "__main__":
    B, L, D_IN, D_MODEL = 2, 8, 32, 384   # d_model fixed to 384 by TransformerEncoder()
    key = jax.random.PRNGKey(0)
    k_param, k_feat = jax.random.split(key)

    params = init_params(k_param, D_IN, D_MODEL, L)
    features = jax.random.normal(k_feat, (B, L, D_IN), jnp.float32)
    lengths = jnp.array([L, L - 3], jnp.int32)
    mask = (jnp.arange(L)[None, :] >= lengths[:, None]).astype(jnp.float32)  # 1 = padded

    fwd = jax.jit(transformer_legacy_forward)
    pooled, encoded = fwd(params, features, mask, lengths)
    jax.block_until_ready((pooled, encoded))

    assert pooled.shape == (B, 2 * D_MODEL), pooled.shape
    assert encoded.shape == (B, L, D_MODEL), encoded.shape
    assert bool(jnp.all(jnp.isfinite(pooled))) and bool(jnp.all(jnp.isfinite(encoded)))
    print("KERNEL_OK")
</pallas_src>

<mosaic_0001>
module attributes {stable_mosaic.version = 11 : i64} {
  func.func @_fused_kernel(%arg0: i32, %arg1: memref<2xi32, #tpu.memory_space<smem>>, %arg2: memref<1x8x32xf32, #tpu.memory_space<vmem>>, %arg3: memref<1x32xf32, #tpu.memory_space<vmem>>, %arg4: memref<1x32xf32, #tpu.memory_space<vmem>>, %arg5: memref<32x384xbf16, #tpu.memory_space<vmem>>, %arg6: memref<1x384xf32, #tpu.memory_space<vmem>>, %arg7: memref<8x384xf32, #tpu.memory_space<vmem>>, %arg8: memref<384x1152xbf16, #tpu.memory_space<vmem>>, %arg9: memref<1x1152xf32, #tpu.memory_space<vmem>>, %arg10: memref<384x384xbf16, #tpu.memory_space<vmem>>, %arg11: memref<1x384xf32, #tpu.memory_space<vmem>>, %arg12: memref<1x384xf32, #tpu.memory_space<vmem>>, %arg13: memref<1x384xf32, #tpu.memory_space<vmem>>, %arg14: memref<384x384xbf16, #tpu.memory_space<vmem>>, %arg15: memref<1x384xf32, #tpu.memory_space<vmem>>, %arg16: memref<384x384xbf16, #tpu.memory_space<vmem>>, %arg17: memref<1x384xf32, #tpu.memory_space<vmem>>, %arg18: memref<1x384xf32, #tpu.memory_space<vmem>>, %arg19: memref<1x384xf32, #tpu.memory_space<vmem>>, %arg20: memref<384x768xbf16, #tpu.memory_space<vmem>>, %arg21: memref<1x768xf32, #tpu.memory_space<vmem>>, %arg22: memref<2x384x384xbf16, #tpu.memory_space<vmem>>, %arg23: memref<2x1x384xf32, #tpu.memory_space<vmem>>, %arg24: memref<1x8x384xf32, #tpu.memory_space<vmem>>, %arg25: memref<1x1x768xf32, #tpu.memory_space<vmem>>) attributes {dimension_semantics = [#tpu.dimension_semantics<parallel>], iteration_bounds = array<i64: 2>, scalar_prefetch = 1 : i64, scratch_operands = 0 : i64, tpu.core_type = #tpu.core_type<tc>, window_params = [{transform_indices = @transform_0, window_bounds = array<i64: 1, 8, 32>}, {pipeline_mode = #tpu.pipeline_mode<synchronous>, transform_indices = @transform_1, window_bounds = array<i64: 1, 32>}, {pipeline_mode = #tpu.pipeline_mode<synchronous>, transform_indices = @transform_2, window_bounds = array<i64: 1, 32>}, {pipeline_mode = #tpu.pipeline_mode<synchronous>, transform_indices = @transform_3, window_bounds = array<i64: 32, 384>}, {pipeline_mode = #tpu.pipeline_mode<synchronous>, transform_indices = @transform_4, window_bounds = array<i64: 1, 384>}, {pipeline_mode = #tpu.pipeline_mode<synchronous>, transform_indices = @transform_5, window_bounds = array<i64: 8, 384>}, {pipeline_mode = #tpu.pipeline_mode<synchronous>, transform_indices = @transform_6, window_bounds = array<i64: 384, 1152>}, {pipeline_mode = #tpu.pipeline_mode<synchronous>, transform_indices = @transform_7, window_bounds = array<i64: 1, 1152>}, {pipeline_mode = #tpu.pipeline_mode<synchronous>, transform_indices = @transform_8, window_bounds = array<i64: 384, 384>}, {pipeline_mode = #tpu.pipeline_mode<synchronous>, transform_indices = @transform_9, window_bounds = array<i64: 1, 384>}, {pipeline_mode = #tpu.pipeline_mode<synchronous>, transform_indices = @transform_10, window_bounds = array<i64: 1, 384>}, {pipeline_mode = #tpu.pipeline_mode<synchronous>, transform_indices = @transform_11, window_bounds = array<i64: 1, 384>}, {pipeline_mode = #tpu.pipeline_mode<synchronous>, transform_indices = @transform_12, window_bounds = array<i64: 384, 384>}, {pipeline_mode = #tpu.pipeline_mode<synchronous>, transform_indices = @transform_13, window_bounds = array<i64: 1, 384>}, {pipeline_mode = #tpu.pipeline_mode<synchronous>, transform_indices = @transform_14, window_bounds = array<i64: 384, 384>}, {pipeline_mode = #tpu.pipeline_mode<synchronous>, transform_indices = @transform_15, window_bounds = array<i64: 1, 384>}, {pipeline_mode = #tpu.pipeline_mode<synchronous>, transform_indices = @transform_16, window_bounds = array<i64: 1, 384>}, {pipeline_mode = #tpu.pipeline_mode<synchronous>, transform_indices = @transform_17, window_bounds = array<i64: 1, 384>}, {pipeline_mode = #tpu.pipeline_mode<synchronous>, transform_indices = @transform_18, window_bounds = array<i64: 384, 768>}, {pipeline_mode = #tpu.pipeline_mode<synchronous>, transform_indices = @transform_19, window_bounds = array<i64: 1, 768>}, {pipeline_mode = #tpu.pipeline_mode<synchronous>, transform_indices = @transform_20, window_bounds = array<i64: 2, 384, 384>}, {pipeline_mode = #tpu.pipeline_mode<synchronous>, transform_indices = @transform_21, window_bounds = array<i64: 2, 1, 384>}, {transform_indices = @transform_22, window_bounds = array<i64: 1, 8, 384>}, {transform_indices = @transform_23, window_bounds = array<i64: 1, 1, 768>}]} {
    %0 = tpu.iota {dimensions = array<i32: 1>} : vector<1x8xi32>
    %c1_i32 = arith.constant 1 : i32
    %1 = arith.muli %arg0, %c1_i32 : i32
    %c0_i32 = arith.constant 0 : i32
    %2 = arith.addi %1, %c0_i32 : i32
    %3 = arith.index_cast %2 : i32 to index
    %4 = memref.load %arg1[%3] : memref<2xi32, #tpu.memory_space<smem>>
    %5 = vector.broadcast %4 : i32 to vector<1x8xi32>
    %6 = arith.cmpi sge, %0, %5 : vector<1x8xi32>
    %7 = arith.extui %6 : vector<1x8xi1> to vector<1x8xi32>
    %8 = arith.sitofp %7 : vector<1x8xi32> to vector<1x8xf32>
    %9 = vector.shape_cast %8 : vector<1x8xf32> to vector<1x1x8xf32>
    %cst = arith.constant 5.000000e-01 : f32
    %10 = vector.broadcast %cst : f32 to vector<1x1x8xf32>
    %11 = arith.cmpf ogt, %9, %10 : vector<1x1x8xf32>
    %12 = vector.shape_cast %8 : vector<1x8xf32> to vector<1x8x1xf32>
    %cst_0 = arith.constant 5.000000e-01 : f32
    %13 = vector.broadcast %cst_0 : f32 to vector<1x8x1xf32>
    %14 = arith.cmpf ogt, %12, %13 : vector<1x8x1xf32>
    %c0 = arith.constant 0 : index
    %c0_1 = arith.constant 0 : index
    %c0_2 = arith.constant 0 : index
    %15 = vector.load %arg2[%c0, %c0_1, %c0_2] : memref<1x8x32xf32, #tpu.memory_space<vmem>>, vector<1x8x32xf32>
    %16 = vector.shape_cast %15 : vector<1x8x32xf32> to vector<8x32xf32>
    %c0_3 = arith.constant 0 : index
    %c0_4 = arith.constant 0 : index
    %17 = vector.load %arg3[%c0_3, %c0_4] : memref<1x32xf32, #tpu.memory_space<vmem>>, vector<1x32xf32>
    %c0_5 = arith.constant 0 : index
    %c0_6 = arith.constant 0 : index
    %18 = vector.load %arg4[%c0_5, %c0_6] : memref<1x32xf32, #tpu.memory_space<vmem>>, vector<1x32xf32>
    %cst_7 = arith.constant dense<0.000000e+00> : vector<8xf32>
    %19 = vector.multi_reduction <add>, %16, %cst_7 [1] : vector<8x32xf32> to vector<8xf32>
    %20 = vector.shape_cast %19 : vector<8xf32> to vector<8x1xf32>
    %cst_8 = arith.constant 3.200000e+01 : f32
    %21 = vector.broadcast %cst_8 : f32 to vector<8x1xf32>
    %22 = arith.divf %20, %21 : vector<8x1xf32>
    %23 = vector.broadcast %22 : vector<8x1xf32> to vector<8x32xf32>
    %24 = arith.subf %16, %23 : vector<8x32xf32>
    %25 = arith.mulf %24, %24 : vector<8x32xf32>
    %cst_9 = arith.constant dense<0.000000e+00> : vector<8xf32>
    %26 = vector.multi_reduction <add>, %25, %cst_9 [1] : vector<8x32xf32> to vector<8xf32>
    %27 = vector.shape_cast %26 : vector<8xf32> to vector<8x1xf32>
    %cst_10 = arith.constant 3.100000e+01 : f32
    %28 = vector.broadcast %cst_10 : f32 to vector<8x1xf32>
    %29 = arith.divf %27, %28 : vector<8x1xf32>
    %30 = math.sqrt %29 : vector<8x1xf32>
    %31 = vector.broadcast %17 : vector<1x32xf32> to vector<8x32xf32>
    %32 = arith.mulf %31, %24 : vector<8x32xf32>
    %cst_11 = arith.constant 9.99999997E-7 : f32
    %33 = vector.broadcast %cst_11 : f32 to vector<8x1xf32>
    %34 = arith.addf %30, %33 : vector<8x1xf32>
    %35 = vector.broadcast %34 : vector<8x1xf32> to vector<8x32xf32>
    %36 = arith.divf %32, %35 : vector<8x32xf32>
    %37 = vector.broadcast %18 : vector<1x32xf32> to vector<8x32xf32>
    %38 = arith.addf %36, %37 : vector<8x32xf32>
    %39 = arith.truncf %38 : vector<8x32xf32> to vector<8x32xbf16>
    %c0_12 = arith.constant 0 : index
    %c0_13 = arith.constant 0 : index
    %40 = vector.load %arg5[%c0_12, %c0_13] : memref<32x384xbf16, #tpu.memory_space<vmem>>, vector<32x384xbf16>
    %cst_14 = arith.constant dense<0.000000e+00> : vector<8x384xf32>
    %41 = tpu.matmul %39, %40, %cst_14 {dimension_numbers = #tpu.dot_dimension_numbers<[1], [0], [0], [1], [0, 0, 1, 1], [], []>} : vector<8x32xbf16>, vector<32x384xbf16>, vector<8x384xf32> -> vector<8x384xf32>
    %c0_15 = arith.constant 0 : index
    %c0_16 = arith.constant 0 : index
    %42 = vector.load %arg6[%c0_15, %c0_16] : memref<1x384xf32, #tpu.memory_space<vmem>>, vector<1x384xf32>
    %43 = vector.broadcast %42 : vector<1x384xf32> to vector<8x384xf32>
    %44 = arith.addf %41, %43 : vector<8x384xf32>
    %cst_17 = arith.constant 5.000000e-01 : f32
    %45 = vector.broadcast %cst_17 : f32 to vector<8x384xf32>
    %46 = arith.mulf %45, %44 : vector<8x384xf32>
    %cst_18 = arith.constant 1.41421354 : f32
    %47 = vector.broadcast %cst_18 : f32 to vector<8x384xf32>
    %48 = arith.divf %44, %47 : vector<8x384xf32>
    %cst_19 = arith.constant 0.000000e+00 : f32
    %49 = vector.broadcast %cst_19 : f32 to vector<8x384xf32>
    %50 = arith.cmpf oge, %48, %49 : vector<8x384xf32>
    %cst_20 = arith.constant 1.000000e+00 : f32
    %cst_21 = arith.constant -1.000000e+00 : f32
    %51 = vector.broadcast %cst_20 : f32 to vector<8x384xf32>
    %52 = vector.broadcast %cst_21 : f32 to vector<8x384xf32>
    %53 = arith.select %50, %51, %52 : vector<8x384xi1>, vector<8x384xf32>
    %54 = math.absf %48 : vector<8x384xf32>
    %cst_22 = arith.constant 0.327591091 : f32
    %55 = vector.broadcast %cst_22 : f32 to vector<8x384xf32>
    %56 = arith.mulf %55, %54 : vector<8x384xf32>
    %cst_23 = arith.constant 1.000000e+00 : f32
    %57 = vector.broadcast %cst_23 : f32 to vector<8x384xf32>
    %58 = arith.addf %57, %56 : vector<8x384xf32>
    %cst_24 = arith.constant 1.000000e+00 : f32
    %59 = vector.broadcast %cst_24 : f32 to vector<8x384xf32>
    %60 = arith.divf %59, %58 : vector<8x384xf32>
    %cst_25 = arith.constant 1.06140542 : f32
    %61 = vector.broadcast %cst_25 : f32 to vector<8x384xf32>
    %62 = arith.mulf %61, %60 : vector<8x384xf32>
    %cst_26 = arith.constant -1.45315206 : f32
    %63 = vector.broadcast %cst_26 : f32 to vector<8x384xf32>
    %64 = arith.addf %62, %63 : vector<8x384xf32>
    %65 = arith.mulf %64, %60 : vector<8x384xf32>
    %cst_27 = arith.constant 1.42141378 : f32
    %66 = vector.broadcast %cst_27 : f32 to vector<8x384xf32>
    %67 = arith.addf %65, %66 : vector<8x384xf32>
    %68 = arith.mulf %67, %60 : vector<8x384xf32>
    %cst_28 = arith.constant -0.284496725 : f32
    %69 = vector.broadcast %cst_28 : f32 to vector<8x384xf32>
    %70 = arith.addf %68, %69 : vector<8x384xf32>
    %71 = arith.mulf %70, %60 : vector<8x384xf32>
    %cst_29 = arith.constant 0.254829586 : f32
    %72 = vector.broadcast %cst_29 : f32 to vector<8x384xf32>
    %73 = arith.addf %71, %72 : vector<8x384xf32>
    %74 = arith.mulf %73, %60 : vector<8x384xf32>
    %cst_30 = arith.constant 0.000000e+00 : f32
    %75 = vector.broadcast %cst_30 : f32 to vector<8x384xf32>
    %76 = arith.subf %75, %54 : vector<8x384xf32>
    %77 = arith.mulf %76, %54 : vector<8x384xf32>
    %78 = math.exp %77 : vector<8x384xf32>
    %79 = arith.mulf %74, %78 : vector<8x384xf32>
    %cst_31 = arith.constant 1.000000e+00 : f32
    %80 = vector.broadcast %cst_31 : f32 to vector<8x384xf32>
    %81 = arith.subf %80, %79 : vector<8x384xf32>
    %82 = arith.mulf %53, %81 : vector<8x384xf32>
    %cst_32 = arith.constant 1.000000e+00 : f32
    %83 = vector.broadcast %cst_32 : f32 to vector<8x384xf32>
    %84 = arith.addf %83, %82 : vector<8x384xf32>
    %85 = arith.mulf %46, %84 : vector<8x384xf32>
    %86 = vector.shape_cast %85 : vector<8x384xf32> to vector<1x8x384xf32>
    %cst_33 = arith.constant 19.5959187 : f32
    %87 = vector.broadcast %cst_33 : f32 to vector<1x8x384xf32>
    %88 = arith.mulf %86, %87 : vector<1x8x384xf32>
    %c0_34 = arith.constant 0 : index
    %c0_35 = arith.constant 0 : index
    %89 = vector.load %arg7[%c0_34, %c0_35] : memref<8x384xf32, #tpu.memory_space<vmem>>, vector<8x384xf32>
    %90 = vector.shape_cast %89 : vector<8x384xf32> to vector<1x8x384xf32>
    %91 = arith.addf %88, %90 : vector<1x8x384xf32>
    %92 = vector.shape_cast %91 : vector<1x8x384xf32> to vector<8x384xf32>
    %93 = arith.truncf %92 : vector<8x384xf32> to vector<8x384xbf16>
    %c0_36 = arith.constant 0 : index
    %c0_37 = arith.constant 0 : index
    %94 = vector.load %arg8[%c0_36, %c0_37] : memref<384x1152xbf16, #tpu.memory_space<vmem>>, vector<384x1152xbf16>
    %cst_38 = arith.constant dense<0.000000e+00> : vector<8x1152xf32>
    %95 = tpu.matmul %93, %94, %cst_38 {dimension_numbers = #tpu.dot_dimension_numbers<[1], [0], [0], [1], [0, 0, 1, 1], [], []>} : vector<8x384xbf16>, vector<384x1152xbf16>, vector<8x1152xf32> -> vector<8x1152xf32>
    %c0_39 = arith.constant 0 : index
    %c0_40 = arith.constant 0 : index
    %96 = vector.load %arg9[%c0_39, %c0_40] : memref<1x1152xf32, #tpu.memory_space<vmem>>, vector<1x1152xf32>
    %97 = vector.broadcast %96 : vector<1x1152xf32> to vector<8x1152xf32>
    %98 = arith.addf %95, %97 : vector<8x1152xf32>
    %99 = vector.extract_strided_slice %98 {offsets = [0, 0], sizes = [8, 48], strides = [1, 1]} : vector<8x1152xf32> to vector<8x48xf32>
    %100 = vector.shape_cast %99 : vector<8x48xf32> to vector<1x8x48xf32>
    %101 = arith.truncf %100 : vector<1x8x48xf32> to vector<1x8x48xbf16>
    %102 = vector.extract_strided_slice %98 {offsets = [0, 384], sizes = [8, 48], strides = [1, 1]} : vector<8x1152xf32> to vector<8x48xf32>
    %103 = vector.shape_cast %102 : vector<8x48xf32> to vector<1x8x48xf32>
    %104 = arith.truncf %103 : vector<1x8x48xf32> to vector<1x8x48xbf16>
    %105 = vector.extract_strided_slice %98 {offsets = [0, 768], sizes = [8, 48], strides = [1, 1]} : vector<8x1152xf32> to vector<8x48xf32>
    %106 = vector.shape_cast %105 : vector<8x48xf32> to vector<1x8x48xf32>
    %107 = arith.truncf %106 : vector<1x8x48xf32> to vector<1x8x48xbf16>
    "tpu.trace_start"() <{level = 10 : i32, message = "bqd,bkd->bqk"}> : () -> ()
    %cst_41 = arith.constant dense<0.000000e+00> : vector<1x8x8xf32>
    %108 = tpu.matmul %101, %104, %cst_41 {dimension_numbers = #tpu.dot_dimension_numbers<[2], [2], [1], [1], [0, 0, 0, 1, 1, 1], [0], [0]>} : vector<1x8x48xbf16>, vector<1x8x48xbf16>, vector<1x8x8xf32> -> vector<1x8x8xf32>
    "tpu.trace_stop"() : () -> ()
    %cst_42 = arith.constant 0.144337565 : f32
    %109 = vector.broadcast %cst_42 : f32 to vector<1x8x8xf32>
    %110 = arith.mulf %108, %109 : vector<1x8x8xf32>
    %cst_43 = arith.constant 3.275200e+04 : f32
    %111 = vector.shape_cast %11 : vector<1x1x8xi1> to vector<1x1x8xi1>
    %112 = vector.broadcast %111 : vector<1x1x8xi1> to vector<1x8x8xi1>
    %113 = vector.broadcast %cst_43 : f32 to vector<1x8x8xf32>
    %114 = arith.select %112, %113, %110 : vector<1x8x8xi1>, vector<1x8x8xf32>
    %cst_44 = arith.constant dense<0xFF800000> : vector<1x8xf32>
    %115 = vector.multi_reduction <maximumf>, %114, %cst_44 [2] : vector<1x8x8xf32> to vector<1x8xf32>
    %116 = vector.shape_cast %115 : vector<1x8xf32> to vector<1x8x1xf32>
    %117 = vector.broadcast %116 : vector<1x8x1xf32> to vector<1x8x8xf32>
    %118 = arith.subf %114, %117 : vector<1x8x8xf32>
    %119 = math.exp %118 : vector<1x8x8xf32>
    %cst_45 = arith.constant dense<0.000000e+00> : vector<1x8xf32>
    %120 = vector.multi_reduction <add>, %119, %cst_45 [2] : vector<1x8x8xf32> to vector<1x8xf32>
    %121 = vector.shape_cast %120 : vector<1x8xf32> to vector<1x8x1xf32>
    %122 = vector.broadcast %121 : vector<1x8x1xf32> to vector<1x8x8xf32>
    %123 = arith.divf %119, %122 : vector<1x8x8xf32>
    %124 = arith.truncf %123 : vector<1x8x8xf32> to vector<1x8x8xbf16>
    "tpu.trace_start"() <{level = 10 : i32, message = "bqk,bkd->bqd"}> : () -> ()
    %cst_46 = arith.constant dense<0.000000e+00> : vector<1x8x48xf32>
    %125 = tpu.matmul %124, %107, %cst_46 {dimension_numbers = #tpu.dot_dimension_numbers<[2], [1], [1], [2], [0, 0, 0, 1, 1, 2], [0], [0]>} : vector<1x8x8xbf16>, vector<1x8x48xbf16>, vector<1x8x48xf32> -> vector<1x8x48xf32>
    "tpu.trace_stop"() : () -> ()
    %126 = vector.extract_strided_slice %98 {offsets = [0, 48], sizes = [8, 48], strides = [1, 1]} : vector<8x1152xf32> to vector<8x48xf32>
    %127 = vector.shape_cast %126 : vector<8x48xf32> to vector<1x8x48xf32>
    %128 = arith.truncf %127 : vector<1x8x48xf32> to vector<1x8x48xbf16>
    %129 = vector.extract_strided_slice %98 {offsets = [0, 432], sizes = [8, 48], strides = [1, 1]} : vector<8x1152xf32> to vector<8x48xf32>
    %130 = vector.shape_cast %129 : vector<8x48xf32> to vector<1x8x48xf32>
    %131 = arith.truncf %130 : vector<1x8x48xf32> to vector<1x8x48xbf16>
    %132 = vector.extract_strided_slice %98 {offsets = [0, 816], sizes = [8, 48], strides = [1, 1]} : vector<8x1152xf32> to vector<8x48xf32>
    %133 = vector.shape_cast %132 : vector<8x48xf32> to vector<1x8x48xf32>
    %134 = arith.truncf %133 : vector<1x8x48xf32> to vector<1x8x48xbf16>
    "tpu.trace_start"() <{level = 10 : i32, message = "bqd,bkd->bqk"}> : () -> ()
    %cst_47 = arith.constant dense<0.000000e+00> : vector<1x8x8xf32>
    %135 = tpu.matmul %128, %131, %cst_47 {dimension_numbers = #tpu.dot_dimension_numbers<[2], [2], [1], [1], [0, 0, 0, 1, 1, 1], [0], [0]>} : vector<1x8x48xbf16>, vector<1x8x48xbf16>, vector<1x8x8xf32> -> vector<1x8x8xf32>
    "tpu.trace_stop"() : () -> ()
    %cst_48 = arith.constant 0.144337565 : f32
    %136 = vector.broadcast %cst_48 : f32 to vector<1x8x8xf32>
    %137 = arith.mulf %135, %136 : vector<1x8x8xf32>
    %cst_49 = arith.constant 3.275200e+04 : f32
    %138 = vector.shape_cast %11 : vector<1x1x8xi1> to vector<1x1x8xi1>
    %139 = vector.broadcast %138 : vector<1x1x8xi1> to vector<1x8x8xi1>
    %140 = vector.broadcast %cst_49 : f32 to vector<1x8x8xf32>
    %141 = arith.select %139, %140, %137 : vector<1x8x8xi1>, vector<1x8x8xf32>
    %cst_50 = arith.constant dense<0xFF800000> : vector<1x8xf32>
    %142 = vector.multi_reduction <maximumf>, %141, %cst_50 [2] : vector<1x8x8xf32> to vector<1x8xf32>
    %143 = vector.shape_cast %142 : vector<1x8xf32> to vector<1x8x1xf32>
    %144 = vector.broadcast %143 : vector<1x8x1xf32> to vector<1x8x8xf32>
    %145 = arith.subf %141, %144 : vector<1x8x8xf32>
    %146 = math.exp %145 : vector<1x8x8xf32>
    %cst_51 = arith.constant dense<0.000000e+00> : vector<1x8xf32>
    %147 = vector.multi_reduction <add>, %146, %cst_51 [2] : vector<1x8x8xf32> to vector<1x8xf32>
    %148 = vector.shape_cast %147 : vector<1x8xf32> to vector<1x8x1xf32>
    %149 = vector.broadcast %148 : vector<1x8x1xf32> to vector<1x8x8xf32>
    %150 = arith.divf %146, %149 : vector<1x8x8xf32>
    %151 = arith.truncf %150 : vector<1x8x8xf32> to vector<1x8x8xbf16>
    "tpu.trace_start"() <{level = 10 : i32, message = "bqk,bkd->bqd"}> : () -> ()
    %cst_52 = arith.constant dense<0.000000e+00> : vector<1x8x48xf32>
    %152 = tpu.matmul %151, %134, %cst_52 {dimension_numbers = #tpu.dot_dimension_numbers<[2], [1], [1], [2], [0, 0, 0, 1, 1, 2], [0], [0]>} : vector<1x8x8xbf16>, vector<1x8x48xbf16>, vector<1x8x48xf32> -> vector<1x8x48xf32>
    "tpu.trace_stop"() : () -> ()
    %153 = vector.extract_strided_slice %98 {offsets = [0, 96], sizes = [8, 48], strides = [1, 1]} : vector<8x1152xf32> to vector<8x48xf32>
    %154 = vector.shape_cast %153 : vector<8x48xf32> to vector<1x8x48xf32>
    %155 = arith.truncf %154 : vector<1x8x48xf32> to vector<1x8x48xbf16>
    %156 = vector.extract_strided_slice %98 {offsets = [0, 480], sizes = [8, 48], strides = [1, 1]} : vector<8x1152xf32> to vector<8x48xf32>
    %157 = vector.shape_cast %156 : vector<8x48xf32> to vector<1x8x48xf32>
    %158 = arith.truncf %157 : vector<1x8x48xf32> to vector<1x8x48xbf16>
    %159 = vector.extract_strided_slice %98 {offsets = [0, 864], sizes = [8, 48], strides = [1, 1]} : vector<8x1152xf32> to vector<8x48xf32>
    %160 = vector.shape_cast %159 : vector<8x48xf32> to vector<1x8x48xf32>
    %161 = arith.truncf %160 : vector<1x8x48xf32> to vector<1x8x48xbf16>
    "tpu.trace_start"() <{level = 10 : i32, message = "bqd,bkd->bqk"}> : () -> ()
    %cst_53 = arith.constant dense<0.000000e+00> : vector<1x8x8xf32>
    %162 = tpu.matmul %155, %158, %cst_53 {dimension_numbers = #tpu.dot_dimension_numbers<[2], [2], [1], [1], [0, 0, 0, 1, 1, 1], [0], [0]>} : vector<1x8x48xbf16>, vector<1x8x48xbf16>, vector<1x8x8xf32> -> vector<1x8x8xf32>
    "tpu.trace_stop"() : () -> ()
    %cst_54 = arith.constant 0.144337565 : f32
    %163 = vector.broadcast %cst_54 : f32 to vector<1x8x8xf32>
    %164 = arith.mulf %162, %163 : vector<1x8x8xf32>
    %cst_55 = arith.constant 3.275200e+04 : f32
    %165 = vector.shape_cast %11 : vector<1x1x8xi1> to vector<1x1x8xi1>
    %166 = vector.broadcast %165 : vector<1x1x8xi1> to vector<1x8x8xi1>
    %167 = vector.broadcast %cst_55 : f32 to vector<1x8x8xf32>
    %168 = arith.select %166, %167, %164 : vector<1x8x8xi1>, vector<1x8x8xf32>
    %cst_56 = arith.constant dense<0xFF800000> : vector<1x8xf32>
    %169 = vector.multi_reduction <maximumf>, %168, %cst_56 [2] : vector<1x8x8xf32> to vector<1x8xf32>
    %170 = vector.shape_cast %169 : vector<1x8xf32> to vector<1x8x1xf32>
    %171 = vector.broadcast %170 : vector<1x8x1xf32> to vector<1x8x8xf32>
    %172 = arith.subf %168, %171 : vector<1x8x8xf32>
    %173 = math.exp %172 : vector<1x8x8xf32>
    %cst_57 = arith.constant dense<0.000000e+00> : vector<1x8xf32>
    %174 = vector.multi_reduction <add>, %173, %cst_57 [2] : vector<1x8x8xf32> to vector<1x8xf32>
    %175 = vector.shape_cast %174 : vector<1x8xf32> to vector<1x8x1xf32>
    %176 = vector.broadcast %175 : vector<1x8x1xf32> to vector<1x8x8xf32>
    %177 = arith.divf %173, %176 : vector<1x8x8xf32>
    %178 = arith.truncf %177 : vector<1x8x8xf32> to vector<1x8x8xbf16>
    "tpu.trace_start"() <{level = 10 : i32, message = "bqk,bkd->bqd"}> : () -> ()
    %cst_58 = arith.constant dense<0.000000e+00> : vector<1x8x48xf32>
    %179 = tpu.matmul %178, %161, %cst_58 {dimension_numbers = #tpu.dot_dimension_numbers<[2], [1], [1], [2], [0, 0, 0, 1, 1, 2], [0], [0]>} : vector<1x8x8xbf16>, vector<1x8x48xbf16>, vector<1x8x48xf32> -> vector<1x8x48xf32>
    "tpu.trace_stop"() : () -> ()
    %180 = vector.extract_strided_slice %98 {offsets = [0, 144], sizes = [8, 48], strides = [1, 1]} : vector<8x1152xf32> to vector<8x48xf32>
    %181 = vector.shape_cast %180 : vector<8x48xf32> to vector<1x8x48xf32>
    %182 = arith.truncf %181 : vector<1x8x48xf32> to vector<1x8x48xbf16>
    %183 = vector.extract_strided_slice %98 {offsets = [0, 528], sizes = [8, 48], strides = [1, 1]} : vector<8x1152xf32> to vector<8x48xf32>
    %184 = vector.shape_cast %183 : vector<8x48xf32> to vector<1x8x48xf32>
    %185 = arith.truncf %184 : vector<1x8x48xf32> to vector<1x8x48xbf16>
    %186 = vector.extract_strided_slice %98 {offsets = [0, 912], sizes = [8, 48], strides = [1, 1]} : vector<8x1152xf32> to vector<8x48xf32>
    %187 = vector.shape_cast %186 : vector<8x48xf32> to vector<1x8x48xf32>
    %188 = arith.truncf %187 : vector<1x8x48xf32> to vector<1x8x48xbf16>
    "tpu.trace_start"() <{level = 10 : i32, message = "bqd,bkd->bqk"}> : () -> ()
    %cst_59 = arith.constant dense<0.000000e+00> : vector<1x8x8xf32>
    %189 = tpu.matmul %182, %185, %cst_59 {dimension_numbers = #tpu.dot_dimension_numbers<[2], [2], [1], [1], [0, 0, 0, 1, 1, 1], [0], [0]>} : vector<1x8x48xbf16>, vector<1x8x48xbf16>, vector<1x8x8xf32> -> vector<1x8x8xf32>
    "tpu.trace_stop"() : () -> ()
    %cst_60 = arith.constant 0.144337565 : f32
    %190 = vector.broadcast %cst_60 : f32 to vector<1x8x8xf32>
    %191 = arith.mulf %189, %190 : vector<1x8x8xf32>
    %cst_61 = arith.constant 3.275200e+04 : f32
    %192 = vector.shape_cast %11 : vector<1x1x8xi1> to vector<1x1x8xi1>
    %193 = vector.broadcast %192 : vector<1x1x8xi1> to vector<1x8x8xi1>
    %194 = vector.broadcast %cst_61 : f32 to vector<1x8x8xf32>
    %195 = arith.select %193, %194, %191 : vector<1x8x8xi1>, vector<1x8x8xf32>
    %cst_62 = arith.constant dense<0xFF800000> : vector<1x8xf32>
    %196 = vector.multi_reduction <maximumf>, %195, %cst_62 [2] : vector<1x8x8xf32> to vector<1x8xf32>
    %197 = vector.shape_cast %196 : vector<1x8xf32> to vector<1x8x1xf32>
    %198 = vector.broadcast %197 : vector<1x8x1xf32> to vector<1x8x8xf32>
    %199 = arith.subf %195, %198 : vector<1x8x8xf32>
    %200 = math.exp %199 : vector<1x8x8xf32>
    %cst_63 = arith.constant dense<0.000000e+00> : vector<1x8xf32>
    %201 = vector.multi_reduction <add>, %200, %cst_63 [2] : vector<1x8x8xf32> to vector<1x8xf32>
    %202 = vector.shape_cast %201 : vector<1x8xf32> to vector<1x8x1xf32>
    %203 = vector.broadcast %202 : vector<1x8x1xf32> to vector<1x8x8xf32>
    %204 = arith.divf %200, %203 : vector<1x8x8xf32>
    %205 = arith.truncf %204 : vector<1x8x8xf32> to vector<1x8x8xbf16>
    "tpu.trace_start"() <{level = 10 : i32, message = "bqk,bkd->bqd"}> : () -> ()
    %cst_64 = arith.constant dense<0.000000e+00> : vector<1x8x48xf32>
    %206 = tpu.matmul %205, %188, %cst_64 {dimension_numbers = #tpu.dot_dimension_numbers<[2], [1], [1], [2], [0, 0, 0, 1, 1, 2], [0], [0]>} : vector<1x8x8xbf16>, vector<1x8x48xbf16>, vector<1x8x48xf32> -> vector<1x8x48xf32>
    "tpu.trace_stop"() : () -> ()
    %207 = vector.extract_strided_slice %98 {offsets = [0, 192], sizes = [8, 48], strides = [1, 1]} : vector<8x1152xf32> to vector<8x48xf32>
    %208 = vector.shape_cast %207 : vector<8x48xf32> to vector<1x8x48xf32>
    %209 = arith.truncf %208 : vector<1x8x48xf32> to vector<1x8x48xbf16>
    %210 = vector.extract_strided_slice %98 {offsets = [0, 576], sizes = [8, 48], strides = [1, 1]} : vector<8x1152xf32> to vector<8x48xf32>
    %211 = vector.shape_cast %210 : vector<8x48xf32> to vector<1x8x48xf32>
    %212 = arith.truncf %211 : vector<1x8x48xf32> to vector<1x8x48xbf16>
    %213 = vector.extract_strided_slice %98 {offsets = [0, 960], sizes = [8, 48], strides = [1, 1]} : vector<8x1152xf32> to vector<8x48xf32>
    %214 = vector.shape_cast %213 : vector<8x48xf32> to vector<1x8x48xf32>
    %215 = arith.truncf %214 : vector<1x8x48xf32> to vector<1x8x48xbf16>
    "tpu.trace_start"() <{level = 10 : i32, message = "bqd,bkd->bqk"}> : () -> ()
    %cst_65 = arith.constant dense<0.000000e+00> : vector<1x8x8xf32>
    %216 = tpu.matmul %209, %212, %cst_65 {dimension_numbers = #tpu.dot_dimension_numbers<[2], [2], [1], [1], [0, 0, 0, 1, 1, 1], [0], [0]>} : vector<1x8x48xbf16>, vector<1x8x48xbf16>, vector<1x8x8xf32> -> vector<1x8x8xf32>
    "tpu.trace_stop"() : () -> ()
    %cst_66 = arith.constant 0.144337565 : f32
    %217 = vector.broadcast %cst_66 : f32 to vector<1x8x8xf32>
    %218 = arith.mulf %216, %217 : vector<1x8x8xf32>
    %cst_67 = arith.constant 3.275200e+04 : f32
    %219 = vector.shape_cast %11 : vector<1x1x8xi1> to vector<1x1x8xi1>
    %220 = vector.broadcast %219 : vector<1x1x8xi1> to vector<1x8x8xi1>
    %221 = vector.broadcast %cst_67 : f32 to vector<1x8x8xf32>
    %222 = arith.select %220, %221, %218 : vector<1x8x8xi1>, vector<1x8x8xf32>
    %cst_68 = arith.constant dense<0xFF800000> : vector<1x8xf32>
    %223 = vector.multi_reduction <maximumf>, %222, %cst_68 [2] : vector<1x8x8xf32> to vector<1x8xf32>
    %224 = vector.shape_cast %223 : vector<1x8xf32> to vector<1x8x1xf32>
    %225 = vector.broadcast %224 : vector<1x8x1xf32> to vector<1x8x8xf32>
    %226 = arith.subf %222, %225 : vector<1x8x8xf32>
    %227 = math.exp %226 : vector<1x8x8xf32>
    %cst_69 = arith.constant dense<0.000000e+00> : vector<1x8xf32>
    %228 = vector.multi_reduction <add>, %227, %cst_69 [2] : vector<1x8x8xf32> to vector<1x8xf32>
    %229 = vector.shape_cast %228 : vector<1x8xf32> to vector<1x8x1xf32>
    %230 = vector.broadcast %229 : vector<1x8x1xf32> to vector<1x8x8xf32>
    %231 = arith.divf %227, %230 : vector<1x8x8xf32>
    %232 = arith.truncf %231 : vector<1x8x8xf32> to vector<1x8x8xbf16>
    "tpu.trace_start"() <{level = 10 : i32, message = "bqk,bkd->bqd"}> : () -> ()
    %cst_70 = arith.constant dense<0.000000e+00> : vector<1x8x48xf32>
    %233 = tpu.matmul %232, %215, %cst_70 {dimension_numbers = #tpu.dot_dimension_numbers<[2], [1], [1], [2], [0, 0, 0, 1, 1, 2], [0], [0]>} : vector<1x8x8xbf16>, vector<1x8x48xbf16>, vector<1x8x48xf32> -> vector<1x8x48xf32>
    "tpu.trace_stop"() : () -> ()
    %234 = vector.extract_strided_slice %98 {offsets = [0, 240], sizes = [8, 48], strides = [1, 1]} : vector<8x1152xf32> to vector<8x48xf32>
    %235 = vector.shape_cast %234 : vector<8x48xf32> to vector<1x8x48xf32>
    %236 = arith.truncf %235 : vector<1x8x48xf32> to vector<1x8x48xbf16>
    %237 = vector.extract_strided_slice %98 {offsets = [0, 624], sizes = [8, 48], strides = [1, 1]} : vector<8x1152xf32> to vector<8x48xf32>
    %238 = vector.shape_cast %237 : vector<8x48xf32> to vector<1x8x48xf32>
    %239 = arith.truncf %238 : vector<1x8x48xf32> to vector<1x8x48xbf16>
    %240 = vector.extract_strided_slice %98 {offsets = [0, 1008], sizes = [8, 48], strides = [1, 1]} : vector<8x1152xf32> to vector<8x48xf32>
    %241 = vector.shape_cast %240 : vector<8x48xf32> to vector<1x8x48xf32>
    %242 = arith.truncf %241 : vector<1x8x48xf32> to vector<1x8x48xbf16>
    "tpu.trace_start"() <{level = 10 : i32, message = "bqd,bkd->bqk"}> : () -> ()
    %cst_71 = arith.constant dense<0.000000e+00> : vector<1x8x8xf32>
    %243 = tpu.matmul %236, %239, %cst_71 {dimension_numbers = #tpu.dot_dimension_numbers<[2], [2], [1], [1], [0, 0, 0, 1, 1, 1], [0], [0]>} : vector<1x8x48xbf16>, vector<1x8x48xbf16>, vector<1x8x8xf32> -> vector<1x8x8xf32>
    "tpu.trace_stop"() : () -> ()
    %cst_72 = arith.constant 0.144337565 : f32
    %244 = vector.broadcast %cst_72 : f32 to vector<1x8x8xf32>
    %245 = arith.mulf %243, %244 : vector<1x8x8xf32>
    %cst_73 = arith.constant 3.275200e+04 : f32
    %246 = vector.shape_cast %11 : vector<1x1x8xi1> to vector<1x1x8xi1>
    %247 = vector.broadcast %246 : vector<1x1x8xi1> to vector<1x8x8xi1>
    %248 = vector.broadcast %cst_73 : f32 to vector<1x8x8xf32>
    %249 = arith.select %247, %248, %245 : vector<1x8x8xi1>, vector<1x8x8xf32>
    %cst_74 = arith.constant dense<0xFF800000> : vector<1x8xf32>
    %250 = vector.multi_reduction <maximumf>, %249, %cst_74 [2] : vector<1x8x8xf32> to vector<1x8xf32>
    %251 = vector.shape_cast %250 : vector<1x8xf32> to vector<1x8x1xf32>
    %252 = vector.broadcast %251 : vector<1x8x1xf32> to vector<1x8x8xf32>
    %253 = arith.subf %249, %252 : vector<1x8x8xf32>
    %254 = math.exp %253 : vector<1x8x8xf32>
    %cst_75 = arith.constant dense<0.000000e+00> : vector<1x8xf32>
    %255 = vector.multi_reduction <add>, %254, %cst_75 [2] : vector<1x8x8xf32> to vector<1x8xf32>
    %256 = vector.shape_cast %255 : vector<1x8xf32> to vector<1x8x1xf32>
    %257 = vector.broadcast %256 : vector<1x8x1xf32> to vector<1x8x8xf32>
    %258 = arith.divf %254, %257 : vector<1x8x8xf32>
    %259 = arith.truncf %258 : vector<1x8x8xf32> to vector<1x8x8xbf16>
    "tpu.trace_start"() <{level = 10 : i32, message = "bqk,bkd->bqd"}> : () -> ()
    %cst_76 = arith.constant dense<0.000000e+00> : vector<1x8x48xf32>
    %260 = tpu.matmul %259, %242, %cst_76 {dimension_numbers = #tpu.dot_dimension_numbers<[2], [1], [1], [2], [0, 0, 0, 1, 1, 2], [0], [0]>} : vector<1x8x8xbf16>, vector<1x8x48xbf16>, vector<1x8x48xf32> -> vector<1x8x48xf32>
    "tpu.trace_stop"() : () -> ()
    %261 = vector.extract_strided_slice %98 {offsets = [0, 288], sizes = [8, 48], strides = [1, 1]} : vector<8x1152xf32> to vector<8x48xf32>
    %262 = vector.shape_cast %261 : vector<8x48xf32> to vector<1x8x48xf32>
    %263 = arith.truncf %262 : vector<1x8x48xf32> to vector<1x8x48xbf16>
    %264 = vector.extract_strided_slice %98 {offsets = [0, 672], sizes = [8, 48], strides = [1, 1]} : vector<8x1152xf32> to vector<8x48xf32>
    %265 = vector.shape_cast %264 : vector<8x48xf32> to vector<1x8x48xf32>
    %266 = arith.truncf %265 : vector<1x8x48xf32> to vector<1x8x48xbf16>
    %267 = vector.extract_strided_slice %98 {offsets = [0, 1056], sizes = [8, 48], strides = [1, 1]} : vector<8x1152xf32> to vector<8x48xf32>
    %268 = vector.shape_cast %267 : vector<8x48xf32> to vector<1x8x48xf32>
    %269 = arith.truncf %268 : vector<1x8x48xf32> to vector<1x8x48xbf16>
    "tpu.trace_start"() <{level = 10 : i32, message = "bqd,bkd->bqk"}> : () -> ()
    %cst_77 = arith.constant dense<0.000000e+00> : vector<1x8x8xf32>
    %270 = tpu.matmul %263, %266, %cst_77 {dimension_numbers = #tpu.dot_dimension_numbers<[2], [2], [1], [1], [0, 0, 0, 1, 1, 1], [0], [0]>} : vector<1x8x48xbf16>, vector<1x8x48xbf16>, vector<1x8x8xf32> -> vector<1x8x8xf32>
    "tpu.trace_stop"() : () -> ()
    %cst_78 = arith.constant 0.144337565 : f32
    %271 = vector.broadcast %cst_78 : f32 to vector<1x8x8xf32>
    %272 = arith.mulf %270, %271 : vector<1x8x8xf32>
    %cst_79 = arith.constant 3.275200e+04 : f32
    %273 = vector.shape_cast %11 : vector<1x1x8xi1> to vector<1x1x8xi1>
    %274 = vector.broadcast %273 : vector<1x1x8xi1> to vector<1x8x8xi1>
    %275 = vector.broadcast %cst_79 : f32 to vector<1x8x8xf32>
    %276 = arith.select %274, %275, %272 : vector<1x8x8xi1>, vector<1x8x8xf32>
    %cst_80 = arith.constant dense<0xFF800000> : vector<1x8xf32>
    %277 = vector.multi_reduction <maximumf>, %276, %cst_80 [2] : vector<1x8x8xf32> to vector<1x8xf32>
    %278 = vector.shape_cast %277 : vector<1x8xf32> to vector<1x8x1xf32>
    %279 = vector.broadcast %278 : vector<1x8x1xf32> to vector<1x8x8xf32>
    %280 = arith.subf %276, %279 : vector<1x8x8xf32>
    %281 = math.exp %280 : vector<1x8x8xf32>
    %cst_81 = arith.constant dense<0.000000e+00> : vector<1x8xf32>
    %282 = vector.multi_reduction <add>, %281, %cst_81 [2] : vector<1x8x8xf32> to vector<1x8xf32>
    %283 = vector.shape_cast %282 : vector<1x8xf32> to vector<1x8x1xf32>
    %284 = vector.broadcast %283 : vector<1x8x1xf32> to vector<1x8x8xf32>
    %285 = arith.divf %281, %284 : vector<1x8x8xf32>
    %286 = arith.truncf %285 : vector<1x8x8xf32> to vector<1x8x8xbf16>
    "tpu.trace_start"() <{level = 10 : i32, message = "bqk,bkd->bqd"}> : () -> ()
    %cst_82 = arith.constant dense<0.000000e+00> : vector<1x8x48xf32>
    %287 = tpu.matmul %286, %269, %cst_82 {dimension_numbers = #tpu.dot_dimension_numbers<[2], [1], [1], [2], [0, 0, 0, 1, 1, 2], [0], [0]>} : vector<1x8x8xbf16>, vector<1x8x48xbf16>, vector<1x8x48xf32> -> vector<1x8x48xf32>
    "tpu.trace_stop"() : () -> ()
    %288 = vector.extract_strided_slice %98 {offsets = [0, 336], sizes = [8, 48], strides = [1, 1]} : vector<8x1152xf32> to vector<8x48xf32>
    %289 = vector.shape_cast %288 : vector<8x48xf32> to vector<1x8x48xf32>
    %290 = arith.truncf %289 : vector<1x8x48xf32> to vector<1x8x48xbf16>
    %291 = vector.extract_strided_slice %98 {offsets = [0, 720], sizes = [8, 48], strides = [1, 1]} : vector<8x1152xf32> to vector<8x48xf32>
    %292 = vector.shape_cast %291 : vector<8x48xf32> to vector<1x8x48xf32>
    %293 = arith.truncf %292 : vector<1x8x48xf32> to vector<1x8x48xbf16>
    %294 = vector.extract_strided_slice %98 {offsets = [0, 1104], sizes = [8, 48], strides = [1, 1]} : vector<8x1152xf32> to vector<8x48xf32>
    %295 = vector.shape_cast %294 : vector<8x48xf32> to vector<1x8x48xf32>
    %296 = arith.truncf %295 : vector<1x8x48xf32> to vector<1x8x48xbf16>
    "tpu.trace_start"() <{level = 10 : i32, message = "bqd,bkd->bqk"}> : () -> ()
    %cst_83 = arith.constant dense<0.000000e+00> : vector<1x8x8xf32>
    %297 = tpu.matmul %290, %293, %cst_83 {dimension_numbers = #tpu.dot_dimension_numbers<[2], [2], [1], [1], [0, 0, 0, 1, 1, 1], [0], [0]>} : vector<1x8x48xbf16>, vector<1x8x48xbf16>, vector<1x8x8xf32> -> vector<1x8x8xf32>
    "tpu.trace_stop"() : () -> ()
    %cst_84 = arith.constant 0.144337565 : f32
    %298 = vector.broadcast %cst_84 : f32 to vector<1x8x8xf32>
    %299 = arith.mulf %297, %298 : vector<1x8x8xf32>
    %cst_85 = arith.constant 3.275200e+04 : f32
    %300 = vector.shape_cast %11 : vector<1x1x8xi1> to vector<1x1x8xi1>
    %301 = vector.broadcast %300 : vector<1x1x8xi1> to vector<1x8x8xi1>
    %302 = vector.broadcast %cst_85 : f32 to vector<1x8x8xf32>
    %303 = arith.select %301, %302, %299 : vector<1x8x8xi1>, vector<1x8x8xf32>
    %cst_86 = arith.constant dense<0xFF800000> : vector<1x8xf32>
    %304 = vector.multi_reduction <maximumf>, %303, %cst_86 [2] : vector<1x8x8xf32> to vector<1x8xf32>
    %305 = vector.shape_cast %304 : vector<1x8xf32> to vector<1x8x1xf32>
    %306 = vector.broadcast %305 : vector<1x8x1xf32> to vector<1x8x8xf32>
    %307 = arith.subf %303, %306 : vector<1x8x8xf32>
    %308 = math.exp %307 : vector<1x8x8xf32>
    %cst_87 = arith.constant dense<0.000000e+00> : vector<1x8xf32>
    %309 = vector.multi_reduction <add>, %308, %cst_87 [2] : vector<1x8x8xf32> to vector<1x8xf32>
    %310 = vector.shape_cast %309 : vector<1x8xf32> to vector<1x8x1xf32>
    %311 = vector.broadcast %310 : vector<1x8x1xf32> to vector<1x8x8xf32>
    %312 = arith.divf %308, %311 : vector<1x8x8xf32>
    %313 = arith.truncf %312 : vector<1x8x8xf32> to vector<1x8x8xbf16>
    "tpu.trace_start"() <{level = 10 : i32, message = "bqk,bkd->bqd"}> : () -> ()
    %cst_88 = arith.constant dense<0.000000e+00> : vector<1x8x48xf32>
    %314 = tpu.matmul %313, %296, %cst_88 {dimension_numbers = #tpu.dot_dimension_numbers<[2], [1], [1], [2], [0, 0, 0, 1, 1, 2], [0], [0]>} : vector<1x8x8xbf16>, vector<1x8x48xbf16>, vector<1x8x48xf32> -> vector<1x8x48xf32>
    "tpu.trace_stop"() : () -> ()
    %315 = tpu.concatenate %125, %152, %179, %206, %233, %260, %287, %314 in 2 : vector<1x8x48xf32>, vector<1x8x48xf32>, vector<1x8x48xf32>, vector<1x8x48xf32>, vector<1x8x48xf32>, vector<1x8x48xf32>, vector<1x8x48xf32>, vector<1x8x48xf32> -> vector<1x8x384xf32>
    %316 = vector.shape_cast %315 : vector<1x8x384xf32> to vector<8x384xf32>
    %317 = arith.truncf %316 : vector<8x384xf32> to vector<8x384xbf16>
    %c0_89 = arith.constant 0 : index
    %c0_90 = arith.constant 0 : index
    %318 = vector.load %arg10[%c0_89, %c0_90] : memref<384x384xbf16, #tpu.memory_space<vmem>>, vector<384x384xbf16>
    %cst_91 = arith.constant dense<0.000000e+00> : vector<8x384xf32>
    %319 = tpu.matmul %317, %318, %cst_91 {dimension_numbers = #tpu.dot_dimension_numbers<[1], [0], [0], [1], [0, 0, 1, 1], [], []>} : vector<8x384xbf16>, vector<384x384xbf16>, vector<8x384xf32> -> vector<8x384xf32>
    %c0_92 = arith.constant 0 : index
    %c0_93 = arith.constant 0 : index
    %320 = vector.load %arg11[%c0_92, %c0_93] : memref<1x384xf32, #tpu.memory_space<vmem>>, vector<1x384xf32>
    %321 = vector.broadcast %320 : vector<1x384xf32> to vector<8x384xf32>
    %322 = arith.addf %319, %321 : vector<8x384xf32>
    %323 = arith.addf %322, %92 : vector<8x384xf32>
    %c0_94 = arith.constant 0 : index
    %c0_95 = arith.constant 0 : index
    %324 = vector.load %arg12[%c0_94, %c0_95] : memref<1x384xf32, #tpu.memory_space<vmem>>, vector<1x384xf32>
    %c0_96 = arith.constant 0 : index
    %c0_97 = arith.constant 0 : index
    %325 = vector.load %arg13[%c0_96, %c0_97] : memref<1x384xf32, #tpu.memory_space<vmem>>, vector<1x384xf32>
    %cst_98 = arith.constant dense<0.000000e+00> : vector<8xf32>
    %326 = vector.multi_reduction <add>, %323, %cst_98 [1] : vector<8x384xf32> to vector<8xf32>
    %327 = vector.shape_cast %326 : vector<8xf32> to vector<8x1xf32>
    %cst_99 = arith.constant 3.840000e+02 : f32
    %328 = vector.broadcast %cst_99 : f32 to vector<8x1xf32>
    %329 = arith.divf %327, %328 : vector<8x1xf32>
    %330 = vector.broadcast %329 : vector<8x1xf32> to vector<8x384xf32>
    %331 = arith.subf %323, %330 : vector<8x384xf32>
    %332 = arith.mulf %331, %331 : vector<8x384xf32>
    %cst_100 = arith.constant dense<0.000000e+00> : vector<8xf32>
    %333 = vector.multi_reduction <add>, %332, %cst_100 [1] : vector<8x384xf32> to vector<8xf32>
    %334 = vector.shape_cast %333 : vector<8xf32> to vector<8x1xf32>
    %cst_101 = arith.constant 3.830000e+02 : f32
    %335 = vector.broadcast %cst_101 : f32 to vector<8x1xf32>
    %336 = arith.divf %334, %335 : vector<8x1xf32>
    %337 = math.sqrt %336 : vector<8x1xf32>
    %338 = vector.broadcast %324 : vector<1x384xf32> to vector<8x384xf32>
    %339 = arith.mulf %338, %331 : vector<8x384xf32>
    %cst_102 = arith.constant 9.99999997E-7 : f32
    %340 = vector.broadcast %cst_102 : f32 to vector<8x1xf32>
    %341 = arith.addf %337, %340 : vector<8x1xf32>
    %342 = vector.broadcast %341 : vector<8x1xf32> to vector<8x384xf32>
    %343 = arith.divf %339, %342 : vector<8x384xf32>
    %344 = vector.broadcast %325 : vector<1x384xf32> to vector<8x384xf32>
    %345 = arith.addf %343, %344 : vector<8x384xf32>
    %346 = arith.truncf %345 : vector<8x384xf32> to vector<8x384xbf16>
    %c0_103 = arith.constant 0 : index
    %c0_104 = arith.constant 0 : index
    %347 = vector.load %arg14[%c0_103, %c0_104] : memref<384x384xbf16, #tpu.memory_space<vmem>>, vector<384x384xbf16>
    %cst_105 = arith.constant dense<0.000000e+00> : vector<8x384xf32>
    %348 = tpu.matmul %346, %347, %cst_105 {dimension_numbers = #tpu.dot_dimension_numbers<[1], [0], [0], [1], [0, 0, 1, 1], [], []>} : vector<8x384xbf16>, vector<384x384xbf16>, vector<8x384xf32> -> vector<8x384xf32>
    %c0_106 = arith.constant 0 : index
    %c0_107 = arith.constant 0 : index
    %349 = vector.load %arg15[%c0_106, %c0_107] : memref<1x384xf32, #tpu.memory_space<vmem>>, vector<1x384xf32>
    %350 = vector.broadcast %349 : vector<1x384xf32> to vector<8x384xf32>
    %351 = arith.addf %348, %350 : vector<8x384xf32>
    %cst_108 = arith.constant 5.000000e-01 : f32
    %352 = vector.broadcast %cst_108 : f32 to vector<8x384xf32>
    %353 = arith.mulf %352, %351 : vector<8x384xf32>
    %cst_109 = arith.constant 1.41421354 : f32
    %354 = vector.broadcast %cst_109 : f32 to vector<8x384xf32>
    %355 = arith.divf %351, %354 : vector<8x384xf32>
    %cst_110 = arith.constant 0.000000e+00 : f32
    %356 = vector.broadcast %cst_110 : f32 to vector<8x384xf32>
    %357 = arith.cmpf oge, %355, %356 : vector<8x384xf32>
    %cst_111 = arith.constant 1.000000e+00 : f32
    %cst_112 = arith.constant -1.000000e+00 : f32
    %358 = vector.broadcast %cst_111 : f32 to vector<8x384xf32>
    %359 = vector.broadcast %cst_112 : f32 to vector<8x384xf32>
    %360 = arith.select %357, %358, %359 : vector<8x384xi1>, vector<8x384xf32>
    %361 = math.absf %355 : vector<8x384xf32>
    %cst_113 = arith.constant 0.327591091 : f32
    %362 = vector.broadcast %cst_113 : f32 to vector<8x384xf32>
    %363 = arith.mulf %362, %361 : vector<8x384xf32>
    %cst_114 = arith.constant 1.000000e+00 : f32
    %364 = vector.broadcast %cst_114 : f32 to vector<8x384xf32>
    %365 = arith.addf %364, %363 : vector<8x384xf32>
    %cst_115 = arith.constant 1.000000e+00 : f32
    %366 = vector.broadcast %cst_115 : f32 to vector<8x384xf32>
    %367 = arith.divf %366, %365 : vector<8x384xf32>
    %cst_116 = arith.constant 1.06140542 : f32
    %368 = vector.broadcast %cst_116 : f32 to vector<8x384xf32>
    %369 = arith.mulf %368, %367 : vector<8x384xf32>
    %cst_117 = arith.constant -1.45315206 : f32
    %370 = vector.broadcast %cst_117 : f32 to vector<8x384xf32>
    %371 = arith.addf %369, %370 : vector<8x384xf32>
    %372 = arith.mulf %371, %367 : vector<8x384xf32>
    %cst_118 = arith.constant 1.42141378 : f32
    %373 = vector.broadcast %cst_118 : f32 to vector<8x384xf32>
    %374 = arith.addf %372, %373 : vector<8x384xf32>
    %375 = arith.mulf %374, %367 : vector<8x384xf32>
    %cst_119 = arith.constant -0.284496725 : f32
    %376 = vector.broadcast %cst_119 : f32 to vector<8x384xf32>
    %377 = arith.addf %375, %376 : vector<8x384xf32>
    %378 = arith.mulf %377, %367 : vector<8x384xf32>
    %cst_120 = arith.constant 0.254829586 : f32
    %379 = vector.broadcast %cst_120 : f32 to vector<8x384xf32>
    %380 = arith.addf %378, %379 : vector<8x384xf32>
    %381 = arith.mulf %380, %367 : vector<8x384xf32>
    %cst_121 = arith.constant 0.000000e+00 : f32
    %382 = vector.broadcast %cst_121 : f32 to vector<8x384xf32>
    %383 = arith.subf %382, %361 : vector<8x384xf32>
    %384 = arith.mulf %383, %361 : vector<8x384xf32>
    %385 = math.exp %384 : vector<8x384xf32>
    %386 = arith.mulf %381, %385 : vector<8x384xf32>
    %cst_122 = arith.constant 1.000000e+00 : f32
    %387 = vector.broadcast %cst_122 : f32 to vector<8x384xf32>
    %388 = arith.subf %387, %386 : vector<8x384xf32>
    %389 = arith.mulf %360, %388 : vector<8x384xf32>
    %cst_123 = arith.constant 1.000000e+00 : f32
    %390 = vector.broadcast %cst_123 : f32 to vector<8x384xf32>
    %391 = arith.addf %390, %389 : vector<8x384xf32>
    %392 = arith.mulf %353, %391 : vector<8x384xf32>
    %393 = arith.truncf %392 : vector<8x384xf32> to vector<8x384xbf16>
    %c0_124 = arith.constant 0 : index
    %c0_125 = arith.constant 0 : index
    %394 = vector.load %arg16[%c0_124, %c0_125] : memref<384x384xbf16, #tpu.memory_space<vmem>>, vector<384x384xbf16>
    %cst_126 = arith.constant dense<0.000000e+00> : vector<8x384xf32>
    %395 = tpu.matmul %393, %394, %cst_126 {dimension_numbers = #tpu.dot_dimension_numbers<[1], [0], [0], [1], [0, 0, 1, 1], [], []>} : vector<8x384xbf16>, vector<384x384xbf16>, vector<8x384xf32> -> vector<8x384xf32>
    %c0_127 = arith.constant 0 : index
    %c0_128 = arith.constant 0 : index
    %396 = vector.load %arg17[%c0_127, %c0_128] : memref<1x384xf32, #tpu.memory_space<vmem>>, vector<1x384xf32>
    %397 = vector.broadcast %396 : vector<1x384xf32> to vector<8x384xf32>
    %398 = arith.addf %395, %397 : vector<8x384xf32>
    %399 = arith.addf %398, %345 : vector<8x384xf32>
    %c0_129 = arith.constant 0 : index
    %c0_130 = arith.constant 0 : index
    %400 = vector.load %arg18[%c0_129, %c0_130] : memref<1x384xf32, #tpu.memory_space<vmem>>, vector<1x384xf32>
    %c0_131 = arith.constant 0 : index
    %c0_132 = arith.constant 0 : index
    %401 = vector.load %arg19[%c0_131, %c0_132] : memref<1x384xf32, #tpu.memory_space<vmem>>, vector<1x384xf32>
    %cst_133 = arith.constant dense<0.000000e+00> : vector<8xf32>
    %402 = vector.multi_reduction <add>, %399, %cst_133 [1] : vector<8x384xf32> to vector<8xf32>
    %403 = vector.shape_cast %402 : vector<8xf32> to vector<8x1xf32>
    %cst_134 = arith.constant 3.840000e+02 : f32
    %404 = vector.broadcast %cst_134 : f32 to vector<8x1xf32>
    %405 = arith.divf %403, %404 : vector<8x1xf32>
    %406 = vector.broadcast %405 : vector<8x1xf32> to vector<8x384xf32>
    %407 = arith.subf %399, %406 : vector<8x384xf32>
    %408 = arith.mulf %407, %407 : vector<8x384xf32>
    %cst_135 = arith.constant dense<0.000000e+00> : vector<8xf32>
    %409 = vector.multi_reduction <add>, %408, %cst_135 [1] : vector<8x384xf32> to vector<8xf32>
    %410 = vector.shape_cast %409 : vector<8xf32> to vector<8x1xf32>
    %cst_136 = arith.constant 3.830000e+02 : f32
    %411 = vector.broadcast %cst_136 : f32 to vector<8x1xf32>
    %412 = arith.divf %410, %411 : vector<8x1xf32>
    %413 = math.sqrt %412 : vector<8x1xf32>
    %414 = vector.broadcast %400 : vector<1x384xf32> to vector<8x384xf32>
    %415 = arith.mulf %414, %407 : vector<8x384xf32>
    %cst_137 = arith.constant 9.99999997E-7 : f32
    %416 = vector.broadcast %cst_137 : f32 to vector<8x1xf32>
    %417 = arith.addf %413, %416 : vector<8x1xf32>
    %418 = vector.broadcast %417 : vector<8x1xf32> to vector<8x384xf32>
    %419 = arith.divf %415, %418 : vector<8x384xf32>
    %420 = vector.broadcast %401 : vector<1x384xf32> to vector<8x384xf32>
    %421 = arith.addf %419, %420 : vector<8x384xf32>
    %422 = vector.shape_cast %421 : vector<8x384xf32> to vector<1x8x384xf32>
    %c0_138 = arith.constant 0 : index
    %c0_139 = arith.constant 0 : index
    %c0_140 = arith.constant 0 : index
    %423 = vector.load %arg24[%c0_138, %c0_139, %c0_140] : memref<1x8x384xf32, #tpu.memory_space<vmem>>, vector<1x8x384xf32>
    tpu.vector_store %arg24[%c0_138, %c0_139, %c0_140], %422 {strides = array<i32>} : memref<1x8x384xf32, #tpu.memory_space<vmem>>, vector<1x8x384xf32>,
    %424 = arith.truncf %421 : vector<8x384xf32> to vector<8x384xbf16>
    %c0_141 = arith.constant 0 : index
    %c0_142 = arith.constant 0 : index
    %425 = vector.load %arg20[%c0_141, %c0_142] : memref<384x768xbf16, #tpu.memory_space<vmem>>, vector<384x768xbf16>
    %cst_143 = arith.constant dense<0.000000e+00> : vector<8x768xf32>
    %426 = tpu.matmul %424, %425, %cst_143 {dimension_numbers = #tpu.dot_dimension_numbers<[1], [0], [0], [1], [0, 0, 1, 1], [], []>} : vector<8x384xbf16>, vector<384x768xbf16>, vector<8x768xf32> -> vector<8x768xf32>
    %c0_144 = arith.constant 0 : index
    %c0_145 = arith.constant 0 : index
    %427 = vector.load %arg21[%c0_144, %c0_145] : memref<1x768xf32, #tpu.memory_space<vmem>>, vector<1x768xf32>
    %428 = vector.broadcast %427 : vector<1x768xf32> to vector<8x768xf32>
    %429 = arith.addf %426, %428 : vector<8x768xf32>
    %cst_146 = arith.constant 5.000000e-01 : f32
    %430 = vector.broadcast %cst_146 : f32 to vector<8x768xf32>
    %431 = arith.mulf %430, %429 : vector<8x768xf32>
    %cst_147 = arith.constant 1.41421354 : f32
    %432 = vector.broadcast %cst_147 : f32 to vector<8x768xf32>
    %433 = arith.divf %429, %432 : vector<8x768xf32>
    %cst_148 = arith.constant 0.000000e+00 : f32
    %434 = vector.broadcast %cst_148 : f32 to vector<8x768xf32>
    %435 = arith.cmpf oge, %433, %434 : vector<8x768xf32>
    %cst_149 = arith.constant 1.000000e+00 : f32
    %cst_150 = arith.constant -1.000000e+00 : f32
    %436 = vector.broadcast %cst_149 : f32 to vector<8x768xf32>
    %437 = vector.broadcast %cst_150 : f32 to vector<8x768xf32>
    %438 = arith.select %435, %436, %437 : vector<8x768xi1>, vector<8x768xf32>
    %439 = math.absf %433 : vector<8x768xf32>
    %cst_151 = arith.constant 0.327591091 : f32
    %440 = vector.broadcast %cst_151 : f32 to vector<8x768xf32>
    %441 = arith.mulf %440, %439 : vector<8x768xf32>
    %cst_152 = arith.constant 1.000000e+00 : f32
    %442 = vector.broadcast %cst_152 : f32 to vector<8x768xf32>
    %443 = arith.addf %442, %441 : vector<8x768xf32>
    %cst_153 = arith.constant 1.000000e+00 : f32
    %444 = vector.broadcast %cst_153 : f32 to vector<8x768xf32>
    %445 = arith.divf %444, %443 : vector<8x768xf32>
    %cst_154 = arith.constant 1.06140542 : f32
    %446 = vector.broadcast %cst_154 : f32 to vector<8x768xf32>
    %447 = arith.mulf %446, %445 : vector<8x768xf32>
    %cst_155 = arith.constant -1.45315206 : f32
    %448 = vector.broadcast %cst_155 : f32 to vector<8x768xf32>
    %449 = arith.addf %447, %448 : vector<8x768xf32>
    %450 = arith.mulf %449, %445 : vector<8x768xf32>
    %cst_156 = arith.constant 1.42141378 : f32
    %451 = vector.broadcast %cst_156 : f32 to vector<8x768xf32>
    %452 = arith.addf %450, %451 : vector<8x768xf32>
    %453 = arith.mulf %452, %445 : vector<8x768xf32>
    %cst_157 = arith.constant -0.284496725 : f32
    %454 = vector.broadcast %cst_157 : f32 to vector<8x768xf32>
    %455 = arith.addf %453, %454 : vector<8x768xf32>
    %456 = arith.mulf %455, %445 : vector<8x768xf32>
    %cst_158 = arith.constant 0.254829586 : f32
    %457 = vector.broadcast %cst_158 : f32 to vector<8x768xf32>
    %458 = arith.addf %456, %457 : vector<8x768xf32>
    %459 = arith.mulf %458, %445 : vector<8x768xf32>
    %cst_159 = arith.constant 0.000000e+00 : f32
    %460 = vector.broadcast %cst_159 : f32 to vector<8x768xf32>
    %461 = arith.subf %460, %439 : vector<8x768xf32>
    %462 = arith.mulf %461, %439 : vector<8x768xf32>
    %463 = math.exp %462 : vector<8x768xf32>
    %464 = arith.mulf %459, %463 : vector<8x768xf32>
    %cst_160 = arith.constant 1.000000e+00 : f32
    %465 = vector.broadcast %cst_160 : f32 to vector<8x768xf32>
    %466 = arith.subf %465, %464 : vector<8x768xf32>
    %467 = arith.mulf %438, %466 : vector<8x768xf32>
    %cst_161 = arith.constant 1.000000e+00 : f32
    %468 = vector.broadcast %cst_161 : f32 to vector<8x768xf32>
    %469 = arith.addf %468, %467 : vector<8x768xf32>
    %470 = arith.mulf %431, %469 : vector<8x768xf32>
    %471 = vector.extract_strided_slice %470 {offsets = [0, 0], sizes = [8, 384], strides = [1, 1]} : vector<8x768xf32> to vector<8x384xf32>
    %472 = arith.truncf %471 : vector<8x384xf32> to vector<8x384xbf16>
    %c0_162 = arith.constant 0 : index
    %c0_163 = arith.constant 0 : index
    %c0_164 = arith.constant 0 : index
    %473 = vector.load %arg22[%c0_162, %c0_163, %c0_164] : memref<2x384x384xbf16, #tpu.memory_space<vmem>>, vector<1x384x384xbf16>
    %474 = vector.shape_cast %473 : vector<1x384x384xbf16> to vector<384x384xbf16>
    %cst_165 = arith.constant dense<0.000000e+00> : vector<8x384xf32>
    %475 = tpu.matmul %472, %474, %cst_165 {dimension_numbers = #tpu.dot_dimension_numbers<[1], [0], [0], [1], [0, 0, 1, 1], [], []>} : vector<8x384xbf16>, vector<384x384xbf16>, vector<8x384xf32> -> vector<8x384xf32>
    %c0_166 = arith.constant 0 : index
    %c0_167 = arith.constant 0 : index
    %c0_168 = arith.constant 0 : index
    %476 = vector.load %arg23[%c0_166, %c0_167, %c0_168] : memref<2x1x384xf32, #tpu.memory_space<vmem>>, vector<1x1x384xf32>
    %477 = vector.shape_cast %476 : vector<1x1x384xf32> to vector<1x384xf32>
    %478 = vector.broadcast %477 : vector<1x384xf32> to vector<8x384xf32>
    %479 = arith.addf %475, %478 : vector<8x384xf32>
    %480 = vector.shape_cast %479 : vector<8x384xf32> to vector<1x8x384xf32>
    %cst_169 = arith.constant 0.000000e+00 : f32
    %cst_170 = arith.constant 3.275200e+04 : f32
    %481 = arith.subf %cst_169, %cst_170 : f32
    %482 = vector.shape_cast %14 : vector<1x8x1xi1> to vector<1x8x1xi1>
    %483 = vector.broadcast %482 : vector<1x8x1xi1> to vector<1x8x384xi1>
    %484 = vector.broadcast %481 : f32 to vector<1x8x384xf32>
    %485 = arith.select %483, %484, %480 : vector<1x8x384xi1>, vector<1x8x384xf32>
    %cst_171 = arith.constant dense<0xFF800000> : vector<1x384xf32>
    %486 = vector.multi_reduction <maximumf>, %485, %cst_171 [1] : vector<1x8x384xf32> to vector<1x384xf32>
    %487 = vector.shape_cast %486 : vector<1x384xf32> to vector<1x1x384xf32>
    %488 = vector.broadcast %487 : vector<1x1x384xf32> to vector<1x8x384xf32>
    %489 = arith.subf %485, %488 : vector<1x8x384xf32>
    %490 = math.exp %489 : vector<1x8x384xf32>
    %cst_172 = arith.constant dense<0.000000e+00> : vector<1x384xf32>
    %491 = vector.multi_reduction <add>, %490, %cst_172 [1] : vector<1x8x384xf32> to vector<1x384xf32>
    %492 = vector.shape_cast %491 : vector<1x384xf32> to vector<1x1x384xf32>
    %493 = vector.broadcast %492 : vector<1x1x384xf32> to vector<1x8x384xf32>
    %494 = arith.divf %490, %493 : vector<1x8x384xf32>
    %495 = arith.mulf %494, %422 : vector<1x8x384xf32>
    %cst_173 = arith.constant dense<0.000000e+00> : vector<1x384xf32>
    %496 = vector.multi_reduction <add>, %495, %cst_173 [1] : vector<1x8x384xf32> to vector<1x384xf32>
    %497 = vector.extract_strided_slice %470 {offsets = [0, 384], sizes = [8, 384], strides = [1, 1]} : vector<8x768xf32> to vector<8x384xf32>
    %498 = arith.truncf %497 : vector<8x384xf32> to vector<8x384xbf16>
    %c1 = arith.constant 1 : index
    %c0_174 = arith.constant 0 : index
    %c0_175 = arith.constant 0 : index
    %499 = vector.load %arg22[%c1, %c0_174, %c0_175] : memref<2x384x384xbf16, #tpu.memory_space<vmem>>, vector<1x384x384xbf16>
    %500 = vector.shape_cast %499 : vector<1x384x384xbf16> to vector<384x384xbf16>
    %cst_176 = arith.constant dense<0.000000e+00> : vector<8x384xf32>
    %501 = tpu.matmul %498, %500, %cst_176 {dimension_numbers = #tpu.dot_dimension_numbers<[1], [0], [0], [1], [0, 0, 1, 1], [], []>} : vector<8x384xbf16>, vector<384x384xbf16>, vector<8x384xf32> -> vector<8x384xf32>
    %c1_177 = arith.constant 1 : index
    %c0_178 = arith.constant 0 : index
    %c0_179 = arith.constant 0 : index
    %502 = vector.load %arg23[%c1_177, %c0_178, %c0_179] : memref<2x1x384xf32, #tpu.memory_space<vmem>>, vector<1x1x384xf32>
    %503 = vector.shape_cast %502 : vector<1x1x384xf32> to vector<1x384xf32>
    %504 = vector.broadcast %503 : vector<1x384xf32> to vector<8x384xf32>
    %505 = arith.addf %501, %504 : vector<8x384xf32>
    %506 = vector.shape_cast %505 : vector<8x384xf32> to vector<1x8x384xf32>
    %cst_180 = arith.constant 0.000000e+00 : f32
    %cst_181 = arith.constant 3.275200e+04 : f32
    %507 = arith.subf %cst_180, %cst_181 : f32
    %508 = vector.shape_cast %14 : vector<1x8x1xi1> to vector<1x8x1xi1>
    %509 = vector.broadcast %508 : vector<1x8x1xi1> to vector<1x8x384xi1>
    %510 = vector.broadcast %507 : f32 to vector<1x8x384xf32>
    %511 = arith.select %509, %510, %506 : vector<1x8x384xi1>, vector<1x8x384xf32>
    %cst_182 = arith.constant dense<0xFF800000> : vector<1x384xf32>
    %512 = vector.multi_reduction <maximumf>, %511, %cst_182 [1] : vector<1x8x384xf32> to vector<1x384xf32>
    %513 = vector.shape_cast %512 : vector<1x384xf32> to vector<1x1x384xf32>
    %514 = vector.broadcast %513 : vector<1x1x384xf32> to vector<1x8x384xf32>
    %515 = arith.subf %511, %514 : vector<1x8x384xf32>
    %516 = math.exp %515 : vector<1x8x384xf32>
    %cst_183 = arith.constant dense<0.000000e+00> : vector<1x384xf32>
    %517 = vector.multi_reduction <add>, %516, %cst_183 [1] : vector<1x8x384xf32> to vector<1x384xf32>
    %518 = vector.shape_cast %517 : vector<1x384xf32> to vector<1x1x384xf32>
    %519 = vector.broadcast %518 : vector<1x1x384xf32> to vector<1x8x384xf32>
    %520 = arith.divf %516, %519 : vector<1x8x384xf32>
    %521 = arith.mulf %520, %422 : vector<1x8x384xf32>
    %cst_184 = arith.constant dense<0.000000e+00> : vector<1x384xf32>
    %522 = vector.multi_reduction <add>, %521, %cst_184 [1] : vector<1x8x384xf32> to vector<1x384xf32>
    %523 = tpu.concatenate %496, %522 in 1 : vector<1x384xf32>, vector<1x384xf32> -> vector<1x768xf32>
    %524 = vector.shape_cast %523 : vector<1x768xf32> to vector<1x1x768xf32>
    %c0_185 = arith.constant 0 : index
    %c0_186 = arith.constant 0 : index
    %c0_187 = arith.constant 0 : index
    %525 = vector.load %arg25[%c0_185, %c0_186, %c0_187] : memref<1x1x768xf32, #tpu.memory_space<vmem>>, vector<1x1x768xf32>
    tpu.vector_store %arg25[%c0_185, %c0_186, %c0_187], %524 {strides = array<i32>} : memref<1x1x768xf32, #tpu.memory_space<vmem>>, vector<1x1x768xf32>,
    return
  }
  func.func @transform_0(%arg0: i32, %arg1: memref<2xi32, #tpu.memory_space<smem>>) -> (i32, i32, i32) {
    %c0_i32 = arith.constant 0 : i32
    %c0_i32_0 = arith.constant 0 : i32
    %c0_i32_1 = arith.constant 0 : i32
    return %arg0, %c0_i32, %c0_i32_0 : i32, i32, i32
  }
  func.func @transform_1(%arg0: i32, %arg1: memref<2xi32, #tpu.memory_space<smem>>) -> (i32, i32) {
    %c0_i32 = arith.constant 0 : i32
    %c0_i32_0 = arith.constant 0 : i32
    %c0_i32_1 = arith.constant 0 : i32
    return %c0_i32, %c0_i32_0 : i32, i32
  }
  func.func @transform_2(%arg0: i32, %arg1: memref<2xi32, #tpu.memory_space<smem>>) -> (i32, i32) {
    %c0_i32 = arith.constant 0 : i32
    %c0_i32_0 = arith.constant 0 : i32
    %c0_i32_1 = arith.constant 0 : i32
    return %c0_i32, %c0_i32_0 : i32, i32
  }
  func.func @transform_3(%arg0: i32, %arg1: memref<2xi32, #tpu.memory_space<smem>>) -> (i32, i32) {
    %c0_i32 = arith.constant 0 : i32
    %c0_i32_0 = arith.constant 0 : i32
    %c0_i32_1 = arith.constant 0 : i32
    return %c0_i32, %c0_i32_0 : i32, i32
  }
  func.func @transform_4(%arg0: i32, %arg1: memref<2xi32, #tpu.memory_space<smem>>) -> (i32, i32) {
    %c0_i32 = arith.constant 0 : i32
    %c0_i32_0 = arith.constant 0 : i32
    %c0_i32_1 = arith.constant 0 : i32
    return %c0_i32, %c0_i32_0 : i32, i32
  }
  func.func @transform_5(%arg0: i32, %arg1: memref<2xi32, #tpu.memory_space<smem>>) -> (i32, i32) {
    %c0_i32 = arith.constant 0 : i32
    %c0_i32_0 = arith.constant 0 : i32
    %c0_i32_1 = arith.constant 0 : i32
    return %c0_i32, %c0_i32_0 : i32, i32
  }
  func.func @transform_6(%arg0: i32, %arg1: memref<2xi32, #tpu.memory_space<smem>>) -> (i32, i32) {
    %c0_i32 = arith.constant 0 : i32
    %c0_i32_0 = arith.constant 0 : i32
    %c0_i32_1 = arith.constant 0 : i32
    return %c0_i32, %c0_i32_0 : i32, i32
  }
  func.func @transform_7(%arg0: i32, %arg1: memref<2xi32, #tpu.memory_space<smem>>) -> (i32, i32) {
    %c0_i32 = arith.constant 0 : i32
    %c0_i32_0 = arith.constant 0 : i32
    %c0_i32_1 = arith.constant 0 : i32
    return %c0_i32, %c0_i32_0 : i32, i32
  }
  func.func @transform_8(%arg0: i32, %arg1: memref<2xi32, #tpu.memory_space<smem>>) -> (i32, i32) {
    %c0_i32 = arith.constant 0 : i32
    %c0_i32_0 = arith.constant 0 : i32
    %c0_i32_1 = arith.constant 0 : i32
    return %c0_i32, %c0_i32_0 : i32, i32
  }
  func.func @transform_9(%arg0: i32, %arg1: memref<2xi32, #tpu.memory_space<smem>>) -> (i32, i32) {
    %c0_i32 = arith.constant 0 : i32
    %c0_i32_0 = arith.constant 0 : i32
    %c0_i32_1 = arith.constant 0 : i32
    return %c0_i32, %c0_i32_0 : i32, i32
  }
  func.func @transform_10(%arg0: i32, %arg1: memref<2xi32, #tpu.memory_space<smem>>) -> (i32, i32) {
    %c0_i32 = arith.constant 0 : i32
    %c0_i32_0 = arith.constant 0 : i32
    %c0_i32_1 = arith.constant 0 : i32
    return %c0_i32, %c0_i32_0 : i32, i32
  }
  func.func @transform_11(%arg0: i32, %arg1: memref<2xi32, #tpu.memory_space<smem>>) -> (i32, i32) {
    %c0_i32 = arith.constant 0 : i32
    %c0_i32_0 = arith.constant 0 : i32
    %c0_i32_1 = arith.constant 0 : i32
    return %c0_i32, %c0_i32_0 : i32, i32
  }
  func.func @transform_12(%arg0: i32, %arg1: memref<2xi32, #tpu.memory_space<smem>>) -> (i32, i32) {
    %c0_i32 = arith.constant 0 : i32
    %c0_i32_0 = arith.constant 0 : i32
    %c0_i32_1 = arith.constant 0 : i32
    return %c0_i32, %c0_i32_0 : i32, i32
  }
  func.func @transform_13(%arg0: i32, %arg1: memref<2xi32, #tpu.memory_space<smem>>) -> (i32, i32) {
    %c0_i32 = arith.constant 0 : i32
    %c0_i32_0 = arith.constant 0 : i32
    %c0_i32_1 = arith.constant 0 : i32
    return %c0_i32, %c0_i32_0 : i32, i32
  }
  func.func @transform_14(%arg0: i32, %arg1: memref<2xi32, #tpu.memory_space<smem>>) -> (i32, i32) {
    %c0_i32 = arith.constant 0 : i32
    %c0_i32_0 = arith.constant 0 : i32
    %c0_i32_1 = arith.constant 0 : i32
    return %c0_i32, %c0_i32_0 : i32, i32
  }
  func.func @transform_15(%arg0: i32, %arg1: memref<2xi32, #tpu.memory_space<smem>>) -> (i32, i32) {
    %c0_i32 = arith.constant 0 : i32
    %c0_i32_0 = arith.constant 0 : i32
    %c0_i32_1 = arith.constant 0 : i32
    return %c0_i32, %c0_i32_0 : i32, i32
  }
  func.func @transform_16(%arg0: i32, %arg1: memref<2xi32, #tpu.memory_space<smem>>) -> (i32, i32) {
    %c0_i32 = arith.constant 0 : i32
    %c0_i32_0 = arith.constant 0 : i32
    %c0_i32_1 = arith.constant 0 : i32
    return %c0_i32, %c0_i32_0 : i32, i32
  }
  func.func @transform_17(%arg0: i32, %arg1: memref<2xi32, #tpu.memory_space<smem>>) -> (i32, i32) {
    %c0_i32 = arith.constant 0 : i32
    %c0_i32_0 = arith.constant 0 : i32
    %c0_i32_1 = arith.constant 0 : i32
    return %c0_i32, %c0_i32_0 : i32, i32
  }
  func.func @transform_18(%arg0: i32, %arg1: memref<2xi32, #tpu.memory_space<smem>>) -> (i32, i32) {
    %c0_i32 = arith.constant 0 : i32
    %c0_i32_0 = arith.constant 0 : i32
    %c0_i32_1 = arith.constant 0 : i32
    return %c0_i32, %c0_i32_0 : i32, i32
  }
  func.func @transform_19(%arg0: i32, %arg1: memref<2xi32, #tpu.memory_space<smem>>) -> (i32, i32) {
    %c0_i32 = arith.constant 0 : i32
    %c0_i32_0 = arith.constant 0 : i32
    %c0_i32_1 = arith.constant 0 : i32
    return %c0_i32, %c0_i32_0 : i32, i32
  }
  func.func @transform_20(%arg0: i32, %arg1: memref<2xi32, #tpu.memory_space<smem>>) -> (i32, i32, i32) {
    %c0_i32 = arith.constant 0 : i32
    %c0_i32_0 = arith.constant 0 : i32
    %c0_i32_1 = arith.constant 0 : i32
    %c0_i32_2 = arith.constant 0 : i32
    return %c0_i32, %c0_i32_0, %c0_i32_1 : i32, i32, i32
  }
  func.func @transform_21(%arg0: i32, %arg1: memref<2xi32, #tpu.memory_space<smem>>) -> (i32, i32, i32) {
    %c0_i32 = arith.constant 0 : i32
    %c0_i32_0 = arith.constant 0 : i32
    %c0_i32_1 = arith.constant 0 : i32
    %c0_i32_2 = arith.constant 0 : i32
    return %c0_i32, %c0_i32_0, %c0_i32_1 : i32, i32, i32
  }
  func.func @transform_22(%arg0: i32, %arg1: memref<2xi32, #tpu.memory_space<smem>>) -> (i32, i32, i32) {
    %c0_i32 = arith.constant 0 : i32
    %c0_i32_0 = arith.constant 0 : i32
    %c0_i32_1 = arith.constant 0 : i32
    return %arg0, %c0_i32, %c0_i32_0 : i32, i32, i32
  }
  func.func @transform_23(%arg0: i32, %arg1: memref<2xi32, #tpu.memory_space<smem>>) -> (i32, i32, i32) {
    %c0_i32 = arith.constant 0 : i32
    %c0_i32_0 = arith.constant 0 : i32
    %c0_i32_1 = arith.constant 0 : i32
    return %arg0, %c0_i32, %c0_i32_0 : i32, i32, i32
  }
}

</mosaic_0001>

<llo_original>
// kernel: transformer_legacy_forward.1
$region0: #{transformer_legacy_forward.1}
  #allocation0 [shape = 'u32[]', space=smem, size = 0x4, offset = 0x4, fixed_abs, tag = 'smem constant byte address 0x4 - core index']
  #allocation1 [shape = 'u32[72,128]{1,0:T(1,128)}', space=vmem, size = 0x9000, scoped, tag = 'internal scratch']
  #allocation2 [shape = 's32[1]{0}', space=sflag, size = 0x4, scoped, tag = 'scoped memory for transformer_legacy_forward.1']
  #allocation3 [shape = 'u8[512]{0}', space=smem, size = 0x200, scoped, tag = 'prefetched SMEM operand 0']
  %s0 = inlined_call_operand.vmem [shape: s32[2], index: 0, kind: input, shape index: {}]
  %s1 = inlined_call_operand.vmem [shape: f32[2,8,32], index: 1, kind: input, shape index: {}]
  %s2 = inlined_call_operand.vmem [shape: f32[1,32], index: 2, kind: input, shape index: {}]
  %s3 = inlined_call_operand.vmem [shape: f32[1,32], index: 3, kind: input, shape index: {}]
  %s4 = inlined_call_operand.vmem [shape: bf16[32,384], index: 4, kind: input, shape index: {}]
  %s5 = inlined_call_operand.vmem [shape: f32[1,384], index: 5, kind: input, shape index: {}]
  %s6 = inlined_call_operand.vmem [shape: f32[8,384], index: 6, kind: input, shape index: {}]
  %s7 = inlined_call_operand.vmem [shape: bf16[384,1152], index: 7, kind: input, shape index: {}]
  %s8 = inlined_call_operand.vmem [shape: f32[1,1152], index: 8, kind: input, shape index: {}]
  %s9 = inlined_call_operand.vmem [shape: bf16[384,384], index: 9, kind: input, shape index: {}]
  %s10 = inlined_call_operand.vmem [shape: f32[1,384], index: 10, kind: input, shape index: {}]
  %s11 = inlined_call_operand.vmem [shape: f32[1,384], index: 11, kind: input, shape index: {}]
  %s12 = inlined_call_operand.vmem [shape: f32[1,384], index: 12, kind: input, shape index: {}]
  %s13 = inlined_call_operand.vmem [shape: bf16[384,384], index: 13, kind: input, shape index: {}]
  %s14 = inlined_call_operand.vmem [shape: f32[1,384], index: 14, kind: input, shape index: {}]
  %s15 = inlined_call_operand.vmem [shape: bf16[384,384], index: 15, kind: input, shape index: {}]
  %s16 = inlined_call_operand.vmem [shape: f32[1,384], index: 16, kind: input, shape index: {}]
  %s17 = inlined_call_operand.vmem [shape: f32[1,384], index: 17, kind: input, shape index: {}]
  %s18 = inlined_call_operand.vmem [shape: f32[1,384], index: 18, kind: input, shape index: {}]
  %s19 = inlined_call_operand.vmem [shape: bf16[384,768], index: 19, kind: input, shape index: {}]
  %s20 = inlined_call_operand.vmem [shape: f32[1,768], index: 20, kind: input, shape index: {}]
  %s21 = inlined_call_operand.vmem [shape: bf16[2,384,384], index: 21, kind: input, shape index: {}]
  %s22 = inlined_call_operand.vmem [shape: f32[2,1,384], index: 22, kind: input, shape index: {}]
  %s23 = inlined_call_operand.hbm [shape: f32[2,8,384], index: 23, kind: output, shape index: {0}]
  %s24 = inlined_call_operand.vmem [shape: f32[2,1,768], index: 24, kind: output, shape index: {1}]
  %25 = xla_tuple %s23, %s24
  %s26 = sld [smem:[#allocation0]]
  $region129: #{transformer_legacy_forward.1} parent=0
    _
  %s28 = ssub.s32 1, %s26
  %s29 = scalar_select 0, %s28, %s26
  %s31 = sshll.u32 %s0, 4
  %s32 = int_to_ptr.vmem [resolvable:$true] %s31
  %34 = dma.vmem_to_smem %s32, 16, [#allocation3], [#allocation2]
  %36 = dma.done [#allocation2], 16
  %37 = sfence
  $region1: #{transformer_legacy_forward.1} parent=0
    #allocation4 [shape = 'u8[24576]{0}', space=vmem, size = 0x6000, scoped, tag = 'output window, operand 0']
    #allocation5 [shape = 's32[2]{0}', space=sflag, size = 0x8, scoped, tag = 'scoped memory for transformer_legacy_forward.1']
    %38 = vsyncpa [#allocation5], 0
    %s39 = scalar_lea.sflag [#allocation5], 1
    %40 = vsyncpa %s39, 0
    loop: start=0, step=1, limit=4
    $region2: #{transformer_legacy_forward.1} parent=1 // loop_pre_header
      _
    $region3: #{transformer_legacy_forward.1} parent=1 // loop_header
      %s42 = sphi 0, %s46
      %p43 = scmp.ge.s32.totalorder %s42, 4
      %s52 = sphi 0, %s54
      %s55 = sphi 0, %s52
      %s56 = sphi 0, %s55
      %s72 = sphi 0, %s56
      %s76 = sphi 0, %s76
      %s78 = sphi 0, %s76
      %s79 = sphi 0, %s78
      %s93 = sphi 0, %s79
      %s97 = sphi 0, %s97
      %s99 = sphi 0, %s97
      %s100 = sphi 0, %s99
      %s114 = sphi 0, %s100
      %s118 = sphi 0, %s118
      %s120 = sphi 0, %s118
      %s121 = sphi 0, %s120
      %s135 = sphi 0, %s121
      %s139 = sphi 0, %s139
      %s141 = sphi 0, %s139
      %s142 = sphi 0, %s141
      %s156 = sphi 0, %s142
      %s160 = sphi 0, %s160
      %s162 = sphi 0, %s160
      %s163 = sphi 0, %s162
      %s177 = sphi 0, %s163
      %s181 = sphi 0, %s181
      %s183 = sphi 0, %s181
      %s184 = sphi 0, %s183
      %s198 = sphi 0, %s184
      %s202 = sphi 0, %s202
      %s204 = sphi 0, %s202
      %s205 = sphi 0, %s204
      %s219 = sphi 0, %s205
      %s223 = sphi 0, %s223
      %s225 = sphi 0, %s223
      %s226 = sphi 0, %s225
      %s240 = sphi 0, %s226
      %s244 = sphi 0, %s244
      %s246 = sphi 0, %s244
      %s247 = sphi 0, %s246
      %s261 = sphi 0, %s247
      %s265 = sphi 0, %s265
      %s267 = sphi 0, %s265
      %s268 = sphi 0, %s267
      %s282 = sphi 0, %s268
      %s286 = sphi 0, %s286
      %s288 = sphi 0, %s286
      %s289 = sphi 0, %s288
      %s303 = sphi 0, %s289
      %s307 = sphi 0, %s307
      %s309 = sphi 0, %s307
      %s310 = sphi 0, %s309
      %s324 = sphi 0, %s310
      %s328 = sphi 0, %s328
      %s330 = sphi 0, %s328
      %s331 = sphi 0, %s330
      %s345 = sphi 0, %s331
      %s349 = sphi 0, %s349
      %s351 = sphi 0, %s349
      %s352 = sphi 0, %s351
      %s366 = sphi 0, %s352
      %s370 = sphi 0, %s370
      %s372 = sphi 0, %s370
      %s373 = sphi 0, %s372
      %s387 = sphi 0, %s373
      %s391 = sphi 0, %s391
      %s393 = sphi 0, %s391
      %s394 = sphi 0, %s393
      %s408 = sphi 0, %s394
      %s412 = sphi 0, %s412
      %s414 = sphi 0, %s412
      %s415 = sphi 0, %s414
      %s429 = sphi 0, %s415
      %s433 = sphi 0, %s433
      %s435 = sphi 0, %s433
      %s436 = sphi 0, %s435
      %s450 = sphi 0, %s436
      %s454 = sphi 0, %s454
      %s456 = sphi 0, %s454
      %s457 = sphi 0, %s456
      %s471 = sphi 0, %s457
      %s475 = sphi 0, %s475
      %s477 = sphi 0, %s475
      %s478 = sphi 0, %s477
      %s492 = sphi 0, %s478
      %s496 = sphi 0, %s496
      %s498 = sphi 0, %s496
      %s499 = sphi 0, %s498
      %s513 = sphi 0, %s499
      %s519 = sphi 0, %s521
      %s522 = sphi 0, %s519
      %s523 = sphi 0, %s522
      %s539 = sphi 0, %s523
      %s545 = sphi 0, %s547
      %s548 = sphi 0, %s545
      %s549 = sphi 0, %s548
      %s565 = sphi 0, %s549
    $region4: #{transformer_legacy_forward.1} parent=1 // loop_header_branch
      %45 = sbr.rel (%p43) target = $region8
    $region5: #{transformer_legacy_forward.1} parent=1 // loop_body
      %s47 = ssub.s32 %s42, 1
      %s48 = ssub.s32 %s42, 2
      %s49 = sadd.s32 %s42, 1
      %s50 = ssub.s32 %s42, %s49
      %p51 = scmp.eq.s32.totalorder %s50, 0
      %s53 = sadd.s32 %s52, 1
      %s54 = scalar_select %p51, %s52, %s53
      %p57 = pneg %p51
      %p58 = scmp.eq.s32.totalorder %s42, 1
      %p59 = por %p57, %p58
      %p60 = scmp.ne.s32.totalorder %s52, %s55
      %p61 = scmp.eq.s32.totalorder %s42, 0
      %p62 = por %p60, %p61
      %p63 = scmp.ne.s32.totalorder %s52, %s55
      %p64 = scmp.eq.s32.totalorder %s47, 1
      %p65 = por %p63, %p64
      %p66 = scmp.ne.s32.totalorder %s55, %s56
      %p67 = scmp.eq.s32.totalorder %s47, 0
      %p68 = por %p66, %p67
      %p69 = scmp.ne.s32.totalorder %s55, %s56
      %p70 = scmp.eq.s32.totalorder %s48, 1
      %p71 = por %p69, %p70
      %p73 = scmp.ne.s32.totalorder %s56, %s72
      %p74 = scmp.eq.s32.totalorder %s48, 0
      %p75 = por %p73, %p74
      %s77 = sadd.s32 %s76, 1
      %p80 = scmp.eq.s32.totalorder %s42, 1
      %p81 = scmp.ne.s32.totalorder %s76, %s78
      %p82 = scmp.eq.s32.totalorder %s42, 0
      %p83 = por %p81, %p82
      %p84 = scmp.ne.s32.totalorder %s76, %s78
      %p85 = scmp.eq.s32.totalorder %s47, 1
      %p86 = por %p84, %p85
      %p87 = scmp.ne.s32.totalorder %s78, %s79
      %p88 = scmp.eq.s32.totalorder %s47, 0
      %p89 = por %p87, %p88
      %p90 = scmp.ne.s32.totalorder %s78, %s79
      %p91 = scmp.eq.s32.totalorder %s48, 1
      %p92 = por %p90, %p91
      %p94 = scmp.ne.s32.totalorder %s79, %s93
      %p95 = scmp.eq.s32.totalorder %s48, 0
      %p96 = por %p94, %p95
      %s98 = sadd.s32 %s97, 1
      %p101 = scmp.eq.s32.totalorder %s42, 1
      %p102 = scmp.ne.s32.totalorder %s97, %s99
      %p103 = scmp.eq.s32.totalorder %s42, 0
      %p104 = por %p102, %p103
      %p105 = scmp.ne.s32.totalorder %s97, %s99
      %p106 = scmp.eq.s32.totalorder %s47, 1
      %p107 = por %p105, %p106
      %p108 = scmp.ne.s32.totalorder %s99, %s100
      %p109 = scmp.eq.s32.totalorder %s47, 0
      %p110 = por %p108, %p109
      %p111 = scmp.ne.s32.totalorder %s99, %s100
      %p112 = scmp.eq.s32.totalorder %s48, 1
      %p113 = por %p111, %p112
      %p115 = scmp.ne.s32.totalorder %s100, %s114
      %p116 = scmp.eq.s32.totalorder %s48, 0
      %p117 = por %p115, %p116
      %s119 = sadd.s32 %s118, 1
      %p122 = scmp.eq.s32.totalorder %s42, 1
      %p123 = scmp.ne.s32.totalorder %s118, %s120
      %p124 = scmp.eq.s32.totalorder %s42, 0
      %p125 = por %p123, %p124
      %p126 = scmp.ne.s32.totalorder %s118, %s120
      %p127 = scmp.eq.s32.totalorder %s47, 1
      %p128 = por %p126, %p127
      %p129 = scmp.ne.s32.totalorder %s120, %s121
      %p130 = scmp.eq.s32.totalorder %s47, 0
      %p131 = por %p129, %p130
      %p132 = scmp.ne.s32.totalorder %s120, %s121
      %p133 = scmp.eq.s32.totalorder %s48, 1
      %p134 = por %p132, %p133
      %p136 = scmp.ne.s32.totalorder %s121, %s135
      %p137 = scmp.eq.s32.totalorder %s48, 0
      %p138 = por %p136, %p137
      %s140 = sadd.s32 %s139, 1
      %p143 = scmp.eq.s32.totalorder %s42, 1
      %p144 = scmp.ne.s32.totalorder %s139, %s141
      %p145 = scmp.eq.s32.totalorder %s42, 0
      %p146 = por %p144, %p145
      %p147 = scmp.ne.s32.totalorder %s139, %s141
      %p148 = scmp.eq.s32.totalorder %s47, 1
      %p149 = por %p147, %p148
      %p150 = scmp.ne.s32.totalorder %s141, %s142
      %p151 = scmp.eq.s32.totalorder %s47, 0
      %p152 = por %p150, %p151
      %p153 = scmp.ne.s32.totalorder %s141, %s142
      %p154 = scmp.eq.s32.totalorder %s48, 1
      %p155 = por %p153, %p154
      %p157 = scmp.ne.s32.totalorder %s142, %s156
      %p158 = scmp.eq.s32.totalorder %s48, 0
      %p159 = por %p157, %p158
      %s161 = sadd.s32 %s160, 1
      %p164 = scmp.eq.s32.totalorder %s42, 1
      %p165 = scmp.ne.s32.totalorder %s160, %s162
      %p166 = scmp.eq.s32.totalorder %s42, 0
      %p167 = por %p165, %p166
      %p168 = scmp.ne.s32.totalorder %s160, %s162
      %p169 = scmp.eq.s32.totalorder %s47, 1
      %p170 = por %p168, %p169
      %p171 = scmp.ne.s32.totalorder %s162, %s163
      %p172 = scmp.eq.s32.totalorder %s47, 0
      %p173 = por %p171, %p172
      %p174 = scmp.ne.s32.totalorder %s162, %s163
      %p175 = scmp.eq.s32.totalorder %s48, 1
      %p176 = por %p174, %p175
      %p178 = scmp.ne.s32.totalorder %s163, %s177
      %p179 = scmp.eq.s32.totalorder %s48, 0
      %p180 = por %p178, %p179
      %s182 = sadd.s32 %s181, 1
      %p185 = scmp.eq.s32.totalorder %s42, 1
      %p186 = scmp.ne.s32.totalorder %s181, %s183
      %p187 = scmp.eq.s32.totalorder %s42, 0
      %p188 = por %p186, %p187
      %p189 = scmp.ne.s32.totalorder %s181, %s183
      %p190 = scmp.eq.s32.totalorder %s47, 1
      %p191 = por %p189, %p190
      %p192 = scmp.ne.s32.totalorder %s183, %s184
      %p193 = scmp.eq.s32.totalorder %s47, 0
      %p194 = por %p192, %p193
      %p195 = scmp.ne.s32.totalorder %s183, %s184
      %p196 = scmp.eq.s32.totalorder %s48, 1
      %p197 = por %p195, %p196
      %p199 = scmp.ne.s32.totalorder %s184, %s198
      %p200 = scmp.eq.s32.totalorder %s48, 0
      %p201 = por %p199, %p200
      %s203 = sadd.s32 %s202, 1
      %p206 = scmp.eq.s32.totalorder %s42, 1
      %p207 = scmp.ne.s32.totalorder %s202, %s204
      %p208 = scmp.eq.s32.totalorder %s42, 0
      %p209 = por %p207, %p208
      %p210 = scmp.ne.s32.totalorder %s202, %s204
      %p211 = scmp.eq.s32.totalorder %s47, 1
      %p212 = por %p210, %p211
      %p213 = scmp.ne.s32.totalorder %s204, %s205
      %p214 = scmp.eq.s32.totalorder %s47, 0
      %p215 = por %p213, %p214
      %p216 = scmp.ne.s32.totalorder %s204, %s205
      %p217 = scmp.eq.s32.totalorder %s48, 1
      %p218 = por %p216, %p217
      %p220 = scmp.ne.s32.totalorder %s205, %s219
      %p221 = scmp.eq.s32.totalorder %s48, 0
      %p222 = por %p220, %p221
      %s224 = sadd.s32 %s223, 1
      %p227 = scmp.eq.s32.totalorder %s42, 1
      %p228 = scmp.ne.s32.totalorder %s223, %s225
      %p229 = scmp.eq.s32.totalorder %s42, 0
      %p230 = por %p228, %p229
      %p231 = scmp.ne.s32.totalorder %s223, %s225
      %p232 = scmp.eq.s32.totalorder %s47, 1
      %p233 = por %p231, %p232
      %p234 = scmp.ne.s32.totalorder %s225, %s226
      %p235 = scmp.eq.s32.totalorder %s47, 0
      %p236 = por %p234, %p235
      %p237 = scmp.ne.s32.totalorder %s225, %s226
      %p238 = scmp.eq.s32.totalorder %s48, 1
      %p239 = por %p237, %p238
      %p241 = scmp.ne.s32.totalorder %s226, %s240
      %p242 = scmp.eq.s32.totalorder %s48, 0
      %p243 = por %p241, %p242
      %s245 = sadd.s32 %s244, 1
      %p248 = scmp.eq.s32.totalorder %s42, 1
      %p249 = scmp.ne.s32.totalorder %s244, %s246
      %p250 = scmp.eq.s32.totalorder %s42, 0
      %p251 = por %p249, %p250
      %p252 = scmp.ne.s32.totalorder %s244, %s246
      %p253 = scmp.eq.s32.totalorder %s47, 1
      %p254 = por %p252, %p253
      %p255 = scmp.ne.s32.totalorder %s246, %s247
      %p256 = scmp.eq.s32.totalorder %s47, 0
      %p257 = por %p255, %p256
      %p258 = scmp.ne.s32.totalorder %s246, %s247
      %p259 = scmp.eq.s32.totalorder %s48, 1
      %p260 = por %p258, %p259
      %p262 = scmp.ne.s32.totalorder %s247, %s261
      %p263 = scmp.eq.s32.totalorder %s48, 0
      %p264 = por %p262, %p263
      %s266 = sadd.s32 %s265, 1
      %p269 = scmp.eq.s32.totalorder %s42, 1
      %p270 = scmp.ne.s32.totalorder %s265, %s267
      %p271 = scmp.eq.s32.totalorder %s42, 0
      %p272 = por %p270, %p271
      %p273 = scmp.ne.s32.totalorder %s265, %s267
      %p274 = scmp.eq.s32.totalorder %s47, 1
      %p275 = por %p273, %p274
      %p276 = scmp.ne.s32.totalorder %s267, %s268
      %p277 = scmp.eq.s32.totalorder %s47, 0
      %p278 = por %p276, %p277
      %p279 = scmp.ne.s32.totalorder %s267, %s268
      %p280 = scmp.eq.s32.totalorder %s48, 1
      %p281 = por %p279, %p280
      %p283 = scmp.ne.s32.totalorder %s268, %s282
      %p284 = scmp.eq.s32.totalorder %s48, 0
      %p285 = por %p283, %p284
      %s287 = sadd.s32 %s286, 1
      %p290 = scmp.eq.s32.totalorder %s42, 1
      %p291 = scmp.ne.s32.totalorder %s286, %s288
      %p292 = scmp.eq.s32.totalorder %s42, 0
      %p293 = por %p291, %p292
      %p294 = scmp.ne.s32.totalorder %s286, %s288
      %p295 = scmp.eq.s32.totalorder %s47, 1
      %p296 = por %p294, %p295
      %p297 = scmp.ne.s32.totalorder %s288, %s289
      %p298 = scmp.eq.s32.totalorder %s47, 0
      %p299 = por %p297, %p298
      %p300 = scmp.ne.s32.totalorder %s288, %s289
      %p301 = scmp.eq.s32.totalorder %s48, 1
      %p302 = por %p300, %p301
      %p304 = scmp.ne.s32.totalorder %s289, %s303
      %p305 = scmp.eq.s32.totalorder %s48, 0
      %p306 = por %p304, %p305
      %s308 = sadd.s32 %s307, 1
      %p311 = scmp.eq.s32.totalorder %s42, 1
      %p312 = scmp.ne.s32.totalorder %s307, %s309
      %p313 = scmp.eq.s32.totalorder %s42, 0
      %p314 = por %p312, %p313
      %p315 = scmp.ne.s32.totalorder %s307, %s309
      %p316 = scmp.eq.s32.totalorder %s47, 1
      %p317 = por %p315, %p316
      %p318 = scmp.ne.s32.totalorder %s309, %s310
      %p319 = scmp.eq.s32.totalorder %s47, 0
      %p320 = por %p318, %p319
      %p321 = scmp.ne.s32.totalorder %s309, %s310
      %p322 = scmp.eq.s32.totalorder %s48, 1
      %p323 = por %p321, %p322
      %p325 = scmp.ne.s32.totalorder %s310, %s324
      %p326 = scmp.eq.s32.totalorder %s48, 0
      %p327 = por %p325, %p326
      %s329 = sadd.s32 %s328, 1
      %p332 = scmp.eq.s32.totalorder %s42, 1
      %p333 = scmp.ne.s32.totalorder %s328, %s330
      %p334 = scmp.eq.s32.totalorder %s42, 0
      %p335 = por %p333, %p334
      %p336 = scmp.ne.s32.totalorder %s328, %s330
      %p337 = scmp.eq.s32.totalorder %s47, 1
      %p338 = por %p336, %p337
      %p339 = scmp.ne.s32.totalorder %s330, %s331
      %p340 = scmp.eq.s32.totalorder %s47, 0
      %p341 = por %p339, %p340
      %p342 = scmp.ne.s32.totalorder %s330, %s331
      %p343 = scmp.eq.s32.totalorder %s48, 1
      %p344 = por %p342, %p343
      %p346 = scmp.ne.s32.totalorder %s331, %s345
      %p347 = scmp.eq.s32.totalorder %s48, 0
      %p348 = por %p346, %p347
      %s350 = sadd.s32 %s349, 1
      %p353 = scmp.eq.s32.totalorder %s42, 1
      %p354 = scmp.ne.s32.totalorder %s349, %s351
      %p355 = scmp.eq.s32.totalorder %s42, 0
      %p356 = por %p354, %p355
      %p357 = scmp.ne.s32.totalorder %s349, %s351
      %p358 = scmp.eq.s32.totalorder %s47, 1
      %p359 = por %p357, %p358
      %p360 = scmp.ne.s32.totalorder %s351, %s352
      %p361 = scmp.eq.s32.totalorder %s47, 0
      %p362 = por %p360, %p361
      %p363 = scmp.ne.s32.totalorder %s351, %s352
      %p364 = scmp.eq.s32.totalorder %s48, 1
      %p365 = por %p363, %p364
      %p367 = scmp.ne.s32.totalorder %s352, %s366
      %p368 = scmp.eq.s32.totalorder %s48, 0
      %p369 = por %p367, %p368
      %s371 = sadd.s32 %s370, 1
      %p374 = scmp.eq.s32.totalorder %s42, 1
      %p375 = scmp.ne.s32.totalorder %s370, %s372
      %p376 = scmp.eq.s32.totalorder %s42, 0
      %p377 = por %p375, %p376
      %p378 = scmp.ne.s32.totalorder %s370, %s372
      %p379 = scmp.eq.s32.totalorder %s47, 1
      %p380 = por %p378, %p379
      %p381 = scmp.ne.s32.totalorder %s372, %s373
      %p382 = scmp.eq.s32.totalorder %s47, 0
      %p383 = por %p381, %p382
      %p384 = scmp.ne.s32.totalorder %s372, %s373
      %p385 = scmp.eq.s32.totalorder %s48, 1
      %p386 = por %p384, %p385
      %p388 = scmp.ne.s32.totalorder %s373, %s387
      %p389 = scmp.eq.s32.totalorder %s48, 0
      %p390 = por %p388, %p389
      %s392 = sadd.s32 %s391, 1
      %p395 = scmp.eq.s32.totalorder %s42, 1
      %p396 = scmp.ne.s32.totalorder %s391, %s393
      %p397 = scmp.eq.s32.totalorder %s42, 0
      %p398 = por %p396, %p397
      %p399 = scmp.ne.s32.totalorder %s391, %s393
      %p400 = scmp.eq.s32.totalorder %s47, 1
      %p401 = por %p399, %p400
      %p402 = scmp.ne.s32.totalorder %s393, %s394
      %p403 = scmp.eq.s32.totalorder %s47, 0
      %p404 = por %p402, %p403
      %p405 = scmp.ne.s32.totalorder %s393, %s394
      %p406 = scmp.eq.s32.totalorder %s48, 1
      %p407 = por %p405, %p406
      %p409 = scmp.ne.s32.totalorder %s394, %s408
      %p410 = scmp.eq.s32.totalorder %s48, 0
      %p411 = por %p409, %p410
      %s413 = sadd.s32 %s412, 1
      %p416 = scmp.eq.s32.totalorder %s42, 1
      %p417 = scmp.ne.s32.totalorder %s412, %s414
      %p418 = scmp.eq.s32.totalorder %s42, 0
      %p419 = por %p417, %p418
      %p420 = scmp.ne.s32.totalorder %s412, %s414
      %p421 = scmp.eq.s32.totalorder %s47, 1
      %p422 = por %p420, %p421
      %p423 = scmp.ne.s32.totalorder %s414, %s415
      %p424 = scmp.eq.s32.totalorder %s47, 0
      %p425 = por %p423, %p424
      %p426 = scmp.ne.s32.totalorder %s414, %s415
      %p427 = scmp.eq.s32.totalorder %s48, 1
      %p428 = por %p426, %p427
      %p430 = scmp.ne.s32.totalorder %s415, %s429
      %p431 = scmp.eq.s32.totalorder %s48, 0
      %p432 = por %p430, %p431
      %s434 = sadd.s32 %s433, 1
      %p437 = scmp.eq.s32.totalorder %s42, 1
      %p438 = scmp.ne.s32.totalorder %s433, %s435
      %p439 = scmp.eq.s32.totalorder %s42, 0
      %p440 = por %p438, %p439
      %p441 = scmp.ne.s32.totalorder %s433, %s435
      %p442 = scmp.eq.s32.totalorder %s47, 1
      %p443 = por %p441, %p442
      %p444 = scmp.ne.s32.totalorder %s435, %s436
      %p445 = scmp.eq.s32.totalorder %s47, 0
      %p446 = por %p444, %p445
      %p447 = scmp.ne.s32.totalorder %s435, %s436
      %p448 = scmp.eq.s32.totalorder %s48, 1
      %p449 = por %p447, %p448
      %p451 = scmp.ne.s32.totalorder %s436, %s450
      %p452 = scmp.eq.s32.totalorder %s48, 0
      %p453 = por %p451, %p452
      %s455 = sadd.s32 %s454, 1
      %p458 = scmp.eq.s32.totalorder %s42, 1
      %p459 = scmp.ne.s32.totalorder %s454, %s456
      %p460 = scmp.eq.s32.totalorder %s42, 0
      %p461 = por %p459, %p460
      %p462 = scmp.ne.s32.totalorder %s454, %s456
      %p463 = scmp.eq.s32.totalorder %s47, 1
      %p464 = por %p462, %p463
      %p465 = scmp.ne.s32.totalorder %s456, %s457
      %p466 = scmp.eq.s32.totalorder %s47, 0
      %p467 = por %p465, %p466
      %p468 = scmp.ne.s32.totalorder %s456, %s457
      %p469 = scmp.eq.s32.totalorder %s48, 1
      %p470 = por %p468, %p469
      %p472 = scmp.ne.s32.totalorder %s457, %s471
      %p473 = scmp.eq.s32.totalorder %s48, 0
      %p474 = por %p472, %p473
      %s476 = sadd.s32 %s475, 1
      %p479 = scmp.eq.s32.totalorder %s42, 1
      %p480 = scmp.ne.s32.totalorder %s475, %s477
      %p481 = scmp.eq.s32.totalorder %s42, 0
      %p482 = por %p480, %p481
      %p483 = scmp.ne.s32.totalorder %s475, %s477
      %p484 = scmp.eq.s32.totalorder %s47, 1
      %p485 = por %p483, %p484
      %p486 = scmp.ne.s32.totalorder %s477, %s478
      %p487 = scmp.eq.s32.totalorder %s47, 0
      %p488 = por %p486, %p487
      %p489 = scmp.ne.s32.totalorder %s477, %s478
      %p490 = scmp.eq.s32.totalorder %s48, 1
      %p491 = por %p489, %p490
      %p493 = scmp.ne.s32.totalorder %s478, %s492
      %p494 = scmp.eq.s32.totalorder %s48, 0
      %p495 = por %p493, %p494
      %s497 = sadd.s32 %s496, 1
      %p500 = scmp.eq.s32.totalorder %s42, 1
      %p501 = scmp.ne.s32.totalorder %s496, %s498
      %p502 = scmp.eq.s32.totalorder %s42, 0
      %p503 = por %p501, %p502
      %p504 = scmp.ne.s32.totalorder %s496, %s498
      %p505 = scmp.eq.s32.totalorder %s47, 1
      %p506 = por %p504, %p505
      %p507 = scmp.ne.s32.totalorder %s498, %s499
      %p508 = scmp.eq.s32.totalorder %s47, 0
      %p509 = por %p507, %p508
      %p510 = scmp.ne.s32.totalorder %s498, %s499
      %p511 = scmp.eq.s32.totalorder %s48, 1
      %p512 = por %p510, %p511
      %p514 = scmp.ne.s32.totalorder %s499, %s513
      %p515 = scmp.eq.s32.totalorder %s48, 0
      %p516 = por %p514, %p515
      %s517 = ssub.s32 %s42, %s49
      %p518 = scmp.eq.s32.totalorder %s517, 0
      %s520 = sadd.s32 %s519, 1
      %s521 = scalar_select %p518, %s519, %s520
      %p524 = pneg %p518
      %p525 = scmp.eq.s32.totalorder %s42, 1
      %p526 = por %p524, %p525
      %p527 = scmp.ne.s32.totalorder %s519, %s522
      %p528 = scmp.eq.s32.totalorder %s42, 0
      %p529 = por %p527, %p528
      %p530 = scmp.ne.s32.totalorder %s519, %s522
      %p531 = scmp.eq.s32.totalorder %s47, 1
      %p532 = por %p530, %p531
      %p533 = scmp.ne.s32.totalorder %s522, %s523
      %p534 = scmp.eq.s32.totalorder %s47, 0
      %p535 = por %p533, %p534
      %p536 = scmp.ne.s32.totalorder %s522, %s523
      %p537 = scmp.eq.s32.totalorder %s48, 1
      %p538 = por %p536, %p537
      %p540 = scmp.ne.s32.totalorder %s523, %s539
      %p541 = scmp.eq.s32.totalorder %s48, 0
      %p542 = por %p540, %p541
      %s543 = ssub.s32 %s42, %s49
      %p544 = scmp.eq.s32.totalorder %s543, 0
      %s546 = sadd.s32 %s545, 1
      %s547 = scalar_select %p544, %s545, %s546
      %p550 = pneg %p544
      %p551 = scmp.eq.s32.totalorder %s42, 1
      %p552 = por %p550, %p551
      %p553 = scmp.ne.s32.totalorder %s545, %s548
      %p554 = scmp.eq.s32.totalorder %s42, 0
      %p555 = por %p553, %p554
      %p556 = scmp.ne.s32.totalorder %s545, %s548
      %p557 = scmp.eq.s32.totalorder %s47, 1
      %p558 = por %p556, %p557
      %p559 = scmp.ne.s32.totalorder %s548, %s549
      %p560 = scmp.eq.s32.totalorder %s47, 0
      %p561 = por %p559, %p560
      %p562 = scmp.ne.s32.totalorder %s548, %s549
      %p563 = scmp.eq.s32.totalorder %s48, 1
      %p564 = por %p562, %p563
      %p566 = scmp.ne.s32.totalorder %s549, %s565
      %p567 = scmp.eq.s32.totalorder %s48, 0
      %p568 = por %p566, %p567
      %p569 = scmp.le.s32.totalorder 1, %s42
      %p570 = scmp.lt.s32.totalorder %s42, 3
      %p571 = pnand %p569, %p570
      %p572 = pneg %p571
      // Predicated region
      $region9: #{transformer_legacy_forward.1} parent=5 // pred_check
        _
      $region10: #{transformer_legacy_forward.1} parent=5 // pred_check_branch
        %574 = sbr.rel (%p571) target = $region12
      $region11: #{transformer_legacy_forward.1} parent=5 // pred_region
        %s575 = ssub.s32 %s42, 1
        // Predicated region
        $region13: #{transformer_legacy_forward.1} parent=11 // pred_check
          %p576 = pneg %p89
        $region14: #{transformer_legacy_forward.1} parent=11 // pred_check_branch
          %578 = sbr.rel (%p576) target = $region16
        $region15: #{transformer_legacy_forward.1} parent=11 // pred_region
          _
        $region16: #{transformer_legacy_forward.1} parent=11 // pred_fallthru
          _
        // Predicated region
        $region17: #{transformer_legacy_forward.1} parent=11 // pred_check
          %p579 = pneg %p110
        $region18: #{transformer_legacy_forward.1} parent=11 // pred_check_branch
          %581 = sbr.rel (%p579) target = $region20
        $region19: #{transformer_legacy_forward.1} parent=11 // pred_region
          _
        $region20: #{transformer_legacy_forward.1} parent=11 // pred_fallthru
          _
        // Predicated region
        $region21: #{transformer_legacy_forward.1} parent=11 // pred_check
          %p582 = pneg %p131
        $region22: #{transformer_legacy_forward.1} parent=11 // pred_check_branch
          %584 = sbr.rel (%p582) target = $region24
        $region23: #{transformer_legacy_forward.1} parent=11 // pred_region
          _
        $region24: #{transformer_legacy_forward.1} parent=11 // pred_fallthru
          _
        // Predicated region
        $region25: #{transformer_legacy_forward.1} parent=11 // pred_check
          %p585 = pneg %p152
        $region26: #{transformer_legacy_forward.1} parent=11 // pred_check_branch
          %587 = sbr.rel (%p585) target = $region28
        $region27: #{transformer_legacy_forward.1} parent=11 // pred_region
          _
        $region28: #{transformer_legacy_forward.1} parent=11 // pred_fallthru
          _
        // Predicated region
        $region29: #{transformer_legacy_forward.1} parent=11 // pred_check
          %p588 = pneg %p173
        $region30: #{transformer_legacy_forward.1} parent=11 // pred_check_branch
          %590 = sbr.rel (%p588) target = $region32
        $region31: #{transformer_legacy_forward.1} parent=11 // pred_region
          _
        $region32: #{transformer_legacy_forward.1} parent=11 // pred_fallthru
          _
        // Predicated region
        $region33: #{transformer_legacy_forward.1} parent=11 // pred_check
          %p591 = pneg %p194
        $region34: #{transformer_legacy_forward.1} parent=11 // pred_check_branch
          %593 = sbr.rel (%p591) target = $region36
        $region35: #{transformer_legacy_forward.1} parent=11 // pred_region
          _
        $region36: #{transformer_legacy_forward.1} parent=11 // pred_fallthru
          _
        // Predicated region
        $region37: #{transformer_legacy_forward.1} parent=11 // pred_check
          %p594 = pneg %p215
        $region38: #{transformer_legacy_forward.1} parent=11 // pred_check_branch
          %596 = sbr.rel (%p594) target = $region40
        $region39: #{transformer_legacy_forward.1} parent=11 // pred_region
          _
        $region40: #{transformer_legacy_forward.1} parent=11 // pred_fallthru
          _
        // Predicated region
        $region41: #{transformer_legacy_forward.1} parent=11 // pred_check
          %p597 = pneg %p236
        $region42: #{transformer_legacy_forward.1} parent=11 // pred_check_branch
          %599 = sbr.rel (%p597) target = $region44
        $region43: #{transformer_legacy_forward.1} parent=11 // pred_region
          _
        $region44: #{transformer_legacy_forward.1} parent=11 // pred_fallthru
          _
        // Predicated region
        $region45: #{transformer_legacy_forward.1} parent=11 // pred_check
          %p600 = pneg %p257
        $region46: #{transformer_legacy_forward.1} parent=11 // pred_check_branch
          %602 = sbr.rel (%p600) target = $region48
        $region47: #{transformer_legacy_forward.1} parent=11 // pred_region
          _
        $region48: #{transformer_legacy_forward.1} parent=11 // pred_fallthru
          _
        // Predicated region
        $region49: #{transformer_legacy_forward.1} parent=11 // pred_check
          %p603 = pneg %p278
        $region50: #{transformer_legacy_forward.1} parent=11 // pred_check_branch
          %605 = sbr.rel (%p603) target = $region52
        $region51: #{transformer_legacy_forward.1} parent=11 // pred_region
          _
        $region52: #{transformer_legacy_forward.1} parent=11 // pred_fallthru
          _
        // Predicated region
        $region53: #{transformer_legacy_forward.1} parent=11 // pred_check
          %p606 = pneg %p299
        $region54: #{transformer_legacy_forward.1} parent=11 // pred_check_branch
          %608 = sbr.rel (%p606) target = $region56
        $region55: #{transformer_legacy_forward.1} parent=11 // pred_region
          _
        $region56: #{transformer_legacy_forward.1} parent=11 // pred_fallthru
          _
        // Predicated region
        $region57: #{transformer_legacy_forward.1} parent=11 // pred_check
          %p609 = pneg %p320
        $region58: #{transformer_legacy_forward.1} parent=11 // pred_check_branch
          %611 = sbr.rel (%p609) target = $region60
        $region59: #{transformer_legacy_forward.1} parent=11 // pred_region
          _
        $region60: #{transformer_legacy_forward.1} parent=11 // pred_fallthru
          _
        // Predicated region
        $region61: #{transformer_legacy_forward.1} parent=11 // pred_check
          %p612 = pneg %p341
        $region62: #{transformer_legacy_forward.1} parent=11 // pred_check_branch
          %614 = sbr.rel (%p612) target = $region64
        $region63: #{transformer_legacy_forward.1} parent=11 // pred_region
          _
        $region64: #{transformer_legacy_forward.1} parent=11 // pred_fallthru
          _
        // Predicated region
        $region65: #{transformer_legacy_forward.1} parent=11 // pred_check
          %p615 = pneg %p362
        $region66: #{transformer_legacy_forward.1} parent=11 // pred_check_branch
          %617 = sbr.rel (%p615) target = $region68
        $region67: #{transformer_legacy_forward.1} parent=11 // pred_region
          _
        $region68: #{transformer_legacy_forward.1} parent=11 // pred_fallthru
          _
        // Predicated region
        $region69: #{transformer_legacy_forward.1} parent=11 // pred_check
          %p618 = pneg %p383
        $region70: #{transformer_legacy_forward.1} parent=11 // pred_check_branch
          %620 = sbr.rel (%p618) target = $region72
        $region71: #{transformer_legacy_forward.1} parent=11 // pred_region
          _
        $region72: #{transformer_legacy_forward.1} parent=11 // pred_fallthru
          _
        // Predicated region
        $region73: #{transformer_legacy_forward.1} parent=11 // pred_check
          %p621 = pneg %p404
        $region74: #{transformer_legacy_forward.1} parent=11 // pred_check_branch
          %623 = sbr.rel (%p621) target = $region76
        $region75: #{transformer_legacy_forward.1} parent=11 // pred_region
          _
        $region76: #{transformer_legacy_forward.1} parent=11 // pred_fallthru
          _
        // Predicated region
        $region77: #{transformer_legacy_forward.1} parent=11 // pred_check
          %p624 = pneg %p425
        $region78: #{transformer_legacy_forward.1} parent=11 // pred_check_branch
          %626 = sbr.rel (%p624) target = $region80
        $region79: #{transformer_legacy_forward.1} parent=11 // pred_region
          _
        $region80: #{transformer_legacy_forward.1} parent=11 // pred_fallthru
          _
        // Predicated region
        $region81: #{transformer_legacy_forward.1} parent=11 // pred_check
          %p627 = pneg %p446
        $region82: #{transformer_legacy_forward.1} parent=11 // pred_check_branch
          %629 = sbr.rel (%p627) target = $region84
        $region83: #{transformer_legacy_forward.1} parent=11 // pred_region
          _
        $region84: #{transformer_legacy_forward.1} parent=11 // pred_fallthru
          _
        // Predicated region
        $region85: #{transformer_legacy_forward.1} parent=11 // pred_check
          %p630 = pneg %p467
        $region86: #{transformer_legacy_forward.1} parent=11 // pred_check_branch
          %632 = sbr.rel (%p630) target = $region88
        $region87: #{transformer_legacy_forward.1} parent=11 // pred_region
          _
        $region88: #{transformer_legacy_forward.1} parent=11 // pred_fallthru
          _
        // Predicated region
        $region89: #{transformer_legacy_forward.1} parent=11 // pred_check
          %p633 = pneg %p488
        $region90: #{transformer_legacy_forward.1} parent=11 // pred_check_branch
          %635 = sbr.rel (%p633) target = $region92
        $region91: #{transformer_legacy_forward.1} parent=11 // pred_region
          _
        $region92: #{transformer_legacy_forward.1} parent=11 // pred_fallthru
          _
        // Predicated region
        $region93: #{transformer_legacy_forward.1} parent=11 // pred_check
          %p636 = pneg %p509
        $region94: #{transformer_legacy_forward.1} parent=11 // pred_check_branch
          %638 = sbr.rel (%p636) target = $region96
        $region95: #{transformer_legacy_forward.1} parent=11 // pred_region
          _
        $region96: #{transformer_legacy_forward.1} parent=11 // pred_fallthru
          _
      $region12: #{transformer_legacy_forward.1} parent=5 // pred_fallthru
        _
      %p639 = scmp.lt.s32.totalorder %s42, 2
      // Predicated region
      $region97: #{transformer_legacy_forward.1} parent=5 // pred_check
        %p640 = pneg %p639
      $region98: #{transformer_legacy_forward.1} parent=5 // pred_check_branch
        %642 = sbr.rel (%p640) target = $region100
      $region99: #{transformer_legacy_forward.1} parent=5 // pred_region
        // Predicated region
        $region101: #{transformer_legacy_forward.1} parent=99 // pred_check
          %p643 = pneg %p62
        $region102: #{transformer_legacy_forward.1} parent=99 // pred_check_branch
          %645 = sbr.rel (%p643) target = $region104
        $region103: #{transformer_legacy_forward.1} parent=99 // pred_region
          %p646 = scmp.lt.s32.totalorder %s42, 1
          %s647 = scalar_select %p646, %s42, 1
          %s648 = smul.addr %s647, 8
          %s649 = scalar_lea.vmem %s1, %s648
        $region104: #{transformer_legacy_forward.1} parent=99 // pred_fallthru
          _
      $region100: #{transformer_legacy_forward.1} parent=5 // pred_fallthru
        _
      %p650 = scmp.le.s32.totalorder 1, %s42
      %p651 = scmp.lt.s32.totalorder %s42, 3
      %p652 = pnand %p650, %p651
      %p653 = pneg %p652
      // Predicated region
      $region105: #{transformer_legacy_forward.1} parent=5 // pred_check
        _
      $region106: #{transformer_legacy_forward.1} parent=5 // pred_check_branch
        %655 = sbr.rel (%p652) target = $region108
      $region107: #{transformer_legacy_forward.1} parent=5 // pred_region
        %s656 = ssub.s32 %s42, 1
        %p657 = scmp.lt.s32.totalorder %s47, 1
        %s658 = scalar_select %p657, %s47, 1
        %s659 = smul.addr %s658, 8
        %s660 = scalar_lea.vmem %s1, %s659
        %p661 = pneg %p68
        %p662 = pneg %p65
        %p663 = pneg %p89
        %p664 = pneg %p86
        %p665 = pneg %p110
        %p666 = pneg %p107
        %p667 = pneg %p131
        %p668 = pneg %p128
        %p669 = pneg %p152
        %p670 = pneg %p149
        %p671 = pneg %p173
        %p672 = pneg %p170
        %p673 = pneg %p194
        %p674 = pneg %p191
        %p675 = pneg %p215
        %p676 = pneg %p212
        %p677 = pneg %p236
        %p678 = pneg %p233
        %p679 = pneg %p257
        %p680 = pneg %p254
        %p681 = pneg %p278
        %p682 = pneg %p275
        %p683 = pneg %p299
        %p684 = pneg %p296
        %p685 = pneg %p320
        %p686 = pneg %p317
        %p687 = pneg %p341
        %p688 = pneg %p338
        %p689 = pneg %p362
        %p690 = pneg %p359
        %p691 = pneg %p383
        %p692 = pneg %p380
        %p693 = pneg %p404
        %p694 = pneg %p401
        %p695 = pneg %p425
        %p696 = pneg %p422
        %p697 = pneg %p446
        %p698 = pneg %p443
        %p699 = pneg %p467
        %p700 = pneg %p464
        %p701 = pneg %p488
        %p702 = pneg %p485
        %p703 = pneg %p509
        %p704 = pneg %p506
        %p705 = pneg %p535
        %p706 = pneg %p532
        %s707 = sand.u32 %s522, 1
        %s708 = scalar_lea.sflag [#allocation5], %s707
        %s709 = sand.u32 %s522, 1
        %s710 = smul.addr %s709, 24
        %s711 = scalar_lea.vmem [#allocation4], %s710
        %p712 = pneg %p561
        %p713 = pneg %p558
        %p714 = scmp.lt.s32.totalorder %s47, 1
        %s715 = scalar_select %p714, %s47, 1
        %s716 = smul.addr %s715, 6
        %s717 = scalar_lea.vmem %s24, %s716
        %p718 = scmp.lt.s32.totalorder %s47, 1
        %s719 = scalar_select %p718, %s47, 1
        %s720 = smul.addr %s719, 8
        %s721 = scalar_lea.vmem %s1, %s720
        %p722 = scmp.lt.s32.totalorder %s47, 1
        %s723 = scalar_select %p722, %s47, 1
        %s724 = smul.addr %s723, 6
        %s725 = scalar_lea.vmem %s24, %s724
        %v727 = vlaneseq
        %v728 = vand.u32 %v727, 127
        %s729 = sld [smem:[#allocation3 + %s47]]
        %v730 = vstv %s729
        %vm731 = vcmp.ge.s32.totalorder %v728, %v730
        %v732 = vsel %vm731, 1, 0
        %v733 = vcvt.s32.f32 %v732
        %vm734 = vcmp.gt.f32.partialorder %v733, 0.5
        %v735 = vlaneseq
        %v736 = vshrl.u32 %v735, 7
        %738 = vset.pattern.permute.xlu0 %v736
        %739 = vperm.xlu0 %738, %v733
        %v740 = vpop.permute.xlu0 %739
        %vm741 = vcmp.gt.f32.partialorder %v740, 0.5
        %v742 = vld [vmem:[%s721] sm:$0xff]
        %v743 = vld [vmem:[%s2] sm:$0x1]
        %v744 = vld [vmem:[%s3] sm:$0x1]
        %vm745 = vcmask 261120
        %v746 = vsel %vm745, %v742, 0.0
        %747 = vadd.xlane.f32.xlu0 %v746
        %v748 = vpop.xlane.xlu0 %747
        %v749 = vrcp.pop 32.0
        %v750 = vmul.f32 32.0, %v749
        %v751 = vsub.f32 1.0, %v750
        %v752 = vmul.f32 %v749, %v751
        %v753 = vadd.f32 %v749, %v752
        %vm754 = vweird.f32 %v749
        %v755 = vsel %vm754, %v749, %v753
        %v756 = vmul.f32 %v748, %v755
        %v757 = vsub.f32 %v742, %v756
        %v758 = vmul.f32 %v757, %v757
        %v759 = vsel %vm745, %v758, 0.0
        %760 = vadd.xlane.f32.xlu0 %v759
        %v761 = vpop.xlane.xlu0 %760
        %v762 = vrcp.pop 31.0
        %v763 = vmul.f32 31.0, %v762
        %v764 = vsub.f32 1.0, %v763
        %v765 = vmul.f32 %v762, %v764
        %v766 = vadd.f32 %v762, %v765
        %vm767 = vweird.f32 %v762
        %v768 = vsel %vm767, %v762, %v766
        %v769 = vmul.f32 %v761, %v768
        %v770 = vrsqrt.pop %v769
        %v771 = vmul.f32 %v770, %v769
        %v772 = vmul.f32 %v771, %v770
        %v773 = vmul.f32 0.5, %v772
        %v774 = vsub.f32 1.5, %v773
        %v775 = vmul.f32 %v770, %v774
        %v776 = vmul.f32 %v769, %v775
        %vm777 = vcmp.eq.f32.partialorder %v769, inf
        %v778 = vsel %vm777, %v769, %v776
        %vm779 = vcmp.eq.f32.partialorder %v769, 0.0
        %v780 = vand.u32 %v769, 2147483648
        %v781 = vsel %vm779, %v780, %v778
        %v783 = vperm.slane %v743, 0
        %v785 = vmul.f32 %v783, %v757
        %v786 = vadd.f32 %v781, 1e-06
        %v787 = vrcp.pop %v786
        %v788 = vmul.f32 %v786, %v787
        %v789 = vsub.f32 1.0, %v788
        %v790 = vmul.f32 %v787, %v789
        %v791 = vadd.f32 %v787, %v790
        %vm792 = vweird.f32 %v786
        %vm793 = vweird.f32 %v787
        %vm794 = vmor %vm792, %vm793
        %v795 = vsel %vm794, %v787, %v791
        %v796 = vand.u32 2147483647, %v786
        %vm797 = vcmp.eq.f32.partialorder %v796, 8.507059e+37
        %v798 = vand.u32 %v786, 2147483648
        %v799 = vor.u32 1.1754944e-38, %v798
        %v800 = vsel %vm797, %v799, %v795
        %v801 = vmul.f32 %v785, %v800
        %v803 = vperm.slane %v744, 0
        %v805 = vadd.f32 %v801, %v803
        %v806 = vpack.c.bf16 %v805, %v805
        %v807 = vld [vmem:[%s4] sm:$0xff]
        %v808 = vld [vmem:[%s4 + $0x8] sm:$0xf]
        %v809 = vld [vmem:[%s4 + $0xc] sm:$0xff]
        %v810 = vld [vmem:[%s4 + $0x14] sm:$0xf]
        %v811 = vld [vmem:[%s4 + $0x18] sm:$0xff]
        %v812 = vld [vmem:[%s4 + $0x20] sm:$0xf]
        %v813 = vld [vmem:[%s4 + $0x24] sm:$0xff]
        %v814 = vld [vmem:[%s4 + $0x2c] sm:$0xf]
        %v815 = vld [vmem:[%s5] sm:$0x7]
        %v817 = vperm.slane %v815, 0
        %v818 = vperm.slane %v815, 1
        %v819 = vperm.slane %v815, 2
        %v831 = vunpack.c.l.b16 %v807
        %v832 = vunpack.c.h.b16 %v807
        %v833 = vunpack.c.l.b16 %v808
        %v834 = vunpack.c.l.b16 %v809
        %v835 = vunpack.c.h.b16 %v809
        %v836 = vunpack.c.l.b16 %v810
        %v837 = vunpack.c.l.b16 %v811
        %v838 = vunpack.c.h.b16 %v811
        %v839 = vunpack.c.l.b16 %v812
        %v840 = vunpack.c.l.b16 %v813
        %v841 = vunpack.c.h.b16 %v813
        %v842 = vunpack.c.l.b16 %v814
        %v843 = vpack.c.b16 %v834, %v831
        %v844 = vpack.c.b16 %v835, %v832
        %v845 = vpack.c.b16 %v836, %v833
        %v846 = vpack.c.b16 %v840, %v837
        %v847 = vpack.c.b16 %v841, %v838
        %v848 = vpack.c.b16 %v842, %v839
        %v856 = vsel %vm745, %v806, 0
        %858 = vmatpush.bf16.msra.mxu0 0
        %859 = vmatpush.bf16.msra.mxu0 0
        %860 = vmatpush.bf16.msra.mxu0 0
        %861 = vmatpush.bf16.msra.mxu0 0
        %862 = vmatpush.bf16.msra.mxu0 0
        %863 = vmatpush.bf16.msra.mxu0 0
        %864 = vmatpush.bf16.msra.mxu0 %v846
        %865 = vmatpush.bf16.msra.mxu0 %v843
        %866 = vmatmul.bf16.gmra.mxu0 %v856
        %v867 = vpop.f32.mrf.mxu0
        %v868 = vadd.f32 %v817, %v867
        %v869 = vpop.f32.mrf.mxu0
        %870 = vdwg.mxu0
        %871 = vmatpush.bf16.msra.mxu0 0
        %872 = vmatpush.bf16.msra.mxu0 0
        %873 = vmatpush.bf16.msra.mxu0 0
        %874 = vmatpush.bf16.msra.mxu0 0
        %875 = vmatpush.bf16.msra.mxu0 0
        %876 = vmatpush.bf16.msra.mxu0 0
        %877 = vmatpush.bf16.msra.mxu0 %v847
        %878 = vmatpush.bf16.msra.mxu0 %v844
        %879 = vmatmul.bf16.gmra.mxu0 %v856
        %v880 = vpop.f32.mrf.mxu0
        %v881 = vadd.f32 %v818, %v880
        %v882 = vpop.f32.mrf.mxu0
        %883 = vdwg.mxu0
        %884 = vmatpush.bf16.msra.mxu0 0
        %885 = vmatpush.bf16.msra.mxu0 0
        %886 = vmatpush.bf16.msra.mxu0 0
        %887 = vmatpush.bf16.msra.mxu0 0
        %888 = vmatpush.bf16.msra.mxu0 0
        %889 = vmatpush.bf16.msra.mxu0 0
        %890 = vmatpush.bf16.msra.mxu0 %v848
        %891 = vmatpush.bf16.msra.mxu0 %v845
        %892 = vmatmul.bf16.gmra.mxu0 %v856
        %v893 = vpop.f32.mrf.mxu0
        %v894 = vadd.f32 %v819, %v893
        %v895 = vpop.f32.mrf.mxu0
        %896 = vdwg.mxu0
        %v897 = vmul.f32 %v868, 0.5
        %v898 = vmul.f32 %v881, 0.5
        %v899 = vmul.f32 %v894, 0.5
        %v900 = vrcp.pop 1.4142135
        %v901 = vmul.f32 1.4142135, %v900
        %v902 = vsub.f32 1.0, %v901
        %v903 = vmul.f32 %v900, %v902
        %v904 = vadd.f32 %v900, %v903
        %vm905 = vweird.f32 %v900
        %v906 = vsel %vm905, %v900, %v904
        %v907 = vmul.f32 %v868, %v906
        %v908 = vmul.f32 %v881, %v906
        %v909 = vmul.f32 %v894, %v906
        %vm910 = vcmp.ge.f32.partialorder %v907, 0.0
        %vm911 = vcmp.ge.f32.partialorder %v908, 0.0
        %vm912 = vcmp.ge.f32.partialorder %v909, 0.0
        %v913 = vsel %vm910, 1.0, -1.0
        %v914 = vsel %vm911, 1.0, -1.0
        %v915 = vsel %vm912, 1.0, -1.0
        %v916 = vand.u32 2147483647, %v907
        %v917 = vand.u32 2147483647, %v908
        %v918 = vand.u32 2147483647, %v909
        %v919 = vmul.f32 %v916, 0.3275911
        %v920 = vmul.f32 %v917, 0.3275911
        %v921 = vmul.f32 %v918, 0.3275911
        %v922 = vadd.f32 %v919, 1.0
        %v923 = vadd.f32 %v920, 1.0
        %v924 = vadd.f32 %v921, 1.0
        %v925 = vrcp.pop %v922
        %v926 = vmul.f32 %v922, %v925
        %v927 = vsub.f32 1.0, %v926
        %v928 = vmul.f32 %v925, %v927
        %v929 = vadd.f32 %v925, %v928
        %vm930 = vweird.f32 %v922
        %vm931 = vweird.f32 %v925
        %vm932 = vmor %vm930, %vm931
        %v933 = vsel %vm932, %v925, %v929
        %v934 = vand.u32 2147483647, %v922
        %vm935 = vcmp.eq.f32.partialorder %v934, 8.507059e+37
        %v936 = vand.u32 %v922, 2147483648
        %v937 = vor.u32 1.1754944e-38, %v936
        %v938 = vsel %vm935, %v937, %v933
        %v939 = vmul.f32 1.0, %v938
        %v940 = vrcp.pop %v923
        %v941 = vmul.f32 %v923, %v940
        %v942 = vsub.f32 1.0, %v941
        %v943 = vmul.f32 %v940, %v942
        %v944 = vadd.f32 %v940, %v943
        %vm945 = vweird.f32 %v923
        %vm946 = vweird.f32 %v940
        %vm947 = vmor %vm945, %vm946
        %v948 = vsel %vm947, %v940, %v944
        %v949 = vand.u32 2147483647, %v923
        %vm950 = vcmp.eq.f32.partialorder %v949, 8.507059e+37
        %v951 = vand.u32 %v923, 2147483648
        %v952 = vor.u32 1.1754944e-38, %v951
        %v953 = vsel %vm950, %v952, %v948
        %v954 = vmul.f32 1.0, %v953
        %v955 = vrcp.pop %v924
        %v956 = vmul.f32 %v924, %v955
        %v957 = vsub.f32 1.0, %v956
        %v958 = vmul.f32 %v955, %v957
        %v959 = vadd.f32 %v955, %v958
        %vm960 = vweird.f32 %v924
        %vm961 = vweird.f32 %v955
        %vm962 = vmor %vm960, %vm961
        %v963 = vsel %vm962, %v955, %v959
        %v964 = vand.u32 2147483647, %v924
        %vm965 = vcmp.eq.f32.partialorder %v964, 8.507059e+37
        %v966 = vand.u32 %v924, 2147483648
        %v967 = vor.u32 1.1754944e-38, %v966
        %v968 = vsel %vm965, %v967, %v963
        %v969 = vmul.f32 1.0, %v968
        %v970 = vmul.f32 %v939, 1.0614054
        %v971 = vmul.f32 %v954, 1.0614054
        %v972 = vmul.f32 %v969, 1.0614054
        %v973 = vadd.f32 %v970, -1.4531521
        %v974 = vadd.f32 %v971, -1.4531521
        %v975 = vadd.f32 %v972, -1.4531521
        %v976 = vmul.f32 %v973, %v939
        %v977 = vmul.f32 %v974, %v954
        %v978 = vmul.f32 %v975, %v969
        %v979 = vadd.f32 %v976, 1.4214138
        %v980 = vadd.f32 %v977, 1.4214138
        %v981 = vadd.f32 %v978, 1.4214138
        %v982 = vmul.f32 %v979, %v939
        %v983 = vmul.f32 %v980, %v954
        %v984 = vmul.f32 %v981, %v969
        %v985 = vadd.f32 %v982, -0.28449672
        %v986 = vadd.f32 %v983, -0.28449672
        %v987 = vadd.f32 %v984, -0.28449672
        %v988 = vmul.f32 %v985, %v939
        %v989 = vmul.f32 %v986, %v954
        %v990 = vmul.f32 %v987, %v969
        %v991 = vadd.f32 %v988, 0.2548296
        %v992 = vadd.f32 %v989, 0.2548296
        %v993 = vadd.f32 %v990, 0.2548296
        %v994 = vmul.f32 %v991, %v939
        %v995 = vmul.f32 %v992, %v954
        %v996 = vmul.f32 %v993, %v969
        %v997 = vsub.f32 0.0, %v916
        %v998 = vsub.f32 0.0, %v917
        %v999 = vsub.f32 0.0, %v918
        %v1000 = vmul.f32 %v997, %v916
        %v1001 = vmul.f32 %v998, %v917
        %v1002 = vmul.f32 %v999, %v918
        %v1003 = vmul.f32 %v1000, 1.442695
        %v1004 = vpow.pop %v1003
        %v1005 = vmul.f32 %v1001, 1.442695
        %v1006 = vpow.pop %v1005
        %v1007 = vmul.f32 %v1002, 1.442695
        %v1008 = vpow.pop %v1007
        %v1009 = vmul.f32 %v994, %v1004
        %v1010 = vmul.f32 %v995, %v1006
        %v1011 = vmul.f32 %v996, %v1008
        %v1012 = vsub.f32 1.0, %v1009
        %v1013 = vsub.f32 1.0, %v1010
        %v1014 = vsub.f32 1.0, %v1011
        %v1015 = vmul.f32 %v913, %v1012
        %v1016 = vmul.f32 %v914, %v1013
        %v1017 = vmul.f32 %v915, %v1014
        %v1018 = vadd.f32 %v1015, 1.0
        %v1019 = vadd.f32 %v1016, 1.0
        %v1020 = vadd.f32 %v1017, 1.0
        %v1021 = vmul.f32 %v897, %v1018
        %v1022 = vmul.f32 %v898, %v1019
        %v1023 = vmul.f32 %v899, %v1020
        %v1024 = vmul.f32 %v1021, 19.595919
        %v1025 = vmul.f32 %v1022, 19.595919
        %v1026 = vmul.f32 %v1023, 19.595919
        %v1027 = vld [vmem:[%s6] sm:$0xff]
        %v1028 = vld [vmem:[%s6 + $0x8] sm:$0xff]
        %v1029 = vld [vmem:[%s6 + $0x10] sm:$0xff]
        %v1030 = vadd.f32 %v1024, %v1027
        %v1031 = vadd.f32 %v1025, %v1028
        %v1032 = vadd.f32 %v1026, %v1029
        %v1033 = vpack.c.bf16 %v1030, %v1030
        %v1034 = vpack.c.bf16 %v1031, %v1031
        %v1035 = vpack.c.bf16 %v1032, %v1032
        %v1036 = vld [vmem:[%s7] sm:$0xff]
        %v1037 = vld [vmem:[%s7 + $0x8] sm:$0xff]
        %v1038 = vld [vmem:[%s7 + $0x10] sm:$0xff]
        %v1039 = vld [vmem:[%s7 + $0x18] sm:$0xff]
        %v1040 = vld [vmem:[%s7 + $0x20] sm:$0xf]
        %v1041 = vld [vmem:[%s7 + $0x24] sm:$0xff]
        %v1042 = vld [vmem:[%s7 + $0x2c] sm:$0xff]
        %v1043 = vld [vmem:[%s7 + $0x34] sm:$0xff]
        %v1044 = vld [vmem:[%s7 + $0x3c] sm:$0xff]
        %v1045 = vld [vmem:[%s7 + $0x44] sm:$0xf]
        %v1046 = vld [vmem:[%s7 + $0x48] sm:$0xff]
        %v1047 = vld [vmem:[%s7 + $0x50] sm:$0xff]
        %v1048 = vld [vmem:[%s7 + $0x58] sm:$0xff]
        %v1049 = vld [vmem:[%s7 + $0x60] sm:$0xff]
        %v1050 = vld [vmem:[%s7 + $0x68] sm:$0xf]
        %v1051 = vld [vmem:[%s7 + $0x6c] sm:$0xff]
        %v1052 = vld [vmem:[%s7 + $0x74] sm:$0xff]
        %v1053 = vld [vmem:[%s7 + $0x7c] sm:$0xff]
        %v1054 = vld [vmem:[%s7 + $0x84] sm:$0xff]
        %v1055 = vld [vmem:[%s7 + $0x8c] sm:$0xf]
        %v1056 = vld [vmem:[%s7 + $0x90] sm:$0xff]
        %v1057 = vld [vmem:[%s7 + $0x98] sm:$0xff]
        %v1058 = vld [vmem:[%s7 + $0xa0] sm:$0xff]
        %v1059 = vld [vmem:[%s7 + $0xa8] sm:$0xff]
        %v1060 = vld [vmem:[%s7 + $0xb0] sm:$0xf]
        %v1061 = vld [vmem:[%s7 + $0xb4] sm:$0xff]
        %v1062 = vld [vmem:[%s7 + $0xbc] sm:$0xff]
        %v1063 = vld [vmem:[%s7 + $0xc4] sm:$0xff]
        %v1064 = vld [vmem:[%s7 + $0xcc] sm:$0xff]
        %v1065 = vld [vmem:[%s7 + $0xd4] sm:$0xf]
        %v1066 = vld [vmem:[%s7 + $0xd8] sm:$0xff]
        %v1067 = vld [vmem:[%s7 + $0xe0] sm:$0xff]
        %v1068 = vld [vmem:[%s7 + $0xe8] sm:$0xff]
        %v1069 = vld [vmem:[%s7 + $0xf0] sm:$0xff]
        %v1070 = vld [vmem:[%s7 + $0xf8] sm:$0xf]
        %v1071 = vld [vmem:[%s7 + $0xfc] sm:$0xff]
        %v1072 = vld [vmem:[%s7 + $0x104] sm:$0xff]
        %v1073 = vld [vmem:[%s7 + $0x10c] sm:$0xff]
        %v1074 = vld [vmem:[%s7 + $0x114] sm:$0xff]
        %v1075 = vld [vmem:[%s7 + $0x11c] sm:$0xf]
        %v1076 = vld [vmem:[%s7 + $0x120] sm:$0xff]
        %v1077 = vld [vmem:[%s7 + $0x128] sm:$0xff]
        %v1078 = vld [vmem:[%s7 + $0x130] sm:$0xff]
        %v1079 = vld [vmem:[%s7 + $0x138] sm:$0xff]
        %v1080 = vld [vmem:[%s7 + $0x140] sm:$0xf]
        %v1081 = vld [vmem:[%s7 + $0x144] sm:$0xff]
        %v1082 = vld [vmem:[%s7 + $0x14c] sm:$0xff]
        %v1083 = vld [vmem:[%s7 + $0x154] sm:$0xff]
        %v1084 = vld [vmem:[%s7 + $0x15c] sm:$0xff]
        %v1085 = vld [vmem:[%s7 + $0x164] sm:$0xf]
        %v1086 = vld [vmem:[%s7 + $0x168] sm:$0xff]
        %v1087 = vld [vmem:[%s7 + $0x170] sm:$0xff]
        %v1088 = vld [vmem:[%s7 + $0x178] sm:$0xff]
        %v1089 = vld [vmem:[%s7 + $0x180] sm:$0xff]
        %v1090 = vld [vmem:[%s7 + $0x188] sm:$0xf]
        %v1091 = vld [vmem:[%s7 + $0x18c] sm:$0xff]
        %v1092 = vld [vmem:[%s7 + $0x194] sm:$0xff]
        %v1093 = vld [vmem:[%s7 + $0x19c] sm:$0xff]
        %v1094 = vld [vmem:[%s7 + $0x1a4] sm:$0xff]
        %v1095 = vld [vmem:[%s7 + $0x1ac] sm:$0xf]
        %v1096 = vld [vmem:[%s7 + $0x1b0] sm:$0xff]
        %v1097 = vld [vmem:[%s7 + $0x1b8] sm:$0xff]
        %v1098 = vld [vmem:[%s7 + $0x1c0] sm:$0xff]
        %v1099 = vld [vmem:[%s7 + $0x1c8] sm:$0xff]
        %v1100 = vld [vmem:[%s7 + $0x1d0] sm:$0xf]
        %v1101 = vld [vmem:[%s7 + $0x1d4] sm:$0xff]
        %v1102 = vld [vmem:[%s7 + $0x1dc] sm:$0xff]
        %v1103 = vld [vmem:[%s7 + $0x1e4] sm:$0xff]
        %v1104 = vld [vmem:[%s7 + $0x1ec] sm:$0xff]
        %v1105 = vld [vmem:[%s7 + $0x1f4] sm:$0xf]
        %v1106 = vld [vmem:[%s7 + $0x1f8] sm:$0xff]
        %v1107 = vld [vmem:[%s7 + $0x200] sm:$0xff]
        %v1108 = vld [vmem:[%s7 + $0x208] sm:$0xff]
        %v1109 = vld [vmem:[%s7 + $0x210] sm:$0xff]
        %v1110 = vld [vmem:[%s7 + $0x218] sm:$0xf]
        %v1111 = vld [vmem:[%s7 + $0x21c] sm:$0xff]
        %v1112 = vld [vmem:[%s7 + $0x224] sm:$0xff]
        %v1113 = vld [vmem:[%s7 + $0x22c] sm:$0xff]
        %v1114 = vld [vmem:[%s7 + $0x234] sm:$0xff]
        %v1115 = vld [vmem:[%s7 + $0x23c] sm:$0xf]
        %v1116 = vld [vmem:[%s7 + $0x240] sm:$0xff]
        %v1117 = vld [vmem:[%s7 + $0x248] sm:$0xff]
        %v1118 = vld [vmem:[%s7 + $0x250] sm:$0xff]
        %v1119 = vld [vmem:[%s7 + $0x258] sm:$0xff]
        %v1120 = vld [vmem:[%s7 + $0x260] sm:$0xf]
        %v1121 = vld [vmem:[%s7 + $0x264] sm:$0xff]
        %v1122 = vld [vmem:[%s7 + $0x26c] sm:$0xff]
        %v1123 = vld [vmem:[%s7 + $0x274] sm:$0xff]
        %v1124 = vld [vmem:[%s7 + $0x27c] sm:$0xff]
        %v1125 = vld [vmem:[%s7 + $0x284] sm:$0xf]
        %v1126 = vld [vmem:[%s7 + $0x288] sm:$0xff]
        %v1127 = vld [vmem:[%s7 + $0x290] sm:$0xff]
        %v1128 = vld [vmem:[%s7 + $0x298] sm:$0xff]
        %v1129 = vld [vmem:[%s7 + $0x2a0] sm:$0xff]
        %v1130 = vld [vmem:[%s7 + $0x2a8] sm:$0xf]
        %v1131 = vld [vmem:[%s7 + $0x2ac] sm:$0xff]
        %v1132 = vld [vmem:[%s7 + $0x2b4] sm:$0xff]
        %v1133 = vld [vmem:[%s7 + $0x2bc] sm:$0xff]
        %v1134 = vld [vmem:[%s7 + $0x2c4] sm:$0xff]
        %v1135 = vld [vmem:[%s7 + $0x2cc] sm:$0xf]
        %v1136 = vld [vmem:[%s7 + $0x2d0] sm:$0xff]
        %v1137 = vld [vmem:[%s7 + $0x2d8] sm:$0xff]
        %v1138 = vld [vmem:[%s7 + $0x2e0] sm:$0xff]
        %v1139 = vld [vmem:[%s7 + $0x2e8] sm:$0xff]
        %v1140 = vld [vmem:[%s7 + $0x2f0] sm:$0xf]
        %v1141 = vld [vmem:[%s7 + $0x2f4] sm:$0xff]
        %v1142 = vld [vmem:[%s7 + $0x2fc] sm:$0xff]
        %v1143 = vld [vmem:[%s7 + $0x304] sm:$0xff]
        %v1144 = vld [vmem:[%s7 + $0x30c] sm:$0xff]
        %v1145 = vld [vmem:[%s7 + $0x314] sm:$0xf]
        %v1146 = vld [vmem:[%s7 + $0x318] sm:$0xff]
        %v1147 = vld [vmem:[%s7 + $0x320] sm:$0xff]
        %v1148 = vld [vmem:[%s7 + $0x328] sm:$0xff]
        %v1149 = vld [vmem:[%s7 + $0x330] sm:$0xff]
        %v1150 = vld [vmem:[%s7 + $0x338] sm:$0xf]
        %v1151 = vld [vmem:[%s7 + $0x33c] sm:$0xff]
        %v1152 = vld [vmem:[%s7 + $0x344] sm:$0xff]
        %v1153 = vld [vmem:[%s7 + $0x34c] sm:$0xff]
        %v1154 = vld [vmem:[%s7 + $0x354] sm:$0xff]
        %v1155 = vld [vmem:[%s7 + $0x35c] sm:$0xf]
        %v1156 = vld [vmem:[%s7 + $0x360] sm:$0xff]
        %v1157 = vld [vmem:[%s7 + $0x368] sm:$0xff]
        %v1158 = vld [vmem:[%s7 + $0x370] sm:$0xff]
        %v1159 = vld [vmem:[%s7 + $0x378] sm:$0xff]
        %v1160 = vld [vmem:[%s7 + $0x380] sm:$0xf]
        %v1161 = vld [vmem:[%s7 + $0x384] sm:$0xff]
        %v1162 = vld [vmem:[%s7 + $0x38c] sm:$0xff]
        %v1163 = vld [vmem:[%s7 + $0x394] sm:$0xff]
        %v1164 = vld [vmem:[%s7 + $0x39c] sm:$0xff]
        %v1165 = vld [vmem:[%s7 + $0x3a4] sm:$0xf]
        %v1166 = vld [vmem:[%s7 + $0x3a8] sm:$0xff]
        %v1167 = vld [vmem:[%s7 + $0x3b0] sm:$0xff]
        %v1168 = vld [vmem:[%s7 + $0x3b8] sm:$0xff]
        %v1169 = vld [vmem:[%s7 + $0x3c0] sm:$0xff]
        %v1170 = vld [vmem:[%s7 + $0x3c8] sm:$0xf]
        %v1171 = vld [vmem:[%s7 + $0x3cc] sm:$0xff]
        %v1172 = vld [vmem:[%s7 + $0x3d4] sm:$0xff]
        %v1173 = vld [vmem:[%s7 + $0x3dc] sm:$0xff]
        %v1174 = vld [vmem:[%s7 + $0x3e4] sm:$0xff]
        %v1175 = vld [vmem:[%s7 + $0x3ec] sm:$0xf]
        %v1176 = vld [vmem:[%s7 + $0x3f0] sm:$0xff]
        %v1177 = vld [vmem:[%s7 + $0x3f8] sm:$0xff]
        %v1178 = vld [vmem:[%s7 + $0x400] sm:$0xff]
        %v1179 = vld [vmem:[%s7 + $0x408] sm:$0xff]
        %v1180 = vld [vmem:[%s7 + $0x410] sm:$0xf]
        %v1181 = vld [vmem:[%s7 + $0x414] sm:$0xff]
        %v1182 = vld [vmem:[%s7 + $0x41c] sm:$0xff]
        %v1183 = vld [vmem:[%s7 + $0x424] sm:$0xff]
        %v1184 = vld [vmem:[%s7 + $0x42c] sm:$0xff]
        %v1185 = vld [vmem:[%s7 + $0x434] sm:$0xf]
        %v1186 = vld [vmem:[%s7 + $0x438] sm:$0xff]
        %v1187 = vld [vmem:[%s7 + $0x440] sm:$0xff]
        %v1188 = vld [vmem:[%s7 + $0x448] sm:$0xff]
        %v1189 = vld [vmem:[%s7 + $0x450] sm:$0xff]
        %v1190 = vld [vmem:[%s7 + $0x458] sm:$0xf]
        %v1191 = vld [vmem:[%s7 + $0x45c] sm:$0xff]
        %v1192 = vld [vmem:[%s7 + $0x464] sm:$0xff]
        %v1193 = vld [vmem:[%s7 + $0x46c] sm:$0xff]
        %v1194 = vld [vmem:[%s7 + $0x474] sm:$0xff]
        %v1195 = vld [vmem:[%s7 + $0x47c] sm:$0xf]
        %v1196 = vld [vmem:[%s7 + $0x480] sm:$0xff]
        %v1197 = vld [vmem:[%s7 + $0x488] sm:$0xff]
        %v1198 = vld [vmem:[%s7 + $0x490] sm:$0xff]
        %v1199 = vld [vmem:[%s7 + $0x498] sm:$0xff]
        %v1200 = vld [vmem:[%s7 + $0x4a0] sm:$0xf]
        %v1201 = vld [vmem:[%s7 + $0x4a4] sm:$0xff]
        %v1202 = vld [vmem:[%s7 + $0x4ac] sm:$0xff]
        %v1203 = vld [vmem:[%s7 + $0x4b4] sm:$0xff]
        %v1204 = vld [vmem:[%s7 + $0x4bc] sm:$0xff]
        %v1205 = vld [vmem:[%s7 + $0x4c4] sm:$0xf]
        %v1206 = vld [vmem:[%s7 + $0x4c8] sm:$0xff]
        %v1207 = vld [vmem:[%s7 + $0x4d0] sm:$0xff]
        %v1208 = vld [vmem:[%s7 + $0x4d8] sm:$0xff]
        %v1209 = vld [vmem:[%s7 + $0x4e0] sm:$0xff]
        %v1210 = vld [vmem:[%s7 + $0x4e8] sm:$0xf]
        %v1211 = vld [vmem:[%s7 + $0x4ec] sm:$0xff]
        %v1212 = vld [vmem:[%s7 + $0x4f4] sm:$0xff]
        %v1213 = vld [vmem:[%s7 + $0x4fc] sm:$0xff]
        %v1214 = vld [vmem:[%s7 + $0x504] sm:$0xff]
        %v1215 = vld [vmem:[%s7 + $0x50c] sm:$0xf]
        %v1216 = vld [vmem:[%s7 + $0x510] sm:$0xff]
        %v1217 = vld [vmem:[%s7 + $0x518] sm:$0xff]
        %v1218 = vld [vmem:[%s7 + $0x520] sm:$0xff]
        %v1219 = vld [vmem:[%s7 + $0x528] sm:$0xff]
        %v1220 = vld [vmem:[%s7 + $0x530] sm:$0xf]
        %v1221 = vld [vmem:[%s7 + $0x534] sm:$0xff]
        %v1222 = vld [vmem:[%s7 + $0x53c] sm:$0xff]
        %v1223 = vld [vmem:[%s7 + $0x544] sm:$0xff]
        %v1224 = vld [vmem:[%s7 + $0x54c] sm:$0xff]
        %v1225 = vld [vmem:[%s7 + $0x554] sm:$0xf]
        %v1226 = vld [vmem:[%s7 + $0x558] sm:$0xff]
        %v1227 = vld [vmem:[%s7 + $0x560] sm:$0xff]
        %v1228 = vld [vmem:[%s7 + $0x568] sm:$0xff]
        %v1229 = vld [vmem:[%s7 + $0x570] sm:$0xff]
        %v1230 = vld [vmem:[%s7 + $0x578] sm:$0xf]
        %v1231 = vld [vmem:[%s7 + $0x57c] sm:$0xff]
        %v1232 = vld [vmem:[%s7 + $0x584] sm:$0xff]
        %v1233 = vld [vmem:[%s7 + $0x58c] sm:$0xff]
        %v1234 = vld [vmem:[%s7 + $0x594] sm:$0xff]
        %v1235 = vld [vmem:[%s7 + $0x59c] sm:$0xf]
        %v1236 = vld [vmem:[%s7 + $0x5a0] sm:$0xff]
        %v1237 = vld [vmem:[%s7 + $0x5a8] sm:$0xff]
        %v1238 = vld [vmem:[%s7 + $0x5b0] sm:$0xff]
        %v1239 = vld [vmem:[%s7 + $0x5b8] sm:$0xff]
        %v1240 = vld [vmem:[%s7 + $0x5c0] sm:$0xf]
        %v1241 = vld [vmem:[%s7 + $0x5c4] sm:$0xff]
        %v1242 = vld [vmem:[%s7 + $0x5cc] sm:$0xff]
        %v1243 = vld [vmem:[%s7 + $0x5d4] sm:$0xff]
        %v1244 = vld [vmem:[%s7 + $0x5dc] sm:$0xff]
        %v1245 = vld [vmem:[%s7 + $0x5e4] sm:$0xf]
        %v1246 = vld [vmem:[%s7 + $0x5e8] sm:$0xff]
        %v1247 = vld [vmem:[%s7 + $0x5f0] sm:$0xff]
        %v1248 = vld [vmem:[%s7 + $0x5f8] sm:$0xff]
        %v1249 = vld [vmem:[%s7 + $0x600] sm:$0xff]
        %v1250 = vld [vmem:[%s7 + $0x608] sm:$0xf]
        %v1251 = vld [vmem:[%s7 + $0x60c] sm:$0xff]
        %v1252 = vld [vmem:[%s7 + $0x614] sm:$0xff]
        %v1253 = vld [vmem:[%s7 + $0x61c] sm:$0xff]
        %v1254 = vld [vmem:[%s7 + $0x624] sm:$0xff]
        %v1255 = vld [vmem:[%s7 + $0x62c] sm:$0xf]
        %v1256 = vld [vmem:[%s7 + $0x630] sm:$0xff]
        %v1257 = vld [vmem:[%s7 + $0x638] sm:$0xff]
        %v1258 = vld [vmem:[%s7 + $0x640] sm:$0xff]
        %v1259 = vld [vmem:[%s7 + $0x648] sm:$0xff]
        %v1260 = vld [vmem:[%s7 + $0x650] sm:$0xf]
        %v1261 = vld [vmem:[%s7 + $0x654] sm:$0xff]
        %v1262 = vld [vmem:[%s7 + $0x65c] sm:$0xff]
        %v1263 = vld [vmem:[%s7 + $0x664] sm:$0xff]
        %v1264 = vld [vmem:[%s7 + $0x66c] sm:$0xff]
        %v1265 = vld [vmem:[%s7 + $0x674] sm:$0xf]
        %v1266 = vld [vmem:[%s7 + $0x678] sm:$0xff]
        %v1267 = vld [vmem:[%s7 + $0x680] sm:$0xff]
        %v1268 = vld [vmem:[%s7 + $0x688] sm:$0xff]
        %v1269 = vld [vmem:[%s7 + $0x690] sm:$0xff]
        %v1270 = vld [vmem:[%s7 + $0x698] sm:$0xf]
        %v1271 = vld [vmem:[%s7 + $0x69c] sm:$0xff]
        %v1272 = vld [vmem:[%s7 + $0x6a4] sm:$0xff]
        %v1273 = vld [vmem:[%s7 + $0x6ac] sm:$0xff]
        %v1274 = vld [vmem:[%s7 + $0x6b4] sm:$0xff]
        %v1275 = vld [vmem:[%s7 + $0x6bc] sm:$0xf]
        %v1276 = vld [vmem:[%s8] sm:$0xff]
        %v1277 = vld [vmem:[%s8 + $0x8] sm:$0x1]
        %v1280 = vperm.slane %v1276, 0
        %v1281 = vperm.slane %v1276, 1
        %v1282 = vperm.slane %v1276, 2
        %v1283 = vperm.slane %v1276, 3
        %v1284 = vperm.slane %v1276, 4
        %v1285 = vperm.slane %v1276, 5
        %v1286 = vperm.slane %v1276, 6
        %v1287 = vperm.slane %v1276, 7
        %v1288 = vperm.slane %v1277, 0
        %v1538 = vunpack.c.l.b16 %v1036
        %v1539 = vunpack.c.h.b16 %v1036
        %v1540 = vunpack.c.l.b16 %v1037
        %v1541 = vunpack.c.h.b16 %v1037
        %v1542 = vunpack.c.l.b16 %v1038
        %v1543 = vunpack.c.h.b16 %v1038
        %v1544 = vunpack.c.l.b16 %v1039
        %v1545 = vunpack.c.h.b16 %v1039
        %v1546 = vunpack.c.l.b16 %v1040
        %v1547 = vunpack.c.l.b16 %v1041
        %v1548 = vunpack.c.h.b16 %v1041
        %v1549 = vunpack.c.l.b16 %v1042
        %v1550 = vunpack.c.h.b16 %v1042
        %v1551 = vunpack.c.l.b16 %v1043
        %v1552 = vunpack.c.h.b16 %v1043
        %v1553 = vunpack.c.l.b16 %v1044
        %v1554 = vunpack.c.h.b16 %v1044
        %v1555 = vunpack.c.l.b16 %v1045
        %v1556 = vunpack.c.l.b16 %v1046
        %v1557 = vunpack.c.h.b16 %v1046
        %v1558 = vunpack.c.l.b16 %v1047
        %v1559 = vunpack.c.h.b16 %v1047
        %v1560 = vunpack.c.l.b16 %v1048
        %v1561 = vunpack.c.h.b16 %v1048
        %v1562 = vunpack.c.l.b16 %v1049
        %v1563 = vunpack.c.h.b16 %v1049
        %v1564 = vunpack.c.l.b16 %v1050
        %v1565 = vunpack.c.l.b16 %v1051
        %v1566 = vunpack.c.h.b16 %v1051
        %v1567 = vunpack.c.l.b16 %v1052
        %v1568 = vunpack.c.h.b16 %v1052
        %v1569 = vunpack.c.l.b16 %v1053
        %v1570 = vunpack.c.h.b16 %v1053
        %v1571 = vunpack.c.l.b16 %v1054
        %v1572 = vunpack.c.h.b16 %v1054
        %v1573 = vunpack.c.l.b16 %v1055
        %v1574 = vunpack.c.l.b16 %v1056
        %v1575 = vunpack.c.h.b16 %v1056
        %v1576 = vunpack.c.l.b16 %v1057
        %v1577 = vunpack.c.h.b16 %v1057
        %v1578 = vunpack.c.l.b16 %v1058
        %v1579 = vunpack.c.h.b16 %v1058
        %v1580 = vunpack.c.l.b16 %v1059
        %v1581 = vunpack.c.h.b16 %v1059
        %v1582 = vunpack.c.l.b16 %v1060
        %v1583 = vunpack.c.l.b16 %v1061
        %v1584 = vunpack.c.h.b16 %v1061
        %v1585 = vunpack.c.l.b16 %v1062
        %v1586 = vunpack.c.h.b16 %v1062
        %v1587 = vunpack.c.l.b16 %v1063
        %v1588 = vunpack.c.h.b16 %v1063
        %v1589 = vunpack.c.l.b16 %v1064
        %v1590 = vunpack.c.h.b16 %v1064
        %v1591 = vunpack.c.l.b16 %v1065
        %v1592 = vunpack.c.l.b16 %v1066
        %v1593 = vunpack.c.h.b16 %v1066
        %v1594 = vunpack.c.l.b16 %v1067
        %v1595 = vunpack.c.h.b16 %v1067
        %v1596 = vunpack.c.l.b16 %v1068
        %v1597 = vunpack.c.h.b16 %v1068
        %v1598 = vunpack.c.l.b16 %v1069
        %v1599 = vunpack.c.h.b16 %v1069
        %v1600 = vunpack.c.l.b16 %v1070
        %v1601 = vunpack.c.l.b16 %v1071
        %v1602 = vunpack.c.h.b16 %v1071
        %v1603 = vunpack.c.l.b16 %v1072
        %v1604 = vunpack.c.h.b16 %v1072
        %v1605 = vunpack.c.l.b16 %v1073
        %v1606 = vunpack.c.h.b16 %v1073
        %v1607 = vunpack.c.l.b16 %v1074
        %v1608 = vunpack.c.h.b16 %v1074
        %v1609 = vunpack.c.l.b16 %v1075
        %v1610 = vunpack.c.l.b16 %v1076
        %v1611 = vunpack.c.h.b16 %v1076
        %v1612 = vunpack.c.l.b16 %v1077
        %v1613 = vunpack.c.h.b16 %v1077
        %v1614 = vunpack.c.l.b16 %v1078
        %v1615 = vunpack.c.h.b16 %v1078
        %v1616 = vunpack.c.l.b16 %v1079
        %v1617 = vunpack.c.h.b16 %v1079
        %v1618 = vunpack.c.l.b16 %v1080
        %v1619 = vunpack.c.l.b16 %v1081
        %v1620 = vunpack.c.h.b16 %v1081
        %v1621 = vunpack.c.l.b16 %v1082
        %v1622 = vunpack.c.h.b16 %v1082
        %v1623 = vunpack.c.l.b16 %v1083
        %v1624 = vunpack.c.h.b16 %v1083
        %v1625 = vunpack.c.l.b16 %v1084
        %v1626 = vunpack.c.h.b16 %v1084
        %v1627 = vunpack.c.l.b16 %v1085
        %v1628 = vunpack.c.l.b16 %v1086
        %v1629 = vunpack.c.h.b16 %v1086
        %v1630 = vunpack.c.l.b16 %v1087
        %v1631 = vunpack.c.h.b16 %v1087
        %v1632 = vunpack.c.l.b16 %v1088
        %v1633 = vunpack.c.h.b16 %v1088
        %v1634 = vunpack.c.l.b16 %v1089
        %v1635 = vunpack.c.h.b16 %v1089
        %v1636 = vunpack.c.l.b16 %v1090
        %v1637 = vunpack.c.l.b16 %v1091
        %v1638 = vunpack.c.h.b16 %v1091
        %v1639 = vunpack.c.l.b16 %v1092
        %v1640 = vunpack.c.h.b16 %v1092
        %v1641 = vunpack.c.l.b16 %v1093
        %v1642 = vunpack.c.h.b16 %v1093
        %v1643 = vunpack.c.l.b16 %v1094
        %v1644 = vunpack.c.h.b16 %v1094
        %v1645 = vunpack.c.l.b16 %v1095
        %v1646 = vunpack.c.l.b16 %v1096
        %v1647 = vunpack.c.h.b16 %v1096
        %v1648 = vunpack.c.l.b16 %v1097
        %v1649 = vunpack.c.h.b16 %v1097
        %v1650 = vunpack.c.l.b16 %v1098
        %v1651 = vunpack.c.h.b16 %v1098
        %v1652 = vunpack.c.l.b16 %v1099
        %v1653 = vunpack.c.h.b16 %v1099
        %v1654 = vunpack.c.l.b16 %v1100
        %v1655 = vunpack.c.l.b16 %v1101
        %v1656 = vunpack.c.h.b16 %v1101
        %v1657 = vunpack.c.l.b16 %v1102
        %v1658 = vunpack.c.h.b16 %v1102
        %v1659 = vunpack.c.l.b16 %v1103
        %v1660 = vunpack.c.h.b16 %v1103
        %v1661 = vunpack.c.l.b16 %v1104
        %v1662 = vunpack.c.h.b16 %v1104
        %v1663 = vunpack.c.l.b16 %v1105
        %v1664 = vunpack.c.l.b16 %v1106
        %v1665 = vunpack.c.h.b16 %v1106
        %v1666 = vunpack.c.l.b16 %v1107
        %v1667 = vunpack.c.h.b16 %v1107
        %v1668 = vunpack.c.l.b16 %v1108
        %v1669 = vunpack.c.h.b16 %v1108
        %v1670 = vunpack.c.l.b16 %v1109
        %v1671 = vunpack.c.h.b16 %v1109
        %v1672 = vunpack.c.l.b16 %v1110
        %v1673 = vunpack.c.l.b16 %v1111
        %v1674 = vunpack.c.h.b16 %v1111
        %v1675 = vunpack.c.l.b16 %v1112
        %v1676 = vunpack.c.h.b16 %v1112
        %v1677 = vunpack.c.l.b16 %v1113
        %v1678 = vunpack.c.h.b16 %v1113
        %v1679 = vunpack.c.l.b16 %v1114
        %v1680 = vunpack.c.h.b16 %v1114
        %v1681 = vunpack.c.l.b16 %v1115
        %v1682 = vunpack.c.l.b16 %v1116
        %v1683 = vunpack.c.h.b16 %v1116
        %v1684 = vunpack.c.l.b16 %v1117
        %v1685 = vunpack.c.h.b16 %v1117
        %v1686 = vunpack.c.l.b16 %v1118
        %v1687 = vunpack.c.h.b16 %v1118
        %v1688 = vunpack.c.l.b16 %v1119
        %v1689 = vunpack.c.h.b16 %v1119
        %v1690 = vunpack.c.l.b16 %v1120
        %v1691 = vunpack.c.l.b16 %v1121
        %v1692 = vunpack.c.h.b16 %v1121
        %v1693 = vunpack.c.l.b16 %v1122
        %v1694 = vunpack.c.h.b16 %v1122
        %v1695 = vunpack.c.l.b16 %v1123
        %v1696 = vunpack.c.h.b16 %v1123
        %v1697 = vunpack.c.l.b16 %v1124
        %v1698 = vunpack.c.h.b16 %v1124
        %v1699 = vunpack.c.l.b16 %v1125
        %v1700 = vunpack.c.l.b16 %v1126
        %v1701 = vunpack.c.h.b16 %v1126
        %v1702 = vunpack.c.l.b16 %v1127
        %v1703 = vunpack.c.h.b16 %v1127
        %v1704 = vunpack.c.l.b16 %v1128
        %v1705 = vunpack.c.h.b16 %v1128
        %v1706 = vunpack.c.l.b16 %v1129
        %v1707 = vunpack.c.h.b16 %v1129
        %v1708 = vunpack.c.l.b16 %v1130
        %v1709 = vunpack.c.l.b16 %v1131
        %v1710 = vunpack.c.h.b16 %v1131
        %v1711 = vunpack.c.l.b16 %v1132
        %v1712 = vunpack.c.h.b16 %v1132
        %v1713 = vunpack.c.l.b16 %v1133
        %v1714 = vunpack.c.h.b16 %v1133
        %v1715 = vunpack.c.l.b16 %v1134
        %v1716 = vunpack.c.h.b16 %v1134
        %v1717 = vunpack.c.l.b16 %v1135
        %v1718 = vunpack.c.l.b16 %v1136
        %v1719 = vunpack.c.h.b16 %v1136
        %v1720 = vunpack.c.l.b16 %v1137
        %v1721 = vunpack.c.h.b16 %v1137
        %v1722 = vunpack.c.l.b16 %v1138
        %v1723 = vunpack.c.h.b16 %v1138
        %v1724 = vunpack.c.l.b16 %v1139
        %v1725 = vunpack.c.h.b16 %v1139
        %v1726 = vunpack.c.l.b16 %v1140
        %v1727 = vunpack.c.l.b16 %v1141
        %v1728 = vunpack.c.h.b16 %v1141
        %v1729 = vunpack.c.l.b16 %v1142
        %v1730 = vunpack.c.h.b16 %v1142
        %v1731 = vunpack.c.l.b16 %v1143
        %v1732 = vunpack.c.h.b16 %v1143
        %v1733 = vunpack.c.l.b16 %v1144
        %v1734 = vunpack.c.h.b16 %v1144
        %v1735 = vunpack.c.l.b16 %v1145
        %v1736 = vunpack.c.l.b16 %v1146
        %v1737 = vunpack.c.h.b16 %v1146
        %v1738 = vunpack.c.l.b16 %v1147
        %v1739 = vunpack.c.h.b16 %v1147
        %v1740 = vunpack.c.l.b16 %v1148
        %v1741 = vunpack.c.h.b16 %v1148
        %v1742 = vunpack.c.l.b16 %v1149
        %v1743 = vunpack.c.h.b16 %v1149
        %v1744 = vunpack.c.l.b16 %v1150
        %v1745 = vunpack.c.l.b16 %v1151
        %v1746 = vunpack.c.h.b16 %v1151
        %v1747 = vunpack.c.l.b16 %v1152
        %v1748 = vunpack.c.h.b16 %v1152
        %v1749 = vunpack.c.l.b16 %v1153
        %v1750 = vunpack.c.h.b16 %v1153
        %v1751 = vunpack.c.l.b16 %v1154
        %v1752 = vunpack.c.h.b16 %v1154
        %v1753 = vunpack.c.l.b16 %v1155
        %v1754 = vunpack.c.l.b16 %v1156
        %v1755 = vunpack.c.h.b16 %v1156
        %v1756 = vunpack.c.l.b16 %v1157
        %v1757 = vunpack.c.h.b16 %v1157
        %v1758 = vunpack.c.l.b16 %v1158
        %v1759 = vunpack.c.h.b16 %v1158
        %v1760 = vunpack.c.l.b16 %v1159
        %v1761 = vunpack.c.h.b16 %v1159
        %v1762 = vunpack.c.l.b16 %v1160
        %v1763 = vunpack.c.l.b16 %v1161
        %v1764 = vunpack.c.h.b16 %v1161
        %v1765 = vunpack.c.l.b16 %v1162
        %v1766 = vunpack.c.h.b16 %v1162
        %v1767 = vunpack.c.l.b16 %v1163
        %v1768 = vunpack.c.h.b16 %v1163
        %v1769 = vunpack.c.l.b16 %v1164
        %v1770 = vunpack.c.h.b16 %v1164
        %v1771 = vunpack.c.l.b16 %v1165
        %v1772 = vunpack.c.l.b16 %v1166
        %v1773 = vunpack.c.h.b16 %v1166
        %v1774 = vunpack.c.l.b16 %v1167
        %v1775 = vunpack.c.h.b16 %v1167
        %v1776 = vunpack.c.l.b16 %v1168
        %v1777 = vunpack.c.h.b16 %v1168
        %v1778 = vunpack.c.l.b16 %v1169
        %v1779 = vunpack.c.h.b16 %v1169
        %v1780 = vunpack.c.l.b16 %v1170
        %v1781 = vunpack.c.l.b16 %v1171
        %v1782 = vunpack.c.h.b16 %v1171
        %v1783 = vunpack.c.l.b16 %v1172
        %v1784 = vunpack.c.h.b16 %v1172
        %v1785 = vunpack.c.l.b16 %v1173
        %v1786 = vunpack.c.h.b16 %v1173
        %v1787 = vunpack.c.l.b16 %v1174
        %v1788 = vunpack.c.h.b16 %v1174
        %v1789 = vunpack.c.l.b16 %v1175
        %v1790 = vunpack.c.l.b16 %v1176
        %v1791 = vunpack.c.h.b16 %v1176
        %v1792 = vunpack.c.l.b16 %v1177
        %v1793 = vunpack.c.h.b16 %v1177
        %v1794 = vunpack.c.l.b16 %v1178
        %v1795 = vunpack.c.h.b16 %v1178
        %v1796 = vunpack.c.l.b16 %v1179
        %v1797 = vunpack.c.h.b16 %v1179
        %v1798 = vunpack.c.l.b16 %v1180
        %v1799 = vunpack.c.l.b16 %v1181
        %v1800 = vunpack.c.h.b16 %v1181
        %v1801 = vunpack.c.l.b16 %v1182
        %v1802 = vunpack.c.h.b16 %v1182
        %v1803 = vunpack.c.l.b16 %v1183
        %v1804 = vunpack.c.h.b16 %v1183
        %v1805 = vunpack.c.l.b16 %v1184
        %v1806 = vunpack.c.h.b16 %v1184
        %v1807 = vunpack.c.l.b16 %v1185
        %v1808 = vunpack.c.l.b16 %v1186
        %v1809 = vunpack.c.h.b16 %v1186
        %v1810 = vunpack.c.l.b16 %v1187
        %v1811 = vunpack.c.h.b16 %v1187
        %v1812 = vunpack.c.l.b16 %v1188
        %v1813 = vunpack.c.h.b16 %v1188
        %v1814 = vunpack.c.l.b16 %v1189
        %v1815 = vunpack.c.h.b16 %v1189
        %v1816 = vunpack.c.l.b16 %v1190
        %v1817 = vunpack.c.l.b16 %v1191
        %v1818 = vunpack.c.h.b16 %v1191
        %v1819 = vunpack.c.l.b16 %v1192
        %v1820 = vunpack.c.h.b16 %v1192
        %v1821 = vunpack.c.l.b16 %v1193
        %v1822 = vunpack.c.h.b16 %v1193
        %v1823 = vunpack.c.l.b16 %v1194
        %v1824 = vunpack.c.h.b16 %v1194
        %v1825 = vunpack.c.l.b16 %v1195
        %v1826 = vunpack.c.l.b16 %v1196
        %v1827 = vunpack.c.h.b16 %v1196
        %v1828 = vunpack.c.l.b16 %v1197
        %v1829 = vunpack.c.h.b16 %v1197
        %v1830 = vunpack.c.l.b16 %v1198
        %v1831 = vunpack.c.h.b16 %v1198
        %v1832 = vunpack.c.l.b16 %v1199
        %v1833 = vunpack.c.h.b16 %v1199
        %v1834 = vunpack.c.l.b16 %v1200
        %v1835 = vunpack.c.l.b16 %v1201
        %v1836 = vunpack.c.h.b16 %v1201
        %v1837 = vunpack.c.l.b16 %v1202
        %v1838 = vunpack.c.h.b16 %v1202
        %v1839 = vunpack.c.l.b16 %v1203
        %v1840 = vunpack.c.h.b16 %v1203
        %v1841 = vunpack.c.l.b16 %v1204
        %v1842 = vunpack.c.h.b16 %v1204
        %v1843 = vunpack.c.l.b16 %v1205
        %v1844 = vunpack.c.l.b16 %v1206
        %v1845 = vunpack.c.h.b16 %v1206
        %v1846 = vunpack.c.l.b16 %v1207
        %v1847 = vunpack.c.h.b16 %v1207
        %v1848 = vunpack.c.l.b16 %v1208
        %v1849 = vunpack.c.h.b16 %v1208
        %v1850 = vunpack.c.l.b16 %v1209
        %v1851 = vunpack.c.h.b16 %v1209
        %v1852 = vunpack.c.l.b16 %v1210
        %v1853 = vunpack.c.l.b16 %v1211
        %v1854 = vunpack.c.h.b16 %v1211
        %v1855 = vunpack.c.l.b16 %v1212
        %v1856 = vunpack.c.h.b16 %v1212
        %v1857 = vunpack.c.l.b16 %v1213
        %v1858 = vunpack.c.h.b16 %v1213
        %v1859 = vunpack.c.l.b16 %v1214
        %v1860 = vunpack.c.h.b16 %v1214
        %v1861 = vunpack.c.l.b16 %v1215
        %v1862 = vunpack.c.l.b16 %v1216
        %v1863 = vunpack.c.h.b16 %v1216
        %v1864 = vunpack.c.l.b16 %v1217
        %v1865 = vunpack.c.h.b16 %v1217
        %v1866 = vunpack.c.l.b16 %v1218
        %v1867 = vunpack.c.h.b16 %v1218
        %v1868 = vunpack.c.l.b16 %v1219
        %v1869 = vunpack.c.h.b16 %v1219
        %v1870 = vunpack.c.l.b16 %v1220
        %v1871 = vunpack.c.l.b16 %v1221
        %v1872 = vunpack.c.h.b16 %v1221
        %v1873 = vunpack.c.l.b16 %v1222
        %v1874 = vunpack.c.h.b16 %v1222
        %v1875 = vunpack.c.l.b16 %v1223
        %v1876 = vunpack.c.h.b16 %v1223
        %v1877 = vunpack.c.l.b16 %v1224
        %v1878 = vunpack.c.h.b16 %v1224
        %v1879 = vunpack.c.l.b16 %v1225
        %v1880 = vunpack.c.l.b16 %v1226
        %v1881 = vunpack.c.h.b16 %v1226
        %v1882 = vunpack.c.l.b16 %v1227
        %v1883 = vunpack.c.h.b16 %v1227
        %v1884 = vunpack.c.l.b16 %v1228
        %v1885 = vunpack.c.h.b16 %v1228
        %v1886 = vunpack.c.l.b16 %v1229
        %v1887 = vunpack.c.h.b16 %v1229
        %v1888 = vunpack.c.l.b16 %v1230
        %v1889 = vunpack.c.l.b16 %v1231
        %v1890 = vunpack.c.h.b16 %v1231
        %v1891 = vunpack.c.l.b16 %v1232
        %v1892 = vunpack.c.h.b16 %v1232
        %v1893 = vunpack.c.l.b16 %v1233
        %v1894 = vunpack.c.h.b16 %v1233
        %v1895 = vunpack.c.l.b16 %v1234
        %v1896 = vunpack.c.h.b16 %v1234
        %v1897 = vunpack.c.l.b16 %v1235
        %v1898 = vunpack.c.l.b16 %v1236
        %v1899 = vunpack.c.h.b16 %v1236
        %v1900 = vunpack.c.l.b16 %v1237
        %v1901 = vunpack.c.h.b16 %v1237
        %v1902 = vunpack.c.l.b16 %v1238
        %v1903 = vunpack.c.h.b16 %v1238
        %v1904 = vunpack.c.l.b16 %v1239
        %v1905 = vunpack.c.h.b16 %v1239
        %v1906 = vunpack.c.l.b16 %v1240
        %v1907 = vunpack.c.l.b16 %v1241
        %v1908 = vunpack.c.h.b16 %v1241
        %v1909 = vunpack.c.l.b16 %v1242
        %v1910 = vunpack.c.h.b16 %v1242
        %v1911 = vunpack.c.l.b16 %v1243
        %v1912 = vunpack.c.h.b16 %v1243
        %v1913 = vunpack.c.l.b16 %v1244
        %v1914 = vunpack.c.h.b16 %v1244
        %v1915 = vunpack.c.l.b16 %v1245
        %v1916 = vunpack.c.l.b16 %v1246
        %v1917 = vunpack.c.h.b16 %v1246
        %v1918 = vunpack.c.l.b16 %v1247
        %v1919 = vunpack.c.h.b16 %v1247
        %v1920 = vunpack.c.l.b16 %v1248
        %v1921 = vunpack.c.h.b16 %v1248
        %v1922 = vunpack.c.l.b16 %v1249
        %v1923 = vunpack.c.h.b16 %v1249
        %v1924 = vunpack.c.l.b16 %v1250
        %v1925 = vunpack.c.l.b16 %v1251
        %v1926 = vunpack.c.h.b16 %v1251
        %v1927 = vunpack.c.l.b16 %v1252
        %v1928 = vunpack.c.h.b16 %v1252
        %v1929 = vunpack.c.l.b16 %v1253
        %v1930 = vunpack.c.h.b16 %v1253
        %v1931 = vunpack.c.l.b16 %v1254
        %v1932 = vunpack.c.h.b16 %v1254
        %v1933 = vunpack.c.l.b16 %v1255
        %v1934 = vunpack.c.l.b16 %v1256
        %v1935 = vunpack.c.h.b16 %v1256
        %v1936 = vunpack.c.l.b16 %v1257
        %v1937 = vunpack.c.h.b16 %v1257
        %v1938 = vunpack.c.l.b16 %v1258
        %v1939 = vunpack.c.h.b16 %v1258
        %v1940 = vunpack.c.l.b16 %v1259
        %v1941 = vunpack.c.h.b16 %v1259
        %v1942 = vunpack.c.l.b16 %v1260
        %v1943 = vunpack.c.l.b16 %v1261
        %v1944 = vunpack.c.h.b16 %v1261
        %v1945 = vunpack.c.l.b16 %v1262
        %v1946 = vunpack.c.h.b16 %v1262
        %v1947 = vunpack.c.l.b16 %v1263
        %v1948 = vunpack.c.h.b16 %v1263
        %v1949 = vunpack.c.l.b16 %v1264
        %v1950 = vunpack.c.h.b16 %v1264
        %v1951 = vunpack.c.l.b16 %v1265
        %v1952 = vunpack.c.l.b16 %v1266
        %v1953 = vunpack.c.h.b16 %v1266
        %v1954 = vunpack.c.l.b16 %v1267
        %v1955 = vunpack.c.h.b16 %v1267
        %v1956 = vunpack.c.l.b16 %v1268
        %v1957 = vunpack.c.h.b16 %v1268
        %v1958 = vunpack.c.l.b16 %v1269
        %v1959 = vunpack.c.h.b16 %v1269
        %v1960 = vunpack.c.l.b16 %v1270
        %v1961 = vunpack.c.l.b16 %v1271
        %v1962 = vunpack.c.h.b16 %v1271
        %v1963 = vunpack.c.l.b16 %v1272
        %v1964 = vunpack.c.h.b16 %v1272
        %v1965 = vunpack.c.l.b16 %v1273
        %v1966 = vunpack.c.h.b16 %v1273
        %v1967 = vunpack.c.l.b16 %v1274
        %v1968 = vunpack.c.h.b16 %v1274
        %v1969 = vunpack.c.l.b16 %v1275
        %v1970 = vpack.c.b16 %v1547, %v1538
        %v1971 = vpack.c.b16 %v1548, %v1539
        %v1972 = vpack.c.b16 %v1549, %v1540
        %v1973 = vpack.c.b16 %v1550, %v1541
        %v1974 = vpack.c.b16 %v1551, %v1542
        %v1975 = vpack.c.b16 %v1552, %v1543
        %v1976 = vpack.c.b16 %v1553, %v1544
        %v1977 = vpack.c.b16 %v1554, %v1545
        %v1978 = vpack.c.b16 %v1555, %v1546
        %v1979 = vpack.c.b16 %v1565, %v1556
        %v1980 = vpack.c.b16 %v1566, %v1557
        %v1981 = vpack.c.b16 %v1567, %v1558
        %v1982 = vpack.c.b16 %v1568, %v1559
        %v1983 = vpack.c.b16 %v1569, %v1560
        %v1984 = vpack.c.b16 %v1570, %v1561
        %v1985 = vpack.c.b16 %v1571, %v1562
        %v1986 = vpack.c.b16 %v1572, %v1563
        %v1987 = vpack.c.b16 %v1573, %v1564
        %v1988 = vpack.c.b16 %v1583, %v1574
        %v1989 = vpack.c.b16 %v1584, %v1575
        %v1990 = vpack.c.b16 %v1585, %v1576
        %v1991 = vpack.c.b16 %v1586, %v1577
        %v1992 = vpack.c.b16 %v1587, %v1578
        %v1993 = vpack.c.b16 %v1588, %v1579
        %v1994 = vpack.c.b16 %v1589, %v1580
        %v1995 = vpack.c.b16 %v1590, %v1581
        %v1996 = vpack.c.b16 %v1591, %v1582
        %v1997 = vpack.c.b16 %v1601, %v1592
        %v1998 = vpack.c.b16 %v1602, %v1593
        %v1999 = vpack.c.b16 %v1603, %v1594
        %v2000 = vpack.c.b16 %v1604, %v1595
        %v2001 = vpack.c.b16 %v1605, %v1596
        %v2002 = vpack.c.b16 %v1606, %v1597
        %v2003 = vpack.c.b16 %v1607, %v1598
        %v2004 = vpack.c.b16 %v1608, %v1599
        %v2005 = vpack.c.b16 %v1609, %v1600
        %v2006 = vpack.c.b16 %v1619, %v1610
        %v2007 = vpack.c.b16 %v1620, %v1611
        %v2008 = vpack.c.b16 %v1621, %v1612
        %v2009 = vpack.c.b16 %v1622, %v1613
        %v2010 = vpack.c.b16 %v1623, %v1614
        %v2011 = vpack.c.b16 %v1624, %v1615
        %v2012 = vpack.c.b16 %v1625, %v1616
        %v2013 = vpack.c.b16 %v1626, %v1617
        %v2014 = vpack.c.b16 %v1627, %v1618
        %v2015 = vpack.c.b16 %v1637, %v1628
        %v2016 = vpack.c.b16 %v1638, %v1629
        %v2017 = vpack.c.b16 %v1639, %v1630
        %v2018 = vpack.c.b16 %v1640, %v1631
        %v2019 = vpack.c.b16 %v1641, %v1632
        %v2020 = vpack.c.b16 %v1642, %v1633
        %v2021 = vpack.c.b16 %v1643, %v1634
        %v2022 = vpack.c.b16 %v1644, %v1635
        %v2023 = vpack.c.b16 %v1645, %v1636
        %v2024 = vpack.c.b16 %v1655, %v1646
        %v2025 = vpack.c.b16 %v1656, %v1647
        %v2026 = vpack.c.b16 %v1657, %v1648
        %v2027 = vpack.c.b16 %v1658, %v1649
        %v2028 = vpack.c.b16 %v1659, %v1650
        %v2029 = vpack.c.b16 %v1660, %v1651
        %v2030 = vpack.c.b16 %v1661, %v1652
        %v2031 = vpack.c.b16 %v1662, %v1653
        %v2032 = vpack.c.b16 %v1663, %v1654
        %v2033 = vpack.c.b16 %v1673, %v1664
        %v2034 = vpack.c.b16 %v1674, %v1665
        %v2035 = vpack.c.b16 %v1675, %v1666
        %v2036 = vpack.c.b16 %v1676, %v1667
        %v2037 = vpack.c.b16 %v1677, %v1668
        %v2038 = vpack.c.b16 %v1678, %v1669
        %v2039 = vpack.c.b16 %v1679, %v1670
        %v2040 = vpack.c.b16 %v1680, %v1671
        %v2041 = vpack.c.b16 %v1681, %v1672
        %v2042 = vpack.c.b16 %v1691, %v1682
        %v2043 = vpack.c.b16 %v1692, %v1683
        %v2044 = vpack.c.b16 %v1693, %v1684
        %v2045 = vpack.c.b16 %v1694, %v1685
        %v2046 = vpack.c.b16 %v1695, %v1686
        %v2047 = vpack.c.b16 %v1696, %v1687
        %v2048 = vpack.c.b16 %v1697, %v1688
        %v2049 = vpack.c.b16 %v1698, %v1689
        %v2050 = vpack.c.b16 %v1699, %v1690
        %v2051 = vpack.c.b16 %v1709, %v1700
        %v2052 = vpack.c.b16 %v1710, %v1701
        %v2053 = vpack.c.b16 %v1711, %v1702
        %v2054 = vpack.c.b16 %v1712, %v1703
        %v2055 = vpack.c.b16 %v1713, %v1704
        %v2056 = vpack.c.b16 %v1714, %v1705
        %v2057 = vpack.c.b16 %v1715, %v1706
        %v2058 = vpack.c.b16 %v1716, %v1707
        %v2059 = vpack.c.b16 %v1717, %v1708
        %v2060 = vpack.c.b16 %v1727, %v1718
        %v2061 = vpack.c.b16 %v1728, %v1719
        %v2062 = vpack.c.b16 %v1729, %v1720
        %v2063 = vpack.c.b16 %v1730, %v1721
        %v2064 = vpack.c.b16 %v1731, %v1722
        %v2065 = vpack.c.b16 %v1732, %v1723
        %v2066 = vpack.c.b16 %v1733, %v1724
        %v2067 = vpack.c.b16 %v1734, %v1725
        %v2068 = vpack.c.b16 %v1735, %v1726
        %v2069 = vpack.c.b16 %v1745, %v1736
        %v2070 = vpack.c.b16 %v1746, %v1737
        %v2071 = vpack.c.b16 %v1747, %v1738
        %v2072 = vpack.c.b16 %v1748, %v1739
        %v2073 = vpack.c.b16 %v1749, %v1740
        %v2074 = vpack.c.b16 %v1750, %v1741
        %v2075 = vpack.c.b16 %v1751, %v1742
        %v2076 = vpack.c.b16 %v1752, %v1743
        %v2077 = vpack.c.b16 %v1753, %v1744
        %v2078 = vpack.c.b16 %v1763, %v1754
        %v2079 = vpack.c.b16 %v1764, %v1755
        %v2080 = vpack.c.b16 %v1765, %v1756
        %v2081 = vpack.c.b16 %v1766, %v1757
        %v2082 = vpack.c.b16 %v1767, %v1758
        %v2083 = vpack.c.b16 %v1768, %v1759
        %v2084 = vpack.c.b16 %v1769, %v1760
        %v2085 = vpack.c.b16 %v1770, %v1761
        %v2086 = vpack.c.b16 %v1771, %v1762
        %v2087 = vpack.c.b16 %v1781, %v1772
        %v2088 = vpack.c.b16 %v1782, %v1773
        %v2089 = vpack.c.b16 %v1783, %v1774
        %v2090 = vpack.c.b16 %v1784, %v1775
        %v2091 = vpack.c.b16 %v1785, %v1776
        %v2092 = vpack.c.b16 %v1786, %v1777
        %v2093 = vpack.c.b16 %v1787, %v1778
        %v2094 = vpack.c.b16 %v1788, %v1779
        %v2095 = vpack.c.b16 %v1789, %v1780
        %v2096 = vpack.c.b16 %v1799, %v1790
        %v2097 = vpack.c.b16 %v1800, %v1791
        %v2098 = vpack.c.b16 %v1801, %v1792
        %v2099 = vpack.c.b16 %v1802, %v1793
        %v2100 = vpack.c.b16 %v1803, %v1794
        %v2101 = vpack.c.b16 %v1804, %v1795
        %v2102 = vpack.c.b16 %v1805, %v1796
        %v2103 = vpack.c.b16 %v1806, %v1797
        %v2104 = vpack.c.b16 %v1807, %v1798
        %v2105 = vpack.c.b16 %v1817, %v1808
        %v2106 = vpack.c.b16 %v1818, %v1809
        %v2107 = vpack.c.b16 %v1819, %v1810
        %v2108 = vpack.c.b16 %v1820, %v1811
        %v2109 = vpack.c.b16 %v1821, %v1812
        %v2110 = vpack.c.b16 %v1822, %v1813
        %v2111 = vpack.c.b16 %v1823, %v1814
        %v2112 = vpack.c.b16 %v1824, %v1815
        %v2113 = vpack.c.b16 %v1825, %v1816
        %v2114 = vpack.c.b16 %v1835, %v1826
        %v2115 = vpack.c.b16 %v1836, %v1827
        %v2116 = vpack.c.b16 %v1837, %v1828
        %v2117 = vpack.c.b16 %v1838, %v1829
        %v2118 = vpack.c.b16 %v1839, %v1830
        %v2119 = vpack.c.b16 %v1840, %v1831
        %v2120 = vpack.c.b16 %v1841, %v1832
        %v2121 = vpack.c.b16 %v1842, %v1833
        %v2122 = vpack.c.b16 %v1843, %v1834
        %v2123 = vpack.c.b16 %v1853, %v1844
        %v2124 = vpack.c.b16 %v1854, %v1845
        %v2125 = vpack.c.b16 %v1855, %v1846
        %v2126 = vpack.c.b16 %v1856, %v1847
        %v2127 = vpack.c.b16 %v1857, %v1848
        %v2128 = vpack.c.b16 %v1858, %v1849
        %v2129 = vpack.c.b16 %v1859, %v1850
        %v2130 = vpack.c.b16 %v1860, %v1851
        %v2131 = vpack.c.b16 %v1861, %v1852
        %v2132 = vpack.c.b16 %v1871, %v1862
        %v2133 = vpack.c.b16 %v1872, %v1863
        %v2134 = vpack.c.b16 %v1873, %v1864
        %v2135 = vpack.c.b16 %v1874, %v1865
        %v2136 = vpack.c.b16 %v1875, %v1866
        %v2137 = vpack.c.b16 %v1876, %v1867
        %v2138 = vpack.c.b16 %v1877, %v1868
        %v2139 = vpack.c.b16 %v1878, %v1869
        %v2140 = vpack.c.b16 %v1879, %v1870
        %v2141 = vpack.c.b16 %v1889, %v1880
        %v2142 = vpack.c.b16 %v1890, %v1881
        %v2143 = vpack.c.b16 %v1891, %v1882
        %v2144 = vpack.c.b16 %v1892, %v1883
        %v2145 = vpack.c.b16 %v1893, %v1884
        %v2146 = vpack.c.b16 %v1894, %v1885
        %v2147 = vpack.c.b16 %v1895, %v1886
        %v2148 = vpack.c.b16 %v1896, %v1887
        %v2149 = vpack.c.b16 %v1897, %v1888
        %v2150 = vpack.c.b16 %v1907, %v1898
        %v2151 = vpack.c.b16 %v1908, %v1899
        %v2152 = vpack.c.b16 %v1909, %v1900
        %v2153 = vpack.c.b16 %v1910, %v1901
        %v2154 = vpack.c.b16 %v1911, %v1902
        %v2155 = vpack.c.b16 %v1912, %v1903
        %v2156 = vpack.c.b16 %v1913, %v1904
        %v2157 = vpack.c.b16 %v1914, %v1905
        %v2158 = vpack.c.b16 %v1915, %v1906
        %v2159 = vpack.c.b16 %v1925, %v1916
        %v2160 = vpack.c.b16 %v1926, %v1917
        %v2161 = vpack.c.b16 %v1927, %v1918
        %v2162 = vpack.c.b16 %v1928, %v1919
        %v2163 = vpack.c.b16 %v1929, %v1920
        %v2164 = vpack.c.b16 %v1930, %v1921
        %v2165 = vpack.c.b16 %v1931, %v1922
        %v2166 = vpack.c.b16 %v1932, %v1923
        %v2167 = vpack.c.b16 %v1933, %v1924
        %v2168 = vpack.c.b16 %v1943, %v1934
        %v2169 = vpack.c.b16 %v1944, %v1935
        %v2170 = vpack.c.b16 %v1945, %v1936
        %v2171 = vpack.c.b16 %v1946, %v1937
        %v2172 = vpack.c.b16 %v1947, %v1938
        %v2173 = vpack.c.b16 %v1948, %v1939
        %v2174 = vpack.c.b16 %v1949, %v1940
        %v2175 = vpack.c.b16 %v1950, %v1941
        %v2176 = vpack.c.b16 %v1951, %v1942
        %v2177 = vpack.c.b16 %v1961, %v1952
        %v2178 = vpack.c.b16 %v1962, %v1953
        %v2179 = vpack.c.b16 %v1963, %v1954
        %v2180 = vpack.c.b16 %v1964, %v1955
        %v2181 = vpack.c.b16 %v1965, %v1956
        %v2182 = vpack.c.b16 %v1966, %v1957
        %v2183 = vpack.c.b16 %v1967, %v1958
        %v2184 = vpack.c.b16 %v1968, %v1959
        %v2185 = vpack.c.b16 %v1969, %v1960
        %2402 = vmatpush.bf16.msra.mxu0 %v2033
        %2403 = vmatpush.bf16.msra.mxu0 %v2024
        %2404 = vmatpush.bf16.msra.mxu0 %v2015
        %2405 = vmatpush.bf16.msra.mxu0 %v2006
        %2406 = vmatpush.bf16.msra.mxu0 %v1997
        %2407 = vmatpush.bf16.msra.mxu0 %v1988
        %2408 = vmatpush.bf16.msra.mxu0 %v1979
        %2409 = vmatpush.bf16.msra.mxu0 %v1970
        %2410 = vmatmul.bf16.gmra.mxu0 %v1033
        %v2411 = vpop.f32.mrf.mxu0
        %v2412 = vadd.f32 %v1280, %v2411
        %v2413 = vpop.f32.mrf.mxu0
        %2414 = vdwg.mxu0
        %2415 = vmatpush.bf16.msra.mxu0 %v2105
        %2416 = vmatpush.bf16.msra.mxu0 %v2096
        %2417 = vmatpush.bf16.msra.mxu0 %v2087
        %2418 = vmatpush.bf16.msra.mxu0 %v2078
        %2419 = vmatpush.bf16.msra.mxu0 %v2069
        %2420 = vmatpush.bf16.msra.mxu0 %v2060
        %2421 = vmatpush.bf16.msra.mxu0 %v2051
        %2422 = vmatpush.bf16.msra.mxu0 %v2042
        %2423 = vmatmul.bf16.gmra.mxu0 %v1034
        %v2424 = vpop.f32.mrf.mxu0
        %v2425 = vadd.f32 %v2412, %v2424
        %v2426 = vpop.f32.mrf.mxu0
        %2427 = vdwg.mxu0
        %2428 = vmatpush.bf16.msra.mxu0 %v2177
        %2429 = vmatpush.bf16.msra.mxu0 %v2168
        %2430 = vmatpush.bf16.msra.mxu0 %v2159
        %2431 = vmatpush.bf16.msra.mxu0 %v2150
        %2432 = vmatpush.bf16.msra.mxu0 %v2141
        %2433 = vmatpush.bf16.msra.mxu0 %v2132
        %2434 = vmatpush.bf16.msra.mxu0 %v2123
        %2435 = vmatpush.bf16.msra.mxu0 %v2114
        %2436 = vmatmul.bf16.gmra.mxu0 %v1035
        %v2437 = vpop.f32.mrf.mxu0
        %v2438 = vadd.f32 %v2425, %v2437
        %v2439 = vpop.f32.mrf.mxu0
        %2440 = vdwg.mxu0
        %2441 = vmatpush.bf16.msra.mxu0 %v2034
        %2442 = vmatpush.bf16.msra.mxu0 %v2025
        %2443 = vmatpush.bf16.msra.mxu0 %v2016
        %2444 = vmatpush.bf16.msra.mxu0 %v2007
        %2445 = vmatpush.bf16.msra.mxu0 %v1998
        %2446 = vmatpush.bf16.msra.mxu0 %v1989
        %2447 = vmatpush.bf16.msra.mxu0 %v1980
        %2448 = vmatpush.bf16.msra.mxu0 %v1971
        %2449 = vmatmul.bf16.gmra.mxu0 %v1033
        %v2450 = vpop.f32.mrf.mxu0
        %v2451 = vadd.f32 %v1281, %v2450
        %v2452 = vpop.f32.mrf.mxu0
        %2453 = vdwg.mxu0
        %2454 = vmatpush.bf16.msra.mxu0 %v2106
        %2455 = vmatpush.bf16.msra.mxu0 %v2097
        %2456 = vmatpush.bf16.msra.mxu0 %v2088
        %2457 = vmatpush.bf16.msra.mxu0 %v2079
        %2458 = vmatpush.bf16.msra.mxu0 %v2070
        %2459 = vmatpush.bf16.msra.mxu0 %v2061
        %2460 = vmatpush.bf16.msra.mxu0 %v2052
        %2461 = vmatpush.bf16.msra.mxu0 %v2043
        %2462 = vmatmul.bf16.gmra.mxu0 %v1034
        %v2463 = vpop.f32.mrf.mxu0
        %v2464 = vadd.f32 %v2451, %v2463
        %v2465 = vpop.f32.mrf.mxu0
        %2466 = vdwg.mxu0
        %2467 = vmatpush.bf16.msra.mxu0 %v2178
        %2468 = vmatpush.bf16.msra.mxu0 %v2169
        %2469 = vmatpush.bf16.msra.mxu0 %v2160
        %2470 = vmatpush.bf16.msra.mxu0 %v2151
        %2471 = vmatpush.bf16.msra.mxu0 %v2142
        %2472 = vmatpush.bf16.msra.mxu0 %v2133
        %2473 = vmatpush.bf16.msra.mxu0 %v2124
        %2474 = vmatpush.bf16.msra.mxu0 %v2115
        %2475 = vmatmul.bf16.gmra.mxu0 %v1035
        %v2476 = vpop.f32.mrf.mxu0
        %v2477 = vadd.f32 %v2464, %v2476
        %v2478 = vpop.f32.mrf.mxu0
        %2479 = vdwg.mxu0
        %2480 = vmatpush.bf16.msra.mxu0 %v2035
        %2481 = vmatpush.bf16.msra.mxu0 %v2026
        %2482 = vmatpush.bf16.msra.mxu0 %v2017
        %2483 = vmatpush.bf16.msra.mxu0 %v2008
        %2484 = vmatpush.bf16.msra.mxu0 %v1999
        %2485 = vmatpush.bf16.msra.mxu0 %v1990
        %2486 = vmatpush.bf16.msra.mxu0 %v1981
        %2487 = vmatpush.bf16.msra.mxu0 %v1972
        %2488 = vmatmul.bf16.gmra.mxu0 %v1033
        %v2489 = vpop.f32.mrf.mxu0
        %v2490 = vadd.f32 %v1282, %v2489
        %v2491 = vpop.f32.mrf.mxu0
        %2492 = vdwg.mxu0
        %2493 = vmatpush.bf16.msra.mxu0 %v2107
        %2494 = vmatpush.bf16.msra.mxu0 %v2098
        %2495 = vmatpush.bf16.msra.mxu0 %v2089
        %2496 = vmatpush.bf16.msra.mxu0 %v2080
        %2497 = vmatpush.bf16.msra.mxu0 %v2071
        %2498 = vmatpush.bf16.msra.mxu0 %v2062
        %2499 = vmatpush.bf16.msra.mxu0 %v2053
        %2500 = vmatpush.bf16.msra.mxu0 %v2044
        %2501 = vmatmul.bf16.gmra.mxu0 %v1034
        %v2502 = vpop.f32.mrf.mxu0
        %v2503 = vadd.f32 %v2490, %v2502
        %v2504 = vpop.f32.mrf.mxu0
        %2505 = vdwg.mxu0
        %2506 = vmatpush.bf16.msra.mxu0 %v2179
        %2507 = vmatpush.bf16.msra.mxu0 %v2170
        %2508 = vmatpush.bf16.msra.mxu0 %v2161
        %2509 = vmatpush.bf16.msra.mxu0 %v2152
        %2510 = vmatpush.bf16.msra.mxu0 %v2143
        %2511 = vmatpush.bf16.msra.mxu0 %v2134
        %2512 = vmatpush.bf16.msra.mxu0 %v2125
        %2513 = vmatpush.bf16.msra.mxu0 %v2116
        %2514 = vmatmul.bf16.gmra.mxu0 %v1035
        %v2515 = vpop.f32.mrf.mxu0
        %v2516 = vadd.f32 %v2503, %v2515
        %v2517 = vpop.f32.mrf.mxu0
        %2518 = vdwg.mxu0
        %2519 = vmatpush.bf16.msra.mxu0 %v2036
        %2520 = vmatpush.bf16.msra.mxu0 %v2027
        %2521 = vmatpush.bf16.msra.mxu0 %v2018
        %2522 = vmatpush.bf16.msra.mxu0 %v2009
        %2523 = vmatpush.bf16.msra.mxu0 %v2000
        %2524 = vmatpush.bf16.msra.mxu0 %v1991
        %2525 = vmatpush.bf16.msra.mxu0 %v1982
        %2526 = vmatpush.bf16.msra.mxu0 %v1973
        %2527 = vmatmul.bf16.gmra.mxu0 %v1033
        %v2528 = vpop.f32.mrf.mxu0
        %v2529 = vadd.f32 %v1283, %v2528
        %v2530 = vpop.f32.mrf.mxu0
        %2531 = vdwg.mxu0
        %2532 = vmatpush.bf16.msra.mxu0 %v2108
        %2533 = vmatpush.bf16.msra.mxu0 %v2099
        %2534 = vmatpush.bf16.msra.mxu0 %v2090
        %2535 = vmatpush.bf16.msra.mxu0 %v2081
        %2536 = vmatpush.bf16.msra.mxu0 %v2072
        %2537 = vmatpush.bf16.msra.mxu0 %v2063
        %2538 = vmatpush.bf16.msra.mxu0 %v2054
        %2539 = vmatpush.bf16.msra.mxu0 %v2045
        %2540 = vmatmul.bf16.gmra.mxu0 %v1034
        %v2541 = vpop.f32.mrf.mxu0
        %v2542 = vadd.f32 %v2529, %v2541
        %v2543 = vpop.f32.mrf.mxu0
        %2544 = vdwg.mxu0
        %2545 = vmatpush.bf16.msra.mxu0 %v2180
        %2546 = vmatpush.bf16.msra.mxu0 %v2171
        %2547 = vmatpush.bf16.msra.mxu0 %v2162
        %2548 = vmatpush.bf16.msra.mxu0 %v2153
        %2549 = vmatpush.bf16.msra.mxu0 %v2144
        %2550 = vmatpush.bf16.msra.mxu0 %v2135
        %2551 = vmatpush.bf16.msra.mxu0 %v2126
        %2552 = vmatpush.bf16.msra.mxu0 %v2117
        %2553 = vmatmul.bf16.gmra.mxu0 %v1035
        %v2554 = vpop.f32.mrf.mxu0
        %v2555 = vadd.f32 %v2542, %v2554
        %v2556 = vpop.f32.mrf.mxu0
        %2557 = vdwg.mxu0
        %2558 = vmatpush.bf16.msra.mxu0 %v2037
        %2559 = vmatpush.bf16.msra.mxu0 %v2028
        %2560 = vmatpush.bf16.msra.mxu0 %v2019
        %2561 = vmatpush.bf16.msra.mxu0 %v2010
        %2562 = vmatpush.bf16.msra.mxu0 %v2001
        %2563 = vmatpush.bf16.msra.mxu0 %v1992
        %2564 = vmatpush.bf16.msra.mxu0 %v1983
        %2565 = vmatpush.bf16.msra.mxu0 %v1974
        %2566 = vmatmul.bf16.gmra.mxu0 %v1033
        %v2567 = vpop.f32.mrf.mxu0
        %v2568 = vadd.f32 %v1284, %v2567
        %v2569 = vpop.f32.mrf.mxu0
        %2570 = vdwg.mxu0
        %2571 = vmatpush.bf16.msra.mxu0 %v2109
        %2572 = vmatpush.bf16.msra.mxu0 %v2100
        %2573 = vmatpush.bf16.msra.mxu0 %v2091
        %2574 = vmatpush.bf16.msra.mxu0 %v2082
        %2575 = vmatpush.bf16.msra.mxu0 %v2073
        %2576 = vmatpush.bf16.msra.mxu0 %v2064
        %2577 = vmatpush.bf16.msra.mxu0 %v2055
        %2578 = vmatpush.bf16.msra.mxu0 %v2046
        %2579 = vmatmul.bf16.gmra.mxu0 %v1034
        %v2580 = vpop.f32.mrf.mxu0
        %v2581 = vadd.f32 %v2568, %v2580
        %v2582 = vpop.f32.mrf.mxu0
        %2583 = vdwg.mxu0
        %2584 = vmatpush.bf16.msra.mxu0 %v2181
        %2585 = vmatpush.bf16.msra.mxu0 %v2172
        %2586 = vmatpush.bf16.msra.mxu0 %v2163
        %2587 = vmatpush.bf16.msra.mxu0 %v2154
        %2588 = vmatpush.bf16.msra.mxu0 %v2145
        %2589 = vmatpush.bf16.msra.mxu0 %v2136
        %2590 = vmatpush.bf16.msra.mxu0 %v2127
        %2591 = vmatpush.bf16.msra.mxu0 %v2118
        %2592 = vmatmul.bf16.gmra.mxu0 %v1035
        %v2593 = vpop.f32.mrf.mxu0
        %v2594 = vadd.f32 %v2581, %v2593
        %v2595 = vpop.f32.mrf.mxu0
        %2596 = vdwg.mxu0
        %2597 = vmatpush.bf16.msra.mxu0 %v2038
        %2598 = vmatpush.bf16.msra.mxu0 %v2029
        %2599 = vmatpush.bf16.msra.mxu0 %v2020
        %2600 = vmatpush.bf16.msra.mxu0 %v2011
        %2601 = vmatpush.bf16.msra.mxu0 %v2002
        %2602 = vmatpush.bf16.msra.mxu0 %v1993
        %2603 = vmatpush.bf16.msra.mxu0 %v1984
        %2604 = vmatpush.bf16.msra.mxu0 %v1975
        %2605 = vmatmul.bf16.gmra.mxu0 %v1033
        %v2606 = vpop.f32.mrf.mxu0
        %v2607 = vadd.f32 %v1285, %v2606
        %v2608 = vpop.f32.mrf.mxu0
        %2609 = vdwg.mxu0
        %2610 = vmatpush.bf16.msra.mxu0 %v2110
        %2611 = vmatpush.bf16.msra.mxu0 %v2101
        %2612 = vmatpush.bf16.msra.mxu0 %v2092
        %2613 = vmatpush.bf16.msra.mxu0 %v2083
        %2614 = vmatpush.bf16.msra.mxu0 %v2074
        %2615 = vmatpush.bf16.msra.mxu0 %v2065
        %2616 = vmatpush.bf16.msra.mxu0 %v2056
        %2617 = vmatpush.bf16.msra.mxu0 %v2047
        %2618 = vmatmul.bf16.gmra.mxu0 %v1034
        %v2619 = vpop.f32.mrf.mxu0
        %v2620 = vadd.f32 %v2607, %v2619
        %v2621 = vpop.f32.mrf.mxu0
        %2622 = vdwg.mxu0
        %2623 = vmatpush.bf16.msra.mxu0 %v2182
        %2624 = vmatpush.bf16.msra.mxu0 %v2173
        %2625 = vmatpush.bf16.msra.mxu0 %v2164
        %2626 = vmatpush.bf16.msra.mxu0 %v2155
        %2627 = vmatpush.bf16.msra.mxu0 %v2146
        %2628 = vmatpush.bf16.msra.mxu0 %v2137
        %2629 = vmatpush.bf16.msra.mxu0 %v2128
        %2630 = vmatpush.bf16.msra.mxu0 %v2119
        %2631 = vmatmul.bf16.gmra.mxu0 %v1035
        %v2632 = vpop.f32.mrf.mxu0
        %v2633 = vadd.f32 %v2620, %v2632
        %v2634 = vpop.f32.mrf.mxu0
        %2635 = vdwg.mxu0
        %2636 = vmatpush.bf16.msra.mxu0 %v2039
        %2637 = vmatpush.bf16.msra.mxu0 %v2030
        %2638 = vmatpush.bf16.msra.mxu0 %v2021
        %2639 = vmatpush.bf16.msra.mxu0 %v2012
        %2640 = vmatpush.bf16.msra.mxu0 %v2003
        %2641 = vmatpush.bf16.msra.mxu0 %v1994
        %2642 = vmatpush.bf16.msra.mxu0 %v1985
        %2643 = vmatpush.bf16.msra.mxu0 %v1976
        %2644 = vmatmul.bf16.gmra.mxu0 %v1033
        %v2645 = vpop.f32.mrf.mxu0
        %v2646 = vadd.f32 %v1286, %v2645
        %v2647 = vpop.f32.mrf.mxu0
        %2648 = vdwg.mxu0
        %2649 = vmatpush.bf16.msra.mxu0 %v2111
        %2650 = vmatpush.bf16.msra.mxu0 %v2102
        %2651 = vmatpush.bf16.msra.mxu0 %v2093
        %2652 = vmatpush.bf16.msra.mxu0 %v2084
        %2653 = vmatpush.bf16.msra.mxu0 %v2075
        %2654 = vmatpush.bf16.msra.mxu0 %v2066
        %2655 = vmatpush.bf16.msra.mxu0 %v2057
        %2656 = vmatpush.bf16.msra.mxu0 %v2048
        %2657 = vmatmul.bf16.gmra.mxu0 %v1034
        %v2658 = vpop.f32.mrf.mxu0
        %v2659 = vadd.f32 %v2646, %v2658
        %v2660 = vpop.f32.mrf.mxu0
        %2661 = vdwg.mxu0
        %2662 = vmatpush.bf16.msra.mxu0 %v2183
        %2663 = vmatpush.bf16.msra.mxu0 %v2174
        %2664 = vmatpush.bf16.msra.mxu0 %v2165
        %2665 = vmatpush.bf16.msra.mxu0 %v2156
        %2666 = vmatpush.bf16.msra.mxu0 %v2147
        %2667 = vmatpush.bf16.msra.mxu0 %v2138
        %2668 = vmatpush.bf16.msra.mxu0 %v2129
        %2669 = vmatpush.bf16.msra.mxu0 %v2120
        %2670 = vmatmul.bf16.gmra.mxu0 %v1035
        %v2671 = vpop.f32.mrf.mxu0
        %v2672 = vadd.f32 %v2659, %v2671
        %v2673 = vpop.f32.mrf.mxu0
        %2674 = vdwg.mxu0
        %2675 = vmatpush.bf16.msra.mxu0 %v2040
        %2676 = vmatpush.bf16.msra.mxu0 %v2031
        %2677 = vmatpush.bf16.msra.mxu0 %v2022
        %2678 = vmatpush.bf16.msra.mxu0 %v2013
        %2679 = vmatpush.bf16.msra.mxu0 %v2004
        %2680 = vmatpush.bf16.msra.mxu0 %v1995
        %2681 = vmatpush.bf16.msra.mxu0 %v1986
        %2682 = vmatpush.bf16.msra.mxu0 %v1977
        %2683 = vmatmul.bf16.gmra.mxu0 %v1033
        %v2684 = vpop.f32.mrf.mxu0
        %v2685 = vadd.f32 %v1287, %v2684
        %v2686 = vpop.f32.mrf.mxu0
        %2687 = vdwg.mxu0
        %2688 = vmatpush.bf16.msra.mxu0 %v2112
        %2689 = vmatpush.bf16.msra.mxu0 %v2103
        %2690 = vmatpush.bf16.msra.mxu0 %v2094
        %2691 = vmatpush.bf16.msra.mxu0 %v2085
        %2692 = vmatpush.bf16.msra.mxu0 %v2076
        %2693 = vmatpush.bf16.msra.mxu0 %v2067
        %2694 = vmatpush.bf16.msra.mxu0 %v2058
        %2695 = vmatpush.bf16.msra.mxu0 %v2049
        %2696 = vmatmul.bf16.gmra.mxu0 %v1034
        %v2697 = vpop.f32.mrf.mxu0
        %v2698 = vadd.f32 %v2685, %v2697
        %v2699 = vpop.f32.mrf.mxu0
        %2700 = vdwg.mxu0
        %2701 = vmatpush.bf16.msra.mxu0 %v2184
        %2702 = vmatpush.bf16.msra.mxu0 %v2175
        %2703 = vmatpush.bf16.msra.mxu0 %v2166
        %2704 = vmatpush.bf16.msra.mxu0 %v2157
        %2705 = vmatpush.bf16.msra.mxu0 %v2148
        %2706 = vmatpush.bf16.msra.mxu0 %v2139
        %2707 = vmatpush.bf16.msra.mxu0 %v2130
        %2708 = vmatpush.bf16.msra.mxu0 %v2121
        %2709 = vmatmul.bf16.gmra.mxu0 %v1035
        %v2710 = vpop.f32.mrf.mxu0
        %v2711 = vadd.f32 %v2698, %v2710
        %v2712 = vpop.f32.mrf.mxu0
        %2713 = vdwg.mxu0
        %2714 = vmatpush.bf16.msra.mxu0 %v2041
        %2715 = vmatpush.bf16.msra.mxu0 %v2032
        %2716 = vmatpush.bf16.msra.mxu0 %v2023
        %2717 = vmatpush.bf16.msra.mxu0 %v2014
        %2718 = vmatpush.bf16.msra.mxu0 %v2005
        %2719 = vmatpush.bf16.msra.mxu0 %v1996
        %2720 = vmatpush.bf16.msra.mxu0 %v1987
        %2721 = vmatpush.bf16.msra.mxu0 %v1978
        %2722 = vmatmul.bf16.gmra.mxu0 %v1033
        %v2723 = vpop.f32.mrf.mxu0
        %v2724 = vadd.f32 %v1288, %v2723
        %v2725 = vpop.f32.mrf.mxu0
        %2726 = vdwg.mxu0
        %2727 = vmatpush.bf16.msra.mxu0 %v2113
        %2728 = vmatpush.bf16.msra.mxu0 %v2104
        %2729 = vmatpush.bf16.msra.mxu0 %v2095
        %2730 = vmatpush.bf16.msra.mxu0 %v2086
        %2731 = vmatpush.bf16.msra.mxu0 %v2077
        %2732 = vmatpush.bf16.msra.mxu0 %v2068
        %2733 = vmatpush.bf16.msra.mxu0 %v2059
        %2734 = vmatpush.bf16.msra.mxu0 %v2050
        %2735 = vmatmul.bf16.gmra.mxu0 %v1034
        %v2736 = vpop.f32.mrf.mxu0
        %v2737 = vadd.f32 %v2724, %v2736
        %v2738 = vpop.f32.mrf.mxu0
        %2739 = vdwg.mxu0
        %2740 = vmatpush.bf16.msra.mxu0 %v2185
        %2741 = vmatpush.bf16.msra.mxu0 %v2176
        %2742 = vmatpush.bf16.msra.mxu0 %v2167
        %2743 = vmatpush.bf16.msra.mxu0 %v2158
        %2744 = vmatpush.bf16.msra.mxu0 %v2149
        %2745 = vmatpush.bf16.msra.mxu0 %v2140
        %2746 = vmatpush.bf16.msra.mxu0 %v2131
        %2747 = vmatpush.bf16.msra.mxu0 %v2122
        %2748 = vmatmul.bf16.gmra.mxu0 %v1035
        %v2749 = vpop.f32.mrf.mxu0
        %v2750 = vadd.f32 %v2737, %v2749
        %v2751 = vpop.f32.mrf.mxu0
        %2752 = vdwg.mxu0
        %v2753 = vpack.c.bf16 %v2438, %v2438
        %v2754 = vpack.c.bf16 %v2555, %v2555
        %v2755 = vpack.c.bf16 %v2672, %v2672
        %vm2756 = vcmask 392192
        %v2758 = vsel %vm2756, %v2753, 0
        %v2761 = vsel %vm2756, %v2754, 0
        %2763 = vmatpush.bf16.xpose.msra.mxu0 0
        %2764 = vmatpush.bf16.xpose.msra.mxu0 0
        %2765 = vmatpush.bf16.xpose.msra.mxu0 0
        %2766 = vmatpush.bf16.xpose.msra.mxu0 0
        %2767 = vmatpush.bf16.xpose.msra.mxu0 0
        %2768 = vmatpush.bf16.xpose.msra.mxu0 0
        %2769 = vmatpush.bf16.xpose.msra.mxu0 0
        %2770 = vmatpush.bf16.xpose.msra.mxu0 %v2761
        %2771 = vmatmul.bf16.gmra.mxu0 %v2758
        %v2772 = vpop.f32.mrf.mxu0
        %v2773 = vadd.f32 0.0, %v2772
        %v2774 = vpop.f32.mrf.mxu0
        %2775 = vdwg.mxu0
        %v2776 = vmul.f32 %v2773, 0.14433756
        %v2777 = vsel %vm734, 1, 0
        %vm2778 = vcmp.eq.s32.totalorder %v2777, 1
        %v2779 = vsel %vm2778, 32752.0, %v2776
        %vm2780 = vcmask 64512
        %v2781 = vsel %vm2780, %v2779, -inf
        %2782 = vmax.xlane.f32.xlu0 %v2781
        %v2783 = vpop.xlane.xlu0 %2782
        %v2784 = vsub.f32 %v2779, %v2783
        %v2785 = vmul.f32 %v2784, 1.442695
        %v2786 = vpow.pop %v2785
        %v2787 = vsel %vm2780, %v2786, 0.0
        %2788 = vadd.xlane.f32.xlu0 %v2787
        %v2789 = vpop.xlane.xlu0 %2788
        %v2790 = vrcp.pop %v2789
        %v2791 = vmul.f32 %v2789, %v2790
        %v2792 = vsub.f32 1.0, %v2791
        %v2793 = vmul.f32 %v2790, %v2792
        %v2794 = vadd.f32 %v2790, %v2793
        %vm2795 = vweird.f32 %v2789
        %vm2796 = vweird.f32 %v2790
        %vm2797 = vmor %vm2795, %vm2796
        %v2798 = vsel %vm2797, %v2790, %v2794
        %v2799 = vand.u32 2147483647, %v2789
        %vm2800 = vcmp.eq.f32.partialorder %v2799, 8.507059e+37
        %v2801 = vand.u32 %v2789, 2147483648
        %v2802 = vor.u32 1.1754944e-38, %v2801
        %v2803 = vsel %vm2800, %v2802, %v2798
        %v2804 = vmul.f32 %v2786, %v2803
        %v2805 = vpack.c.bf16 %v2804, %v2804
        %v2807 = vsel %vm2780, %v2805, 0
        %vm2809 = vcmask 1043456
        %v2811 = vsel %vm2809, %v2755, 0
        %2813 = vmatpush.bf16.msra.mxu0 0
        %2814 = vmatpush.bf16.msra.mxu0 0
        %2815 = vmatpush.bf16.msra.mxu0 0
        %2816 = vmatpush.bf16.msra.mxu0 0
        %2817 = vmatpush.bf16.msra.mxu0 0
        %2818 = vmatpush.bf16.msra.mxu0 0
        %2819 = vmatpush.bf16.msra.mxu0 0
        %2820 = vmatpush.bf16.msra.mxu0 %v2811
        %2821 = vmatmul.bf16.gmra.mxu0 %v2807
        %v2822 = vpop.f32.mrf.mxu0
        %v2823 = vadd.f32 0.0, %v2822
        %v2824 = vpop.f32.mrf.mxu0
        %2825 = vdwg.mxu0
        %v2827 = vunpack.c.l.b16 %v2753
        %v2828 = vpack.c.b16 %v2827, %v2827
        %2829 = vrot.lane.b32.xlu0 %v2828, 80
        %v2830 = vpop.permute.xlu0 %2829
        %v2832 = vunpack.c.l.b16 %v2754
        %v2833 = vpack.c.b16 %v2832, %v2832
        %2834 = vrot.lane.b32.xlu0 %v2833, 80
        %v2835 = vpop.permute.xlu0 %2834
        %v2837 = vsel %vm2756, %v2830, 0
        %v2840 = vsel %vm2756, %v2835, 0
        %2842 = vmatpush.bf16.xpose.msra.mxu0 0
        %2843 = vmatpush.bf16.xpose.msra.mxu0 0
        %2844 = vmatpush.bf16.xpose.msra.mxu0 0
        %2845 = vmatpush.bf16.xpose.msra.mxu0 0
        %2846 = vmatpush.bf16.xpose.msra.mxu0 0
        %2847 = vmatpush.bf16.xpose.msra.mxu0 0
        %2848 = vmatpush.bf16.xpose.msra.mxu0 0
        %2849 = vmatpush.bf16.xpose.msra.mxu0 %v2840
        %2850 = vmatmul.bf16.gmra.mxu0 %v2837
        %v2851 = vpop.f32.mrf.mxu0
        %v2852 = vadd.f32 0.0, %v2851
        %v2853 = vpop.f32.mrf.mxu0
        %2854 = vdwg.mxu0
        %v2855 = vmul.f32 %v2852, 0.14433756
        %v2856 = vsel %vm2778, 32752.0, %v2855
        %v2857 = vsel %vm2780, %v2856, -inf
        %2858 = vmax.xlane.f32.xlu0 %v2857
        %v2859 = vpop.xlane.xlu0 %2858
        %v2860 = vsub.f32 %v2856, %v2859
        %v2861 = vmul.f32 %v2860, 1.442695
        %v2862 = vpow.pop %v2861
        %v2863 = vsel %vm2780, %v2862, 0.0
        %2864 = vadd.xlane.f32.xlu0 %v2863
        %v2865 = vpop.xlane.xlu0 %2864
        %v2866 = vrcp.pop %v2865
        %v2867 = vmul.f32 %v2865, %v2866
        %v2868 = vsub.f32 1.0, %v2867
        %v2869 = vmul.f32 %v2866, %v2868
        %v2870 = vadd.f32 %v2866, %v2869
        %vm2871 = vweird.f32 %v2865
        %vm2872 = vweird.f32 %v2866
        %vm2873 = vmor %vm2871, %vm2872
        %v2874 = vsel %vm2873, %v2866, %v2870
        %v2875 = vand.u32 2147483647, %v2865
        %vm2876 = vcmp.eq.f32.partialorder %v2875, 8.507059e+37
        %v2877 = vand.u32 %v2865, 2147483648
        %v2878 = vor.u32 1.1754944e-38, %v2877
        %v2879 = vsel %vm2876, %v2878, %v2874
        %v2880 = vmul.f32 %v2862, %v2879
        %v2881 = vpack.c.bf16 %v2880, %v2880
        %v2883 = vunpack.c.l.b16 %v2755
        %v2884 = vpack.c.b16 %v2883, %v2883
        %2885 = vrot.lane.b32.xlu0 %v2884, 80
        %v2886 = vpop.permute.xlu0 %2885
        %v2888 = vsel %vm2780, %v2881, 0
        %v2891 = vsel %vm2809, %v2886, 0
        %2893 = vmatpush.bf16.msra.mxu0 0
        %2894 = vmatpush.bf16.msra.mxu0 0
        %2895 = vmatpush.bf16.msra.mxu0 0
        %2896 = vmatpush.bf16.msra.mxu0 0
        %2897 = vmatpush.bf16.msra.mxu0 0
        %2898 = vmatpush.bf16.msra.mxu0 0
        %2899 = vmatpush.bf16.msra.mxu0 0
        %2900 = vmatpush.bf16.msra.mxu0 %v2891
        %2901 = vmatmul.bf16.gmra.mxu0 %v2888
        %v2902 = vpop.f32.mrf.mxu0
        %v2903 = vadd.f32 0.0, %v2902
        %v2904 = vpop.f32.mrf.mxu0
        %2905 = vdwg.mxu0
        %v2906 = vpack.c.bf16 %v2477, %v2438
        %v2907 = vpack.c.bf16 %v2594, %v2555
        %v2908 = vpack.c.bf16 %v2711, %v2672
        %v2910 = vunpack.c.l.b16 %v2906
        %v2911 = vunpack.c.h.b16 %v2906
        %v2912 = vpack.c.b16 %v2910, %v2910
        %v2913 = vpack.c.b16 %v2911, %v2911
        %2914 = vrot.lane.b32.xlu0 %v2912, 32
        %v2915 = vpop.permute.xlu0 %2914
        %2916 = vrot.lane.b32.xlu0 %v2913, 32
        %v2917 = vpop.permute.xlu0 %2916
        %vm2918 = vcmask 261120
        %v2919 = vsel %vm2918, %v2915, %v2917
        %v2921 = vunpack.c.l.b16 %v2907
        %v2922 = vunpack.c.h.b16 %v2907
        %v2923 = vpack.c.b16 %v2921, %v2921
        %v2924 = vpack.c.b16 %v2922, %v2922
        %2925 = vrot.lane.b32.xlu0 %v2923, 32
        %v2926 = vpop.permute.xlu0 %2925
        %2927 = vrot.lane.b32.xlu0 %v2924, 32
        %v2928 = vpop.permute.xlu0 %2927
        %v2929 = vsel %vm2918, %v2926, %v2928
        %v2931 = vsel %vm2756, %v2919, 0
        %v2934 = vsel %vm2756, %v2929, 0
        %2936 = vmatpush.bf16.xpose.msra.mxu0 0
        %2937 = vmatpush.bf16.xpose.msra.mxu0 0
        %2938 = vmatpush.bf16.xpose.msra.mxu0 0
        %2939 = vmatpush.bf16.xpose.msra.mxu0 0
        %2940 = vmatpush.bf16.xpose.msra.mxu0 0
        %2941 = vmatpush.bf16.xpose.msra.mxu0 0
        %2942 = vmatpush.bf16.xpose.msra.mxu0 0
        %2943 = vmatpush.bf16.xpose.msra.mxu0 %v2934
        %2944 = vmatmul.bf16.gmra.mxu0 %v2931
        %v2945 = vpop.f32.mrf.mxu0
        %v2946 = vadd.f32 0.0, %v2945
        %v2947 = vpop.f32.mrf.mxu0
        %2948 = vdwg.mxu0
        %v2949 = vmul.f32 %v2946, 0.14433756
        %v2950 = vsel %vm2778, 32752.0, %v2949
        %v2951 = vsel %vm2780, %v2950, -inf
        %2952 = vmax.xlane.f32.xlu0 %v2951
        %v2953 = vpop.xlane.xlu0 %2952
        %v2954 = vsub.f32 %v2950, %v2953
        %v2955 = vmul.f32 %v2954, 1.442695
        %v2956 = vpow.pop %v2955
        %v2957 = vsel %vm2780, %v2956, 0.0
        %2958 = vadd.xlane.f32.xlu0 %v2957
        %v2959 = vpop.xlane.xlu0 %2958
        %v2960 = vrcp.pop %v2959
        %v2961 = vmul.f32 %v2959, %v2960
        %v2962 = vsub.f32 1.0, %v2961
        %v2963 = vmul.f32 %v2960, %v2962
        %v2964 = vadd.f32 %v2960, %v2963
        %vm2965 = vweird.f32 %v2959
        %vm2966 = vweird.f32 %v2960
        %vm2967 = vmor %vm2965, %vm2966
        %v2968 = vsel %vm2967, %v2960, %v2964
        %v2969 = vand.u32 2147483647, %v2959
        %vm2970 = vcmp.eq.f32.partialorder %v2969, 8.507059e+37
        %v2971 = vand.u32 %v2959, 2147483648
        %v2972 = vor.u32 1.1754944e-38, %v2971
        %v2973 = vsel %vm2970, %v2972, %v2968
        %v2974 = vmul.f32 %v2956, %v2973
        %v2975 = vpack.c.bf16 %v2974, %v2974
        %v2977 = vunpack.c.l.b16 %v2908
        %v2978 = vunpack.c.h.b16 %v2908
        %v2979 = vpack.c.b16 %v2977, %v2977
        %v2980 = vpack.c.b16 %v2978, %v2978
        %2981 = vrot.lane.b32.xlu0 %v2979, 32
        %v2982 = vpop.permute.xlu0 %2981
        %2983 = vrot.lane.b32.xlu0 %v2980, 32
        %v2984 = vpop.permute.xlu0 %2983
        %v2985 = vsel %vm2918, %v2982, %v2984
        %v2987 = vsel %vm2780, %v2975, 0
        %v2990 = vsel %vm2809, %v2985, 0
        %2992 = vmatpush.bf16.msra.mxu0 0
        %2993 = vmatpush.bf16.msra.mxu0 0
        %2994 = vmatpush.bf16.msra.mxu0 0
        %2995 = vmatpush.bf16.msra.mxu0 0
        %2996 = vmatpush.bf16.msra.mxu0 0
        %2997 = vmatpush.bf16.msra.mxu0 0
        %2998 = vmatpush.bf16.msra.mxu0 0
        %2999 = vmatpush.bf16.msra.mxu0 %v2990
        %3000 = vmatmul.bf16.gmra.mxu0 %v2987
        %v3001 = vpop.f32.mrf.mxu0
        %v3002 = vadd.f32 0.0, %v3001
        %v3003 = vpop.f32.mrf.mxu0
        %3004 = vdwg.mxu0
        %v3005 = vpack.c.bf16 %v2477, %v2477
        %v3006 = vpack.c.bf16 %v2594, %v2594
        %v3007 = vpack.c.bf16 %v2711, %v2711
        %v3009 = vunpack.c.l.b16 %v3005
        %v3010 = vpack.c.b16 %v3009, %v3009
        %3011 = vrot.lane.b32.xlu0 %v3010, 112
        %v3012 = vpop.permute.xlu0 %3011
        %v3014 = vunpack.c.l.b16 %v3006
        %v3015 = vpack.c.b16 %v3014, %v3014
        %3016 = vrot.lane.b32.xlu0 %v3015, 112
        %v3017 = vpop.permute.xlu0 %3016
        %v3019 = vsel %vm2756, %v3012, 0
        %v3022 = vsel %vm2756, %v3017, 0
        %3024 = vmatpush.bf16.xpose.msra.mxu0 0
        %3025 = vmatpush.bf16.xpose.msra.mxu0 0
        %3026 = vmatpush.bf16.xpose.msra.mxu0 0
        %3027 = vmatpush.bf16.xpose.msra.mxu0 0
        %3028 = vmatpush.bf16.xpose.msra.mxu0 0
        %3029 = vmatpush.bf16.xpose.msra.mxu0 0
        %3030 = vmatpush.bf16.xpose.msra.mxu0 0
        %3031 = vmatpush.bf16.xpose.msra.mxu0 %v3022
        %3032 = vmatmul.bf16.gmra.mxu0 %v3019
        %v3033 = vpop.f32.mrf.mxu0
        %v3034 = vadd.f32 0.0, %v3033
        %v3035 = vpop.f32.mrf.mxu0
        %3036 = vdwg.mxu0
        %v3037 = vmul.f32 %v3034, 0.14433756
        %v3038 = vsel %vm2778, 32752.0, %v3037
        %v3039 = vsel %vm2780, %v3038, -inf
        %3040 = vmax.xlane.f32.xlu0 %v3039
        %v3041 = vpop.xlane.xlu0 %3040
        %v3042 = vsub.f32 %v3038, %v3041
        %v3043 = vmul.f32 %v3042, 1.442695
        %v3044 = vpow.pop %v3043
        %v3045 = vsel %vm2780, %v3044, 0.0
        %3046 = vadd.xlane.f32.xlu0 %v3045
        %v3047 = vpop.xlane.xlu0 %3046
        %v3048 = vrcp.pop %v3047
        %v3049 = vmul.f32 %v3047, %v3048
        %v3050 = vsub.f32 1.0, %v3049
        %v3051 = vmul.f32 %v3048, %v3050
        %v3052 = vadd.f32 %v3048, %v3051
        %vm3053 = vweird.f32 %v3047
        %vm3054 = vweird.f32 %v3048
        %vm3055 = vmor %vm3053, %vm3054
        %v3056 = vsel %vm3055, %v3048, %v3052
        %v3057 = vand.u32 2147483647, %v3047
        %vm3058 = vcmp.eq.f32.partialorder %v3057, 8.507059e+37
        %v3059 = vand.u32 %v3047, 2147483648
        %v3060 = vor.u32 1.1754944e-38, %v3059
        %v3061 = vsel %vm3058, %v3060, %v3056
        %v3062 = vmul.f32 %v3044, %v3061
        %v3063 = vpack.c.bf16 %v3062, %v3062
        %v3065 = vunpack.c.l.b16 %v3007
        %v3066 = vpack.c.b16 %v3065, %v3065
        %3067 = vrot.lane.b32.xlu0 %v3066, 112
        %v3068 = vpop.permute.xlu0 %3067
        %v3070 = vsel %vm2780, %v3063, 0
        %v3073 = vsel %vm2809, %v3068, 0
        %3075 = vmatpush.bf16.msra.mxu0 0
        %3076 = vmatpush.bf16.msra.mxu0 0
        %3077 = vmatpush.bf16.msra.mxu0 0
        %3078 = vmatpush.bf16.msra.mxu0 0
        %3079 = vmatpush.bf16.msra.mxu0 0
        %3080 = vmatpush.bf16.msra.mxu0 0
        %3081 = vmatpush.bf16.msra.mxu0 0
        %3082 = vmatpush.bf16.msra.mxu0 %v3073
        %3083 = vmatmul.bf16.gmra.mxu0 %v3070
        %v3084 = vpop.f32.mrf.mxu0
        %v3085 = vadd.f32 0.0, %v3084
        %v3086 = vpop.f32.mrf.mxu0
        %3087 = vdwg.mxu0
        %3088 = vrot.lane.b32.xlu0 %v3010, 64
        %v3089 = vpop.permute.xlu0 %3088
        %3090 = vrot.lane.b32.xlu0 %v3015, 64
        %v3091 = vpop.permute.xlu0 %3090
        %v3093 = vsel %vm2756, %v3089, 0
        %v3096 = vsel %vm2756, %v3091, 0
        %3098 = vmatpush.bf16.xpose.msra.mxu0 0
        %3099 = vmatpush.bf16.xpose.msra.mxu0 0
        %3100 = vmatpush.bf16.xpose.msra.mxu0 0
        %3101 = vmatpush.bf16.xpose.msra.mxu0 0
        %3102 = vmatpush.bf16.xpose.msra.mxu0 0
        %3103 = vmatpush.bf16.xpose.msra.mxu0 0
        %3104 = vmatpush.bf16.xpose.msra.mxu0 0
        %3105 = vmatpush.bf16.xpose.msra.mxu0 %v3096
        %3106 = vmatmul.bf16.gmra.mxu0 %v3093
        %v3107 = vpop.f32.mrf.mxu0
        %v3108 = vadd.f32 0.0, %v3107
        %v3109 = vpop.f32.mrf.mxu0
        %3110 = vdwg.mxu0
        %v3111 = vmul.f32 %v3108, 0.14433756
        %v3112 = vsel %vm2778, 32752.0, %v3111
        %v3113 = vsel %vm2780, %v3112, -inf
        %3114 = vmax.xlane.f32.xlu0 %v3113
        %v3115 = vpop.xlane.xlu0 %3114
        %v3116 = vsub.f32 %v3112, %v3115
        %v3117 = vmul.f32 %v3116, 1.442695
        %v3118 = vpow.pop %v3117
        %v3119 = vsel %vm2780, %v3118, 0.0
        %3120 = vadd.xlane.f32.xlu0 %v3119
        %v3121 = vpop.xlane.xlu0 %3120
        %v3122 = vrcp.pop %v3121
        %v3123 = vmul.f32 %v3121, %v3122
        %v3124 = vsub.f32 1.0, %v3123
        %v3125 = vmul.f32 %v3122, %v3124
        %v3126 = vadd.f32 %v3122, %v3125
        %vm3127 = vweird.f32 %v3121
        %vm3128 = vweird.f32 %v3122
        %vm3129 = vmor %vm3127, %vm3128
        %v3130 = vsel %vm3129, %v3122, %v3126
        %v3131 = vand.u32 2147483647, %v3121
        %vm3132 = vcmp.eq.f32.partialorder %v3131, 8.507059e+37
        %v3133 = vand.u32 %v3121, 2147483648
        %v3134 = vor.u32 1.1754944e-38, %v3133
        %v3135 = vsel %vm3132, %v3134, %v3130
        %v3136 = vmul.f32 %v3118, %v3135
        %v3137 = vpack.c.bf16 %v3136, %v3136
        %3138 = vrot.lane.b32.xlu0 %v3066, 64
        %v3139 = vpop.permute.xlu0 %3138
        %v3141 = vsel %vm2780, %v3137, 0
        %v3144 = vsel %vm2809, %v3139, 0
        %3146 = vmatpush.bf16.msra.mxu0 0
        %3147 = vmatpush.bf16.msra.mxu0 0
        %3148 = vmatpush.bf16.msra.mxu0 0
        %3149 = vmatpush.bf16.msra.mxu0 0
        %3150 = vmatpush.bf16.msra.mxu0 0
        %3151 = vmatpush.bf16.msra.mxu0 0
        %3152 = vmatpush.bf16.msra.mxu0 0
        %3153 = vmatpush.bf16.msra.mxu0 %v3144
        %3154 = vmatmul.bf16.gmra.mxu0 %v3141
        %v3155 = vpop.f32.mrf.mxu0
        %v3156 = vadd.f32 0.0, %v3155
        %v3157 = vpop.f32.mrf.mxu0
        %3158 = vdwg.mxu0
        %v3159 = vpack.c.bf16 %v2516, %v2477
        %v3160 = vpack.c.bf16 %v2633, %v2594
        %v3161 = vpack.c.bf16 %v2750, %v2711
        %v3163 = vunpack.c.l.b16 %v3159
        %v3164 = vunpack.c.h.b16 %v3159
        %v3165 = vpack.c.b16 %v3163, %v3163
        %v3166 = vpack.c.b16 %v3164, %v3164
        %3167 = vrot.lane.b32.xlu0 %v3165, 16
        %v3168 = vpop.permute.xlu0 %3167
        %3169 = vrot.lane.b32.xlu0 %v3166, 16
        %v3170 = vpop.permute.xlu0 %3169
        %vm3171 = vcmask 130048
        %v3172 = vsel %vm3171, %v3168, %v3170
        %v3174 = vunpack.c.l.b16 %v3160
        %v3175 = vunpack.c.h.b16 %v3160
        %v3176 = vpack.c.b16 %v3174, %v3174
        %v3177 = vpack.c.b16 %v3175, %v3175
        %3178 = vrot.lane.b32.xlu0 %v3176, 16
        %v3179 = vpop.permute.xlu0 %3178
        %3180 = vrot.lane.b32.xlu0 %v3177, 16
        %v3181 = vpop.permute.xlu0 %3180
        %v3182 = vsel %vm3171, %v3179, %v3181
        %v3184 = vsel %vm2756, %v3172, 0
        %v3187 = vsel %vm2756, %v3182, 0
        %3189 = vmatpush.bf16.xpose.msra.mxu0 0
        %3190 = vmatpush.bf16.xpose.msra.mxu0 0
        %3191 = vmatpush.bf16.xpose.msra.mxu0 0
        %3192 = vmatpush.bf16.xpose.msra.mxu0 0
        %3193 = vmatpush.bf16.xpose.msra.mxu0 0
        %3194 = vmatpush.bf16.xpose.msra.mxu0 0
        %3195 = vmatpush.bf16.xpose.msra.mxu0 0
        %3196 = vmatpush.bf16.xpose.msra.mxu0 %v3187
        %3197 = vmatmul.bf16.gmra.mxu0 %v3184
        %v3198 = vpop.f32.mrf.mxu0
        %v3199 = vadd.f32 0.0, %v3198
        %v3200 = vpop.f32.mrf.mxu0
        %3201 = vdwg.mxu0
        %v3202 = vmul.f32 %v3199, 0.14433756
        %v3203 = vsel %vm2778, 32752.0, %v3202
        %v3204 = vsel %vm2780, %v3203, -inf
        %3205 = vmax.xlane.f32.xlu0 %v3204
        %v3206 = vpop.xlane.xlu0 %3205
        %v3207 = vsub.f32 %v3203, %v3206
        %v3208 = vmul.f32 %v3207, 1.442695
        %v3209 = vpow.pop %v3208
        %v3210 = vsel %vm2780, %v3209, 0.0
        %3211 = vadd.xlane.f32.xlu0 %v3210
        %v3212 = vpop.xlane.xlu0 %3211
        %v3213 = vrcp.pop %v3212
        %v3214 = vmul.f32 %v3212, %v3213
        %v3215 = vsub.f32 1.0, %v3214
        %v3216 = vmul.f32 %v3213, %v3215
        %v3217 = vadd.f32 %v3213, %v3216
        %vm3218 = vweird.f32 %v3212
        %vm3219 = vweird.f32 %v3213
        %vm3220 = vmor %vm3218, %vm3219
        %v3221 = vsel %vm3220, %v3213, %v3217
        %v3222 = vand.u32 2147483647, %v3212
        %vm3223 = vcmp.eq.f32.partialorder %v3222, 8.507059e+37
        %v3224 = vand.u32 %v3212, 2147483648
        %v3225 = vor.u32 1.1754944e-38, %v3224
        %v3226 = vsel %vm3223, %v3225, %v3221
        %v3227 = vmul.f32 %v3209, %v3226
        %v3228 = vpack.c.bf16 %v3227, %v3227
        %v3230 = vunpack.c.l.b16 %v3161
        %v3231 = vunpack.c.h.b16 %v3161
        %v3232 = vpack.c.b16 %v3230, %v3230
        %v3233 = vpack.c.b16 %v3231, %v3231
        %3234 = vrot.lane.b32.xlu0 %v3232, 16
        %v3235 = vpop.permute.xlu0 %3234
        %3236 = vrot.lane.b32.xlu0 %v3233, 16
        %v3237 = vpop.permute.xlu0 %3236
        %v3238 = vsel %vm3171, %v3235, %v3237
        %v3240 = vsel %vm2780, %v3228, 0
        %v3243 = vsel %vm2809, %v3238, 0
        %3245 = vmatpush.bf16.msra.mxu0 0
        %3246 = vmatpush.bf16.msra.mxu0 0
        %3247 = vmatpush.bf16.msra.mxu0 0
        %3248 = vmatpush.bf16.msra.mxu0 0
        %3249 = vmatpush.bf16.msra.mxu0 0
        %3250 = vmatpush.bf16.msra.mxu0 0
        %3251 = vmatpush.bf16.msra.mxu0 0
        %3252 = vmatpush.bf16.msra.mxu0 %v3243
        %3253 = vmatmul.bf16.gmra.mxu0 %v3240
        %v3254 = vpop.f32.mrf.mxu0
        %v3255 = vadd.f32 0.0, %v3254
        %v3256 = vpop.f32.mrf.mxu0
        %3257 = vdwg.mxu0
        %v3258 = vpack.c.bf16 %v2516, %v2516
        %v3259 = vpack.c.bf16 %v2633, %v2633
        %v3260 = vpack.c.bf16 %v2750, %v2750
        %v3262 = vunpack.c.l.b16 %v3258
        %v3263 = vpack.c.b16 %v3262, %v3262
        %3264 = vrot.lane.b32.xlu0 %v3263, 96
        %v3265 = vpop.permute.xlu0 %3264
        %v3267 = vunpack.c.l.b16 %v3259
        %v3268 = vpack.c.b16 %v3267, %v3267
        %3269 = vrot.lane.b32.xlu0 %v3268, 96
        %v3270 = vpop.permute.xlu0 %3269
        %v3272 = vsel %vm2756, %v3265, 0
        %v3275 = vsel %vm2756, %v3270, 0
        %3277 = vmatpush.bf16.xpose.msra.mxu0 0
        %3278 = vmatpush.bf16.xpose.msra.mxu0 0
        %3279 = vmatpush.bf16.xpose.msra.mxu0 0
        %3280 = vmatpush.bf16.xpose.msra.mxu0 0
        %3281 = vmatpush.bf16.xpose.msra.mxu0 0
        %3282 = vmatpush.bf16.xpose.msra.mxu0 0
        %3283 = vmatpush.bf16.xpose.msra.mxu0 0
        %3284 = vmatpush.bf16.xpose.msra.mxu0 %v3275
        %3285 = vmatmul.bf16.gmra.mxu0 %v3272
        %v3286 = vpop.f32.mrf.mxu0
        %v3287 = vadd.f32 0.0, %v3286
        %v3288 = vpop.f32.mrf.mxu0
        %3289 = vdwg.mxu0
        %v3290 = vmul.f32 %v3287, 0.14433756
        %v3291 = vsel %vm2778, 32752.0, %v3290
        %v3292 = vsel %vm2780, %v3291, -inf
        %3293 = vmax.xlane.f32.xlu0 %v3292
        %v3294 = vpop.xlane.xlu0 %3293
        %v3295 = vsub.f32 %v3291, %v3294
        %v3296 = vmul.f32 %v3295, 1.442695
        %v3297 = vpow.pop %v3296
        %v3298 = vsel %vm2780, %v3297, 0.0
        %3299 = vadd.xlane.f32.xlu0 %v3298
        %v3300 = vpop.xlane.xlu0 %3299
        %v3301 = vrcp.pop %v3300
        %v3302 = vmul.f32 %v3300, %v3301
        %v3303 = vsub.f32 1.0, %v3302
        %v3304 = vmul.f32 %v3301, %v3303
        %v3305 = vadd.f32 %v3301, %v3304
        %vm3306 = vweird.f32 %v3300
        %vm3307 = vweird.f32 %v3301
        %vm3308 = vmor %vm3306, %vm3307
        %v3309 = vsel %vm3308, %v3301, %v3305
        %v3310 = vand.u32 2147483647, %v3300
        %vm3311 = vcmp.eq.f32.partialorder %v3310, 8.507059e+37
        %v3312 = vand.u32 %v3300, 2147483648
        %v3313 = vor.u32 1.1754944e-38, %v3312
        %v3314 = vsel %vm3311, %v3313, %v3309
        %v3315 = vmul.f32 %v3297, %v3314
        %v3316 = vpack.c.bf16 %v3315, %v3315
        %v3318 = vunpack.c.l.b16 %v3260
        %v3319 = vpack.c.b16 %v3318, %v3318
        %3320 = vrot.lane.b32.xlu0 %v3319, 96
        %v3321 = vpop.permute.xlu0 %3320
        %v3323 = vsel %vm2780, %v3316, 0
        %v3326 = vsel %vm2809, %v3321, 0
        %3328 = vmatpush.bf16.msra.mxu0 0
        %3329 = vmatpush.bf16.msra.mxu0 0
        %3330 = vmatpush.bf16.msra.mxu0 0
        %3331 = vmatpush.bf16.msra.mxu0 0
        %3332 = vmatpush.bf16.msra.mxu0 0
        %3333 = vmatpush.bf16.msra.mxu0 0
        %3334 = vmatpush.bf16.msra.mxu0 0
        %3335 = vmatpush.bf16.msra.mxu0 %v3326
        %3336 = vmatmul.bf16.gmra.mxu0 %v3323
        %v3337 = vpop.f32.mrf.mxu0
        %v3338 = vadd.f32 0.0, %v3337
        %v3339 = vpop.f32.mrf.mxu0
        %3340 = vdwg.mxu0
        %3341 = vrot.lane.b32.xlu0 %v3263, 48
        %v3342 = vpop.permute.xlu0 %3341
        %3343 = vrot.lane.b32.xlu0 %v3268, 48
        %v3344 = vpop.permute.xlu0 %3343
        %v3346 = vsel %vm2756, %v3342, 0
        %v3349 = vsel %vm2756, %v3344, 0
        %3351 = vmatpush.bf16.xpose.msra.mxu0 0
        %3352 = vmatpush.bf16.xpose.msra.mxu0 0
        %3353 = vmatpush.bf16.xpose.msra.mxu0 0
        %3354 = vmatpush.bf16.xpose.msra.mxu0 0
        %3355 = vmatpush.bf16.xpose.msra.mxu0 0
        %3356 = vmatpush.bf16.xpose.msra.mxu0 0
        %3357 = vmatpush.bf16.xpose.msra.mxu0 0
        %3358 = vmatpush.bf16.xpose.msra.mxu0 %v3349
        %3359 = vmatmul.bf16.gmra.mxu0 %v3346
        %v3360 = vpop.f32.mrf.mxu0
        %v3361 = vadd.f32 0.0, %v3360
        %v3362 = vpop.f32.mrf.mxu0
        %3363 = vdwg.mxu0
        %v3364 = vmul.f32 %v3361, 0.14433756
        %v3365 = vsel %vm2778, 32752.0, %v3364
        %v3366 = vsel %vm2780, %v3365, -inf
        %3367 = vmax.xlane.f32.xlu0 %v3366
        %v3368 = vpop.xlane.xlu0 %3367
        %v3369 = vsub.f32 %v3365, %v3368
        %v3370 = vmul.f32 %v3369, 1.442695
        %v3371 = vpow.pop %v3370
        %v3372 = vsel %vm2780, %v3371, 0.0
        %3373 = vadd.xlane.f32.xlu0 %v3372
        %v3374 = vpop.xlane.xlu0 %3373
        %v3375 = vrcp.pop %v3374
        %v3376 = vmul.f32 %v3374, %v3375
        %v3377 = vsub.f32 1.0, %v3376
        %v3378 = vmul.f32 %v3375, %v3377
        %v3379 = vadd.f32 %v3375, %v3378
        %vm3380 = vweird.f32 %v3374
        %vm3381 = vweird.f32 %v3375
        %vm3382 = vmor %vm3380, %vm3381
        %v3383 = vsel %vm3382, %v3375, %v3379
        %v3384 = vand.u32 2147483647, %v3374
        %vm3385 = vcmp.eq.f32.partialorder %v3384, 8.507059e+37
        %v3386 = vand.u32 %v3374, 2147483648
        %v3387 = vor.u32 1.1754944e-38, %v3386
        %v3388 = vsel %vm3385, %v3387, %v3383
        %v3389 = vmul.f32 %v3371, %v3388
        %v3390 = vpack.c.bf16 %v3389, %v3389
        %3391 = vrot.lane.b32.xlu0 %v3319, 48
        %v3392 = vpop.permute.xlu0 %3391
        %v3394 = vsel %vm2780, %v3390, 0
        %v3397 = vsel %vm2809, %v3392, 0
        %3399 = vmatpush.bf16.msra.mxu0 0
        %3400 = vmatpush.bf16.msra.mxu0 0
        %3401 = vmatpush.bf16.msra.mxu0 0
        %3402 = vmatpush.bf16.msra.mxu0 0
        %3403 = vmatpush.bf16.msra.mxu0 0
        %3404 = vmatpush.bf16.msra.mxu0 0
        %3405 = vmatpush.bf16.msra.mxu0 0
        %3406 = vmatpush.bf16.msra.mxu0 %v3397
        %3407 = vmatmul.bf16.gmra.mxu0 %v3394
        %v3408 = vpop.f32.mrf.mxu0
        %v3409 = vadd.f32 0.0, %v3408
        %v3410 = vpop.f32.mrf.mxu0
        %3411 = vdwg.mxu0
        %3413 = vrot.lane.b32.xlu0 %v2903, 48
        %v3414 = vpop.permute.xlu0 %3413
        %3417 = vrot.lane.b32.xlu0 %v3002, 96
        %v3418 = vpop.permute.xlu0 %3417
        %3421 = vrot.lane.b32.xlu0 %v3085, 16
        %v3422 = vpop.permute.xlu0 %3421
        %3425 = vrot.lane.b32.xlu0 %v3156, 64
        %v3426 = vpop.permute.xlu0 %3425
        %3429 = vrot.lane.b32.xlu0 %v3255, 112
        %v3430 = vpop.permute.xlu0 %3429
        %3433 = vrot.lane.b32.xlu0 %v3338, 32
        %v3434 = vpop.permute.xlu0 %3433
        %3437 = vrot.lane.b32.xlu0 %v3409, 80
        %v3438 = vpop.permute.xlu0 %3437
        %v3440 = vsel %vm2756, %v2823, %v3414
        %vm3441 = vcmask 785408
        %v3442 = vsel %vm3441, %v3440, %v3418
        %vm3443 = vcmask 130048
        %v3444 = vsel %vm3443, %v3418, %v3422
        %vm3445 = vcmask 523264
        %v3446 = vsel %vm3445, %v3444, %v3426
        %vm3447 = vcmask 916480
        %v3448 = vsel %vm3447, %v3446, %v3430
        %v3449 = vsel %vm745, %v3430, %v3434
        %vm3450 = vcmask 654336
        %v3451 = vsel %vm3450, %v3449, %v3438
        %v3452 = vpack.c.bf16 %v3442, %v3442
        %v3453 = vpack.c.bf16 %v3448, %v3448
        %v3454 = vpack.c.bf16 %v3451, %v3451
        %v3455 = vld [vmem:[%s9] sm:$0xff]
        %v3456 = vld [vmem:[%s9 + $0x8] sm:$0xf]
        %v3457 = vld [vmem:[%s9 + $0xc] sm:$0xff]
        %v3458 = vld [vmem:[%s9 + $0x14] sm:$0xf]
        %v3459 = vld [vmem:[%s9 + $0x18] sm:$0xff]
        %v3460 = vld [vmem:[%s9 + $0x20] sm:$0xf]
        %v3461 = vld [vmem:[%s9 + $0x24] sm:$0xff]
        %v3462 = vld [vmem:[%s9 + $0x2c] sm:$0xf]
        %v3463 = vld [vmem:[%s9 + $0x30] sm:$0xff]
        %v3464 = vld [vmem:[%s9 + $0x38] sm:$0xf]
        %v3465 = vld [vmem:[%s9 + $0x3c] sm:$0xff]
        %v3466 = vld [vmem:[%s9 + $0x44] sm:$0xf]
        %v3467 = vld [vmem:[%s9 + $0x48] sm:$0xff]
        %v3468 = vld [vmem:[%s9 + $0x50] sm:$0xf]
        %v3469 = vld [vmem:[%s9 + $0x54] sm:$0xff]
        %v3470 = vld [vmem:[%s9 + $0x5c] sm:$0xf]
        %v3471 = vld [vmem:[%s9 + $0x60] sm:$0xff]
        %v3472 = vld [vmem:[%s9 + $0x68] sm:$0xf]
        %v3473 = vld [vmem:[%s9 + $0x6c] sm:$0xff]
        %v3474 = vld [vmem:[%s9 + $0x74] sm:$0xf]
        %v3475 = vld [vmem:[%s9 + $0x78] sm:$0xff]
        %v3476 = vld [vmem:[%s9 + $0x80] sm:$0xf]
        %v3477 = vld [vmem:[%s9 + $0x84] sm:$0xff]
        %v3478 = vld [vmem:[%s9 + $0x8c] sm:$0xf]
        %v3479 = vld [vmem:[%s9 + $0x90] sm:$0xff]
        %v3480 = vld [vmem:[%s9 + $0x98] sm:$0xf]
        %v3481 = vld [vmem:[%s9 + $0x9c] sm:$0xff]
        %v3482 = vld [vmem:[%s9 + $0xa4] sm:$0xf]
        %v3483 = vld [vmem:[%s9 + $0xa8] sm:$0xff]
        %v3484 = vld [vmem:[%s9 + $0xb0] sm:$0xf]
        %v3485 = vld [vmem:[%s9 + $0xb4] sm:$0xff]
        %v3486 = vld [vmem:[%s9 + $0xbc] sm:$0xf]
        %v3487 = vld [vmem:[%s9 + $0xc0] sm:$0xff]
        %v3488 = vld [vmem:[%s9 + $0xc8] sm:$0xf]
        %v3489 = vld [vmem:[%s9 + $0xcc] sm:$0xff]
        %v3490 = vld [vmem:[%s9 + $0xd4] sm:$0xf]
        %v3491 = vld [vmem:[%s9 + $0xd8] sm:$0xff]
        %v3492 = vld [vmem:[%s9 + $0xe0] sm:$0xf]
        %v3493 = vld [vmem:[%s9 + $0xe4] sm:$0xff]
        %v3494 = vld [vmem:[%s9 + $0xec] sm:$0xf]
        %v3495 = vld [vmem:[%s9 + $0xf0] sm:$0xff]
        %v3496 = vld [vmem:[%s9 + $0xf8] sm:$0xf]
        %v3497 = vld [vmem:[%s9 + $0xfc] sm:$0xff]
        %v3498 = vld [vmem:[%s9 + $0x104] sm:$0xf]
        %v3499 = vld [vmem:[%s9 + $0x108] sm:$0xff]
        %v3500 = vld [vmem:[%s9 + $0x110] sm:$0xf]
        %v3501 = vld [vmem:[%s9 + $0x114] sm:$0xff]
        %v3502 = vld [vmem:[%s9 + $0x11c] sm:$0xf]
        %v3503 = vld [vmem:[%s9 + $0x120] sm:$0xff]
        %v3504 = vld [vmem:[%s9 + $0x128] sm:$0xf]
        %v3505 = vld [vmem:[%s9 + $0x12c] sm:$0xff]
        %v3506 = vld [vmem:[%s9 + $0x134] sm:$0xf]
        %v3507 = vld [vmem:[%s9 + $0x138] sm:$0xff]
        %v3508 = vld [vmem:[%s9 + $0x140] sm:$0xf]
        %v3509 = vld [vmem:[%s9 + $0x144] sm:$0xff]
        %v3510 = vld [vmem:[%s9 + $0x14c] sm:$0xf]
        %v3511 = vld [vmem:[%s9 + $0x150] sm:$0xff]
        %v3512 = vld [vmem:[%s9 + $0x158] sm:$0xf]
        %v3513 = vld [vmem:[%s9 + $0x15c] sm:$0xff]
        %v3514 = vld [vmem:[%s9 + $0x164] sm:$0xf]
        %v3515 = vld [vmem:[%s9 + $0x168] sm:$0xff]
        %v3516 = vld [vmem:[%s9 + $0x170] sm:$0xf]
        %v3517 = vld [vmem:[%s9 + $0x174] sm:$0xff]
        %v3518 = vld [vmem:[%s9 + $0x17c] sm:$0xf]
        %v3519 = vld [vmem:[%s9 + $0x180] sm:$0xff]
        %v3520 = vld [vmem:[%s9 + $0x188] sm:$0xf]
        %v3521 = vld [vmem:[%s9 + $0x18c] sm:$0xff]
        %v3522 = vld [vmem:[%s9 + $0x194] sm:$0xf]
        %v3523 = vld [vmem:[%s9 + $0x198] sm:$0xff]
        %v3524 = vld [vmem:[%s9 + $0x1a0] sm:$0xf]
        %v3525 = vld [vmem:[%s9 + $0x1a4] sm:$0xff]
        %v3526 = vld [vmem:[%s9 + $0x1ac] sm:$0xf]
        %v3527 = vld [vmem:[%s9 + $0x1b0] sm:$0xff]
        %v3528 = vld [vmem:[%s9 + $0x1b8] sm:$0xf]
        %v3529 = vld [vmem:[%s9 + $0x1bc] sm:$0xff]
        %v3530 = vld [vmem:[%s9 + $0x1c4] sm:$0xf]
        %v3531 = vld [vmem:[%s9 + $0x1c8] sm:$0xff]
        %v3532 = vld [vmem:[%s9 + $0x1d0] sm:$0xf]
        %v3533 = vld [vmem:[%s9 + $0x1d4] sm:$0xff]
        %v3534 = vld [vmem:[%s9 + $0x1dc] sm:$0xf]
        %v3535 = vld [vmem:[%s9 + $0x1e0] sm:$0xff]
        %v3536 = vld [vmem:[%s9 + $0x1e8] sm:$0xf]
        %v3537 = vld [vmem:[%s9 + $0x1ec] sm:$0xff]
        %v3538 = vld [vmem:[%s9 + $0x1f4] sm:$0xf]
        %v3539 = vld [vmem:[%s9 + $0x1f8] sm:$0xff]
        %v3540 = vld [vmem:[%s9 + $0x200] sm:$0xf]
        %v3541 = vld [vmem:[%s9 + $0x204] sm:$0xff]
        %v3542 = vld [vmem:[%s9 + $0x20c] sm:$0xf]
        %v3543 = vld [vmem:[%s9 + $0x210] sm:$0xff]
        %v3544 = vld [vmem:[%s9 + $0x218] sm:$0xf]
        %v3545 = vld [vmem:[%s9 + $0x21c] sm:$0xff]
        %v3546 = vld [vmem:[%s9 + $0x224] sm:$0xf]
        %v3547 = vld [vmem:[%s9 + $0x228] sm:$0xff]
        %v3548 = vld [vmem:[%s9 + $0x230] sm:$0xf]
        %v3549 = vld [vmem:[%s9 + $0x234] sm:$0xff]
        %v3550 = vld [vmem:[%s9 + $0x23c] sm:$0xf]
        %v3551 = vld [vmem:[%s10] sm:$0x7]
        %v3553 = vperm.slane %v3551, 0
        %v3554 = vperm.slane %v3551, 1
        %v3555 = vperm.slane %v3551, 2
        %v3655 = vunpack.c.l.b16 %v3455
        %v3656 = vunpack.c.h.b16 %v3455
        %v3657 = vunpack.c.l.b16 %v3456
        %v3658 = vunpack.c.l.b16 %v3457
        %v3659 = vunpack.c.h.b16 %v3457
        %v3660 = vunpack.c.l.b16 %v3458
        %v3661 = vunpack.c.l.b16 %v3459
        %v3662 = vunpack.c.h.b16 %v3459
        %v3663 = vunpack.c.l.b16 %v3460
        %v3664 = vunpack.c.l.b16 %v3461
        %v3665 = vunpack.c.h.b16 %v3461
        %v3666 = vunpack.c.l.b16 %v3462
        %v3667 = vunpack.c.l.b16 %v3463
        %v3668 = vunpack.c.h.b16 %v3463
        %v3669 = vunpack.c.l.b16 %v3464
        %v3670 = vunpack.c.l.b16 %v3465
        %v3671 = vunpack.c.h.b16 %v3465
        %v3672 = vunpack.c.l.b16 %v3466
        %v3673 = vunpack.c.l.b16 %v3467
        %v3674 = vunpack.c.h.b16 %v3467
        %v3675 = vunpack.c.l.b16 %v3468
        %v3676 = vunpack.c.l.b16 %v3469
        %v3677 = vunpack.c.h.b16 %v3469
        %v3678 = vunpack.c.l.b16 %v3470
        %v3679 = vunpack.c.l.b16 %v3471
        %v3680 = vunpack.c.h.b16 %v3471
        %v3681 = vunpack.c.l.b16 %v3472
        %v3682 = vunpack.c.l.b16 %v3473
        %v3683 = vunpack.c.h.b16 %v3473
        %v3684 = vunpack.c.l.b16 %v3474
        %v3685 = vunpack.c.l.b16 %v3475
        %v3686 = vunpack.c.h.b16 %v3475
        %v3687 = vunpack.c.l.b16 %v3476
        %v3688 = vunpack.c.l.b16 %v3477
        %v3689 = vunpack.c.h.b16 %v3477
        %v3690 = vunpack.c.l.b16 %v3478
        %v3691 = vunpack.c.l.b16 %v3479
        %v3692 = vunpack.c.h.b16 %v3479
        %v3693 = vunpack.c.l.b16 %v3480
        %v3694 = vunpack.c.l.b16 %v3481
        %v3695 = vunpack.c.h.b16 %v3481
        %v3696 = vunpack.c.l.b16 %v3482
        %v3697 = vunpack.c.l.b16 %v3483
        %v3698 = vunpack.c.h.b16 %v3483
        %v3699 = vunpack.c.l.b16 %v3484
        %v3700 = vunpack.c.l.b16 %v3485
        %v3701 = vunpack.c.h.b16 %v3485
        %v3702 = vunpack.c.l.b16 %v3486
        %v3703 = vunpack.c.l.b16 %v3487
        %v3704 = vunpack.c.h.b16 %v3487
        %v3705 = vunpack.c.l.b16 %v3488
        %v3706 = vunpack.c.l.b16 %v3489
        %v3707 = vunpack.c.h.b16 %v3489
        %v3708 = vunpack.c.l.b16 %v3490
        %v3709 = vunpack.c.l.b16 %v3491
        %v3710 = vunpack.c.h.b16 %v3491
        %v3711 = vunpack.c.l.b16 %v3492
        %v3712 = vunpack.c.l.b16 %v3493
        %v3713 = vunpack.c.h.b16 %v3493
        %v3714 = vunpack.c.l.b16 %v3494
        %v3715 = vunpack.c.l.b16 %v3495
        %v3716 = vunpack.c.h.b16 %v3495
        %v3717 = vunpack.c.l.b16 %v3496
        %v3718 = vunpack.c.l.b16 %v3497
        %v3719 = vunpack.c.h.b16 %v3497
        %v3720 = vunpack.c.l.b16 %v3498
        %v3721 = vunpack.c.l.b16 %v3499
        %v3722 = vunpack.c.h.b16 %v3499
        %v3723 = vunpack.c.l.b16 %v3500
        %v3724 = vunpack.c.l.b16 %v3501
        %v3725 = vunpack.c.h.b16 %v3501
        %v3726 = vunpack.c.l.b16 %v3502
        %v3727 = vunpack.c.l.b16 %v3503
        %v3728 = vunpack.c.h.b16 %v3503
        %v3729 = vunpack.c.l.b16 %v3504
        %v3730 = vunpack.c.l.b16 %v3505
        %v3731 = vunpack.c.h.b16 %v3505
        %v3732 = vunpack.c.l.b16 %v3506
        %v3733 = vunpack.c.l.b16 %v3507
        %v3734 = vunpack.c.h.b16 %v3507
        %v3735 = vunpack.c.l.b16 %v3508
        %v3736 = vunpack.c.l.b16 %v3509
        %v3737 = vunpack.c.h.b16 %v3509
        %v3738 = vunpack.c.l.b16 %v3510
        %v3739 = vunpack.c.l.b16 %v3511
        %v3740 = vunpack.c.h.b16 %v3511
        %v3741 = vunpack.c.l.b16 %v3512
        %v3742 = vunpack.c.l.b16 %v3513
        %v3743 = vunpack.c.h.b16 %v3513
        %v3744 = vunpack.c.l.b16 %v3514
        %v3745 = vunpack.c.l.b16 %v3515
        %v3746 = vunpack.c.h.b16 %v3515
        %v3747 = vunpack.c.l.b16 %v3516
        %v3748 = vunpack.c.l.b16 %v3517
        %v3749 = vunpack.c.h.b16 %v3517
        %v3750 = vunpack.c.l.b16 %v3518
        %v3751 = vunpack.c.l.b16 %v3519
        %v3752 = vunpack.c.h.b16 %v3519
        %v3753 = vunpack.c.l.b16 %v3520
        %v3754 = vunpack.c.l.b16 %v3521
        %v3755 = vunpack.c.h.b16 %v3521
        %v3756 = vunpack.c.l.b16 %v3522
        %v3757 = vunpack.c.l.b16 %v3523
        %v3758 = vunpack.c.h.b16 %v3523
        %v3759 = vunpack.c.l.b16 %v3524
        %v3760 = vunpack.c.l.b16 %v3525
        %v3761 = vunpack.c.h.b16 %v3525
        %v3762 = vunpack.c.l.b16 %v3526
        %v3763 = vunpack.c.l.b16 %v3527
        %v3764 = vunpack.c.h.b16 %v3527
        %v3765 = vunpack.c.l.b16 %v3528
        %v3766 = vunpack.c.l.b16 %v3529
        %v3767 = vunpack.c.h.b16 %v3529
        %v3768 = vunpack.c.l.b16 %v3530
        %v3769 = vunpack.c.l.b16 %v3531
        %v3770 = vunpack.c.h.b16 %v3531
        %v3771 = vunpack.c.l.b16 %v3532
        %v3772 = vunpack.c.l.b16 %v3533
        %v3773 = vunpack.c.h.b16 %v3533
        %v3774 = vunpack.c.l.b16 %v3534
        %v3775 = vunpack.c.l.b16 %v3535
        %v3776 = vunpack.c.h.b16 %v3535
        %v3777 = vunpack.c.l.b16 %v3536
        %v3778 = vunpack.c.l.b16 %v3537
        %v3779 = vunpack.c.h.b16 %v3537
        %v3780 = vunpack.c.l.b16 %v3538
        %v3781 = vunpack.c.l.b16 %v3539
        %v3782 = vunpack.c.h.b16 %v3539
        %v3783 = vunpack.c.l.b16 %v3540
        %v3784 = vunpack.c.l.b16 %v3541
        %v3785 = vunpack.c.h.b16 %v3541
        %v3786 = vunpack.c.l.b16 %v3542
        %v3787 = vunpack.c.l.b16 %v3543
        %v3788 = vunpack.c.h.b16 %v3543
        %v3789 = vunpack.c.l.b16 %v3544
        %v3790 = vunpack.c.l.b16 %v3545
        %v3791 = vunpack.c.h.b16 %v3545
        %v3792 = vunpack.c.l.b16 %v3546
        %v3793 = vunpack.c.l.b16 %v3547
        %v3794 = vunpack.c.h.b16 %v3547
        %v3795 = vunpack.c.l.b16 %v3548
        %v3796 = vunpack.c.l.b16 %v3549
        %v3797 = vunpack.c.h.b16 %v3549
        %v3798 = vunpack.c.l.b16 %v3550
        %v3799 = vpack.c.b16 %v3658, %v3655
        %v3800 = vpack.c.b16 %v3659, %v3656
        %v3801 = vpack.c.b16 %v3660, %v3657
        %v3802 = vpack.c.b16 %v3664, %v3661
        %v3803 = vpack.c.b16 %v3665, %v3662
        %v3804 = vpack.c.b16 %v3666, %v3663
        %v3805 = vpack.c.b16 %v3670, %v3667
        %v3806 = vpack.c.b16 %v3671, %v3668
        %v3807 = vpack.c.b16 %v3672, %v3669
        %v3808 = vpack.c.b16 %v3676, %v3673
        %v3809 = vpack.c.b16 %v3677, %v3674
        %v3810 = vpack.c.b16 %v3678, %v3675
        %v3811 = vpack.c.b16 %v3682, %v3679
        %v3812 = vpack.c.b16 %v3683, %v3680
        %v3813 = vpack.c.b16 %v3684, %v3681
        %v3814 = vpack.c.b16 %v3688, %v3685
        %v3815 = vpack.c.b16 %v3689, %v3686
        %v3816 = vpack.c.b16 %v3690, %v3687
        %v3817 = vpack.c.b16 %v3694, %v3691
        %v3818 = vpack.c.b16 %v3695, %v3692
        %v3819 = vpack.c.b16 %v3696, %v3693
        %v3820 = vpack.c.b16 %v3700, %v3697
        %v3821 = vpack.c.b16 %v3701, %v3698
        %v3822 = vpack.c.b16 %v3702, %v3699
        %v3823 = vpack.c.b16 %v3706, %v3703
        %v3824 = vpack.c.b16 %v3707, %v3704
        %v3825 = vpack.c.b16 %v3708, %v3705
        %v3826 = vpack.c.b16 %v3712, %v3709
        %v3827 = vpack.c.b16 %v3713, %v3710
        %v3828 = vpack.c.b16 %v3714, %v3711
        %v3829 = vpack.c.b16 %v3718, %v3715
        %v3830 = vpack.c.b16 %v3719, %v3716
        %v3831 = vpack.c.b16 %v3720, %v3717
        %v3832 = vpack.c.b16 %v3724, %v3721
        %v3833 = vpack.c.b16 %v3725, %v3722
        %v3834 = vpack.c.b16 %v3726, %v3723
        %v3835 = vpack.c.b16 %v3730, %v3727
        %v3836 = vpack.c.b16 %v3731, %v3728
        %v3837 = vpack.c.b16 %v3732, %v3729
        %v3838 = vpack.c.b16 %v3736, %v3733
        %v3839 = vpack.c.b16 %v3737, %v3734
        %v3840 = vpack.c.b16 %v3738, %v3735
        %v3841 = vpack.c.b16 %v3742, %v3739
        %v3842 = vpack.c.b16 %v3743, %v3740
        %v3843 = vpack.c.b16 %v3744, %v3741
        %v3844 = vpack.c.b16 %v3748, %v3745
        %v3845 = vpack.c.b16 %v3749, %v3746
        %v3846 = vpack.c.b16 %v3750, %v3747
        %v3847 = vpack.c.b16 %v3754, %v3751
        %v3848 = vpack.c.b16 %v3755, %v3752
        %v3849 = vpack.c.b16 %v3756, %v3753
        %v3850 = vpack.c.b16 %v3760, %v3757
        %v3851 = vpack.c.b16 %v3761, %v3758
        %v3852 = vpack.c.b16 %v3762, %v3759
        %v3853 = vpack.c.b16 %v3766, %v3763
        %v3854 = vpack.c.b16 %v3767, %v3764
        %v3855 = vpack.c.b16 %v3768, %v3765
        %v3856 = vpack.c.b16 %v3772, %v3769
        %v3857 = vpack.c.b16 %v3773, %v3770
        %v3858 = vpack.c.b16 %v3774, %v3771
        %v3859 = vpack.c.b16 %v3778, %v3775
        %v3860 = vpack.c.b16 %v3779, %v3776
        %v3861 = vpack.c.b16 %v3780, %v3777
        %v3862 = vpack.c.b16 %v3784, %v3781
        %v3863 = vpack.c.b16 %v3785, %v3782
        %v3864 = vpack.c.b16 %v3786, %v3783
        %v3865 = vpack.c.b16 %v3790, %v3787
        %v3866 = vpack.c.b16 %v3791, %v3788
        %v3867 = vpack.c.b16 %v3792, %v3789
        %v3868 = vpack.c.b16 %v3796, %v3793
        %v3869 = vpack.c.b16 %v3797, %v3794
        %v3870 = vpack.c.b16 %v3798, %v3795
        %3943 = vmatpush.bf16.msra.mxu0 %v3820
        %3944 = vmatpush.bf16.msra.mxu0 %v3817
        %3945 = vmatpush.bf16.msra.mxu0 %v3814
        %3946 = vmatpush.bf16.msra.mxu0 %v3811
        %3947 = vmatpush.bf16.msra.mxu0 %v3808
        %3948 = vmatpush.bf16.msra.mxu0 %v3805
        %3949 = vmatpush.bf16.msra.mxu0 %v3802
        %3950 = vmatpush.bf16.msra.mxu0 %v3799
        %3951 = vmatmul.bf16.gmra.mxu0 %v3452
        %v3952 = vpop.f32.mrf.mxu0
        %v3953 = vadd.f32 %v3553, %v3952
        %v3954 = vpop.f32.mrf.mxu0
        %3955 = vdwg.mxu0
        %3956 = vmatpush.bf16.msra.mxu0 %v3844
        %3957 = vmatpush.bf16.msra.mxu0 %v3841
        %3958 = vmatpush.bf16.msra.mxu0 %v3838
        %3959 = vmatpush.bf16.msra.mxu0 %v3835
        %3960 = vmatpush.bf16.msra.mxu0 %v3832
        %3961 = vmatpush.bf16.msra.mxu0 %v3829
        %3962 = vmatpush.bf16.msra.mxu0 %v3826
        %3963 = vmatpush.bf16.msra.mxu0 %v3823
        %3964 = vmatmul.bf16.gmra.mxu0 %v3453
        %v3965 = vpop.f32.mrf.mxu0
        %v3966 = vadd.f32 %v3953, %v3965
        %v3967 = vpop.f32.mrf.mxu0
        %3968 = vdwg.mxu0
        %3969 = vmatpush.bf16.msra.mxu0 %v3868
        %3970 = vmatpush.bf16.msra.mxu0 %v3865
        %3971 = vmatpush.bf16.msra.mxu0 %v3862
        %3972 = vmatpush.bf16.msra.mxu0 %v3859
        %3973 = vmatpush.bf16.msra.mxu0 %v3856
        %3974 = vmatpush.bf16.msra.mxu0 %v3853
        %3975 = vmatpush.bf16.msra.mxu0 %v3850
        %3976 = vmatpush.bf16.msra.mxu0 %v3847
        %3977 = vmatmul.bf16.gmra.mxu0 %v3454
        %v3978 = vpop.f32.mrf.mxu0
        %v3979 = vadd.f32 %v3966, %v3978
        %v3980 = vpop.f32.mrf.mxu0
        %3981 = vdwg.mxu0
        %3982 = vmatpush.bf16.msra.mxu0 %v3821
        %3983 = vmatpush.bf16.msra.mxu0 %v3818
        %3984 = vmatpush.bf16.msra.mxu0 %v3815
        %3985 = vmatpush.bf16.msra.mxu0 %v3812
        %3986 = vmatpush.bf16.msra.mxu0 %v3809
        %3987 = vmatpush.bf16.msra.mxu0 %v3806
        %3988 = vmatpush.bf16.msra.mxu0 %v3803
        %3989 = vmatpush.bf16.msra.mxu0 %v3800
        %3990 = vmatmul.bf16.gmra.mxu0 %v3452
        %v3991 = vpop.f32.mrf.mxu0
        %v3992 = vadd.f32 %v3554, %v3991
        %v3993 = vpop.f32.mrf.mxu0
        %3994 = vdwg.mxu0
        %3995 = vmatpush.bf16.msra.mxu0 %v3845
        %3996 = vmatpush.bf16.msra.mxu0 %v3842
        %3997 = vmatpush.bf16.msra.mxu0 %v3839
        %3998 = vmatpush.bf16.msra.mxu0 %v3836
        %3999 = vmatpush.bf16.msra.mxu0 %v3833
        %4000 = vmatpush.bf16.msra.mxu0 %v3830
        %4001 = vmatpush.bf16.msra.mxu0 %v3827
        %4002 = vmatpush.bf16.msra.mxu0 %v3824
        %4003 = vmatmul.bf16.gmra.mxu0 %v3453
        %v4004 = vpop.f32.mrf.mxu0
        %v4005 = vadd.f32 %v3992, %v4004
        %v4006 = vpop.f32.mrf.mxu0
        %4007 = vdwg.mxu0
        %4008 = vmatpush.bf16.msra.mxu0 %v3869
        %4009 = vmatpush.bf16.msra.mxu0 %v3866
        %4010 = vmatpush.bf16.msra.mxu0 %v3863
        %4011 = vmatpush.bf16.msra.mxu0 %v3860
        %4012 = vmatpush.bf16.msra.mxu0 %v3857
        %4013 = vmatpush.bf16.msra.mxu0 %v3854
        %4014 = vmatpush.bf16.msra.mxu0 %v3851
        %4015 = vmatpush.bf16.msra.mxu0 %v3848
        %4016 = vmatmul.bf16.gmra.mxu0 %v3454
        %v4017 = vpop.f32.mrf.mxu0
        %v4018 = vadd.f32 %v4005, %v4017
        %v4019 = vpop.f32.mrf.mxu0
        %4020 = vdwg.mxu0
        %4021 = vmatpush.bf16.msra.mxu0 %v3822
        %4022 = vmatpush.bf16.msra.mxu0 %v3819
        %4023 = vmatpush.bf16.msra.mxu0 %v3816
        %4024 = vmatpush.bf16.msra.mxu0 %v3813
        %4025 = vmatpush.bf16.msra.mxu0 %v3810
        %4026 = vmatpush.bf16.msra.mxu0 %v3807
        %4027 = vmatpush.bf16.msra.mxu0 %v3804
        %4028 = vmatpush.bf16.msra.mxu0 %v3801
        %4029 = vmatmul.bf16.gmra.mxu0 %v3452
        %v4030 = vpop.f32.mrf.mxu0
        %v4031 = vadd.f32 %v3555, %v4030
        %v4032 = vpop.f32.mrf.mxu0
        %4033 = vdwg.mxu0
        %4034 = vmatpush.bf16.msra.mxu0 %v3846
        %4035 = vmatpush.bf16.msra.mxu0 %v3843
        %4036 = vmatpush.bf16.msra.mxu0 %v3840
        %4037 = vmatpush.bf16.msra.mxu0 %v3837
        %4038 = vmatpush.bf16.msra.mxu0 %v3834
        %4039 = vmatpush.bf16.msra.mxu0 %v3831
        %4040 = vmatpush.bf16.msra.mxu0 %v3828
        %4041 = vmatpush.bf16.msra.mxu0 %v3825
        %4042 = vmatmul.bf16.gmra.mxu0 %v3453
        %v4043 = vpop.f32.mrf.mxu0
        %v4044 = vadd.f32 %v4031, %v4043
        %v4045 = vpop.f32.mrf.mxu0
        %4046 = vdwg.mxu0
        %4047 = vmatpush.bf16.msra.mxu0 %v3870
        %4048 = vmatpush.bf16.msra.mxu0 %v3867
        %4049 = vmatpush.bf16.msra.mxu0 %v3864
        %4050 = vmatpush.bf16.msra.mxu0 %v3861
        %4051 = vmatpush.bf16.msra.mxu0 %v3858
        %4052 = vmatpush.bf16.msra.mxu0 %v3855
        %4053 = vmatpush.bf16.msra.mxu0 %v3852
        %4054 = vmatpush.bf16.msra.mxu0 %v3849
        %4055 = vmatmul.bf16.gmra.mxu0 %v3454
        %v4056 = vpop.f32.mrf.mxu0
        %v4057 = vadd.f32 %v4044, %v4056
        %v4058 = vpop.f32.mrf.mxu0
        %4059 = vdwg.mxu0
        %v4060 = vadd.f32 %v3979, %v1030
        %v4061 = vadd.f32 %v4018, %v1031
        %v4062 = vadd.f32 %v4057, %v1032
        %v4063 = vld [vmem:[%s11] sm:$0x7]
        %v4064 = vld [vmem:[%s12] sm:$0x7]
        %v4065 = vadd.f32 %v4060, %v4061
        %v4066 = vadd.f32 %v4065, %v4062
        %4067 = vadd.xlane.f32.xlu0 %v4066
        %v4068 = vpop.xlane.xlu0 %4067
        %v4069 = vrcp.pop 384.0
        %v4070 = vmul.f32 384.0, %v4069
        %v4071 = vsub.f32 1.0, %v4070
        %v4072 = vmul.f32 %v4069, %v4071
        %v4073 = vadd.f32 %v4069, %v4072
        %vm4074 = vweird.f32 %v4069
        %v4075 = vsel %vm4074, %v4069, %v4073
        %v4076 = vmul.f32 %v4068, %v4075
        %v4077 = vsub.f32 %v4060, %v4076
        %v4078 = vsub.f32 %v4061, %v4076
        %v4079 = vsub.f32 %v4062, %v4076
        %v4080 = vmul.f32 %v4077, %v4077
        %v4081 = vmul.f32 %v4078, %v4078
        %v4082 = vmul.f32 %v4079, %v4079
        %v4083 = vadd.f32 %v4080, %v4081
        %v4084 = vadd.f32 %v4083, %v4082
        %4085 = vadd.xlane.f32.xlu0 %v4084
        %v4086 = vpop.xlane.xlu0 %4085
        %v4087 = vrcp.pop 383.0
        %v4088 = vmul.f32 383.0, %v4087
        %v4089 = vsub.f32 1.0, %v4088
        %v4090 = vmul.f32 %v4087, %v4089
        %v4091 = vadd.f32 %v4087, %v4090
        %vm4092 = vweird.f32 %v4087
        %v4093 = vsel %vm4092, %v4087, %v4091
        %v4094 = vmul.f32 %v4086, %v4093
        %v4095 = vrsqrt.pop %v4094
        %v4096 = vmul.f32 %v4095, %v4094
        %v4097 = vmul.f32 %v4096, %v4095
        %v4098 = vmul.f32 0.5, %v4097
        %v4099 = vsub.f32 1.5, %v4098
        %v4100 = vmul.f32 %v4095, %v4099
        %v4101 = vmul.f32 %v4094, %v4100
        %vm4102 = vcmp.eq.f32.partialorder %v4094, inf
        %v4103 = vsel %vm4102, %v4094, %v4101
        %vm4104 = vcmp.eq.f32.partialorder %v4094, 0.0
        %v4105 = vand.u32 %v4094, 2147483648
        %v4106 = vsel %vm4104, %v4105, %v4103
        %v4108 = vperm.slane %v4063, 0
        %v4109 = vperm.slane %v4063, 1
        %v4110 = vperm.slane %v4063, 2
        %v4114 = vmul.f32 %v4108, %v4077
        %v4115 = vmul.f32 %v4109, %v4078
        %v4116 = vmul.f32 %v4110, %v4079
        %v4117 = vadd.f32 %v4106, 1e-06
        %v4118 = vrcp.pop %v4117
        %v4119 = vmul.f32 %v4117, %v4118
        %v4120 = vsub.f32 1.0, %v4119
        %v4121 = vmul.f32 %v4118, %v4120
        %v4122 = vadd.f32 %v4118, %v4121
        %vm4123 = vweird.f32 %v4117
        %vm4124 = vweird.f32 %v4118
        %vm4125 = vmor %vm4123, %vm4124
        %v4126 = vsel %vm4125, %v4118, %v4122
        %v4127 = vand.u32 2147483647, %v4117
        %vm4128 = vcmp.eq.f32.partialorder %v4127, 8.507059e+37
        %v4129 = vand.u32 %v4117, 2147483648
        %v4130 = vor.u32 1.1754944e-38, %v4129
        %v4131 = vsel %vm4128, %v4130, %v4126
        %v4132 = vmul.f32 %v4114, %v4131
        %v4133 = vmul.f32 %v4115, %v4131
        %v4134 = vmul.f32 %v4116, %v4131
        %v4136 = vperm.slane %v4064, 0
        %v4137 = vperm.slane %v4064, 1
        %v4138 = vperm.slane %v4064, 2
        %v4142 = vadd.f32 %v4132, %v4136
        %v4143 = vadd.f32 %v4133, %v4137
        %v4144 = vadd.f32 %v4134, %v4138
        %v4145 = vpack.c.bf16 %v4142, %v4142
        %v4146 = vpack.c.bf16 %v4143, %v4143
        %v4147 = vpack.c.bf16 %v4144, %v4144
        %v4148 = vld [vmem:[%s13] sm:$0xff]
        %v4149 = vld [vmem:[%s13 + $0x8] sm:$0xf]
        %v4150 = vld [vmem:[%s13 + $0xc] sm:$0xff]
        %v4151 = vld [vmem:[%s13 + $0x14] sm:$0xf]
        %v4152 = vld [vmem:[%s13 + $0x18] sm:$0xff]
        %v4153 = vld [vmem:[%s13 + $0x20] sm:$0xf]
        %v4154 = vld [vmem:[%s13 + $0x24] sm:$0xff]
        %v4155 = vld [vmem:[%s13 + $0x2c] sm:$0xf]
        %v4156 = vld [vmem:[%s13 + $0x30] sm:$0xff]
        %v4157 = vld [vmem:[%s13 + $0x38] sm:$0xf]
        %v4158 = vld [vmem:[%s13 + $0x3c] sm:$0xff]
        %v4159 = vld [vmem:[%s13 + $0x44] sm:$0xf]
        %v4160 = vld [vmem:[%s13 + $0x48] sm:$0xff]
        %v4161 = vld [vmem:[%s13 + $0x50] sm:$0xf]
        %v4162 = vld [vmem:[%s13 + $0x54] sm:$0xff]
        %v4163 = vld [vmem:[%s13 + $0x5c] sm:$0xf]
        %v4164 = vld [vmem:[%s13 + $0x60] sm:$0xff]
        %v4165 = vld [vmem:[%s13 + $0x68] sm:$0xf]
        %v4166 = vld [vmem:[%s13 + $0x6c] sm:$0xff]
        %v4167 = vld [vmem:[%s13 + $0x74] sm:$0xf]
        %v4168 = vld [vmem:[%s13 + $0x78] sm:$0xff]
        %v4169 = vld [vmem:[%s13 + $0x80] sm:$0xf]
        %v4170 = vld [vmem:[%s13 + $0x84] sm:$0xff]
        %v4171 = vld [vmem:[%s13 + $0x8c] sm:$0xf]
        %v4172 = vld [vmem:[%s13 + $0x90] sm:$0xff]
        %v4173 = vld [vmem:[%s13 + $0x98] sm:$0xf]
        %v4174 = vld [vmem:[%s13 + $0x9c] sm:$0xff]
        %v4175 = vld [vmem:[%s13 + $0xa4] sm:$0xf]
        %v4176 = vld [vmem:[%s13 + $0xa8] sm:$0xff]
        %v4177 = vld [vmem:[%s13 + $0xb0] sm:$0xf]
        %v4178 = vld [vmem:[%s13 + $0xb4] sm:$0xff]
        %v4179 = vld [vmem:[%s13 + $0xbc] sm:$0xf]
        %v4180 = vld [vmem:[%s13 + $0xc0] sm:$0xff]
        %v4181 = vld [vmem:[%s13 + $0xc8] sm:$0xf]
        %v4182 = vld [vmem:[%s13 + $0xcc] sm:$0xff]
        %v4183 = vld [vmem:[%s13 + $0xd4] sm:$0xf]
        %v4184 = vld [vmem:[%s13 + $0xd8] sm:$0xff]
        %v4185 = vld [vmem:[%s13 + $0xe0] sm:$0xf]
        %v4186 = vld [vmem:[%s13 + $0xe4] sm:$0xff]
        %v4187 = vld [vmem:[%s13 + $0xec] sm:$0xf]
        %v4188 = vld [vmem:[%s13 + $0xf0] sm:$0xff]
        %v4189 = vld [vmem:[%s13 + $0xf8] sm:$0xf]
        %v4190 = vld [vmem:[%s13 + $0xfc] sm:$0xff]
        %v4191 = vld [vmem:[%s13 + $0x104] sm:$0xf]
        %v4192 = vld [vmem:[%s13 + $0x108] sm:$0xff]
        %v4193 = vld [vmem:[%s13 + $0x110] sm:$0xf]
        %v4194 = vld [vmem:[%s13 + $0x114] sm:$0xff]
        %v4195 = vld [vmem:[%s13 + $0x11c] sm:$0xf]
        %v4196 = vld [vmem:[%s13 + $0x120] sm:$0xff]
        %v4197 = vld [vmem:[%s13 + $0x128] sm:$0xf]
        %v4198 = vld [vmem:[%s13 + $0x12c] sm:$0xff]
        %v4199 = vld [vmem:[%s13 + $0x134] sm:$0xf]
        %v4200 = vld [vmem:[%s13 + $0x138] sm:$0xff]
        %v4201 = vld [vmem:[%s13 + $0x140] sm:$0xf]
        %v4202 = vld [vmem:[%s13 + $0x144] sm:$0xff]
        %v4203 = vld [vmem:[%s13 + $0x14c] sm:$0xf]
        %v4204 = vld [vmem:[%s13 + $0x150] sm:$0xff]
        %v4205 = vld [vmem:[%s13 + $0x158] sm:$0xf]
        %v4206 = vld [vmem:[%s13 + $0x15c] sm:$0xff]
        %v4207 = vld [vmem:[%s13 + $0x164] sm:$0xf]
        %v4208 = vld [vmem:[%s13 + $0x168] sm:$0xff]
        %v4209 = vld [vmem:[%s13 + $0x170] sm:$0xf]
        %v4210 = vld [vmem:[%s13 + $0x174] sm:$0xff]
        %v4211 = vld [vmem:[%s13 + $0x17c] sm:$0xf]
        %v4212 = vld [vmem:[%s13 + $0x180] sm:$0xff]
        %v4213 = vld [vmem:[%s13 + $0x188] sm:$0xf]
        %v4214 = vld [vmem:[%s13 + $0x18c] sm:$0xff]
        %v4215 = vld [vmem:[%s13 + $0x194] sm:$0xf]
        %v4216 = vld [vmem:[%s13 + $0x198] sm:$0xff]
        %v4217 = vld [vmem:[%s13 + $0x1a0] sm:$0xf]
        %v4218 = vld [vmem:[%s13 + $0x1a4] sm:$0xff]
        %v4219 = vld [vmem:[%s13 + $0x1ac] sm:$0xf]
        %v4220 = vld [vmem:[%s13 + $0x1b0] sm:$0xff]
        %v4221 = vld [vmem:[%s13 + $0x1b8] sm:$0xf]
        %v4222 = vld [vmem:[%s13 + $0x1bc] sm:$0xff]
        %v4223 = vld [vmem:[%s13 + $0x1c4] sm:$0xf]
        %v4224 = vld [vmem:[%s13 + $0x1c8] sm:$0xff]
        %v4225 = vld [vmem:[%s13 + $0x1d0] sm:$0xf]
        %v4226 = vld [vmem:[%s13 + $0x1d4] sm:$0xff]
        %v4227 = vld [vmem:[%s13 + $0x1dc] sm:$0xf]
        %v4228 = vld [vmem:[%s13 + $0x1e0] sm:$0xff]
        %v4229 = vld [vmem:[%s13 + $0x1e8] sm:$0xf]
        %v4230 = vld [vmem:[%s13 + $0x1ec] sm:$0xff]
        %v4231 = vld [vmem:[%s13 + $0x1f4] sm:$0xf]
        %v4232 = vld [vmem:[%s13 + $0x1f8] sm:$0xff]
        %v4233 = vld [vmem:[%s13 + $0x200] sm:$0xf]
        %v4234 = vld [vmem:[%s13 + $0x204] sm:$0xff]
        %v4235 = vld [vmem:[%s13 + $0x20c] sm:$0xf]
        %v4236 = vld [vmem:[%s13 + $0x210] sm:$0xff]
        %v4237 = vld [vmem:[%s13 + $0x218] sm:$0xf]
        %v4238 = vld [vmem:[%s13 + $0x21c] sm:$0xff]
        %v4239 = vld [vmem:[%s13 + $0x224] sm:$0xf]
        %v4240 = vld [vmem:[%s13 + $0x228] sm:$0xff]
        %v4241 = vld [vmem:[%s13 + $0x230] sm:$0xf]
        %v4242 = vld [vmem:[%s13 + $0x234] sm:$0xff]
        %v4243 = vld [vmem:[%s13 + $0x23c] sm:$0xf]
        %v4244 = vld [vmem:[%s14] sm:$0x7]
        %v4246 = vperm.slane %v4244, 0
        %v4247 = vperm.slane %v4244, 1
        %v4248 = vperm.slane %v4244, 2
        %v4348 = vunpack.c.l.b16 %v4148
        %v4349 = vunpack.c.h.b16 %v4148
        %v4350 = vunpack.c.l.b16 %v4149
        %v4351 = vunpack.c.l.b16 %v4150
        %v4352 = vunpack.c.h.b16 %v4150
        %v4353 = vunpack.c.l.b16 %v4151
        %v4354 = vunpack.c.l.b16 %v4152
        %v4355 = vunpack.c.h.b16 %v4152
        %v4356 = vunpack.c.l.b16 %v4153
        %v4357 = vunpack.c.l.b16 %v4154
        %v4358 = vunpack.c.h.b16 %v4154
        %v4359 = vunpack.c.l.b16 %v4155
        %v4360 = vunpack.c.l.b16 %v4156
        %v4361 = vunpack.c.h.b16 %v4156
        %v4362 = vunpack.c.l.b16 %v4157
        %v4363 = vunpack.c.l.b16 %v4158
        %v4364 = vunpack.c.h.b16 %v4158
        %v4365 = vunpack.c.l.b16 %v4159
        %v4366 = vunpack.c.l.b16 %v4160
        %v4367 = vunpack.c.h.b16 %v4160
        %v4368 = vunpack.c.l.b16 %v4161
        %v4369 = vunpack.c.l.b16 %v4162
        %v4370 = vunpack.c.h.b16 %v4162
        %v4371 = vunpack.c.l.b16 %v4163
        %v4372 = vunpack.c.l.b16 %v4164
        %v4373 = vunpack.c.h.b16 %v4164
        %v4374 = vunpack.c.l.b16 %v4165
        %v4375 = vunpack.c.l.b16 %v4166
        %v4376 = vunpack.c.h.b16 %v4166
        %v4377 = vunpack.c.l.b16 %v4167
        %v4378 = vunpack.c.l.b16 %v4168
        %v4379 = vunpack.c.h.b16 %v4168
        %v4380 = vunpack.c.l.b16 %v4169
        %v4381 = vunpack.c.l.b16 %v4170
        %v4382 = vunpack.c.h.b16 %v4170
        %v4383 = vunpack.c.l.b16 %v4171
        %v4384 = vunpack.c.l.b16 %v4172
        %v4385 = vunpack.c.h.b16 %v4172
        %v4386 = vunpack.c.l.b16 %v4173
        %v4387 = vunpack.c.l.b16 %v4174
        %v4388 = vunpack.c.h.b16 %v4174
        %v4389 = vunpack.c.l.b16 %v4175
        %v4390 = vunpack.c.l.b16 %v4176
        %v4391 = vunpack.c.h.b16 %v4176
        %v4392 = vunpack.c.l.b16 %v4177
        %v4393 = vunpack.c.l.b16 %v4178
        %v4394 = vunpack.c.h.b16 %v4178
        %v4395 = vunpack.c.l.b16 %v4179
        %v4396 = vunpack.c.l.b16 %v4180
        %v4397 = vunpack.c.h.b16 %v4180
        %v4398 = vunpack.c.l.b16 %v4181
        %v4399 = vunpack.c.l.b16 %v4182
        %v4400 = vunpack.c.h.b16 %v4182
        %v4401 = vunpack.c.l.b16 %v4183
        %v4402 = vunpack.c.l.b16 %v4184
        %v4403 = vunpack.c.h.b16 %v4184
        %v4404 = vunpack.c.l.b16 %v4185
        %v4405 = vunpack.c.l.b16 %v4186
        %v4406 = vunpack.c.h.b16 %v4186
        %v4407 = vunpack.c.l.b16 %v4187
        %v4408 = vunpack.c.l.b16 %v4188
        %v4409 = vunpack.c.h.b16 %v4188
        %v4410 = vunpack.c.l.b16 %v4189
        %v4411 = vunpack.c.l.b16 %v4190
        %v4412 = vunpack.c.h.b16 %v4190
        %v4413 = vunpack.c.l.b16 %v4191
        %v4414 = vunpack.c.l.b16 %v4192
        %v4415 = vunpack.c.h.b16 %v4192
        %v4416 = vunpack.c.l.b16 %v4193
        %v4417 = vunpack.c.l.b16 %v4194
        %v4418 = vunpack.c.h.b16 %v4194
        %v4419 = vunpack.c.l.b16 %v4195
        %v4420 = vunpack.c.l.b16 %v4196
        %v4421 = vunpack.c.h.b16 %v4196
        %v4422 = vunpack.c.l.b16 %v4197
        %v4423 = vunpack.c.l.b16 %v4198
        %v4424 = vunpack.c.h.b16 %v4198
        %v4425 = vunpack.c.l.b16 %v4199
        %v4426 = vunpack.c.l.b16 %v4200
        %v4427 = vunpack.c.h.b16 %v4200
        %v4428 = vunpack.c.l.b16 %v4201
        %v4429 = vunpack.c.l.b16 %v4202
        %v4430 = vunpack.c.h.b16 %v4202
        %v4431 = vunpack.c.l.b16 %v4203
        %v4432 = vunpack.c.l.b16 %v4204
        %v4433 = vunpack.c.h.b16 %v4204
        %v4434 = vunpack.c.l.b16 %v4205
        %v4435 = vunpack.c.l.b16 %v4206
        %v4436 = vunpack.c.h.b16 %v4206
        %v4437 = vunpack.c.l.b16 %v4207
        %v4438 = vunpack.c.l.b16 %v4208
        %v4439 = vunpack.c.h.b16 %v4208
        %v4440 = vunpack.c.l.b16 %v4209
        %v4441 = vunpack.c.l.b16 %v4210
        %v4442 = vunpack.c.h.b16 %v4210
        %v4443 = vunpack.c.l.b16 %v4211
        %v4444 = vunpack.c.l.b16 %v4212
        %v4445 = vunpack.c.h.b16 %v4212
        %v4446 = vunpack.c.l.b16 %v4213
        %v4447 = vunpack.c.l.b16 %v4214
        %v4448 = vunpack.c.h.b16 %v4214
        %v4449 = vunpack.c.l.b16 %v4215
        %v4450 = vunpack.c.l.b16 %v4216
        %v4451 = vunpack.c.h.b16 %v4216
        %v4452 = vunpack.c.l.b16 %v4217
        %v4453 = vunpack.c.l.b16 %v4218
        %v4454 = vunpack.c.h.b16 %v4218
        %v4455 = vunpack.c.l.b16 %v4219
        %v4456 = vunpack.c.l.b16 %v4220
        %v4457 = vunpack.c.h.b16 %v4220
        %v4458 = vunpack.c.l.b16 %v4221
        %v4459 = vunpack.c.l.b16 %v4222
        %v4460 = vunpack.c.h.b16 %v4222
        %v4461 = vunpack.c.l.b16 %v4223
        %v4462 = vunpack.c.l.b16 %v4224
        %v4463 = vunpack.c.h.b16 %v4224
        %v4464 = vunpack.c.l.b16 %v4225
        %v4465 = vunpack.c.l.b16 %v4226
        %v4466 = vunpack.c.h.b16 %v4226
        %v4467 = vunpack.c.l.b16 %v4227
        %v4468 = vunpack.c.l.b16 %v4228
        %v4469 = vunpack.c.h.b16 %v4228
        %v4470 = vunpack.c.l.b16 %v4229
        %v4471 = vunpack.c.l.b16 %v4230
        %v4472 = vunpack.c.h.b16 %v4230
        %v4473 = vunpack.c.l.b16 %v4231
        %v4474 = vunpack.c.l.b16 %v4232
        %v4475 = vunpack.c.h.b16 %v4232
        %v4476 = vunpack.c.l.b16 %v4233
        %v4477 = vunpack.c.l.b16 %v4234
        %v4478 = vunpack.c.h.b16 %v4234
        %v4479 = vunpack.c.l.b16 %v4235
        %v4480 = vunpack.c.l.b16 %v4236
        %v4481 = vunpack.c.h.b16 %v4236
        %v4482 = vunpack.c.l.b16 %v4237
        %v4483 = vunpack.c.l.b16 %v4238
        %v4484 = vunpack.c.h.b16 %v4238
        %v4485 = vunpack.c.l.b16 %v4239
        %v4486 = vunpack.c.l.b16 %v4240
        %v4487 = vunpack.c.h.b16 %v4240
        %v4488 = vunpack.c.l.b16 %v4241
        %v4489 = vunpack.c.l.b16 %v4242
        %v4490 = vunpack.c.h.b16 %v4242
        %v4491 = vunpack.c.l.b16 %v4243
        %v4492 = vpack.c.b16 %v4351, %v4348
        %v4493 = vpack.c.b16 %v4352, %v4349
        %v4494 = vpack.c.b16 %v4353, %v4350
        %v4495 = vpack.c.b16 %v4357, %v4354
        %v4496 = vpack.c.b16 %v4358, %v4355
        %v4497 = vpack.c.b16 %v4359, %v4356
        %v4498 = vpack.c.b16 %v4363, %v4360
        %v4499 = vpack.c.b16 %v4364, %v4361
        %v4500 = vpack.c.b16 %v4365, %v4362
        %v4501 = vpack.c.b16 %v4369, %v4366
        %v4502 = vpack.c.b16 %v4370, %v4367
        %v4503 = vpack.c.b16 %v4371, %v4368
        %v4504 = vpack.c.b16 %v4375, %v4372
        %v4505 = vpack.c.b16 %v4376, %v4373
        %v4506 = vpack.c.b16 %v4377, %v4374
        %v4507 = vpack.c.b16 %v4381, %v4378
        %v4508 = vpack.c.b16 %v4382, %v4379
        %v4509 = vpack.c.b16 %v4383, %v4380
        %v4510 = vpack.c.b16 %v4387, %v4384
        %v4511 = vpack.c.b16 %v4388, %v4385
        %v4512 = vpack.c.b16 %v4389, %v4386
        %v4513 = vpack.c.b16 %v4393, %v4390
        %v4514 = vpack.c.b16 %v4394, %v4391
        %v4515 = vpack.c.b16 %v4395, %v4392
        %v4516 = vpack.c.b16 %v4399, %v4396
        %v4517 = vpack.c.b16 %v4400, %v4397
        %v4518 = vpack.c.b16 %v4401, %v4398
        %v4519 = vpack.c.b16 %v4405, %v4402
        %v4520 = vpack.c.b16 %v4406, %v4403
        %v4521 = vpack.c.b16 %v4407, %v4404
        %v4522 = vpack.c.b16 %v4411, %v4408
        %v4523 = vpack.c.b16 %v4412, %v4409
        %v4524 = vpack.c.b16 %v4413, %v4410
        %v4525 = vpack.c.b16 %v4417, %v4414
        %v4526 = vpack.c.b16 %v4418, %v4415
        %v4527 = vpack.c.b16 %v4419, %v4416
        %v4528 = vpack.c.b16 %v4423, %v4420
        %v4529 = vpack.c.b16 %v4424, %v4421
        %v4530 = vpack.c.b16 %v4425, %v4422
        %v4531 = vpack.c.b16 %v4429, %v4426
        %v4532 = vpack.c.b16 %v4430, %v4427
        %v4533 = vpack.c.b16 %v4431, %v4428
        %v4534 = vpack.c.b16 %v4435, %v4432
        %v4535 = vpack.c.b16 %v4436, %v4433
        %v4536 = vpack.c.b16 %v4437, %v4434
        %v4537 = vpack.c.b16 %v4441, %v4438
        %v4538 = vpack.c.b16 %v4442, %v4439
        %v4539 = vpack.c.b16 %v4443, %v4440
        %v4540 = vpack.c.b16 %v4447, %v4444
        %v4541 = vpack.c.b16 %v4448, %v4445
        %v4542 = vpack.c.b16 %v4449, %v4446
        %v4543 = vpack.c.b16 %v4453, %v4450
        %v4544 = vpack.c.b16 %v4454, %v4451
        %v4545 = vpack.c.b16 %v4455, %v4452
        %v4546 = vpack.c.b16 %v4459, %v4456
        %v4547 = vpack.c.b16 %v4460, %v4457
        %v4548 = vpack.c.b16 %v4461, %v4458
        %v4549 = vpack.c.b16 %v4465, %v4462
        %v4550 = vpack.c.b16 %v4466, %v4463
        %v4551 = vpack.c.b16 %v4467, %v4464
        %v4552 = vpack.c.b16 %v4471, %v4468
        %v4553 = vpack.c.b16 %v4472, %v4469
        %v4554 = vpack.c.b16 %v4473, %v4470
        %v4555 = vpack.c.b16 %v4477, %v4474
        %v4556 = vpack.c.b16 %v4478, %v4475
        %v4557 = vpack.c.b16 %v4479, %v4476
        %v4558 = vpack.c.b16 %v4483, %v4480
        %v4559 = vpack.c.b16 %v4484, %v4481
        %v4560 = vpack.c.b16 %v4485, %v4482
        %v4561 = vpack.c.b16 %v4489, %v4486
        %v4562 = vpack.c.b16 %v4490, %v4487
        %v4563 = vpack.c.b16 %v4491, %v4488
        %4636 = vmatpush.bf16.msra.mxu0 %v4513
        %4637 = vmatpush.bf16.msra.mxu0 %v4510
        %4638 = vmatpush.bf16.msra.mxu0 %v4507
        %4639 = vmatpush.bf16.msra.mxu0 %v4504
        %4640 = vmatpush.bf16.msra.mxu0 %v4501
        %4641 = vmatpush.bf16.msra.mxu0 %v4498
        %4642 = vmatpush.bf16.msra.mxu0 %v4495
        %4643 = vmatpush.bf16.msra.mxu0 %v4492
        %4644 = vmatmul.bf16.gmra.mxu0 %v4145
        %v4645 = vpop.f32.mrf.mxu0
        %v4646 = vadd.f32 %v4246, %v4645
        %v4647 = vpop.f32.mrf.mxu0
        %4648 = vdwg.mxu0
        %4649 = vmatpush.bf16.msra.mxu0 %v4537
        %4650 = vmatpush.bf16.msra.mxu0 %v4534
        %4651 = vmatpush.bf16.msra.mxu0 %v4531
        %4652 = vmatpush.bf16.msra.mxu0 %v4528
        %4653 = vmatpush.bf16.msra.mxu0 %v4525
        %4654 = vmatpush.bf16.msra.mxu0 %v4522
        %4655 = vmatpush.bf16.msra.mxu0 %v4519
        %4656 = vmatpush.bf16.msra.mxu0 %v4516
        %4657 = vmatmul.bf16.gmra.mxu0 %v4146
        %v4658 = vpop.f32.mrf.mxu0
        %v4659 = vadd.f32 %v4646, %v4658
        %v4660 = vpop.f32.mrf.mxu0
        %4661 = vdwg.mxu0
        %4662 = vmatpush.bf16.msra.mxu0 %v4561
        %4663 = vmatpush.bf16.msra.mxu0 %v4558
        %4664 = vmatpush.bf16.msra.mxu0 %v4555
        %4665 = vmatpush.bf16.msra.mxu0 %v4552
        %4666 = vmatpush.bf16.msra.mxu0 %v4549
        %4667 = vmatpush.bf16.msra.mxu0 %v4546
        %4668 = vmatpush.bf16.msra.mxu0 %v4543
        %4669 = vmatpush.bf16.msra.mxu0 %v4540
        %4670 = vmatmul.bf16.gmra.mxu0 %v4147
        %v4671 = vpop.f32.mrf.mxu0
        %v4672 = vadd.f32 %v4659, %v4671
        %v4673 = vpop.f32.mrf.mxu0
        %4674 = vdwg.mxu0
        %4675 = vmatpush.bf16.msra.mxu0 %v4514
        %4676 = vmatpush.bf16.msra.mxu0 %v4511
        %4677 = vmatpush.bf16.msra.mxu0 %v4508
        %4678 = vmatpush.bf16.msra.mxu0 %v4505
        %4679 = vmatpush.bf16.msra.mxu0 %v4502
        %4680 = vmatpush.bf16.msra.mxu0 %v4499
        %4681 = vmatpush.bf16.msra.mxu0 %v4496
        %4682 = vmatpush.bf16.msra.mxu0 %v4493
        %4683 = vmatmul.bf16.gmra.mxu0 %v4145
        %v4684 = vpop.f32.mrf.mxu0
        %v4685 = vadd.f32 %v4247, %v4684
        %v4686 = vpop.f32.mrf.mxu0
        %4687 = vdwg.mxu0
        %4688 = vmatpush.bf16.msra.mxu0 %v4538
        %4689 = vmatpush.bf16.msra.mxu0 %v4535
        %4690 = vmatpush.bf16.msra.mxu0 %v4532
        %4691 = vmatpush.bf16.msra.mxu0 %v4529
        %4692 = vmatpush.bf16.msra.mxu0 %v4526
        %4693 = vmatpush.bf16.msra.mxu0 %v4523
        %4694 = vmatpush.bf16.msra.mxu0 %v4520
        %4695 = vmatpush.bf16.msra.mxu0 %v4517
        %4696 = vmatmul.bf16.gmra.mxu0 %v4146
        %v4697 = vpop.f32.mrf.mxu0
        %v4698 = vadd.f32 %v4685, %v4697
        %v4699 = vpop.f32.mrf.mxu0
        %4700 = vdwg.mxu0
        %4701 = vmatpush.bf16.msra.mxu0 %v4562
        %4702 = vmatpush.bf16.msra.mxu0 %v4559
        %4703 = vmatpush.bf16.msra.mxu0 %v4556
        %4704 = vmatpush.bf16.msra.mxu0 %v4553
        %4705 = vmatpush.bf16.msra.mxu0 %v4550
        %4706 = vmatpush.bf16.msra.mxu0 %v4547
        %4707 = vmatpush.bf16.msra.mxu0 %v4544
        %4708 = vmatpush.bf16.msra.mxu0 %v4541
        %4709 = vmatmul.bf16.gmra.mxu0 %v4147
        %v4710 = vpop.f32.mrf.mxu0
        %v4711 = vadd.f32 %v4698, %v4710
        %v4712 = vpop.f32.mrf.mxu0
        %4713 = vdwg.mxu0
        %4714 = vmatpush.bf16.msra.mxu0 %v4515
        %4715 = vmatpush.bf16.msra.mxu0 %v4512
        %4716 = vmatpush.bf16.msra.mxu0 %v4509
        %4717 = vmatpush.bf16.msra.mxu0 %v4506
        %4718 = vmatpush.bf16.msra.mxu0 %v4503
        %4719 = vmatpush.bf16.msra.mxu0 %v4500
        %4720 = vmatpush.bf16.msra.mxu0 %v4497
        %4721 = vmatpush.bf16.msra.mxu0 %v4494
        %4722 = vmatmul.bf16.gmra.mxu0 %v4145
        %v4723 = vpop.f32.mrf.mxu0
        %v4724 = vadd.f32 %v4248, %v4723
        %v4725 = vpop.f32.mrf.mxu0
        %4726 = vdwg.mxu0
        %4727 = vmatpush.bf16.msra.mxu0 %v4539
        %4728 = vmatpush.bf16.msra.mxu0 %v4536
        %4729 = vmatpush.bf16.msra.mxu0 %v4533
        %4730 = vmatpush.bf16.msra.mxu0 %v4530
        %4731 = vmatpush.bf16.msra.mxu0 %v4527
        %4732 = vmatpush.bf16.msra.mxu0 %v4524
        %4733 = vmatpush.bf16.msra.mxu0 %v4521
        %4734 = vmatpush.bf16.msra.mxu0 %v4518
        %4735 = vmatmul.bf16.gmra.mxu0 %v4146
        %v4736 = vpop.f32.mrf.mxu0
        %v4737 = vadd.f32 %v4724, %v4736
        %v4738 = vpop.f32.mrf.mxu0
        %4739 = vdwg.mxu0
        %4740 = vmatpush.bf16.msra.mxu0 %v4563
        %4741 = vmatpush.bf16.msra.mxu0 %v4560
        %4742 = vmatpush.bf16.msra.mxu0 %v4557
        %4743 = vmatpush.bf16.msra.mxu0 %v4554
        %4744 = vmatpush.bf16.msra.mxu0 %v4551
        %4745 = vmatpush.bf16.msra.mxu0 %v4548
        %4746 = vmatpush.bf16.msra.mxu0 %v4545
        %4747 = vmatpush.bf16.msra.mxu0 %v4542
        %4748 = vmatmul.bf16.gmra.mxu0 %v4147
        %v4749 = vpop.f32.mrf.mxu0
        %v4750 = vadd.f32 %v4737, %v4749
        %v4751 = vpop.f32.mrf.mxu0
        %4752 = vdwg.mxu0
        %v4753 = vmul.f32 %v4672, 0.5
        %v4754 = vmul.f32 %v4711, 0.5
        %v4755 = vmul.f32 %v4750, 0.5
        %v4756 = vmul.f32 %v4672, %v906
        %v4757 = vmul.f32 %v4711, %v906
        %v4758 = vmul.f32 %v4750, %v906
        %vm4759 = vcmp.ge.f32.partialorder %v4756, 0.0
        %vm4760 = vcmp.ge.f32.partialorder %v4757, 0.0
        %vm4761 = vcmp.ge.f32.partialorder %v4758, 0.0
        %v4762 = vsel %vm4759, 1.0, -1.0
        %v4763 = vsel %vm4760, 1.0, -1.0
        %v4764 = vsel %vm4761, 1.0, -1.0
        %v4765 = vand.u32 2147483647, %v4756
        %v4766 = vand.u32 2147483647, %v4757
        %v4767 = vand.u32 2147483647, %v4758
        %v4768 = vmul.f32 %v4765, 0.3275911
        %v4769 = vmul.f32 %v4766, 0.3275911
        %v4770 = vmul.f32 %v4767, 0.3275911
        %v4771 = vadd.f32 %v4768, 1.0
        %v4772 = vadd.f32 %v4769, 1.0
        %v4773 = vadd.f32 %v4770, 1.0
        %v4774 = vrcp.pop %v4771
        %v4775 = vmul.f32 %v4771, %v4774
        %v4776 = vsub.f32 1.0, %v4775
        %v4777 = vmul.f32 %v4774, %v4776
        %v4778 = vadd.f32 %v4774, %v4777
        %vm4779 = vweird.f32 %v4771
        %vm4780 = vweird.f32 %v4774
        %vm4781 = vmor %vm4779, %vm4780
        %v4782 = vsel %vm4781, %v4774, %v4778
        %v4783 = vand.u32 2147483647, %v4771
        %vm4784 = vcmp.eq.f32.partialorder %v4783, 8.507059e+37
        %v4785 = vand.u32 %v4771, 2147483648
        %v4786 = vor.u32 1.1754944e-38, %v4785
        %v4787 = vsel %vm4784, %v4786, %v4782
        %v4788 = vmul.f32 1.0, %v4787
        %v4789 = vrcp.pop %v4772
        %v4790 = vmul.f32 %v4772, %v4789
        %v4791 = vsub.f32 1.0, %v4790
        %v4792 = vmul.f32 %v4789, %v4791
        %v4793 = vadd.f32 %v4789, %v4792
        %vm4794 = vweird.f32 %v4772
        %vm4795 = vweird.f32 %v4789
        %vm4796 = vmor %vm4794, %vm4795
        %v4797 = vsel %vm4796, %v4789, %v4793
        %v4798 = vand.u32 2147483647, %v4772
        %vm4799 = vcmp.eq.f32.partialorder %v4798, 8.507059e+37
        %v4800 = vand.u32 %v4772, 2147483648
        %v4801 = vor.u32 1.1754944e-38, %v4800
        %v4802 = vsel %vm4799, %v4801, %v4797
        %v4803 = vmul.f32 1.0, %v4802
        %v4804 = vrcp.pop %v4773
        %v4805 = vmul.f32 %v4773, %v4804
        %v4806 = vsub.f32 1.0, %v4805
        %v4807 = vmul.f32 %v4804, %v4806
        %v4808 = vadd.f32 %v4804, %v4807
        %vm4809 = vweird.f32 %v4773
        %vm4810 = vweird.f32 %v4804
        %vm4811 = vmor %vm4809, %vm4810
        %v4812 = vsel %vm4811, %v4804, %v4808
        %v4813 = vand.u32 2147483647, %v4773
        %vm4814 = vcmp.eq.f32.partialorder %v4813, 8.507059e+37
        %v4815 = vand.u32 %v4773, 2147483648
        %v4816 = vor.u32 1.1754944e-38, %v4815
        %v4817 = vsel %vm4814, %v4816, %v4812
        %v4818 = vmul.f32 1.0, %v4817
        %v4819 = vmul.f32 %v4788, 1.0614054
        %v4820 = vmul.f32 %v4803, 1.0614054
        %v4821 = vmul.f32 %v4818, 1.0614054
        %v4822 = vadd.f32 %v4819, -1.4531521
        %v4823 = vadd.f32 %v4820, -1.4531521
        %v4824 = vadd.f32 %v4821, -1.4531521
        %v4825 = vmul.f32 %v4822, %v4788
        %v4826 = vmul.f32 %v4823, %v4803
        %v4827 = vmul.f32 %v4824, %v4818
        %v4828 = vadd.f32 %v4825, 1.4214138
        %v4829 = vadd.f32 %v4826, 1.4214138
        %v4830 = vadd.f32 %v4827, 1.4214138
        %v4831 = vmul.f32 %v4828, %v4788
        %v4832 = vmul.f32 %v4829, %v4803
        %v4833 = vmul.f32 %v4830, %v4818
        %v4834 = vadd.f32 %v4831, -0.28449672
        %v4835 = vadd.f32 %v4832, -0.28449672
        %v4836 = vadd.f32 %v4833, -0.28449672
        %v4837 = vmul.f32 %v4834, %v4788
        %v4838 = vmul.f32 %v4835, %v4803
        %v4839 = vmul.f32 %v4836, %v4818
        %v4840 = vadd.f32 %v4837, 0.2548296
        %v4841 = vadd.f32 %v4838, 0.2548296
        %v4842 = vadd.f32 %v4839, 0.2548296
        %v4843 = vmul.f32 %v4840, %v4788
        %v4844 = vmul.f32 %v4841, %v4803
        %v4845 = vmul.f32 %v4842, %v4818
        %v4846 = vsub.f32 0.0, %v4765
        %v4847 = vsub.f32 0.0, %v4766
        %v4848 = vsub.f32 0.0, %v4767
        %v4849 = vmul.f32 %v4846, %v4765
        %v4850 = vmul.f32 %v4847, %v4766
        %v4851 = vmul.f32 %v4848, %v4767
        %v4852 = vmul.f32 %v4849, 1.442695
        %v4853 = vpow.pop %v4852
        %v4854 = vmul.f32 %v4850, 1.442695
        %v4855 = vpow.pop %v4854
        %v4856 = vmul.f32 %v4851, 1.442695
        %v4857 = vpow.pop %v4856
        %v4858 = vmul.f32 %v4843, %v4853
        %v4859 = vmul.f32 %v4844, %v4855
        %v4860 = vmul.f32 %v4845, %v4857
        %v4861 = vsub.f32 1.0, %v4858
        %v4862 = vsub.f32 1.0, %v4859
        %v4863 = vsub.f32 1.0, %v4860
        %v4864 = vmul.f32 %v4762, %v4861
        %v4865 = vmul.f32 %v4763, %v4862
        %v4866 = vmul.f32 %v4764, %v4863
        %v4867 = vadd.f32 %v4864, 1.0
        %v4868 = vadd.f32 %v4865, 1.0
        %v4869 = vadd.f32 %v4866, 1.0
        %v4870 = vmul.f32 %v4753, %v4867
        %v4871 = vmul.f32 %v4754, %v4868
        %v4872 = vmul.f32 %v4755, %v4869
        %v4873 = vpack.c.bf16 %v4870, %v4870
        %v4874 = vpack.c.bf16 %v4871, %v4871
        %v4875 = vpack.c.bf16 %v4872, %v4872
        %v4876 = vld [vmem:[%s15] sm:$0xff]
        %v4877 = vld [vmem:[%s15 + $0x8] sm:$0xf]
        %v4878 = vld [vmem:[%s15 + $0xc] sm:$0xff]
        %v4879 = vld [vmem:[%s15 + $0x14] sm:$0xf]
        %v4880 = vld [vmem:[%s15 + $0x18] sm:$0xff]
        %v4881 = vld [vmem:[%s15 + $0x20] sm:$0xf]
        %v4882 = vld [vmem:[%s15 + $0x24] sm:$0xff]
        %v4883 = vld [vmem:[%s15 + $0x2c] sm:$0xf]
        %v4884 = vld [vmem:[%s15 + $0x30] sm:$0xff]
        %v4885 = vld [vmem:[%s15 + $0x38] sm:$0xf]
        %v4886 = vld [vmem:[%s15 + $0x3c] sm:$0xff]
        %v4887 = vld [vmem:[%s15 + $0x44] sm:$0xf]
        %v4888 = vld [vmem:[%s15 + $0x48] sm:$0xff]
        %v4889 = vld [vmem:[%s15 + $0x50] sm:$0xf]
        %v4890 = vld [vmem:[%s15 + $0x54] sm:$0xff]
        %v4891 = vld [vmem:[%s15 + $0x5c] sm:$0xf]
        %v4892 = vld [vmem:[%s15 + $0x60] sm:$0xff]
        %v4893 = vld [vmem:[%s15 + $0x68] sm:$0xf]
        %v4894 = vld [vmem:[%s15 + $0x6c] sm:$0xff]
        %v4895 = vld [vmem:[%s15 + $0x74] sm:$0xf]
        %v4896 = vld [vmem:[%s15 + $0x78] sm:$0xff]
        %v4897 = vld [vmem:[%s15 + $0x80] sm:$0xf]
        %v4898 = vld [vmem:[%s15 + $0x84] sm:$0xff]
        %v4899 = vld [vmem:[%s15 + $0x8c] sm:$0xf]
        %v4900 = vld [vmem:[%s15 + $0x90] sm:$0xff]
        %v4901 = vld [vmem:[%s15 + $0x98] sm:$0xf]
        %v4902 = vld [vmem:[%s15 + $0x9c] sm:$0xff]
        %v4903 = vld [vmem:[%s15 + $0xa4] sm:$0xf]
        %v4904 = vld [vmem:[%s15 + $0xa8] sm:$0xff]
        %v4905 = vld [vmem:[%s15 + $0xb0] sm:$0xf]
        %v4906 = vld [vmem:[%s15 + $0xb4] sm:$0xff]
        %v4907 = vld [vmem:[%s15 + $0xbc] sm:$0xf]
        %v4908 = vld [vmem:[%s15 + $0xc0] sm:$0xff]
        %v4909 = vld [vmem:[%s15 + $0xc8] sm:$0xf]
        %v4910 = vld [vmem:[%s15 + $0xcc] sm:$0xff]
        %v4911 = vld [vmem:[%s15 + $0xd4] sm:$0xf]
        %v4912 = vld [vmem:[%s15 + $0xd8] sm:$0xff]
        %v4913 = vld [vmem:[%s15 + $0xe0] sm:$0xf]
        %v4914 = vld [vmem:[%s15 + $0xe4] sm:$0xff]
        %v4915 = vld [vmem:[%s15 + $0xec] sm:$0xf]
        %v4916 = vld [vmem:[%s15 + $0xf0] sm:$0xff]
        %v4917 = vld [vmem:[%s15 + $0xf8] sm:$0xf]
        %v4918 = vld [vmem:[%s15 + $0xfc] sm:$0xff]
        %v4919 = vld [vmem:[%s15 + $0x104] sm:$0xf]
        %v4920 = vld [vmem:[%s15 + $0x108] sm:$0xff]
        %v4921 = vld [vmem:[%s15 + $0x110] sm:$0xf]
        %v4922 = vld [vmem:[%s15 + $0x114] sm:$0xff]
        %v4923 = vld [vmem:[%s15 + $0x11c] sm:$0xf]
        %v4924 = vld [vmem:[%s15 + $0x120] sm:$0xff]
        %v4925 = vld [vmem:[%s15 + $0x128] sm:$0xf]
        %v4926 = vld [vmem:[%s15 + $0x12c] sm:$0xff]
        %v4927 = vld [vmem:[%s15 + $0x134] sm:$0xf]
        %v4928 = vld [vmem:[%s15 + $0x138] sm:$0xff]
        %v4929 = vld [vmem:[%s15 + $0x140] sm:$0xf]
        %v4930 = vld [vmem:[%s15 + $0x144] sm:$0xff]
        %v4931 = vld [vmem:[%s15 + $0x14c] sm:$0xf]
        %v4932 = vld [vmem:[%s15 + $0x150] sm:$0xff]
        %v4933 = vld [vmem:[%s15 + $0x158] sm:$0xf]
        %v4934 = vld [vmem:[%s15 + $0x15c] sm:$0xff]
        %v4935 = vld [vmem:[%s15 + $0x164] sm:$0xf]
        %v4936 = vld [vmem:[%s15 + $0x168] sm:$0xff]
        %v4937 = vld [vmem:[%s15 + $0x170] sm:$0xf]
        %v4938 = vld [vmem:[%s15 + $0x174] sm:$0xff]
        %v4939 = vld [vmem:[%s15 + $0x17c] sm:$0xf]
        %v4940 = vld [vmem:[%s15 + $0x180] sm:$0xff]
        %v4941 = vld [vmem:[%s15 + $0x188] sm:$0xf]
        %v4942 = vld [vmem:[%s15 + $0x18c] sm:$0xff]
        %v4943 = vld [vmem:[%s15 + $0x194] sm:$0xf]
        %v4944 = vld [vmem:[%s15 + $0x198] sm:$0xff]
        %v4945 = vld [vmem:[%s15 + $0x1a0] sm:$0xf]
        %v4946 = vld [vmem:[%s15 + $0x1a4] sm:$0xff]
        %v4947 = vld [vmem:[%s15 + $0x1ac] sm:$0xf]
        %v4948 = vld [vmem:[%s15 + $0x1b0] sm:$0xff]
        %v4949 = vld [vmem:[%s15 + $0x1b8] sm:$0xf]
        %v4950 = vld [vmem:[%s15 + $0x1bc] sm:$0xff]
        %v4951 = vld [vmem:[%s15 + $0x1c4] sm:$0xf]
        %v4952 = vld [vmem:[%s15 + $0x1c8] sm:$0xff]
        %v4953 = vld [vmem:[%s15 + $0x1d0] sm:$0xf]
        %v4954 = vld [vmem:[%s15 + $0x1d4] sm:$0xff]
        %v4955 = vld [vmem:[%s15 + $0x1dc] sm:$0xf]
        %v4956 = vld [vmem:[%s15 + $0x1e0] sm:$0xff]
        %v4957 = vld [vmem:[%s15 + $0x1e8] sm:$0xf]
        %v4958 = vld [vmem:[%s15 + $0x1ec] sm:$0xff]
        %v4959 = vld [vmem:[%s15 + $0x1f4] sm:$0xf]
        %v4960 = vld [vmem:[%s15 + $0x1f8] sm:$0xff]
        %v4961 = vld [vmem:[%s15 + $0x200] sm:$0xf]
        %v4962 = vld [vmem:[%s15 + $0x204] sm:$0xff]
        %v4963 = vld [vmem:[%s15 + $0x20c] sm:$0xf]
        %v4964 = vld [vmem:[%s15 + $0x210] sm:$0xff]
        %v4965 = vld [vmem:[%s15 + $0x218] sm:$0xf]
        %v4966 = vld [vmem:[%s15 + $0x21c] sm:$0xff]
        %v4967 = vld [vmem:[%s15 + $0x224] sm:$0xf]
        %v4968 = vld [vmem:[%s15 + $0x228] sm:$0xff]
        %v4969 = vld [vmem:[%s15 + $0x230] sm:$0xf]
        %v4970 = vld [vmem:[%s15 + $0x234] sm:$0xff]
        %v4971 = vld [vmem:[%s15 + $0x23c] sm:$0xf]
        %v4972 = vld [vmem:[%s16] sm:$0x7]
        %v4974 = vperm.slane %v4972, 0
        %v4975 = vperm.slane %v4972, 1
        %v4976 = vperm.slane %v4972, 2
        %v5076 = vunpack.c.l.b16 %v4876
        %v5077 = vunpack.c.h.b16 %v4876
        %v5078 = vunpack.c.l.b16 %v4877
        %v5079 = vunpack.c.l.b16 %v4878
        %v5080 = vunpack.c.h.b16 %v4878
        %v5081 = vunpack.c.l.b16 %v4879
        %v5082 = vunpack.c.l.b16 %v4880
        %v5083 = vunpack.c.h.b16 %v4880
        %v5084 = vunpack.c.l.b16 %v4881
        %v5085 = vunpack.c.l.b16 %v4882
        %v5086 = vunpack.c.h.b16 %v4882
        %v5087 = vunpack.c.l.b16 %v4883
        %v5088 = vunpack.c.l.b16 %v4884
        %v5089 = vunpack.c.h.b16 %v4884
        %v5090 = vunpack.c.l.b16 %v4885
        %v5091 = vunpack.c.l.b16 %v4886
        %v5092 = vunpack.c.h.b16 %v4886
        %v5093 = vunpack.c.l.b16 %v4887
        %v5094 = vunpack.c.l.b16 %v4888
        %v5095 = vunpack.c.h.b16 %v4888
        %v5096 = vunpack.c.l.b16 %v4889
        %v5097 = vunpack.c.l.b16 %v4890
        %v5098 = vunpack.c.h.b16 %v4890
        %v5099 = vunpack.c.l.b16 %v4891
        %v5100 = vunpack.c.l.b16 %v4892
        %v5101 = vunpack.c.h.b16 %v4892
        %v5102 = vunpack.c.l.b16 %v4893
        %v5103 = vunpack.c.l.b16 %v4894
        %v5104 = vunpack.c.h.b16 %v4894
        %v5105 = vunpack.c.l.b16 %v4895
        %v5106 = vunpack.c.l.b16 %v4896
        %v5107 = vunpack.c.h.b16 %v4896
        %v5108 = vunpack.c.l.b16 %v4897
        %v5109 = vunpack.c.l.b16 %v4898
        %v5110 = vunpack.c.h.b16 %v4898
        %v5111 = vunpack.c.l.b16 %v4899
        %v5112 = vunpack.c.l.b16 %v4900
        %v5113 = vunpack.c.h.b16 %v4900
        %v5114 = vunpack.c.l.b16 %v4901
        %v5115 = vunpack.c.l.b16 %v4902
        %v5116 = vunpack.c.h.b16 %v4902
        %v5117 = vunpack.c.l.b16 %v4903
        %v5118 = vunpack.c.l.b16 %v4904
        %v5119 = vunpack.c.h.b16 %v4904
        %v5120 = vunpack.c.l.b16 %v4905
        %v5121 = vunpack.c.l.b16 %v4906
        %v5122 = vunpack.c.h.b16 %v4906
        %v5123 = vunpack.c.l.b16 %v4907
        %v5124 = vunpack.c.l.b16 %v4908
        %v5125 = vunpack.c.h.b16 %v4908
        %v5126 = vunpack.c.l.b16 %v4909
        %v5127 = vunpack.c.l.b16 %v4910
        %v5128 = vunpack.c.h.b16 %v4910
        %v5129 = vunpack.c.l.b16 %v4911
        %v5130 = vunpack.c.l.b16 %v4912
        %v5131 = vunpack.c.h.b16 %v4912
        %v5132 = vunpack.c.l.b16 %v4913
        %v5133 = vunpack.c.l.b16 %v4914
        %v5134 = vunpack.c.h.b16 %v4914
        %v5135 = vunpack.c.l.b16 %v4915
        %v5136 = vunpack.c.l.b16 %v4916
        %v5137 = vunpack.c.h.b16 %v4916
        %v5138 = vunpack.c.l.b16 %v4917
        %v5139 = vunpack.c.l.b16 %v4918
        %v5140 = vunpack.c.h.b16 %v4918
        %v5141 = vunpack.c.l.b16 %v4919
        %v5142 = vunpack.c.l.b16 %v4920
        %v5143 = vunpack.c.h.b16 %v4920
        %v5144 = vunpack.c.l.b16 %v4921
        %v5145 = vunpack.c.l.b16 %v4922
        %v5146 = vunpack.c.h.b16 %v4922
        %v5147 = vunpack.c.l.b16 %v4923
        %v5148 = vunpack.c.l.b16 %v4924
        %v5149 = vunpack.c.h.b16 %v4924
        %v5150 = vunpack.c.l.b16 %v4925
        %v5151 = vunpack.c.l.b16 %v4926
        %v5152 = vunpack.c.h.b16 %v4926
        %v5153 = vunpack.c.l.b16 %v4927
        %v5154 = vunpack.c.l.b16 %v4928
        %v5155 = vunpack.c.h.b16 %v4928
        %v5156 = vunpack.c.l.b16 %v4929
        %v5157 = vunpack.c.l.b16 %v4930
        %v5158 = vunpack.c.h.b16 %v4930
        %v5159 = vunpack.c.l.b16 %v4931
        %v5160 = vunpack.c.l.b16 %v4932
        %v5161 = vunpack.c.h.b16 %v4932
        %v5162 = vunpack.c.l.b16 %v4933
        %v5163 = vunpack.c.l.b16 %v4934
        %v5164 = vunpack.c.h.b16 %v4934
        %v5165 = vunpack.c.l.b16 %v4935
        %v5166 = vunpack.c.l.b16 %v4936
        %v5167 = vunpack.c.h.b16 %v4936
        %v5168 = vunpack.c.l.b16 %v4937
        %v5169 = vunpack.c.l.b16 %v4938
        %v5170 = vunpack.c.h.b16 %v4938
        %v5171 = vunpack.c.l.b16 %v4939
        %v5172 = vunpack.c.l.b16 %v4940
        %v5173 = vunpack.c.h.b16 %v4940
        %v5174 = vunpack.c.l.b16 %v4941
        %v5175 = vunpack.c.l.b16 %v4942
        %v5176 = vunpack.c.h.b16 %v4942
        %v5177 = vunpack.c.l.b16 %v4943
        %v5178 = vunpack.c.l.b16 %v4944
        %v5179 = vunpack.c.h.b16 %v4944
        %v5180 = vunpack.c.l.b16 %v4945
        %v5181 = vunpack.c.l.b16 %v4946
        %v5182 = vunpack.c.h.b16 %v4946
        %v5183 = vunpack.c.l.b16 %v4947
        %v5184 = vunpack.c.l.b16 %v4948
        %v5185 = vunpack.c.h.b16 %v4948
        %v5186 = vunpack.c.l.b16 %v4949
        %v5187 = vunpack.c.l.b16 %v4950
        %v5188 = vunpack.c.h.b16 %v4950
        %v5189 = vunpack.c.l.b16 %v4951
        %v5190 = vunpack.c.l.b16 %v4952
        %v5191 = vunpack.c.h.b16 %v4952
        %v5192 = vunpack.c.l.b16 %v4953
        %v5193 = vunpack.c.l.b16 %v4954
        %v5194 = vunpack.c.h.b16 %v4954
        %v5195 = vunpack.c.l.b16 %v4955
        %v5196 = vunpack.c.l.b16 %v4956
        %v5197 = vunpack.c.h.b16 %v4956
        %v5198 = vunpack.c.l.b16 %v4957
        %v5199 = vunpack.c.l.b16 %v4958
        %v5200 = vunpack.c.h.b16 %v4958
        %v5201 = vunpack.c.l.b16 %v4959
        %v5202 = vunpack.c.l.b16 %v4960
        %v5203 = vunpack.c.h.b16 %v4960
        %v5204 = vunpack.c.l.b16 %v4961
        %v5205 = vunpack.c.l.b16 %v4962
        %v5206 = vunpack.c.h.b16 %v4962
        %v5207 = vunpack.c.l.b16 %v4963
        %v5208 = vunpack.c.l.b16 %v4964
        %v5209 = vunpack.c.h.b16 %v4964
        %v5210 = vunpack.c.l.b16 %v4965
        %v5211 = vunpack.c.l.b16 %v4966
        %v5212 = vunpack.c.h.b16 %v4966
        %v5213 = vunpack.c.l.b16 %v4967
        %v5214 = vunpack.c.l.b16 %v4968
        %v5215 = vunpack.c.h.b16 %v4968
        %v5216 = vunpack.c.l.b16 %v4969
        %v5217 = vunpack.c.l.b16 %v4970
        %v5218 = vunpack.c.h.b16 %v4970
        %v5219 = vunpack.c.l.b16 %v4971
        %v5220 = vpack.c.b16 %v5079, %v5076
        %v5221 = vpack.c.b16 %v5080, %v5077
        %v5222 = vpack.c.b16 %v5081, %v5078
        %v5223 = vpack.c.b16 %v5085, %v5082
        %v5224 = vpack.c.b16 %v5086, %v5083
        %v5225 = vpack.c.b16 %v5087, %v5084
        %v5226 = vpack.c.b16 %v5091, %v5088
        %v5227 = vpack.c.b16 %v5092, %v5089
        %v5228 = vpack.c.b16 %v5093, %v5090
        %v5229 = vpack.c.b16 %v5097, %v5094
        %v5230 = vpack.c.b16 %v5098, %v5095
        %v5231 = vpack.c.b16 %v5099, %v5096
        %v5232 = vpack.c.b16 %v5103, %v5100
        %v5233 = vpack.c.b16 %v5104, %v5101
        %v5234 = vpack.c.b16 %v5105, %v5102
        %v5235 = vpack.c.b16 %v5109, %v5106
        %v5236 = vpack.c.b16 %v5110, %v5107
        %v5237 = vpack.c.b16 %v5111, %v5108
        %v5238 = vpack.c.b16 %v5115, %v5112
        %v5239 = vpack.c.b16 %v5116, %v5113
        %v5240 = vpack.c.b16 %v5117, %v5114
        %v5241 = vpack.c.b16 %v5121, %v5118
        %v5242 = vpack.c.b16 %v5122, %v5119
        %v5243 = vpack.c.b16 %v5123, %v5120
        %v5244 = vpack.c.b16 %v5127, %v5124
        %v5245 = vpack.c.b16 %v5128, %v5125
        %v5246 = vpack.c.b16 %v5129, %v5126
        %v5247 = vpack.c.b16 %v5133, %v5130
        %v5248 = vpack.c.b16 %v5134, %v5131
        %v5249 = vpack.c.b16 %v5135, %v5132
        %v5250 = vpack.c.b16 %v5139, %v5136
        %v5251 = vpack.c.b16 %v5140, %v5137
        %v5252 = vpack.c.b16 %v5141, %v5138
        %v5253 = vpack.c.b16 %v5145, %v5142
        %v5254 = vpack.c.b16 %v5146, %v5143
        %v5255 = vpack.c.b16 %v5147, %v5144
        %v5256 = vpack.c.b16 %v5151, %v5148
        %v5257 = vpack.c.b16 %v5152, %v5149
        %v5258 = vpack.c.b16 %v5153, %v5150
        %v5259 = vpack.c.b16 %v5157, %v5154
        %v5260 = vpack.c.b16 %v5158, %v5155
        %v5261 = vpack.c.b16 %v5159, %v5156
        %v5262 = vpack.c.b16 %v5163, %v5160
        %v5263 = vpack.c.b16 %v5164, %v5161
        %v5264 = vpack.c.b16 %v5165, %v5162
        %v5265 = vpack.c.b16 %v5169, %v5166
        %v5266 = vpack.c.b16 %v5170, %v5167
        %v5267 = vpack.c.b16 %v5171, %v5168
        %v5268 = vpack.c.b16 %v5175, %v5172
        %v5269 = vpack.c.b16 %v5176, %v5173
        %v5270 = vpack.c.b16 %v5177, %v5174
        %v5271 = vpack.c.b16 %v5181, %v5178
        %v5272 = vpack.c.b16 %v5182, %v5179
        %v5273 = vpack.c.b16 %v5183, %v5180
        %v5274 = vpack.c.b16 %v5187, %v5184
        %v5275 = vpack.c.b16 %v5188, %v5185
        %v5276 = vpack.c.b16 %v5189, %v5186
        %v5277 = vpack.c.b16 %v5193, %v5190
        %v5278 = vpack.c.b16 %v5194, %v5191
        %v5279 = vpack.c.b16 %v5195, %v5192
        %v5280 = vpack.c.b16 %v5199, %v5196
        %v5281 = vpack.c.b16 %v5200, %v5197
        %v5282 = vpack.c.b16 %v5201, %v5198
        %v5283 = vpack.c.b16 %v5205, %v5202
        %v5284 = vpack.c.b16 %v5206, %v5203
        %v5285 = vpack.c.b16 %v5207, %v5204
        %v5286 = vpack.c.b16 %v5211, %v5208
        %v5287 = vpack.c.b16 %v5212, %v5209
        %v5288 = vpack.c.b16 %v5213, %v5210
        %v5289 = vpack.c.b16 %v5217, %v5214
        %v5290 = vpack.c.b16 %v5218, %v5215
        %v5291 = vpack.c.b16 %v5219, %v5216
        %5364 = vmatpush.bf16.msra.mxu0 %v5241
        %5365 = vmatpush.bf16.msra.mxu0 %v5238
        %5366 = vmatpush.bf16.msra.mxu0 %v5235
        %5367 = vmatpush.bf16.msra.mxu0 %v5232
        %5368 = vmatpush.bf16.msra.mxu0 %v5229
        %5369 = vmatpush.bf16.msra.mxu0 %v5226
        %5370 = vmatpush.bf16.msra.mxu0 %v5223
        %5371 = vmatpush.bf16.msra.mxu0 %v5220
        %5372 = vmatmul.bf16.gmra.mxu0 %v4873
        %v5373 = vpop.f32.mrf.mxu0
        %v5374 = vadd.f32 %v4974, %v5373
        %v5375 = vpop.f32.mrf.mxu0
        %5376 = vdwg.mxu0
        %5377 = vmatpush.bf16.msra.mxu0 %v5265
        %5378 = vmatpush.bf16.msra.mxu0 %v5262
        %5379 = vmatpush.bf16.msra.mxu0 %v5259
        %5380 = vmatpush.bf16.msra.mxu0 %v5256
        %5381 = vmatpush.bf16.msra.mxu0 %v5253
        %5382 = vmatpush.bf16.msra.mxu0 %v5250
        %5383 = vmatpush.bf16.msra.mxu0 %v5247
        %5384 = vmatpush.bf16.msra.mxu0 %v5244
        %5385 = vmatmul.bf16.gmra.mxu0 %v4874
        %v5386 = vpop.f32.mrf.mxu0
        %v5387 = vadd.f32 %v5374, %v5386
        %v5388 = vpop.f32.mrf.mxu0
        %5389 = vdwg.mxu0
        %5390 = vmatpush.bf16.msra.mxu0 %v5289
        %5391 = vmatpush.bf16.msra.mxu0 %v5286
        %5392 = vmatpush.bf16.msra.mxu0 %v5283
        %5393 = vmatpush.bf16.msra.mxu0 %v5280
        %5394 = vmatpush.bf16.msra.mxu0 %v5277
        %5395 = vmatpush.bf16.msra.mxu0 %v5274
        %5396 = vmatpush.bf16.msra.mxu0 %v5271
        %5397 = vmatpush.bf16.msra.mxu0 %v5268
        %5398 = vmatmul.bf16.gmra.mxu0 %v4875
        %v5399 = vpop.f32.mrf.mxu0
        %v5400 = vadd.f32 %v5387, %v5399
        %v5401 = vpop.f32.mrf.mxu0
        %5402 = vdwg.mxu0
        %5403 = vmatpush.bf16.msra.mxu0 %v5242
        %5404 = vmatpush.bf16.msra.mxu0 %v5239
        %5405 = vmatpush.bf16.msra.mxu0 %v5236
        %5406 = vmatpush.bf16.msra.mxu0 %v5233
        %5407 = vmatpush.bf16.msra.mxu0 %v5230
        %5408 = vmatpush.bf16.msra.mxu0 %v5227
        %5409 = vmatpush.bf16.msra.mxu0 %v5224
        %5410 = vmatpush.bf16.msra.mxu0 %v5221
        %5411 = vmatmul.bf16.gmra.mxu0 %v4873
        %v5412 = vpop.f32.mrf.mxu0
        %v5413 = vadd.f32 %v4975, %v5412
        %v5414 = vpop.f32.mrf.mxu0
        %5415 = vdwg.mxu0
        %5416 = vmatpush.bf16.msra.mxu0 %v5266
        %5417 = vmatpush.bf16.msra.mxu0 %v5263
        %5418 = vmatpush.bf16.msra.mxu0 %v5260
        %5419 = vmatpush.bf16.msra.mxu0 %v5257
        %5420 = vmatpush.bf16.msra.mxu0 %v5254
        %5421 = vmatpush.bf16.msra.mxu0 %v5251
        %5422 = vmatpush.bf16.msra.mxu0 %v5248
        %5423 = vmatpush.bf16.msra.mxu0 %v5245
        %5424 = vmatmul.bf16.gmra.mxu0 %v4874
        %v5425 = vpop.f32.mrf.mxu0
        %v5426 = vadd.f32 %v5413, %v5425
        %v5427 = vpop.f32.mrf.mxu0
        %5428 = vdwg.mxu0
        %5429 = vmatpush.bf16.msra.mxu0 %v5290
        %5430 = vmatpush.bf16.msra.mxu0 %v5287
        %5431 = vmatpush.bf16.msra.mxu0 %v5284
        %5432 = vmatpush.bf16.msra.mxu0 %v5281
        %5433 = vmatpush.bf16.msra.mxu0 %v5278
        %5434 = vmatpush.bf16.msra.mxu0 %v5275
        %5435 = vmatpush.bf16.msra.mxu0 %v5272
        %5436 = vmatpush.bf16.msra.mxu0 %v5269
        %5437 = vmatmul.bf16.gmra.mxu0 %v4875
        %v5438 = vpop.f32.mrf.mxu0
        %v5439 = vadd.f32 %v5426, %v5438
        %v5440 = vpop.f32.mrf.mxu0
        %5441 = vdwg.mxu0
        %5442 = vmatpush.bf16.msra.mxu0 %v5243
        %5443 = vmatpush.bf16.msra.mxu0 %v5240
        %5444 = vmatpush.bf16.msra.mxu0 %v5237
        %5445 = vmatpush.bf16.msra.mxu0 %v5234
        %5446 = vmatpush.bf16.msra.mxu0 %v5231
        %5447 = vmatpush.bf16.msra.mxu0 %v5228
        %5448 = vmatpush.bf16.msra.mxu0 %v5225
        %5449 = vmatpush.bf16.msra.mxu0 %v5222
        %5450 = vmatmul.bf16.gmra.mxu0 %v4873
        %v5451 = vpop.f32.mrf.mxu0
        %v5452 = vadd.f32 %v4976, %v5451
        %v5453 = vpop.f32.mrf.mxu0
        %5454 = vdwg.mxu0
        %5455 = vmatpush.bf16.msra.mxu0 %v5267
        %5456 = vmatpush.bf16.msra.mxu0 %v5264
        %5457 = vmatpush.bf16.msra.mxu0 %v5261
        %5458 = vmatpush.bf16.msra.mxu0 %v5258
        %5459 = vmatpush.bf16.msra.mxu0 %v5255
        %5460 = vmatpush.bf16.msra.mxu0 %v5252
        %5461 = vmatpush.bf16.msra.mxu0 %v5249
        %5462 = vmatpush.bf16.msra.mxu0 %v5246
        %5463 = vmatmul.bf16.gmra.mxu0 %v4874
        %v5464 = vpop.f32.mrf.mxu0
        %v5465 = vadd.f32 %v5452, %v5464
        %v5466 = vpop.f32.mrf.mxu0
        %5467 = vdwg.mxu0
        %5468 = vmatpush.bf16.msra.mxu0 %v5291
        %5469 = vmatpush.bf16.msra.mxu0 %v5288
        %5470 = vmatpush.bf16.msra.mxu0 %v5285
        %5471 = vmatpush.bf16.msra.mxu0 %v5282
        %5472 = vmatpush.bf16.msra.mxu0 %v5279
        %5473 = vmatpush.bf16.msra.mxu0 %v5276
        %5474 = vmatpush.bf16.msra.mxu0 %v5273
        %5475 = vmatpush.bf16.msra.mxu0 %v5270
        %5476 = vmatmul.bf16.gmra.mxu0 %v4875
        %v5477 = vpop.f32.mrf.mxu0
        %v5478 = vadd.f32 %v5465, %v5477
        %v5479 = vpop.f32.mrf.mxu0
        %5480 = vdwg.mxu0
        %v5481 = vadd.f32 %v5400, %v4142
        %v5482 = vadd.f32 %v5439, %v4143
        %v5483 = vadd.f32 %v5478, %v4144
        %v5484 = vld [vmem:[%s17] sm:$0x7]
        %v5485 = vld [vmem:[%s18] sm:$0x7]
        %v5486 = vadd.f32 %v5481, %v5482
        %v5487 = vadd.f32 %v5486, %v5483
        %5488 = vadd.xlane.f32.xlu0 %v5487
        %v5489 = vpop.xlane.xlu0 %5488
        %v5490 = vmul.f32 %v5489, %v4075
        %v5491 = vsub.f32 %v5481, %v5490
        %v5492 = vsub.f32 %v5482, %v5490
        %v5493 = vsub.f32 %v5483, %v5490
        %v5494 = vmul.f32 %v5491, %v5491
        %v5495 = vmul.f32 %v5492, %v5492
        %v5496 = vmul.f32 %v5493, %v5493
        %v5497 = vadd.f32 %v5494, %v5495
        %v5498 = vadd.f32 %v5497, %v5496
        %5499 = vadd.xlane.f32.xlu0 %v5498
        %v5500 = vpop.xlane.xlu0 %5499
        %v5501 = vmul.f32 %v5500, %v4093
        %v5502 = vrsqrt.pop %v5501
        %v5503 = vmul.f32 %v5502, %v5501
        %v5504 = vmul.f32 %v5503, %v5502
        %v5505 = vmul.f32 0.5, %v5504
        %v5506 = vsub.f32 1.5, %v5505
        %v5507 = vmul.f32 %v5502, %v5506
        %v5508 = vmul.f32 %v5501, %v5507
        %vm5509 = vcmp.eq.f32.partialorder %v5501, inf
        %v5510 = vsel %vm5509, %v5501, %v5508
        %vm5511 = vcmp.eq.f32.partialorder %v5501, 0.0
        %v5512 = vand.u32 %v5501, 2147483648
        %v5513 = vsel %vm5511, %v5512, %v5510
        %v5515 = vperm.slane %v5484, 0
        %v5516 = vperm.slane %v5484, 1
        %v5517 = vperm.slane %v5484, 2
        %v5521 = vmul.f32 %v5515, %v5491
        %v5522 = vmul.f32 %v5516, %v5492
        %v5523 = vmul.f32 %v5517, %v5493
        %v5524 = vadd.f32 %v5513, 1e-06
        %v5525 = vrcp.pop %v5524
        %v5526 = vmul.f32 %v5524, %v5525
        %v5527 = vsub.f32 1.0, %v5526
        %v5528 = vmul.f32 %v5525, %v5527
        %v5529 = vadd.f32 %v5525, %v5528
        %vm5530 = vweird.f32 %v5524
        %vm5531 = vweird.f32 %v5525
        %vm5532 = vmor %vm5530, %vm5531
        %v5533 = vsel %vm5532, %v5525, %v5529
        %v5534 = vand.u32 2147483647, %v5524
        %vm5535 = vcmp.eq.f32.partialorder %v5534, 8.507059e+37
        %v5536 = vand.u32 %v5524, 2147483648
        %v5537 = vor.u32 1.1754944e-38, %v5536
        %v5538 = vsel %vm5535, %v5537, %v5533
        %v5539 = vmul.f32 %v5521, %v5538
        %v5540 = vmul.f32 %v5522, %v5538
        %v5541 = vmul.f32 %v5523, %v5538
        %v5543 = vperm.slane %v5485, 0
        %v5544 = vperm.slane %v5485, 1
        %v5545 = vperm.slane %v5485, 2
        %v5549 = vadd.f32 %v5539, %v5543
        %v5550 = vadd.f32 %v5540, %v5544
        %v5551 = vadd.f32 %v5541, %v5545
        %5552 = vst [vmem:[%s711] sm:$0xff] %v5549
        %5553 = vst [vmem:[%s711 + $0x8] sm:$0xff] %v5550
        %5554 = vst [vmem:[%s711 + $0x10] sm:$0xff] %v5551
        %v5555 = vpack.c.bf16 %v5549, %v5549
        %v5556 = vpack.c.bf16 %v5550, %v5550
        %v5557 = vpack.c.bf16 %v5551, %v5551
        %v5558 = vld [vmem:[%s19] sm:$0xff]
        %v5559 = vld [vmem:[%s19 + $0x8] sm:$0xff]
        %v5560 = vld [vmem:[%s19 + $0x10] sm:$0xff]
        %v5561 = vld [vmem:[%s19 + $0x18] sm:$0xff]
        %v5562 = vld [vmem:[%s19 + $0x20] sm:$0xff]
        %v5563 = vld [vmem:[%s19 + $0x28] sm:$0xff]
        %v5564 = vld [vmem:[%s19 + $0x30] sm:$0xff]
        %v5565 = vld [vmem:[%s19 + $0x38] sm:$0xff]
        %v5566 = vld [vmem:[%s19 + $0x40] sm:$0xff]
        %v5567 = vld [vmem:[%s19 + $0x48] sm:$0xff]
        %v5568 = vld [vmem:[%s19 + $0x50] sm:$0xff]
        %v5569 = vld [vmem:[%s19 + $0x58] sm:$0xff]
        %v5570 = vld [vmem:[%s19 + $0x60] sm:$0xff]
        %v5571 = vld [vmem:[%s19 + $0x68] sm:$0xff]
        %v5572 = vld [vmem:[%s19 + $0x70] sm:$0xff]
        %v5573 = vld [vmem:[%s19 + $0x78] sm:$0xff]
        %v5574 = vld [vmem:[%s19 + $0x80] sm:$0xff]
        %v5575 = vld [vmem:[%s19 + $0x88] sm:$0xff]
        %v5576 = vld [vmem:[%s19 + $0x90] sm:$0xff]
        %v5577 = vld [vmem:[%s19 + $0x98] sm:$0xff]
        %v5578 = vld [vmem:[%s19 + $0xa0] sm:$0xff]
        %v5579 = vld [vmem:[%s19 + $0xa8] sm:$0xff]
        %v5580 = vld [vmem:[%s19 + $0xb0] sm:$0xff]
        %v5581 = vld [vmem:[%s19 + $0xb8] sm:$0xff]
        %v5582 = vld [vmem:[%s19 + $0xc0] sm:$0xff]
        %v5583 = vld [vmem:[%s19 + $0xc8] sm:$0xff]
        %v5584 = vld [vmem:[%s19 + $0xd0] sm:$0xff]
        %v5585 = vld [vmem:[%s19 + $0xd8] sm:$0xff]
        %v5586 = vld [vmem:[%s19 + $0xe0] sm:$0xff]
        %v5587 = vld [vmem:[%s19 + $0xe8] sm:$0xff]
        %v5588 = vld [vmem:[%s19 + $0xf0] sm:$0xff]
        %v5589 = vld [vmem:[%s19 + $0xf8] sm:$0xff]
        %v5590 = vld [vmem:[%s19 + $0x100] sm:$0xff]
        %v5591 = vld [vmem:[%s19 + $0x108] sm:$0xff]
        %v5592 = vld [vmem:[%s19 + $0x110] sm:$0xff]
        %v5593 = vld [vmem:[%s19 + $0x118] sm:$0xff]
        %v5594 = vld [vmem:[%s19 + $0x120] sm:$0xff]
        %v5595 = vld [vmem:[%s19 + $0x128] sm:$0xff]
        %v5596 = vld [vmem:[%s19 + $0x130] sm:$0xff]
        %v5597 = vld [vmem:[%s19 + $0x138] sm:$0xff]
        %v5598 = vld [vmem:[%s19 + $0x140] sm:$0xff]
        %v5599 = vld [vmem:[%s19 + $0x148] sm:$0xff]
        %v5600 = vld [vmem:[%s19 + $0x150] sm:$0xff]
        %v5601 = vld [vmem:[%s19 + $0x158] sm:$0xff]
        %v5602 = vld [vmem:[%s19 + $0x160] sm:$0xff]
        %v5603 = vld [vmem:[%s19 + $0x168] sm:$0xff]
        %v5604 = vld [vmem:[%s19 + $0x170] sm:$0xff]
        %v5605 = vld [vmem:[%s19 + $0x178] sm:$0xff]
        %v5606 = vld [vmem:[%s19 + $0x180] sm:$0xff]
        %v5607 = vld [vmem:[%s19 + $0x188] sm:$0xff]
        %v5608 = vld [vmem:[%s19 + $0x190] sm:$0xff]
        %v5609 = vld [vmem:[%s19 + $0x198] sm:$0xff]
        %v5610 = vld [vmem:[%s19 + $0x1a0] sm:$0xff]
        %v5611 = vld [vmem:[%s19 + $0x1a8] sm:$0xff]
        %v5612 = vld [vmem:[%s19 + $0x1b0] sm:$0xff]
        %v5613 = vld [vmem:[%s19 + $0x1b8] sm:$0xff]
        %v5614 = vld [vmem:[%s19 + $0x1c0] sm:$0xff]
        %v5615 = vld [vmem:[%s19 + $0x1c8] sm:$0xff]
        %v5616 = vld [vmem:[%s19 + $0x1d0] sm:$0xff]
        %v5617 = vld [vmem:[%s19 + $0x1d8] sm:$0xff]
        %v5618 = vld [vmem:[%s19 + $0x1e0] sm:$0xff]
        %v5619 = vld [vmem:[%s19 + $0x1e8] sm:$0xff]
        %v5620 = vld [vmem:[%s19 + $0x1f0] sm:$0xff]
        %v5621 = vld [vmem:[%s19 + $0x1f8] sm:$0xff]
        %v5622 = vld [vmem:[%s19 + $0x200] sm:$0xff]
        %v5623 = vld [vmem:[%s19 + $0x208] sm:$0xff]
        %v5624 = vld [vmem:[%s19 + $0x210] sm:$0xff]
        %v5625 = vld [vmem:[%s19 + $0x218] sm:$0xff]
        %v5626 = vld [vmem:[%s19 + $0x220] sm:$0xff]
        %v5627 = vld [vmem:[%s19 + $0x228] sm:$0xff]
        %v5628 = vld [vmem:[%s19 + $0x230] sm:$0xff]
        %v5629 = vld [vmem:[%s19 + $0x238] sm:$0xff]
        %v5630 = vld [vmem:[%s19 + $0x240] sm:$0xff]
        %v5631 = vld [vmem:[%s19 + $0x248] sm:$0xff]
        %v5632 = vld [vmem:[%s19 + $0x250] sm:$0xff]
        %v5633 = vld [vmem:[%s19 + $0x258] sm:$0xff]
        %v5634 = vld [vmem:[%s19 + $0x260] sm:$0xff]
        %v5635 = vld [vmem:[%s19 + $0x268] sm:$0xff]
        %v5636 = vld [vmem:[%s19 + $0x270] sm:$0xff]
        %v5637 = vld [vmem:[%s19 + $0x278] sm:$0xff]
        %v5638 = vld [vmem:[%s19 + $0x280] sm:$0xff]
        %v5639 = vld [vmem:[%s19 + $0x288] sm:$0xff]
        %v5640 = vld [vmem:[%s19 + $0x290] sm:$0xff]
        %v5641 = vld [vmem:[%s19 + $0x298] sm:$0xff]
        %v5642 = vld [vmem:[%s19 + $0x2a0] sm:$0xff]
        %v5643 = vld [vmem:[%s19 + $0x2a8] sm:$0xff]
        %v5644 = vld [vmem:[%s19 + $0x2b0] sm:$0xff]
        %v5645 = vld [vmem:[%s19 + $0x2b8] sm:$0xff]
        %v5646 = vld [vmem:[%s19 + $0x2c0] sm:$0xff]
        %v5647 = vld [vmem:[%s19 + $0x2c8] sm:$0xff]
        %v5648 = vld [vmem:[%s19 + $0x2d0] sm:$0xff]
        %v5649 = vld [vmem:[%s19 + $0x2d8] sm:$0xff]
        %v5650 = vld [vmem:[%s19 + $0x2e0] sm:$0xff]
        %v5651 = vld [vmem:[%s19 + $0x2e8] sm:$0xff]
        %v5652 = vld [vmem:[%s19 + $0x2f0] sm:$0xff]
        %v5653 = vld [vmem:[%s19 + $0x2f8] sm:$0xff]
        %v5654 = vld [vmem:[%s19 + $0x300] sm:$0xff]
        %v5655 = vld [vmem:[%s19 + $0x308] sm:$0xff]
        %v5656 = vld [vmem:[%s19 + $0x310] sm:$0xff]
        %v5657 = vld [vmem:[%s19 + $0x318] sm:$0xff]
        %v5658 = vld [vmem:[%s19 + $0x320] sm:$0xff]
        %v5659 = vld [vmem:[%s19 + $0x328] sm:$0xff]
        %v5660 = vld [vmem:[%s19 + $0x330] sm:$0xff]
        %v5661 = vld [vmem:[%s19 + $0x338] sm:$0xff]
        %v5662 = vld [vmem:[%s19 + $0x340] sm:$0xff]
        %v5663 = vld [vmem:[%s19 + $0x348] sm:$0xff]
        %v5664 = vld [vmem:[%s19 + $0x350] sm:$0xff]
        %v5665 = vld [vmem:[%s19 + $0x358] sm:$0xff]
        %v5666 = vld [vmem:[%s19 + $0x360] sm:$0xff]
        %v5667 = vld [vmem:[%s19 + $0x368] sm:$0xff]
        %v5668 = vld [vmem:[%s19 + $0x370] sm:$0xff]
        %v5669 = vld [vmem:[%s19 + $0x378] sm:$0xff]
        %v5670 = vld [vmem:[%s19 + $0x380] sm:$0xff]
        %v5671 = vld [vmem:[%s19 + $0x388] sm:$0xff]
        %v5672 = vld [vmem:[%s19 + $0x390] sm:$0xff]
        %v5673 = vld [vmem:[%s19 + $0x398] sm:$0xff]
        %v5674 = vld [vmem:[%s19 + $0x3a0] sm:$0xff]
        %v5675 = vld [vmem:[%s19 + $0x3a8] sm:$0xff]
        %v5676 = vld [vmem:[%s19 + $0x3b0] sm:$0xff]
        %v5677 = vld [vmem:[%s19 + $0x3b8] sm:$0xff]
        %v5678 = vld [vmem:[%s19 + $0x3c0] sm:$0xff]
        %v5679 = vld [vmem:[%s19 + $0x3c8] sm:$0xff]
        %v5680 = vld [vmem:[%s19 + $0x3d0] sm:$0xff]
        %v5681 = vld [vmem:[%s19 + $0x3d8] sm:$0xff]
        %v5682 = vld [vmem:[%s19 + $0x3e0] sm:$0xff]
        %v5683 = vld [vmem:[%s19 + $0x3e8] sm:$0xff]
        %v5684 = vld [vmem:[%s19 + $0x3f0] sm:$0xff]
        %v5685 = vld [vmem:[%s19 + $0x3f8] sm:$0xff]
        %v5686 = vld [vmem:[%s19 + $0x400] sm:$0xff]
        %v5687 = vld [vmem:[%s19 + $0x408] sm:$0xff]
        %v5688 = vld [vmem:[%s19 + $0x410] sm:$0xff]
        %v5689 = vld [vmem:[%s19 + $0x418] sm:$0xff]
        %v5690 = vld [vmem:[%s19 + $0x420] sm:$0xff]
        %v5691 = vld [vmem:[%s19 + $0x428] sm:$0xff]
        %v5692 = vld [vmem:[%s19 + $0x430] sm:$0xff]
        %v5693 = vld [vmem:[%s19 + $0x438] sm:$0xff]
        %v5694 = vld [vmem:[%s19 + $0x440] sm:$0xff]
        %v5695 = vld [vmem:[%s19 + $0x448] sm:$0xff]
        %v5696 = vld [vmem:[%s19 + $0x450] sm:$0xff]
        %v5697 = vld [vmem:[%s19 + $0x458] sm:$0xff]
        %v5698 = vld [vmem:[%s19 + $0x460] sm:$0xff]
        %v5699 = vld [vmem:[%s19 + $0x468] sm:$0xff]
        %v5700 = vld [vmem:[%s19 + $0x470] sm:$0xff]
        %v5701 = vld [vmem:[%s19 + $0x478] sm:$0xff]
        %v5702 = vld [vmem:[%s20] sm:$0x3f]
        %v5704 = vperm.slane %v5702, 0
        %v5705 = vperm.slane %v5702, 1
        %v5706 = vperm.slane %v5702, 2
        %v5707 = vperm.slane %v5702, 3
        %v5708 = vperm.slane %v5702, 4
        %v5709 = vperm.slane %v5702, 5
        %v5860 = vunpack.c.l.b16 %v5558
        %v5861 = vunpack.c.h.b16 %v5558
        %v5862 = vunpack.c.l.b16 %v5559
        %v5863 = vunpack.c.h.b16 %v5559
        %v5864 = vunpack.c.l.b16 %v5560
        %v5865 = vunpack.c.h.b16 %v5560
        %v5866 = vunpack.c.l.b16 %v5561
        %v5867 = vunpack.c.h.b16 %v5561
        %v5868 = vunpack.c.l.b16 %v5562
        %v5869 = vunpack.c.h.b16 %v5562
        %v5870 = vunpack.c.l.b16 %v5563
        %v5871 = vunpack.c.h.b16 %v5563
        %v5872 = vunpack.c.l.b16 %v5564
        %v5873 = vunpack.c.h.b16 %v5564
        %v5874 = vunpack.c.l.b16 %v5565
        %v5875 = vunpack.c.h.b16 %v5565
        %v5876 = vunpack.c.l.b16 %v5566
        %v5877 = vunpack.c.h.b16 %v5566
        %v5878 = vunpack.c.l.b16 %v5567
        %v5879 = vunpack.c.h.b16 %v5567
        %v5880 = vunpack.c.l.b16 %v5568
        %v5881 = vunpack.c.h.b16 %v5568
        %v5882 = vunpack.c.l.b16 %v5569
        %v5883 = vunpack.c.h.b16 %v5569
        %v5884 = vunpack.c.l.b16 %v5570
        %v5885 = vunpack.c.h.b16 %v5570
        %v5886 = vunpack.c.l.b16 %v5571
        %v5887 = vunpack.c.h.b16 %v5571
        %v5888 = vunpack.c.l.b16 %v5572
        %v5889 = vunpack.c.h.b16 %v5572
        %v5890 = vunpack.c.l.b16 %v5573
        %v5891 = vunpack.c.h.b16 %v5573
        %v5892 = vunpack.c.l.b16 %v5574
        %v5893 = vunpack.c.h.b16 %v5574
        %v5894 = vunpack.c.l.b16 %v5575
        %v5895 = vunpack.c.h.b16 %v5575
        %v5896 = vunpack.c.l.b16 %v5576
        %v5897 = vunpack.c.h.b16 %v5576
        %v5898 = vunpack.c.l.b16 %v5577
        %v5899 = vunpack.c.h.b16 %v5577
        %v5900 = vunpack.c.l.b16 %v5578
        %v5901 = vunpack.c.h.b16 %v5578
        %v5902 = vunpack.c.l.b16 %v5579
        %v5903 = vunpack.c.h.b16 %v5579
        %v5904 = vunpack.c.l.b16 %v5580
        %v5905 = vunpack.c.h.b16 %v5580
        %v5906 = vunpack.c.l.b16 %v5581
        %v5907 = vunpack.c.h.b16 %v5581
        %v5908 = vunpack.c.l.b16 %v5582
        %v5909 = vunpack.c.h.b16 %v5582
        %v5910 = vunpack.c.l.b16 %v5583
        %v5911 = vunpack.c.h.b16 %v5583
        %v5912 = vunpack.c.l.b16 %v5584
        %v5913 = vunpack.c.h.b16 %v5584
        %v5914 = vunpack.c.l.b16 %v5585
        %v5915 = vunpack.c.h.b16 %v5585
        %v5916 = vunpack.c.l.b16 %v5586
        %v5917 = vunpack.c.h.b16 %v5586
        %v5918 = vunpack.c.l.b16 %v5587
        %v5919 = vunpack.c.h.b16 %v5587
        %v5920 = vunpack.c.l.b16 %v5588
        %v5921 = vunpack.c.h.b16 %v5588
        %v5922 = vunpack.c.l.b16 %v5589
        %v5923 = vunpack.c.h.b16 %v5589
        %v5924 = vunpack.c.l.b16 %v5590
        %v5925 = vunpack.c.h.b16 %v5590
        %v5926 = vunpack.c.l.b16 %v5591
        %v5927 = vunpack.c.h.b16 %v5591
        %v5928 = vunpack.c.l.b16 %v5592
        %v5929 = vunpack.c.h.b16 %v5592
        %v5930 = vunpack.c.l.b16 %v5593
        %v5931 = vunpack.c.h.b16 %v5593
        %v5932 = vunpack.c.l.b16 %v5594
        %v5933 = vunpack.c.h.b16 %v5594
        %v5934 = vunpack.c.l.b16 %v5595
        %v5935 = vunpack.c.h.b16 %v5595
        %v5936 = vunpack.c.l.b16 %v5596
        %v5937 = vunpack.c.h.b16 %v5596
        %v5938 = vunpack.c.l.b16 %v5597
        %v5939 = vunpack.c.h.b16 %v5597
        %v5940 = vunpack.c.l.b16 %v5598
        %v5941 = vunpack.c.h.b16 %v5598
        %v5942 = vunpack.c.l.b16 %v5599
        %v5943 = vunpack.c.h.b16 %v5599
        %v5944 = vunpack.c.l.b16 %v5600
        %v5945 = vunpack.c.h.b16 %v5600
        %v5946 = vunpack.c.l.b16 %v5601
        %v5947 = vunpack.c.h.b16 %v5601
        %v5948 = vunpack.c.l.b16 %v5602
        %v5949 = vunpack.c.h.b16 %v5602
        %v5950 = vunpack.c.l.b16 %v5603
        %v5951 = vunpack.c.h.b16 %v5603
        %v5952 = vunpack.c.l.b16 %v5604
        %v5953 = vunpack.c.h.b16 %v5604
        %v5954 = vunpack.c.l.b16 %v5605
        %v5955 = vunpack.c.h.b16 %v5605
        %v5956 = vunpack.c.l.b16 %v5606
        %v5957 = vunpack.c.h.b16 %v5606
        %v5958 = vunpack.c.l.b16 %v5607
        %v5959 = vunpack.c.h.b16 %v5607
        %v5960 = vunpack.c.l.b16 %v5608
        %v5961 = vunpack.c.h.b16 %v5608
        %v5962 = vunpack.c.l.b16 %v5609
        %v5963 = vunpack.c.h.b16 %v5609
        %v5964 = vunpack.c.l.b16 %v5610
        %v5965 = vunpack.c.h.b16 %v5610
        %v5966 = vunpack.c.l.b16 %v5611
        %v5967 = vunpack.c.h.b16 %v5611
        %v5968 = vunpack.c.l.b16 %v5612
        %v5969 = vunpack.c.h.b16 %v5612
        %v5970 = vunpack.c.l.b16 %v5613
        %v5971 = vunpack.c.h.b16 %v5613
        %v5972 = vunpack.c.l.b16 %v5614
        %v5973 = vunpack.c.h.b16 %v5614
        %v5974 = vunpack.c.l.b16 %v5615
        %v5975 = vunpack.c.h.b16 %v5615
        %v5976 = vunpack.c.l.b16 %v5616
        %v5977 = vunpack.c.h.b16 %v5616
        %v5978 = vunpack.c.l.b16 %v5617
        %v5979 = vunpack.c.h.b16 %v5617
        %v5980 = vunpack.c.l.b16 %v5618
        %v5981 = vunpack.c.h.b16 %v5618
        %v5982 = vunpack.c.l.b16 %v5619
        %v5983 = vunpack.c.h.b16 %v5619
        %v5984 = vunpack.c.l.b16 %v5620
        %v5985 = vunpack.c.h.b16 %v5620
        %v5986 = vunpack.c.l.b16 %v5621
        %v5987 = vunpack.c.h.b16 %v5621
        %v5988 = vunpack.c.l.b16 %v5622
        %v5989 = vunpack.c.h.b16 %v5622
        %v5990 = vunpack.c.l.b16 %v5623
        %v5991 = vunpack.c.h.b16 %v5623
        %v5992 = vunpack.c.l.b16 %v5624
        %v5993 = vunpack.c.h.b16 %v5624
        %v5994 = vunpack.c.l.b16 %v5625
        %v5995 = vunpack.c.h.b16 %v5625
        %v5996 = vunpack.c.l.b16 %v5626
        %v5997 = vunpack.c.h.b16 %v5626
        %v5998 = vunpack.c.l.b16 %v5627
        %v5999 = vunpack.c.h.b16 %v5627
        %v6000 = vunpack.c.l.b16 %v5628
        %v6001 = vunpack.c.h.b16 %v5628
        %v6002 = vunpack.c.l.b16 %v5629
        %v6003 = vunpack.c.h.b16 %v5629
        %v6004 = vunpack.c.l.b16 %v5630
        %v6005 = vunpack.c.h.b16 %v5630
        %v6006 = vunpack.c.l.b16 %v5631
        %v6007 = vunpack.c.h.b16 %v5631
        %v6008 = vunpack.c.l.b16 %v5632
        %v6009 = vunpack.c.h.b16 %v5632
        %v6010 = vunpack.c.l.b16 %v5633
        %v6011 = vunpack.c.h.b16 %v5633
        %v6012 = vunpack.c.l.b16 %v5634
        %v6013 = vunpack.c.h.b16 %v5634
        %v6014 = vunpack.c.l.b16 %v5635
        %v6015 = vunpack.c.h.b16 %v5635
        %v6016 = vunpack.c.l.b16 %v5636
        %v6017 = vunpack.c.h.b16 %v5636
        %v6018 = vunpack.c.l.b16 %v5637
        %v6019 = vunpack.c.h.b16 %v5637
        %v6020 = vunpack.c.l.b16 %v5638
        %v6021 = vunpack.c.h.b16 %v5638
        %v6022 = vunpack.c.l.b16 %v5639
        %v6023 = vunpack.c.h.b16 %v5639
        %v6024 = vunpack.c.l.b16 %v5640
        %v6025 = vunpack.c.h.b16 %v5640
        %v6026 = vunpack.c.l.b16 %v5641
        %v6027 = vunpack.c.h.b16 %v5641
        %v6028 = vunpack.c.l.b16 %v5642
        %v6029 = vunpack.c.h.b16 %v5642
        %v6030 = vunpack.c.l.b16 %v5643
        %v6031 = vunpack.c.h.b16 %v5643
        %v6032 = vunpack.c.l.b16 %v5644
        %v6033 = vunpack.c.h.b16 %v5644
        %v6034 = vunpack.c.l.b16 %v5645
        %v6035 = vunpack.c.h.b16 %v5645
        %v6036 = vunpack.c.l.b16 %v5646
        %v6037 = vunpack.c.h.b16 %v5646
        %v6038 = vunpack.c.l.b16 %v5647
        %v6039 = vunpack.c.h.b16 %v5647
        %v6040 = vunpack.c.l.b16 %v5648
        %v6041 = vunpack.c.h.b16 %v5648
        %v6042 = vunpack.c.l.b16 %v5649
        %v6043 = vunpack.c.h.b16 %v5649
        %v6044 = vunpack.c.l.b16 %v5650
        %v6045 = vunpack.c.h.b16 %v5650
        %v6046 = vunpack.c.l.b16 %v5651
        %v6047 = vunpack.c.h.b16 %v5651
        %v6048 = vunpack.c.l.b16 %v5652
        %v6049 = vunpack.c.h.b16 %v5652
        %v6050 = vunpack.c.l.b16 %v5653
        %v6051 = vunpack.c.h.b16 %v5653
        %v6052 = vunpack.c.l.b16 %v5654
        %v6053 = vunpack.c.h.b16 %v5654
        %v6054 = vunpack.c.l.b16 %v5655
        %v6055 = vunpack.c.h.b16 %v5655
        %v6056 = vunpack.c.l.b16 %v5656
        %v6057 = vunpack.c.h.b16 %v5656
        %v6058 = vunpack.c.l.b16 %v5657
        %v6059 = vunpack.c.h.b16 %v5657
        %v6060 = vunpack.c.l.b16 %v5658
        %v6061 = vunpack.c.h.b16 %v5658
        %v6062 = vunpack.c.l.b16 %v5659
        %v6063 = vunpack.c.h.b16 %v5659
        %v6064 = vunpack.c.l.b16 %v5660
        %v6065 = vunpack.c.h.b16 %v5660
        %v6066 = vunpack.c.l.b16 %v5661
        %v6067 = vunpack.c.h.b16 %v5661
        %v6068 = vunpack.c.l.b16 %v5662
        %v6069 = vunpack.c.h.b16 %v5662
        %v6070 = vunpack.c.l.b16 %v5663
        %v6071 = vunpack.c.h.b16 %v5663
        %v6072 = vunpack.c.l.b16 %v5664
        %v6073 = vunpack.c.h.b16 %v5664
        %v6074 = vunpack.c.l.b16 %v5665
        %v6075 = vunpack.c.h.b16 %v5665
        %v6076 = vunpack.c.l.b16 %v5666
        %v6077 = vunpack.c.h.b16 %v5666
        %v6078 = vunpack.c.l.b16 %v5667
        %v6079 = vunpack.c.h.b16 %v5667
        %v6080 = vunpack.c.l.b16 %v5668
        %v6081 = vunpack.c.h.b16 %v5668
        %v6082 = vunpack.c.l.b16 %v5669
        %v6083 = vunpack.c.h.b16 %v5669
        %v6084 = vunpack.c.l.b16 %v5670
        %v6085 = vunpack.c.h.b16 %v5670
        %v6086 = vunpack.c.l.b16 %v5671
        %v6087 = vunpack.c.h.b16 %v5671
        %v6088 = vunpack.c.l.b16 %v5672
        %v6089 = vunpack.c.h.b16 %v5672
        %v6090 = vunpack.c.l.b16 %v5673
        %v6091 = vunpack.c.h.b16 %v5673
        %v6092 = vunpack.c.l.b16 %v5674
        %v6093 = vunpack.c.h.b16 %v5674
        %v6094 = vunpack.c.l.b16 %v5675
        %v6095 = vunpack.c.h.b16 %v5675
        %v6096 = vunpack.c.l.b16 %v5676
        %v6097 = vunpack.c.h.b16 %v5676
        %v6098 = vunpack.c.l.b16 %v5677
        %v6099 = vunpack.c.h.b16 %v5677
        %v6100 = vunpack.c.l.b16 %v5678
        %v6101 = vunpack.c.h.b16 %v5678
        %v6102 = vunpack.c.l.b16 %v5679
        %v6103 = vunpack.c.h.b16 %v5679
        %v6104 = vunpack.c.l.b16 %v5680
        %v6105 = vunpack.c.h.b16 %v5680
        %v6106 = vunpack.c.l.b16 %v5681
        %v6107 = vunpack.c.h.b16 %v5681
        %v6108 = vunpack.c.l.b16 %v5682
        %v6109 = vunpack.c.h.b16 %v5682
        %v6110 = vunpack.c.l.b16 %v5683
        %v6111 = vunpack.c.h.b16 %v5683
        %v6112 = vunpack.c.l.b16 %v5684
        %v6113 = vunpack.c.h.b16 %v5684
        %v6114 = vunpack.c.l.b16 %v5685
        %v6115 = vunpack.c.h.b16 %v5685
        %v6116 = vunpack.c.l.b16 %v5686
        %v6117 = vunpack.c.h.b16 %v5686
        %v6118 = vunpack.c.l.b16 %v5687
        %v6119 = vunpack.c.h.b16 %v5687
        %v6120 = vunpack.c.l.b16 %v5688
        %v6121 = vunpack.c.h.b16 %v5688
        %v6122 = vunpack.c.l.b16 %v5689
        %v6123 = vunpack.c.h.b16 %v5689
        %v6124 = vunpack.c.l.b16 %v5690
        %v6125 = vunpack.c.h.b16 %v5690
        %v6126 = vunpack.c.l.b16 %v5691
        %v6127 = vunpack.c.h.b16 %v5691
        %v6128 = vunpack.c.l.b16 %v5692
        %v6129 = vunpack.c.h.b16 %v5692
        %v6130 = vunpack.c.l.b16 %v5693
        %v6131 = vunpack.c.h.b16 %v5693
        %v6132 = vunpack.c.l.b16 %v5694
        %v6133 = vunpack.c.h.b16 %v5694
        %v6134 = vunpack.c.l.b16 %v5695
        %v6135 = vunpack.c.h.b16 %v5695
        %v6136 = vunpack.c.l.b16 %v5696
        %v6137 = vunpack.c.h.b16 %v5696
        %v6138 = vunpack.c.l.b16 %v5697
        %v6139 = vunpack.c.h.b16 %v5697
        %v6140 = vunpack.c.l.b16 %v5698
        %v6141 = vunpack.c.h.b16 %v5698
        %v6142 = vunpack.c.l.b16 %v5699
        %v6143 = vunpack.c.h.b16 %v5699
        %v6144 = vunpack.c.l.b16 %v5700
        %v6145 = vunpack.c.h.b16 %v5700
        %v6146 = vunpack.c.l.b16 %v5701
        %v6147 = vunpack.c.h.b16 %v5701
        %v6148 = vpack.c.b16 %v5866, %v5860
        %v6149 = vpack.c.b16 %v5867, %v5861
        %v6150 = vpack.c.b16 %v5868, %v5862
        %v6151 = vpack.c.b16 %v5869, %v5863
        %v6152 = vpack.c.b16 %v5870, %v5864
        %v6153 = vpack.c.b16 %v5871, %v5865
        %v6154 = vpack.c.b16 %v5878, %v5872
        %v6155 = vpack.c.b16 %v5879, %v5873
        %v6156 = vpack.c.b16 %v5880, %v5874
        %v6157 = vpack.c.b16 %v5881, %v5875
        %v6158 = vpack.c.b16 %v5882, %v5876
        %v6159 = vpack.c.b16 %v5883, %v5877
        %v6160 = vpack.c.b16 %v5890, %v5884
        %v6161 = vpack.c.b16 %v5891, %v5885
        %v6162 = vpack.c.b16 %v5892, %v5886
        %v6163 = vpack.c.b16 %v5893, %v5887
        %v6164 = vpack.c.b16 %v5894, %v5888
        %v6165 = vpack.c.b16 %v5895, %v5889
        %v6166 = vpack.c.b16 %v5902, %v5896
        %v6167 = vpack.c.b16 %v5903, %v5897
        %v6168 = vpack.c.b16 %v5904, %v5898
        %v6169 = vpack.c.b16 %v5905, %v5899
        %v6170 = vpack.c.b16 %v5906, %v5900
        %v6171 = vpack.c.b16 %v5907, %v5901
        %v6172 = vpack.c.b16 %v5914, %v5908
        %v6173 = vpack.c.b16 %v5915, %v5909
        %v6174 = vpack.c.b16 %v5916, %v5910
        %v6175 = vpack.c.b16 %v5917, %v5911
        %v6176 = vpack.c.b16 %v5918, %v5912
        %v6177 = vpack.c.b16 %v5919, %v5913
        %v6178 = vpack.c.b16 %v5926, %v5920
        %v6179 = vpack.c.b16 %v5927, %v5921
        %v6180 = vpack.c.b16 %v5928, %v5922
        %v6181 = vpack.c.b16 %v5929, %v5923
        %v6182 = vpack.c.b16 %v5930, %v5924
        %v6183 = vpack.c.b16 %v5931, %v5925
        %v6184 = vpack.c.b16 %v5938, %v5932
        %v6185 = vpack.c.b16 %v5939, %v5933
        %v6186 = vpack.c.b16 %v5940, %v5934
        %v6187 = vpack.c.b16 %v5941, %v5935
        %v6188 = vpack.c.b16 %v5942, %v5936
        %v6189 = vpack.c.b16 %v5943, %v5937
        %v6190 = vpack.c.b16 %v5950, %v5944
        %v6191 = vpack.c.b16 %v5951, %v5945
        %v6192 = vpack.c.b16 %v5952, %v5946
        %v6193 = vpack.c.b16 %v5953, %v5947
        %v6194 = vpack.c.b16 %v5954, %v5948
        %v6195 = vpack.c.b16 %v5955, %v5949
        %v6196 = vpack.c.b16 %v5962, %v5956
        %v6197 = vpack.c.b16 %v5963, %v5957
        %v6198 = vpack.c.b16 %v5964, %v5958
        %v6199 = vpack.c.b16 %v5965, %v5959
        %v6200 = vpack.c.b16 %v5966, %v5960
        %v6201 = vpack.c.b16 %v5967, %v5961
        %v6202 = vpack.c.b16 %v5974, %v5968
        %v6203 = vpack.c.b16 %v5975, %v5969
        %v6204 = vpack.c.b16 %v5976, %v5970
        %v6205 = vpack.c.b16 %v5977, %v5971
        %v6206 = vpack.c.b16 %v5978, %v5972
        %v6207 = vpack.c.b16 %v5979, %v5973
        %v6208 = vpack.c.b16 %v5986, %v5980
        %v6209 = vpack.c.b16 %v5987, %v5981
        %v6210 = vpack.c.b16 %v5988, %v5982
        %v6211 = vpack.c.b16 %v5989, %v5983
        %v6212 = vpack.c.b16 %v5990, %v5984
        %v6213 = vpack.c.b16 %v5991, %v5985
        %v6214 = vpack.c.b16 %v5998, %v5992
        %v6215 = vpack.c.b16 %v5999, %v5993
        %v6216 = vpack.c.b16 %v6000, %v5994
        %v6217 = vpack.c.b16 %v6001, %v5995
        %v6218 = vpack.c.b16 %v6002, %v5996
        %v6219 = vpack.c.b16 %v6003, %v5997
        %v6220 = vpack.c.b16 %v6010, %v6004
        %v6221 = vpack.c.b16 %v6011, %v6005
        %v6222 = vpack.c.b16 %v6012, %v6006
        %v6223 = vpack.c.b16 %v6013, %v6007
        %v6224 = vpack.c.b16 %v6014, %v6008
        %v6225 = vpack.c.b16 %v6015, %v6009
        %v6226 = vpack.c.b16 %v6022, %v6016
        %v6227 = vpack.c.b16 %v6023, %v6017
        %v6228 = vpack.c.b16 %v6024, %v6018
        %v6229 = vpack.c.b16 %v6025, %v6019
        %v6230 = vpack.c.b16 %v6026, %v6020
        %v6231 = vpack.c.b16 %v6027, %v6021
        %v6232 = vpack.c.b16 %v6034, %v6028
        %v6233 = vpack.c.b16 %v6035, %v6029
        %v6234 = vpack.c.b16 %v6036, %v6030
        %v6235 = vpack.c.b16 %v6037, %v6031
        %v6236 = vpack.c.b16 %v6038, %v6032
        %v6237 = vpack.c.b16 %v6039, %v6033
        %v6238 = vpack.c.b16 %v6046, %v6040
        %v6239 = vpack.c.b16 %v6047, %v6041
        %v6240 = vpack.c.b16 %v6048, %v6042
        %v6241 = vpack.c.b16 %v6049, %v6043
        %v6242 = vpack.c.b16 %v6050, %v6044
        %v6243 = vpack.c.b16 %v6051, %v6045
        %v6244 = vpack.c.b16 %v6058, %v6052
        %v6245 = vpack.c.b16 %v6059, %v6053
        %v6246 = vpack.c.b16 %v6060, %v6054
        %v6247 = vpack.c.b16 %v6061, %v6055
        %v6248 = vpack.c.b16 %v6062, %v6056
        %v6249 = vpack.c.b16 %v6063, %v6057
        %v6250 = vpack.c.b16 %v6070, %v6064
        %v6251 = vpack.c.b16 %v6071, %v6065
        %v6252 = vpack.c.b16 %v6072, %v6066
        %v6253 = vpack.c.b16 %v6073, %v6067
        %v6254 = vpack.c.b16 %v6074, %v6068
        %v6255 = vpack.c.b16 %v6075, %v6069
        %v6256 = vpack.c.b16 %v6082, %v6076
        %v6257 = vpack.c.b16 %v6083, %v6077
        %v6258 = vpack.c.b16 %v6084, %v6078
        %v6259 = vpack.c.b16 %v6085, %v6079
        %v6260 = vpack.c.b16 %v6086, %v6080
        %v6261 = vpack.c.b16 %v6087, %v6081
        %v6262 = vpack.c.b16 %v6094, %v6088
        %v6263 = vpack.c.b16 %v6095, %v6089
        %v6264 = vpack.c.b16 %v6096, %v6090
        %v6265 = vpack.c.b16 %v6097, %v6091
        %v6266 = vpack.c.b16 %v6098, %v6092
        %v6267 = vpack.c.b16 %v6099, %v6093
        %v6268 = vpack.c.b16 %v6106, %v6100
        %v6269 = vpack.c.b16 %v6107, %v6101
        %v6270 = vpack.c.b16 %v6108, %v6102
        %v6271 = vpack.c.b16 %v6109, %v6103
        %v6272 = vpack.c.b16 %v6110, %v6104
        %v6273 = vpack.c.b16 %v6111, %v6105
        %v6274 = vpack.c.b16 %v6118, %v6112
        %v6275 = vpack.c.b16 %v6119, %v6113
        %v6276 = vpack.c.b16 %v6120, %v6114
        %v6277 = vpack.c.b16 %v6121, %v6115
        %v6278 = vpack.c.b16 %v6122, %v6116
        %v6279 = vpack.c.b16 %v6123, %v6117
        %v6280 = vpack.c.b16 %v6130, %v6124
        %v6281 = vpack.c.b16 %v6131, %v6125
        %v6282 = vpack.c.b16 %v6132, %v6126
        %v6283 = vpack.c.b16 %v6133, %v6127
        %v6284 = vpack.c.b16 %v6134, %v6128
        %v6285 = vpack.c.b16 %v6135, %v6129
        %v6286 = vpack.c.b16 %v6142, %v6136
        %v6287 = vpack.c.b16 %v6143, %v6137
        %v6288 = vpack.c.b16 %v6144, %v6138
        %v6289 = vpack.c.b16 %v6145, %v6139
        %v6290 = vpack.c.b16 %v6146, %v6140
        %v6291 = vpack.c.b16 %v6147, %v6141
        %6436 = vmatpush.bf16.msra.mxu0 %v6190
        %6437 = vmatpush.bf16.msra.mxu0 %v6184
        %6438 = vmatpush.bf16.msra.mxu0 %v6178
        %6439 = vmatpush.bf16.msra.mxu0 %v6172
        %6440 = vmatpush.bf16.msra.mxu0 %v6166
        %6441 = vmatpush.bf16.msra.mxu0 %v6160
        %6442 = vmatpush.bf16.msra.mxu0 %v6154
        %6443 = vmatpush.bf16.msra.mxu0 %v6148
        %6444 = vmatmul.bf16.gmra.mxu0 %v5555
        %v6445 = vpop.f32.mrf.mxu0
        %v6446 = vadd.f32 %v5704, %v6445
        %v6447 = vpop.f32.mrf.mxu0
        %6448 = vdwg.mxu0
        %6449 = vmatpush.bf16.msra.mxu0 %v6238
        %6450 = vmatpush.bf16.msra.mxu0 %v6232
        %6451 = vmatpush.bf16.msra.mxu0 %v6226
        %6452 = vmatpush.bf16.msra.mxu0 %v6220
        %6453 = vmatpush.bf16.msra.mxu0 %v6214
        %6454 = vmatpush.bf16.msra.mxu0 %v6208
        %6455 = vmatpush.bf16.msra.mxu0 %v6202
        %6456 = vmatpush.bf16.msra.mxu0 %v6196
        %6457 = vmatmul.bf16.gmra.mxu0 %v5556
        %v6458 = vpop.f32.mrf.mxu0
        %v6459 = vadd.f32 %v6446, %v6458
        %v6460 = vpop.f32.mrf.mxu0
        %6461 = vdwg.mxu0
        %6462 = vmatpush.bf16.msra.mxu0 %v6286
        %6463 = vmatpush.bf16.msra.mxu0 %v6280
        %6464 = vmatpush.bf16.msra.mxu0 %v6274
        %6465 = vmatpush.bf16.msra.mxu0 %v6268
        %6466 = vmatpush.bf16.msra.mxu0 %v6262
        %6467 = vmatpush.bf16.msra.mxu0 %v6256
        %6468 = vmatpush.bf16.msra.mxu0 %v6250
        %6469 = vmatpush.bf16.msra.mxu0 %v6244
        %6470 = vmatmul.bf16.gmra.mxu0 %v5557
        %v6471 = vpop.f32.mrf.mxu0
        %v6472 = vadd.f32 %v6459, %v6471
        %v6473 = vpop.f32.mrf.mxu0
        %6474 = vdwg.mxu0
        %6475 = vmatpush.bf16.msra.mxu0 %v6191
        %6476 = vmatpush.bf16.msra.mxu0 %v6185
        %6477 = vmatpush.bf16.msra.mxu0 %v6179
        %6478 = vmatpush.bf16.msra.mxu0 %v6173
        %6479 = vmatpush.bf16.msra.mxu0 %v6167
        %6480 = vmatpush.bf16.msra.mxu0 %v6161
        %6481 = vmatpush.bf16.msra.mxu0 %v6155
        %6482 = vmatpush.bf16.msra.mxu0 %v6149
        %6483 = vmatmul.bf16.gmra.mxu0 %v5555
        %v6484 = vpop.f32.mrf.mxu0
        %v6485 = vadd.f32 %v5705, %v6484
        %v6486 = vpop.f32.mrf.mxu0
        %6487 = vdwg.mxu0
        %6488 = vmatpush.bf16.msra.mxu0 %v6239
        %6489 = vmatpush.bf16.msra.mxu0 %v6233
        %6490 = vmatpush.bf16.msra.mxu0 %v6227
        %6491 = vmatpush.bf16.msra.mxu0 %v6221
        %6492 = vmatpush.bf16.msra.mxu0 %v6215
        %6493 = vmatpush.bf16.msra.mxu0 %v6209
        %6494 = vmatpush.bf16.msra.mxu0 %v6203
        %6495 = vmatpush.bf16.msra.mxu0 %v6197
        %6496 = vmatmul.bf16.gmra.mxu0 %v5556
        %v6497 = vpop.f32.mrf.mxu0
        %v6498 = vadd.f32 %v6485, %v6497
        %v6499 = vpop.f32.mrf.mxu0
        %6500 = vdwg.mxu0
        %6501 = vmatpush.bf16.msra.mxu0 %v6287
        %6502 = vmatpush.bf16.msra.mxu0 %v6281
        %6503 = vmatpush.bf16.msra.mxu0 %v6275
        %6504 = vmatpush.bf16.msra.mxu0 %v6269
        %6505 = vmatpush.bf16.msra.mxu0 %v6263
        %6506 = vmatpush.bf16.msra.mxu0 %v6257
        %6507 = vmatpush.bf16.msra.mxu0 %v6251
        %6508 = vmatpush.bf16.msra.mxu0 %v6245
        %6509 = vmatmul.bf16.gmra.mxu0 %v5557
        %v6510 = vpop.f32.mrf.mxu0
        %v6511 = vadd.f32 %v6498, %v6510
        %v6512 = vpop.f32.mrf.mxu0
        %6513 = vdwg.mxu0
        %6514 = vmatpush.bf16.msra.mxu0 %v6192
        %6515 = vmatpush.bf16.msra.mxu0 %v6186
        %6516 = vmatpush.bf16.msra.mxu0 %v6180
        %6517 = vmatpush.bf16.msra.mxu0 %v6174
        %6518 = vmatpush.bf16.msra.mxu0 %v6168
        %6519 = vmatpush.bf16.msra.mxu0 %v6162
        %6520 = vmatpush.bf16.msra.mxu0 %v6156
        %6521 = vmatpush.bf16.msra.mxu0 %v6150
        %6522 = vmatmul.bf16.gmra.mxu0 %v5555
        %v6523 = vpop.f32.mrf.mxu0
        %v6524 = vadd.f32 %v5706, %v6523
        %v6525 = vpop.f32.mrf.mxu0
        %6526 = vdwg.mxu0
        %6527 = vmatpush.bf16.msra.mxu0 %v6240
        %6528 = vmatpush.bf16.msra.mxu0 %v6234
        %6529 = vmatpush.bf16.msra.mxu0 %v6228
        %6530 = vmatpush.bf16.msra.mxu0 %v6222
        %6531 = vmatpush.bf16.msra.mxu0 %v6216
        %6532 = vmatpush.bf16.msra.mxu0 %v6210
        %6533 = vmatpush.bf16.msra.mxu0 %v6204
        %6534 = vmatpush.bf16.msra.mxu0 %v6198
        %6535 = vmatmul.bf16.gmra.mxu0 %v5556
        %v6536 = vpop.f32.mrf.mxu0
        %v6537 = vadd.f32 %v6524, %v6536
        %v6538 = vpop.f32.mrf.mxu0
        %6539 = vdwg.mxu0
        %6540 = vmatpush.bf16.msra.mxu0 %v6288
        %6541 = vmatpush.bf16.msra.mxu0 %v6282
        %6542 = vmatpush.bf16.msra.mxu0 %v6276
        %6543 = vmatpush.bf16.msra.mxu0 %v6270
        %6544 = vmatpush.bf16.msra.mxu0 %v6264
        %6545 = vmatpush.bf16.msra.mxu0 %v6258
        %6546 = vmatpush.bf16.msra.mxu0 %v6252
        %6547 = vmatpush.bf16.msra.mxu0 %v6246
        %6548 = vmatmul.bf16.gmra.mxu0 %v5557
        %v6549 = vpop.f32.mrf.mxu0
        %v6550 = vadd.f32 %v6537, %v6549
        %v6551 = vpop.f32.mrf.mxu0
        %6552 = vdwg.mxu0
        %6553 = vmatpush.bf16.msra.mxu0 %v6193
        %6554 = vmatpush.bf16.msra.mxu0 %v6187
        %6555 = vmatpush.bf16.msra.mxu0 %v6181
        %6556 = vmatpush.bf16.msra.mxu0 %v6175
        %6557 = vmatpush.bf16.msra.mxu0 %v6169
        %6558 = vmatpush.bf16.msra.mxu0 %v6163
        %6559 = vmatpush.bf16.msra.mxu0 %v6157
        %6560 = vmatpush.bf16.msra.mxu0 %v6151
        %6561 = vmatmul.bf16.gmra.mxu0 %v5555
        %v6562 = vpop.f32.mrf.mxu0
        %v6563 = vadd.f32 %v5707, %v6562
        %v6564 = vpop.f32.mrf.mxu0
        %6565 = vdwg.mxu0
        %6566 = vmatpush.bf16.msra.mxu0 %v6241
        %6567 = vmatpush.bf16.msra.mxu0 %v6235
        %6568 = vmatpush.bf16.msra.mxu0 %v6229
        %6569 = vmatpush.bf16.msra.mxu0 %v6223
        %6570 = vmatpush.bf16.msra.mxu0 %v6217
        %6571 = vmatpush.bf16.msra.mxu0 %v6211
        %6572 = vmatpush.bf16.msra.mxu0 %v6205
        %6573 = vmatpush.bf16.msra.mxu0 %v6199
        %6574 = vmatmul.bf16.gmra.mxu0 %v5556
        %v6575 = vpop.f32.mrf.mxu0
        %v6576 = vadd.f32 %v6563, %v6575
        %v6577 = vpop.f32.mrf.mxu0
        %6578 = vdwg.mxu0
        %6579 = vmatpush.bf16.msra.mxu0 %v6289
        %6580 = vmatpush.bf16.msra.mxu0 %v6283
        %6581 = vmatpush.bf16.msra.mxu0 %v6277
        %6582 = vmatpush.bf16.msra.mxu0 %v6271
        %6583 = vmatpush.bf16.msra.mxu0 %v6265
        %6584 = vmatpush.bf16.msra.mxu0 %v6259
        %6585 = vmatpush.bf16.msra.mxu0 %v6253
        %6586 = vmatpush.bf16.msra.mxu0 %v6247
        %6587 = vmatmul.bf16.gmra.mxu0 %v5557
        %v6588 = vpop.f32.mrf.mxu0
        %v6589 = vadd.f32 %v6576, %v6588
        %v6590 = vpop.f32.mrf.mxu0
        %6591 = vdwg.mxu0
        %6592 = vmatpush.bf16.msra.mxu0 %v6194
        %6593 = vmatpush.bf16.msra.mxu0 %v6188
        %6594 = vmatpush.bf16.msra.mxu0 %v6182
        %6595 = vmatpush.bf16.msra.mxu0 %v6176
        %6596 = vmatpush.bf16.msra.mxu0 %v6170
        %6597 = vmatpush.bf16.msra.mxu0 %v6164
        %6598 = vmatpush.bf16.msra.mxu0 %v6158
        %6599 = vmatpush.bf16.msra.mxu0 %v6152
        %6600 = vmatmul.bf16.gmra.mxu0 %v5555
        %v6601 = vpop.f32.mrf.mxu0
        %v6602 = vadd.f32 %v5708, %v6601
        %v6603 = vpop.f32.mrf.mxu0
        %6604 = vdwg.mxu0
        %6605 = vmatpush.bf16.msra.mxu0 %v6242
        %6606 = vmatpush.bf16.msra.mxu0 %v6236
        %6607 = vmatpush.bf16.msra.mxu0 %v6230
        %6608 = vmatpush.bf16.msra.mxu0 %v6224
        %6609 = vmatpush.bf16.msra.mxu0 %v6218
        %6610 = vmatpush.bf16.msra.mxu0 %v6212
        %6611 = vmatpush.bf16.msra.mxu0 %v6206
        %6612 = vmatpush.bf16.msra.mxu0 %v6200
        %6613 = vmatmul.bf16.gmra.mxu0 %v5556
        %v6614 = vpop.f32.mrf.mxu0
        %v6615 = vadd.f32 %v6602, %v6614
        %v6616 = vpop.f32.mrf.mxu0
        %6617 = vdwg.mxu0
        %6618 = vmatpush.bf16.msra.mxu0 %v6290
        %6619 = vmatpush.bf16.msra.mxu0 %v6284
        %6620 = vmatpush.bf16.msra.mxu0 %v6278
        %6621 = vmatpush.bf16.msra.mxu0 %v6272
        %6622 = vmatpush.bf16.msra.mxu0 %v6266
        %6623 = vmatpush.bf16.msra.mxu0 %v6260
        %6624 = vmatpush.bf16.msra.mxu0 %v6254
        %6625 = vmatpush.bf16.msra.mxu0 %v6248
        %6626 = vmatmul.bf16.gmra.mxu0 %v5557
        %v6627 = vpop.f32.mrf.mxu0
        %v6628 = vadd.f32 %v6615, %v6627
        %v6629 = vpop.f32.mrf.mxu0
        %6630 = vdwg.mxu0
        %6631 = vmatpush.bf16.msra.mxu0 %v6195
        %6632 = vmatpush.bf16.msra.mxu0 %v6189
        %6633 = vmatpush.bf16.msra.mxu0 %v6183
        %6634 = vmatpush.bf16.msra.mxu0 %v6177
        %6635 = vmatpush.bf16.msra.mxu0 %v6171
        %6636 = vmatpush.bf16.msra.mxu0 %v6165
        %6637 = vmatpush.bf16.msra.mxu0 %v6159
        %6638 = vmatpush.bf16.msra.mxu0 %v6153
        %6639 = vmatmul.bf16.gmra.mxu0 %v5555
        %v6640 = vpop.f32.mrf.mxu0
        %v6641 = vadd.f32 %v5709, %v6640
        %v6642 = vpop.f32.mrf.mxu0
        %6643 = vdwg.mxu0
        %6644 = vmatpush.bf16.msra.mxu0 %v6243
        %6645 = vmatpush.bf16.msra.mxu0 %v6237
        %6646 = vmatpush.bf16.msra.mxu0 %v6231
        %6647 = vmatpush.bf16.msra.mxu0 %v6225
        %6648 = vmatpush.bf16.msra.mxu0 %v6219
        %6649 = vmatpush.bf16.msra.mxu0 %v6213
        %6650 = vmatpush.bf16.msra.mxu0 %v6207
        %6651 = vmatpush.bf16.msra.mxu0 %v6201
        %6652 = vmatmul.bf16.gmra.mxu0 %v5556
        %v6653 = vpop.f32.mrf.mxu0
        %v6654 = vadd.f32 %v6641, %v6653
        %v6655 = vpop.f32.mrf.mxu0
        %6656 = vdwg.mxu0
        %6657 = vmatpush.bf16.msra.mxu0 %v6291
        %6658 = vmatpush.bf16.msra.mxu0 %v6285
        %6659 = vmatpush.bf16.msra.mxu0 %v6279
        %6660 = vmatpush.bf16.msra.mxu0 %v6273
        %6661 = vmatpush.bf16.msra.mxu0 %v6267
        %6662 = vmatpush.bf16.msra.mxu0 %v6261
        %6663 = vmatpush.bf16.msra.mxu0 %v6255
        %6664 = vmatpush.bf16.msra.mxu0 %v6249
        %6665 = vmatmul.bf16.gmra.mxu0 %v5557
        %v6666 = vpop.f32.mrf.mxu0
        %v6667 = vadd.f32 %v6654, %v6666
        %v6668 = vpop.f32.mrf.mxu0
        %6669 = vdwg.mxu0
        %v6670 = vmul.f32 %v6472, 0.5
        %v6671 = vmul.f32 %v6511, 0.5
        %v6672 = vmul.f32 %v6550, 0.5
        %v6673 = vmul.f32 %v6589, 0.5
        %v6674 = vmul.f32 %v6628, 0.5
        %v6675 = vmul.f32 %v6667, 0.5
        %v6676 = vmul.f32 %v6472, %v906
        %v6677 = vmul.f32 %v6511, %v906
        %v6678 = vmul.f32 %v6550, %v906
        %v6679 = vmul.f32 %v6589, %v906
        %v6680 = vmul.f32 %v6628, %v906
        %v6681 = vmul.f32 %v6667, %v906
        %vm6682 = vcmp.ge.f32.partialorder %v6676, 0.0
        %vm6683 = vcmp.ge.f32.partialorder %v6677, 0.0
        %vm6684 = vcmp.ge.f32.partialorder %v6678, 0.0
        %vm6685 = vcmp.ge.f32.partialorder %v6679, 0.0
        %vm6686 = vcmp.ge.f32.partialorder %v6680, 0.0
        %vm6687 = vcmp.ge.f32.partialorder %v6681, 0.0
        %v6688 = vsel %vm6682, 1.0, -1.0
        %v6689 = vsel %vm6683, 1.0, -1.0
        %v6690 = vsel %vm6684, 1.0, -1.0
        %v6691 = vsel %vm6685, 1.0, -1.0
        %v6692 = vsel %vm6686, 1.0, -1.0
        %v6693 = vsel %vm6687, 1.0, -1.0
        %v6694 = vand.u32 2147483647, %v6676
        %v6695 = vand.u32 2147483647, %v6677
        %v6696 = vand.u32 2147483647, %v6678
        %v6697 = vand.u32 2147483647, %v6679
        %v6698 = vand.u32 2147483647, %v6680
        %v6699 = vand.u32 2147483647, %v6681
        %v6700 = vmul.f32 %v6694, 0.3275911
        %v6701 = vmul.f32 %v6695, 0.3275911
        %v6702 = vmul.f32 %v6696, 0.3275911
        %v6703 = vmul.f32 %v6697, 0.3275911
        %v6704 = vmul.f32 %v6698, 0.3275911
        %v6705 = vmul.f32 %v6699, 0.3275911
        %v6706 = vadd.f32 %v6700, 1.0
        %v6707 = vadd.f32 %v6701, 1.0
        %v6708 = vadd.f32 %v6702, 1.0
        %v6709 = vadd.f32 %v6703, 1.0
        %v6710 = vadd.f32 %v6704, 1.0
        %v6711 = vadd.f32 %v6705, 1.0
        %v6712 = vrcp.pop %v6706
        %v6713 = vmul.f32 %v6706, %v6712
        %v6714 = vsub.f32 1.0, %v6713
        %v6715 = vmul.f32 %v6712, %v6714
        %v6716 = vadd.f32 %v6712, %v6715
        %vm6717 = vweird.f32 %v6706
        %vm6718 = vweird.f32 %v6712
        %vm6719 = vmor %vm6717, %vm6718
        %v6720 = vsel %vm6719, %v6712, %v6716
        %v6721 = vand.u32 2147483647, %v6706
        %vm6722 = vcmp.eq.f32.partialorder %v6721, 8.507059e+37
        %v6723 = vand.u32 %v6706, 2147483648
        %v6724 = vor.u32 1.1754944e-38, %v6723
        %v6725 = vsel %vm6722, %v6724, %v6720
        %v6726 = vmul.f32 1.0, %v6725
        %v6727 = vrcp.pop %v6707
        %v6728 = vmul.f32 %v6707, %v6727
        %v6729 = vsub.f32 1.0, %v6728
        %v6730 = vmul.f32 %v6727, %v6729
        %v6731 = vadd.f32 %v6727, %v6730
        %vm6732 = vweird.f32 %v6707
        %vm6733 = vweird.f32 %v6727
        %vm6734 = vmor %vm6732, %vm6733
        %v6735 = vsel %vm6734, %v6727, %v6731
        %v6736 = vand.u32 2147483647, %v6707
        %vm6737 = vcmp.eq.f32.partialorder %v6736, 8.507059e+37
        %v6738 = vand.u32 %v6707, 2147483648
        %v6739 = vor.u32 1.1754944e-38, %v6738
        %v6740 = vsel %vm6737, %v6739, %v6735
        %v6741 = vmul.f32 1.0, %v6740
        %v6742 = vrcp.pop %v6708
        %v6743 = vmul.f32 %v6708, %v6742
        %v6744 = vsub.f32 1.0, %v6743
        %v6745 = vmul.f32 %v6742, %v6744
        %v6746 = vadd.f32 %v6742, %v6745
        %vm6747 = vweird.f32 %v6708
        %vm6748 = vweird.f32 %v6742
        %vm6749 = vmor %vm6747, %vm6748
        %v6750 = vsel %vm6749, %v6742, %v6746
        %v6751 = vand.u32 2147483647, %v6708
        %vm6752 = vcmp.eq.f32.partialorder %v6751, 8.507059e+37
        %v6753 = vand.u32 %v6708, 2147483648
        %v6754 = vor.u32 1.1754944e-38, %v6753
        %v6755 = vsel %vm6752, %v6754, %v6750
        %v6756 = vmul.f32 1.0, %v6755
        %v6757 = vrcp.pop %v6709
        %v6758 = vmul.f32 %v6709, %v6757
        %v6759 = vsub.f32 1.0, %v6758
        %v6760 = vmul.f32 %v6757, %v6759
        %v6761 = vadd.f32 %v6757, %v6760
        %vm6762 = vweird.f32 %v6709
        %vm6763 = vweird.f32 %v6757
        %vm6764 = vmor %vm6762, %vm6763
        %v6765 = vsel %vm6764, %v6757, %v6761
        %v6766 = vand.u32 2147483647, %v6709
        %vm6767 = vcmp.eq.f32.partialorder %v6766, 8.507059e+37
        %v6768 = vand.u32 %v6709, 2147483648
        %v6769 = vor.u32 1.1754944e-38, %v6768
        %v6770 = vsel %vm6767, %v6769, %v6765
        %v6771 = vmul.f32 1.0, %v6770
        %v6772 = vrcp.pop %v6710
        %v6773 = vmul.f32 %v6710, %v6772
        %v6774 = vsub.f32 1.0, %v6773
        %v6775 = vmul.f32 %v6772, %v6774
        %v6776 = vadd.f32 %v6772, %v6775
        %vm6777 = vweird.f32 %v6710
        %vm6778 = vweird.f32 %v6772
        %vm6779 = vmor %vm6777, %vm6778
        %v6780 = vsel %vm6779, %v6772, %v6776
        %v6781 = vand.u32 2147483647, %v6710
        %vm6782 = vcmp.eq.f32.partialorder %v6781, 8.507059e+37
        %v6783 = vand.u32 %v6710, 2147483648
        %v6784 = vor.u32 1.1754944e-38, %v6783
        %v6785 = vsel %vm6782, %v6784, %v6780
        %v6786 = vmul.f32 1.0, %v6785
        %v6787 = vrcp.pop %v6711
        %v6788 = vmul.f32 %v6711, %v6787
        %v6789 = vsub.f32 1.0, %v6788
        %v6790 = vmul.f32 %v6787, %v6789
        %v6791 = vadd.f32 %v6787, %v6790
        %vm6792 = vweird.f32 %v6711
        %vm6793 = vweird.f32 %v6787
        %vm6794 = vmor %vm6792, %vm6793
        %v6795 = vsel %vm6794, %v6787, %v6791
        %v6796 = vand.u32 2147483647, %v6711
        %vm6797 = vcmp.eq.f32.partialorder %v6796, 8.507059e+37
        %v6798 = vand.u32 %v6711, 2147483648
        %v6799 = vor.u32 1.1754944e-38, %v6798
        %v6800 = vsel %vm6797, %v6799, %v6795
        %v6801 = vmul.f32 1.0, %v6800
        %v6802 = vmul.f32 %v6726, 1.0614054
        %v6803 = vmul.f32 %v6741, 1.0614054
        %v6804 = vmul.f32 %v6756, 1.0614054
        %v6805 = vmul.f32 %v6771, 1.0614054
        %v6806 = vmul.f32 %v6786, 1.0614054
        %v6807 = vmul.f32 %v6801, 1.0614054
        %v6808 = vadd.f32 %v6802, -1.4531521
        %v6809 = vadd.f32 %v6803, -1.4531521
        %v6810 = vadd.f32 %v6804, -1.4531521
        %v6811 = vadd.f32 %v6805, -1.4531521
        %v6812 = vadd.f32 %v6806, -1.4531521
        %v6813 = vadd.f32 %v6807, -1.4531521
        %v6814 = vmul.f32 %v6808, %v6726
        %v6815 = vmul.f32 %v6809, %v6741
        %v6816 = vmul.f32 %v6810, %v6756
        %v6817 = vmul.f32 %v6811, %v6771
        %v6818 = vmul.f32 %v6812, %v6786
        %v6819 = vmul.f32 %v6813, %v6801
        %v6820 = vadd.f32 %v6814, 1.4214138
        %v6821 = vadd.f32 %v6815, 1.4214138
        %v6822 = vadd.f32 %v6816, 1.4214138
        %v6823 = vadd.f32 %v6817, 1.4214138
        %v6824 = vadd.f32 %v6818, 1.4214138
        %v6825 = vadd.f32 %v6819, 1.4214138
        %v6826 = vmul.f32 %v6820, %v6726
        %v6827 = vmul.f32 %v6821, %v6741
        %v6828 = vmul.f32 %v6822, %v6756
        %v6829 = vmul.f32 %v6823, %v6771
        %v6830 = vmul.f32 %v6824, %v6786
        %v6831 = vmul.f32 %v6825, %v6801
        %v6832 = vadd.f32 %v6826, -0.28449672
        %v6833 = vadd.f32 %v6827, -0.28449672
        %v6834 = vadd.f32 %v6828, -0.28449672
        %v6835 = vadd.f32 %v6829, -0.28449672
        %v6836 = vadd.f32 %v6830, -0.28449672
        %v6837 = vadd.f32 %v6831, -0.28449672
        %v6838 = vmul.f32 %v6832, %v6726
        %v6839 = vmul.f32 %v6833, %v6741
        %v6840 = vmul.f32 %v6834, %v6756
        %v6841 = vmul.f32 %v6835, %v6771
        %v6842 = vmul.f32 %v6836, %v6786
        %v6843 = vmul.f32 %v6837, %v6801
        %v6844 = vadd.f32 %v6838, 0.2548296
        %v6845 = vadd.f32 %v6839, 0.2548296
        %v6846 = vadd.f32 %v6840, 0.2548296
        %v6847 = vadd.f32 %v6841, 0.2548296
        %v6848 = vadd.f32 %v6842, 0.2548296
        %v6849 = vadd.f32 %v6843, 0.2548296
        %v6850 = vmul.f32 %v6844, %v6726
        %v6851 = vmul.f32 %v6845, %v6741
        %v6852 = vmul.f32 %v6846, %v6756
        %v6853 = vmul.f32 %v6847, %v6771
        %v6854 = vmul.f32 %v6848, %v6786
        %v6855 = vmul.f32 %v6849, %v6801
        %v6856 = vsub.f32 0.0, %v6694
        %v6857 = vsub.f32 0.0, %v6695
        %v6858 = vsub.f32 0.0, %v6696
        %v6859 = vsub.f32 0.0, %v6697
        %v6860 = vsub.f32 0.0, %v6698
        %v6861 = vsub.f32 0.0, %v6699
        %v6862 = vmul.f32 %v6856, %v6694
        %v6863 = vmul.f32 %v6857, %v6695
        %v6864 = vmul.f32 %v6858, %v6696
        %v6865 = vmul.f32 %v6859, %v6697
        %v6866 = vmul.f32 %v6860, %v6698
        %v6867 = vmul.f32 %v6861, %v6699
        %v6868 = vmul.f32 %v6862, 1.442695
        %v6869 = vpow.pop %v6868
        %v6870 = vmul.f32 %v6863, 1.442695
        %v6871 = vpow.pop %v6870
        %v6872 = vmul.f32 %v6864, 1.442695
        %v6873 = vpow.pop %v6872
        %v6874 = vmul.f32 %v6865, 1.442695
        %v6875 = vpow.pop %v6874
        %v6876 = vmul.f32 %v6866, 1.442695
        %v6877 = vpow.pop %v6876
        %v6878 = vmul.f32 %v6867, 1.442695
        %v6879 = vpow.pop %v6878
        %v6880 = vmul.f32 %v6850, %v6869
        %v6881 = vmul.f32 %v6851, %v6871
        %v6882 = vmul.f32 %v6852, %v6873
        %v6883 = vmul.f32 %v6853, %v6875
        %v6884 = vmul.f32 %v6854, %v6877
        %v6885 = vmul.f32 %v6855, %v6879
        %v6886 = vsub.f32 1.0, %v6880
        %v6887 = vsub.f32 1.0, %v6881
        %v6888 = vsub.f32 1.0, %v6882
        %v6889 = vsub.f32 1.0, %v6883
        %v6890 = vsub.f32 1.0, %v6884
        %v6891 = vsub.f32 1.0, %v6885
        %v6892 = vmul.f32 %v6688, %v6886
        %v6893 = vmul.f32 %v6689, %v6887
        %v6894 = vmul.f32 %v6690, %v6888
        %v6895 = vmul.f32 %v6691, %v6889
        %v6896 = vmul.f32 %v6692, %v6890
        %v6897 = vmul.f32 %v6693, %v6891
        %v6898 = vadd.f32 %v6892, 1.0
        %v6899 = vadd.f32 %v6893, 1.0
        %v6900 = vadd.f32 %v6894, 1.0
        %v6901 = vadd.f32 %v6895, 1.0
        %v6902 = vadd.f32 %v6896, 1.0
        %v6903 = vadd.f32 %v6897, 1.0
        %v6904 = vmul.f32 %v6670, %v6898
        %v6905 = vmul.f32 %v6671, %v6899
        %v6906 = vmul.f32 %v6672, %v6900
        %v6907 = vmul.f32 %v6673, %v6901
        %v6908 = vmul.f32 %v6674, %v6902
        %v6909 = vmul.f32 %v6675, %v6903
        %v6910 = vpack.c.bf16 %v6904, %v6904
        %v6911 = vpack.c.bf16 %v6905, %v6905
        %v6912 = vpack.c.bf16 %v6906, %v6906
        %v6913 = vld [vmem:[%s21] sm:$0xff]
        %v6914 = vld [vmem:[%s21 + $0x8] sm:$0xf]
        %v6915 = vld [vmem:[%s21 + $0xc] sm:$0xff]
        %v6916 = vld [vmem:[%s21 + $0x14] sm:$0xf]
        %v6917 = vld [vmem:[%s21 + $0x18] sm:$0xff]
        %v6918 = vld [vmem:[%s21 + $0x20] sm:$0xf]
        %v6919 = vld [vmem:[%s21 + $0x24] sm:$0xff]
        %v6920 = vld [vmem:[%s21 + $0x2c] sm:$0xf]
        %v6921 = vld [vmem:[%s21 + $0x30] sm:$0xff]
        %v6922 = vld [vmem:[%s21 + $0x38] sm:$0xf]
        %v6923 = vld [vmem:[%s21 + $0x3c] sm:$0xff]
        %v6924 = vld [vmem:[%s21 + $0x44] sm:$0xf]
        %v6925 = vld [vmem:[%s21 + $0x48] sm:$0xff]
        %v6926 = vld [vmem:[%s21 + $0x50] sm:$0xf]
        %v6927 = vld [vmem:[%s21 + $0x54] sm:$0xff]
        %v6928 = vld [vmem:[%s21 + $0x5c] sm:$0xf]
        %v6929 = vld [vmem:[%s21 + $0x60] sm:$0xff]
        %v6930 = vld [vmem:[%s21 + $0x68] sm:$0xf]
        %v6931 = vld [vmem:[%s21 + $0x6c] sm:$0xff]
        %v6932 = vld [vmem:[%s21 + $0x74] sm:$0xf]
        %v6933 = vld [vmem:[%s21 + $0x78] sm:$0xff]
        %v6934 = vld [vmem:[%s21 + $0x80] sm:$0xf]
        %v6935 = vld [vmem:[%s21 + $0x84] sm:$0xff]
        %v6936 = vld [vmem:[%s21 + $0x8c] sm:$0xf]
        %v6937 = vld [vmem:[%s21 + $0x90] sm:$0xff]
        %v6938 = vld [vmem:[%s21 + $0x98] sm:$0xf]
        %v6939 = vld [vmem:[%s21 + $0x9c] sm:$0xff]
        %v6940 = vld [vmem:[%s21 + $0xa4] sm:$0xf]
        %v6941 = vld [vmem:[%s21 + $0xa8] sm:$0xff]
        %v6942 = vld [vmem:[%s21 + $0xb0] sm:$0xf]
        %v6943 = vld [vmem:[%s21 + $0xb4] sm:$0xff]
        %v6944 = vld [vmem:[%s21 + $0xbc] sm:$0xf]
        %v6945 = vld [vmem:[%s21 + $0xc0] sm:$0xff]
        %v6946 = vld [vmem:[%s21 + $0xc8] sm:$0xf]
        %v6947 = vld [vmem:[%s21 + $0xcc] sm:$0xff]
        %v6948 = vld [vmem:[%s21 + $0xd4] sm:$0xf]
        %v6949 = vld [vmem:[%s21 + $0xd8] sm:$0xff]
        %v6950 = vld [vmem:[%s21 + $0xe0] sm:$0xf]
        %v6951 = vld [vmem:[%s21 + $0xe4] sm:$0xff]
        %v6952 = vld [vmem:[%s21 + $0xec] sm:$0xf]
        %v6953 = vld [vmem:[%s21 + $0xf0] sm:$0xff]
        %v6954 = vld [vmem:[%s21 + $0xf8] sm:$0xf]
        %v6955 = vld [vmem:[%s21 + $0xfc] sm:$0xff]
        %v6956 = vld [vmem:[%s21 + $0x104] sm:$0xf]
        %v6957 = vld [vmem:[%s21 + $0x108] sm:$0xff]
        %v6958 = vld [vmem:[%s21 + $0x110] sm:$0xf]
        %v6959 = vld [vmem:[%s21 + $0x114] sm:$0xff]
        %v6960 = vld [vmem:[%s21 + $0x11c] sm:$0xf]
        %v6961 = vld [vmem:[%s21 + $0x120] sm:$0xff]
        %v6962 = vld [vmem:[%s21 + $0x128] sm:$0xf]
        %v6963 = vld [vmem:[%s21 + $0x12c] sm:$0xff]
        %v6964 = vld [vmem:[%s21 + $0x134] sm:$0xf]
        %v6965 = vld [vmem:[%s21 + $0x138] sm:$0xff]
        %v6966 = vld [vmem:[%s21 + $0x140] sm:$0xf]
        %v6967 = vld [vmem:[%s21 + $0x144] sm:$0xff]
        %v6968 = vld [vmem:[%s21 + $0x14c] sm:$0xf]
        %v6969 = vld [vmem:[%s21 + $0x150] sm:$0xff]
        %v6970 = vld [vmem:[%s21 + $0x158] sm:$0xf]
        %v6971 = vld [vmem:[%s21 + $0x15c] sm:$0xff]
        %v6972 = vld [vmem:[%s21 + $0x164] sm:$0xf]
        %v6973 = vld [vmem:[%s21 + $0x168] sm:$0xff]
        %v6974 = vld [vmem:[%s21 + $0x170] sm:$0xf]
        %v6975 = vld [vmem:[%s21 + $0x174] sm:$0xff]
        %v6976 = vld [vmem:[%s21 + $0x17c] sm:$0xf]
        %v6977 = vld [vmem:[%s21 + $0x180] sm:$0xff]
        %v6978 = vld [vmem:[%s21 + $0x188] sm:$0xf]
        %v6979 = vld [vmem:[%s21 + $0x18c] sm:$0xff]
        %v6980 = vld [vmem:[%s21 + $0x194] sm:$0xf]
        %v6981 = vld [vmem:[%s21 + $0x198] sm:$0xff]
        %v6982 = vld [vmem:[%s21 + $0x1a0] sm:$0xf]
        %v6983 = vld [vmem:[%s21 + $0x1a4] sm:$0xff]
        %v6984 = vld [vmem:[%s21 + $0x1ac] sm:$0xf]
        %v6985 = vld [vmem:[%s21 + $0x1b0] sm:$0xff]
        %v6986 = vld [vmem:[%s21 + $0x1b8] sm:$0xf]
        %v6987 = vld [vmem:[%s21 + $0x1bc] sm:$0xff]
        %v6988 = vld [vmem:[%s21 + $0x1c4] sm:$0xf]
        %v6989 = vld [vmem:[%s21 + $0x1c8] sm:$0xff]
        %v6990 = vld [vmem:[%s21 + $0x1d0] sm:$0xf]
        %v6991 = vld [vmem:[%s21 + $0x1d4] sm:$0xff]
        %v6992 = vld [vmem:[%s21 + $0x1dc] sm:$0xf]
        %v6993 = vld [vmem:[%s21 + $0x1e0] sm:$0xff]
        %v6994 = vld [vmem:[%s21 + $0x1e8] sm:$0xf]
        %v6995 = vld [vmem:[%s21 + $0x1ec] sm:$0xff]
        %v6996 = vld [vmem:[%s21 + $0x1f4] sm:$0xf]
        %v6997 = vld [vmem:[%s21 + $0x1f8] sm:$0xff]
        %v6998 = vld [vmem:[%s21 + $0x200] sm:$0xf]
        %v6999 = vld [vmem:[%s21 + $0x204] sm:$0xff]
        %v7000 = vld [vmem:[%s21 + $0x20c] sm:$0xf]
        %v7001 = vld [vmem:[%s21 + $0x210] sm:$0xff]
        %v7002 = vld [vmem:[%s21 + $0x218] sm:$0xf]
        %v7003 = vld [vmem:[%s21 + $0x21c] sm:$0xff]
        %v7004 = vld [vmem:[%s21 + $0x224] sm:$0xf]
        %v7005 = vld [vmem:[%s21 + $0x228] sm:$0xff]
        %v7006 = vld [vmem:[%s21 + $0x230] sm:$0xf]
        %v7007 = vld [vmem:[%s21 + $0x234] sm:$0xff]
        %v7008 = vld [vmem:[%s21 + $0x23c] sm:$0xf]
        %v7009 = vld [vmem:[%s22] sm:$0x7]
        %v7011 = vperm.slane %v7009, 0
        %v7012 = vperm.slane %v7009, 1
        %v7013 = vperm.slane %v7009, 2
        %v7113 = vunpack.c.l.b16 %v6913
        %v7114 = vunpack.c.h.b16 %v6913
        %v7115 = vunpack.c.l.b16 %v6914
        %v7116 = vunpack.c.l.b16 %v6915
        %v7117 = vunpack.c.h.b16 %v6915
        %v7118 = vunpack.c.l.b16 %v6916
        %v7119 = vunpack.c.l.b16 %v6917
        %v7120 = vunpack.c.h.b16 %v6917
        %v7121 = vunpack.c.l.b16 %v6918
        %v7122 = vunpack.c.l.b16 %v6919
        %v7123 = vunpack.c.h.b16 %v6919
        %v7124 = vunpack.c.l.b16 %v6920
        %v7125 = vunpack.c.l.b16 %v6921
        %v7126 = vunpack.c.h.b16 %v6921
        %v7127 = vunpack.c.l.b16 %v6922
        %v7128 = vunpack.c.l.b16 %v6923
        %v7129 = vunpack.c.h.b16 %v6923
        %v7130 = vunpack.c.l.b16 %v6924
        %v7131 = vunpack.c.l.b16 %v6925
        %v7132 = vunpack.c.h.b16 %v6925
        %v7133 = vunpack.c.l.b16 %v6926
        %v7134 = vunpack.c.l.b16 %v6927
        %v7135 = vunpack.c.h.b16 %v6927
        %v7136 = vunpack.c.l.b16 %v6928
        %v7137 = vunpack.c.l.b16 %v6929
        %v7138 = vunpack.c.h.b16 %v6929
        %v7139 = vunpack.c.l.b16 %v6930
        %v7140 = vunpack.c.l.b16 %v6931
        %v7141 = vunpack.c.h.b16 %v6931
        %v7142 = vunpack.c.l.b16 %v6932
        %v7143 = vunpack.c.l.b16 %v6933
        %v7144 = vunpack.c.h.b16 %v6933
        %v7145 = vunpack.c.l.b16 %v6934
        %v7146 = vunpack.c.l.b16 %v6935
        %v7147 = vunpack.c.h.b16 %v6935
        %v7148 = vunpack.c.l.b16 %v6936
        %v7149 = vunpack.c.l.b16 %v6937
        %v7150 = vunpack.c.h.b16 %v6937
        %v7151 = vunpack.c.l.b16 %v6938
        %v7152 = vunpack.c.l.b16 %v6939
        %v7153 = vunpack.c.h.b16 %v6939
        %v7154 = vunpack.c.l.b16 %v6940
        %v7155 = vunpack.c.l.b16 %v6941
        %v7156 = vunpack.c.h.b16 %v6941
        %v7157 = vunpack.c.l.b16 %v6942
        %v7158 = vunpack.c.l.b16 %v6943
        %v7159 = vunpack.c.h.b16 %v6943
        %v7160 = vunpack.c.l.b16 %v6944
        %v7161 = vunpack.c.l.b16 %v6945
        %v7162 = vunpack.c.h.b16 %v6945
        %v7163 = vunpack.c.l.b16 %v6946
        %v7164 = vunpack.c.l.b16 %v6947
        %v7165 = vunpack.c.h.b16 %v6947
        %v7166 = vunpack.c.l.b16 %v6948
        %v7167 = vunpack.c.l.b16 %v6949
        %v7168 = vunpack.c.h.b16 %v6949
        %v7169 = vunpack.c.l.b16 %v6950
        %v7170 = vunpack.c.l.b16 %v6951
        %v7171 = vunpack.c.h.b16 %v6951
        %v7172 = vunpack.c.l.b16 %v6952
        %v7173 = vunpack.c.l.b16 %v6953
        %v7174 = vunpack.c.h.b16 %v6953
        %v7175 = vunpack.c.l.b16 %v6954
        %v7176 = vunpack.c.l.b16 %v6955
        %v7177 = vunpack.c.h.b16 %v6955
        %v7178 = vunpack.c.l.b16 %v6956
        %v7179 = vunpack.c.l.b16 %v6957
        %v7180 = vunpack.c.h.b16 %v6957
        %v7181 = vunpack.c.l.b16 %v6958
        %v7182 = vunpack.c.l.b16 %v6959
        %v7183 = vunpack.c.h.b16 %v6959
        %v7184 = vunpack.c.l.b16 %v6960
        %v7185 = vunpack.c.l.b16 %v6961
        %v7186 = vunpack.c.h.b16 %v6961
        %v7187 = vunpack.c.l.b16 %v6962
        %v7188 = vunpack.c.l.b16 %v6963
        %v7189 = vunpack.c.h.b16 %v6963
        %v7190 = vunpack.c.l.b16 %v6964
        %v7191 = vunpack.c.l.b16 %v6965
        %v7192 = vunpack.c.h.b16 %v6965
        %v7193 = vunpack.c.l.b16 %v6966
        %v7194 = vunpack.c.l.b16 %v6967
        %v7195 = vunpack.c.h.b16 %v6967
        %v7196 = vunpack.c.l.b16 %v6968
        %v7197 = vunpack.c.l.b16 %v6969
        %v7198 = vunpack.c.h.b16 %v6969
        %v7199 = vunpack.c.l.b16 %v6970
        %v7200 = vunpack.c.l.b16 %v6971
        %v7201 = vunpack.c.h.b16 %v6971
        %v7202 = vunpack.c.l.b16 %v6972
        %v7203 = vunpack.c.l.b16 %v6973
        %v7204 = vunpack.c.h.b16 %v6973
        %v7205 = vunpack.c.l.b16 %v6974
        %v7206 = vunpack.c.l.b16 %v6975
        %v7207 = vunpack.c.h.b16 %v6975
        %v7208 = vunpack.c.l.b16 %v6976
        %v7209 = vunpack.c.l.b16 %v6977
        %v7210 = vunpack.c.h.b16 %v6977
        %v7211 = vunpack.c.l.b16 %v6978
        %v7212 = vunpack.c.l.b16 %v6979
        %v7213 = vunpack.c.h.b16 %v6979
        %v7214 = vunpack.c.l.b16 %v6980
        %v7215 = vunpack.c.l.b16 %v6981
        %v7216 = vunpack.c.h.b16 %v6981
        %v7217 = vunpack.c.l.b16 %v6982
        %v7218 = vunpack.c.l.b16 %v6983
        %v7219 = vunpack.c.h.b16 %v6983
        %v7220 = vunpack.c.l.b16 %v6984
        %v7221 = vunpack.c.l.b16 %v6985
        %v7222 = vunpack.c.h.b16 %v6985
        %v7223 = vunpack.c.l.b16 %v6986
        %v7224 = vunpack.c.l.b16 %v6987
        %v7225 = vunpack.c.h.b16 %v6987
        %v7226 = vunpack.c.l.b16 %v6988
        %v7227 = vunpack.c.l.b16 %v6989
        %v7228 = vunpack.c.h.b16 %v6989
        %v7229 = vunpack.c.l.b16 %v6990
        %v7230 = vunpack.c.l.b16 %v6991
        %v7231 = vunpack.c.h.b16 %v6991
        %v7232 = vunpack.c.l.b16 %v6992
        %v7233 = vunpack.c.l.b16 %v6993
        %v7234 = vunpack.c.h.b16 %v6993
        %v7235 = vunpack.c.l.b16 %v6994
        %v7236 = vunpack.c.l.b16 %v6995
        %v7237 = vunpack.c.h.b16 %v6995
        %v7238 = vunpack.c.l.b16 %v6996
        %v7239 = vunpack.c.l.b16 %v6997
        %v7240 = vunpack.c.h.b16 %v6997
        %v7241 = vunpack.c.l.b16 %v6998
        %v7242 = vunpack.c.l.b16 %v6999
        %v7243 = vunpack.c.h.b16 %v6999
        %v7244 = vunpack.c.l.b16 %v7000
        %v7245 = vunpack.c.l.b16 %v7001
        %v7246 = vunpack.c.h.b16 %v7001
        %v7247 = vunpack.c.l.b16 %v7002
        %v7248 = vunpack.c.l.b16 %v7003
        %v7249 = vunpack.c.h.b16 %v7003
        %v7250 = vunpack.c.l.b16 %v7004
        %v7251 = vunpack.c.l.b16 %v7005
        %v7252 = vunpack.c.h.b16 %v7005
        %v7253 = vunpack.c.l.b16 %v7006
        %v7254 = vunpack.c.l.b16 %v7007
        %v7255 = vunpack.c.h.b16 %v7007
        %v7256 = vunpack.c.l.b16 %v7008
        %v7257 = vpack.c.b16 %v7116, %v7113
        %v7258 = vpack.c.b16 %v7117, %v7114
        %v7259 = vpack.c.b16 %v7118, %v7115
        %v7260 = vpack.c.b16 %v7122, %v7119
        %v7261 = vpack.c.b16 %v7123, %v7120
        %v7262 = vpack.c.b16 %v7124, %v7121
        %v7263 = vpack.c.b16 %v7128, %v7125
        %v7264 = vpack.c.b16 %v7129, %v7126
        %v7265 = vpack.c.b16 %v7130, %v7127
        %v7266 = vpack.c.b16 %v7134, %v7131
        %v7267 = vpack.c.b16 %v7135, %v7132
        %v7268 = vpack.c.b16 %v7136, %v7133
        %v7269 = vpack.c.b16 %v7140, %v7137
        %v7270 = vpack.c.b16 %v7141, %v7138
        %v7271 = vpack.c.b16 %v7142, %v7139
        %v7272 = vpack.c.b16 %v7146, %v7143
        %v7273 = vpack.c.b16 %v7147, %v7144
        %v7274 = vpack.c.b16 %v7148, %v7145
        %v7275 = vpack.c.b16 %v7152, %v7149
        %v7276 = vpack.c.b16 %v7153, %v7150
        %v7277 = vpack.c.b16 %v7154, %v7151
        %v7278 = vpack.c.b16 %v7158, %v7155
        %v7279 = vpack.c.b16 %v7159, %v7156
        %v7280 = vpack.c.b16 %v7160, %v7157
        %v7281 = vpack.c.b16 %v7164, %v7161
        %v7282 = vpack.c.b16 %v7165, %v7162
        %v7283 = vpack.c.b16 %v7166, %v7163
        %v7284 = vpack.c.b16 %v7170, %v7167
        %v7285 = vpack.c.b16 %v7171, %v7168
        %v7286 = vpack.c.b16 %v7172, %v7169
        %v7287 = vpack.c.b16 %v7176, %v7173
        %v7288 = vpack.c.b16 %v7177, %v7174
        %v7289 = vpack.c.b16 %v7178, %v7175
        %v7290 = vpack.c.b16 %v7182, %v7179
        %v7291 = vpack.c.b16 %v7183, %v7180
        %v7292 = vpack.c.b16 %v7184, %v7181
        %v7293 = vpack.c.b16 %v7188, %v7185
        %v7294 = vpack.c.b16 %v7189, %v7186
        %v7295 = vpack.c.b16 %v7190, %v7187
        %v7296 = vpack.c.b16 %v7194, %v7191
        %v7297 = vpack.c.b16 %v7195, %v7192
        %v7298 = vpack.c.b16 %v7196, %v7193
        %v7299 = vpack.c.b16 %v7200, %v7197
        %v7300 = vpack.c.b16 %v7201, %v7198
        %v7301 = vpack.c.b16 %v7202, %v7199
        %v7302 = vpack.c.b16 %v7206, %v7203
        %v7303 = vpack.c.b16 %v7207, %v7204
        %v7304 = vpack.c.b16 %v7208, %v7205
        %v7305 = vpack.c.b16 %v7212, %v7209
        %v7306 = vpack.c.b16 %v7213, %v7210
        %v7307 = vpack.c.b16 %v7214, %v7211
        %v7308 = vpack.c.b16 %v7218, %v7215
        %v7309 = vpack.c.b16 %v7219, %v7216
        %v7310 = vpack.c.b16 %v7220, %v7217
        %v7311 = vpack.c.b16 %v7224, %v7221
        %v7312 = vpack.c.b16 %v7225, %v7222
        %v7313 = vpack.c.b16 %v7226, %v7223
        %v7314 = vpack.c.b16 %v7230, %v7227
        %v7315 = vpack.c.b16 %v7231, %v7228
        %v7316 = vpack.c.b16 %v7232, %v7229
        %v7317 = vpack.c.b16 %v7236, %v7233
        %v7318 = vpack.c.b16 %v7237, %v7234
        %v7319 = vpack.c.b16 %v7238, %v7235
        %v7320 = vpack.c.b16 %v7242, %v7239
        %v7321 = vpack.c.b16 %v7243, %v7240
        %v7322 = vpack.c.b16 %v7244, %v7241
        %v7323 = vpack.c.b16 %v7248, %v7245
        %v7324 = vpack.c.b16 %v7249, %v7246
        %v7325 = vpack.c.b16 %v7250, %v7247
        %v7326 = vpack.c.b16 %v7254, %v7251
        %v7327 = vpack.c.b16 %v7255, %v7252
        %v7328 = vpack.c.b16 %v7256, %v7253
        %7401 = vmatpush.bf16.msra.mxu0 %v7278
        %7402 = vmatpush.bf16.msra.mxu0 %v7275
        %7403 = vmatpush.bf16.msra.mxu0 %v7272
        %7404 = vmatpush.bf16.msra.mxu0 %v7269
        %7405 = vmatpush.bf16.msra.mxu0 %v7266
        %7406 = vmatpush.bf16.msra.mxu0 %v7263
        %7407 = vmatpush.bf16.msra.mxu0 %v7260
        %7408 = vmatpush.bf16.msra.mxu0 %v7257
        %7409 = vmatmul.bf16.gmra.mxu0 %v6910
        %v7410 = vpop.f32.mrf.mxu0
        %v7411 = vadd.f32 %v7011, %v7410
        %v7412 = vpop.f32.mrf.mxu0
        %7413 = vdwg.mxu0
        %7414 = vmatpush.bf16.msra.mxu0 %v7302
        %7415 = vmatpush.bf16.msra.mxu0 %v7299
        %7416 = vmatpush.bf16.msra.mxu0 %v7296
        %7417 = vmatpush.bf16.msra.mxu0 %v7293
        %7418 = vmatpush.bf16.msra.mxu0 %v7290
        %7419 = vmatpush.bf16.msra.mxu0 %v7287
        %7420 = vmatpush.bf16.msra.mxu0 %v7284
        %7421 = vmatpush.bf16.msra.mxu0 %v7281
        %7422 = vmatmul.bf16.gmra.mxu0 %v6911
        %v7423 = vpop.f32.mrf.mxu0
        %v7424 = vadd.f32 %v7411, %v7423
        %v7425 = vpop.f32.mrf.mxu0
        %7426 = vdwg.mxu0
        %7427 = vmatpush.bf16.msra.mxu0 %v7326
        %7428 = vmatpush.bf16.msra.mxu0 %v7323
        %7429 = vmatpush.bf16.msra.mxu0 %v7320
        %7430 = vmatpush.bf16.msra.mxu0 %v7317
        %7431 = vmatpush.bf16.msra.mxu0 %v7314
        %7432 = vmatpush.bf16.msra.mxu0 %v7311
        %7433 = vmatpush.bf16.msra.mxu0 %v7308
        %7434 = vmatpush.bf16.msra.mxu0 %v7305
        %7435 = vmatmul.bf16.gmra.mxu0 %v6912
        %v7436 = vpop.f32.mrf.mxu0
        %v7437 = vadd.f32 %v7424, %v7436
        %v7438 = vpop.f32.mrf.mxu0
        %7439 = vdwg.mxu0
        %7440 = vmatpush.bf16.msra.mxu0 %v7279
        %7441 = vmatpush.bf16.msra.mxu0 %v7276
        %7442 = vmatpush.bf16.msra.mxu0 %v7273
        %7443 = vmatpush.bf16.msra.mxu0 %v7270
        %7444 = vmatpush.bf16.msra.mxu0 %v7267
        %7445 = vmatpush.bf16.msra.mxu0 %v7264
        %7446 = vmatpush.bf16.msra.mxu0 %v7261
        %7447 = vmatpush.bf16.msra.mxu0 %v7258
        %7448 = vmatmul.bf16.gmra.mxu0 %v6910
        %v7449 = vpop.f32.mrf.mxu0
        %v7450 = vadd.f32 %v7012, %v7449
        %v7451 = vpop.f32.mrf.mxu0
        %7452 = vdwg.mxu0
        %7453 = vmatpush.bf16.msra.mxu0 %v7303
        %7454 = vmatpush.bf16.msra.mxu0 %v7300
        %7455 = vmatpush.bf16.msra.mxu0 %v7297
        %7456 = vmatpush.bf16.msra.mxu0 %v7294
        %7457 = vmatpush.bf16.msra.mxu0 %v7291
        %7458 = vmatpush.bf16.msra.mxu0 %v7288
        %7459 = vmatpush.bf16.msra.mxu0 %v7285
        %7460 = vmatpush.bf16.msra.mxu0 %v7282
        %7461 = vmatmul.bf16.gmra.mxu0 %v6911
        %v7462 = vpop.f32.mrf.mxu0
        %v7463 = vadd.f32 %v7450, %v7462
        %v7464 = vpop.f32.mrf.mxu0
        %7465 = vdwg.mxu0
        %7466 = vmatpush.bf16.msra.mxu0 %v7327
        %7467 = vmatpush.bf16.msra.mxu0 %v7324
        %7468 = vmatpush.bf16.msra.mxu0 %v7321
        %7469 = vmatpush.bf16.msra.mxu0 %v7318
        %7470 = vmatpush.bf16.msra.mxu0 %v7315
        %7471 = vmatpush.bf16.msra.mxu0 %v7312
        %7472 = vmatpush.bf16.msra.mxu0 %v7309
        %7473 = vmatpush.bf16.msra.mxu0 %v7306
        %7474 = vmatmul.bf16.gmra.mxu0 %v6912
        %v7475 = vpop.f32.mrf.mxu0
        %v7476 = vadd.f32 %v7463, %v7475
        %v7477 = vpop.f32.mrf.mxu0
        %7478 = vdwg.mxu0
        %7479 = vmatpush.bf16.msra.mxu0 %v7280
        %7480 = vmatpush.bf16.msra.mxu0 %v7277
        %7481 = vmatpush.bf16.msra.mxu0 %v7274
        %7482 = vmatpush.bf16.msra.mxu0 %v7271
        %7483 = vmatpush.bf16.msra.mxu0 %v7268
        %7484 = vmatpush.bf16.msra.mxu0 %v7265
        %7485 = vmatpush.bf16.msra.mxu0 %v7262
        %7486 = vmatpush.bf16.msra.mxu0 %v7259
        %7487 = vmatmul.bf16.gmra.mxu0 %v6910
        %v7488 = vpop.f32.mrf.mxu0
        %v7489 = vadd.f32 %v7013, %v7488
        %v7490 = vpop.f32.mrf.mxu0
        %7491 = vdwg.mxu0
        %7492 = vmatpush.bf16.msra.mxu0 %v7304
        %7493 = vmatpush.bf16.msra.mxu0 %v7301
        %7494 = vmatpush.bf16.msra.mxu0 %v7298
        %7495 = vmatpush.bf16.msra.mxu0 %v7295
        %7496 = vmatpush.bf16.msra.mxu0 %v7292
        %7497 = vmatpush.bf16.msra.mxu0 %v7289
        %7498 = vmatpush.bf16.msra.mxu0 %v7286
        %7499 = vmatpush.bf16.msra.mxu0 %v7283
        %7500 = vmatmul.bf16.gmra.mxu0 %v6911
        %v7501 = vpop.f32.mrf.mxu0
        %v7502 = vadd.f32 %v7489, %v7501
        %v7503 = vpop.f32.mrf.mxu0
        %7504 = vdwg.mxu0
        %7505 = vmatpush.bf16.msra.mxu0 %v7328
        %7506 = vmatpush.bf16.msra.mxu0 %v7325
        %7507 = vmatpush.bf16.msra.mxu0 %v7322
        %7508 = vmatpush.bf16.msra.mxu0 %v7319
        %7509 = vmatpush.bf16.msra.mxu0 %v7316
        %7510 = vmatpush.bf16.msra.mxu0 %v7313
        %7511 = vmatpush.bf16.msra.mxu0 %v7310
        %7512 = vmatpush.bf16.msra.mxu0 %v7307
        %7513 = vmatmul.bf16.gmra.mxu0 %v6912
        %v7514 = vpop.f32.mrf.mxu0
        %v7515 = vadd.f32 %v7502, %v7514
        %v7516 = vpop.f32.mrf.mxu0
        %7517 = vdwg.mxu0
        %v7518 = vsel %vm741, 1, 0
        %vm7519 = vcmp.eq.s32.totalorder %v7518, 1
        %v7520 = vsel %vm7519, -32752.0, %v7437
        %v7521 = vsel %vm7519, -32752.0, %v7476
        %v7522 = vsel %vm7519, -32752.0, %v7515
        %v7523 = vrot.slane %v7520, 4
        %v7524 = vmax.f32 %v7520, %v7523
        %v7525 = vrot.slane %v7524, 2
        %v7526 = vmax.f32 %v7524, %v7525
        %v7527 = vrot.slane %v7526, 1
        %v7528 = vmax.f32 %v7526, %v7527
        %v7529 = vrot.slane %v7521, 4
        %v7530 = vmax.f32 %v7521, %v7529
        %v7531 = vrot.slane %v7530, 2
        %v7532 = vmax.f32 %v7530, %v7531
        %v7533 = vrot.slane %v7532, 1
        %v7534 = vmax.f32 %v7532, %v7533
        %v7535 = vrot.slane %v7522, 4
        %v7536 = vmax.f32 %v7522, %v7535
        %v7537 = vrot.slane %v7536, 2
        %v7538 = vmax.f32 %v7536, %v7537
        %v7539 = vrot.slane %v7538, 1
        %v7540 = vmax.f32 %v7538, %v7539
        %v7541 = vsub.f32 %v7520, %v7528
        %v7542 = vsub.f32 %v7521, %v7534
        %v7543 = vsub.f32 %v7522, %v7540
        %v7544 = vmul.f32 %v7541, 1.442695
        %v7545 = vpow.pop %v7544
        %v7546 = vmul.f32 %v7542, 1.442695
        %v7547 = vpow.pop %v7546
        %v7548 = vmul.f32 %v7543, 1.442695
        %v7549 = vpow.pop %v7548
        %v7550 = vrot.slane %v7545, 4
        %v7551 = vadd.f32 %v7545, %v7550
        %v7552 = vrot.slane %v7551, 2
        %v7553 = vadd.f32 %v7551, %v7552
        %v7554 = vrot.slane %v7553, 1
        %v7555 = vadd.f32 %v7553, %v7554
        %v7556 = vrot.slane %v7547, 4
        %v7557 = vadd.f32 %v7547, %v7556
        %v7558 = vrot.slane %v7557, 2
        %v7559 = vadd.f32 %v7557, %v7558
        %v7560 = vrot.slane %v7559, 1
        %v7561 = vadd.f32 %v7559, %v7560
        %v7562 = vrot.slane %v7549, 4
        %v7563 = vadd.f32 %v7549, %v7562
        %v7564 = vrot.slane %v7563, 2
        %v7565 = vadd.f32 %v7563, %v7564
        %v7566 = vrot.slane %v7565, 1
        %v7567 = vadd.f32 %v7565, %v7566
        %v7568 = vrcp.pop %v7555
        %v7569 = vmul.f32 %v7555, %v7568
        %v7570 = vsub.f32 1.0, %v7569
        %v7571 = vmul.f32 %v7568, %v7570
        %v7572 = vadd.f32 %v7568, %v7571
        %vm7573 = vweird.f32 %v7555
        %vm7574 = vweird.f32 %v7568
        %vm7575 = vmor %vm7573, %vm7574
        %v7576 = vsel %vm7575, %v7568, %v7572
        %v7577 = vand.u32 2147483647, %v7555
        %vm7578 = vcmp.eq.f32.partialorder %v7577, 8.507059e+37
        %v7579 = vand.u32 %v7555, 2147483648
        %v7580 = vor.u32 1.1754944e-38, %v7579
        %v7581 = vsel %vm7578, %v7580, %v7576
        %v7582 = vmul.f32 %v7545, %v7581
        %v7583 = vrcp.pop %v7561
        %v7584 = vmul.f32 %v7561, %v7583
        %v7585 = vsub.f32 1.0, %v7584
        %v7586 = vmul.f32 %v7583, %v7585
        %v7587 = vadd.f32 %v7583, %v7586
        %vm7588 = vweird.f32 %v7561
        %vm7589 = vweird.f32 %v7583
        %vm7590 = vmor %vm7588, %vm7589
        %v7591 = vsel %vm7590, %v7583, %v7587
        %v7592 = vand.u32 2147483647, %v7561
        %vm7593 = vcmp.eq.f32.partialorder %v7592, 8.507059e+37
        %v7594 = vand.u32 %v7561, 2147483648
        %v7595 = vor.u32 1.1754944e-38, %v7594
        %v7596 = vsel %vm7593, %v7595, %v7591
        %v7597 = vmul.f32 %v7547, %v7596
        %v7598 = vrcp.pop %v7567
        %v7599 = vmul.f32 %v7567, %v7598
        %v7600 = vsub.f32 1.0, %v7599
        %v7601 = vmul.f32 %v7598, %v7600
        %v7602 = vadd.f32 %v7598, %v7601
        %vm7603 = vweird.f32 %v7567
        %vm7604 = vweird.f32 %v7598
        %vm7605 = vmor %vm7603, %vm7604
        %v7606 = vsel %vm7605, %v7598, %v7602
        %v7607 = vand.u32 2147483647, %v7567
        %vm7608 = vcmp.eq.f32.partialorder %v7607, 8.507059e+37
        %v7609 = vand.u32 %v7567, 2147483648
        %v7610 = vor.u32 1.1754944e-38, %v7609
        %v7611 = vsel %vm7608, %v7610, %v7606
        %v7612 = vmul.f32 %v7549, %v7611
        %v7613 = vmul.f32 %v7582, %v5549
        %v7614 = vmul.f32 %v7597, %v5550
        %v7615 = vmul.f32 %v7612, %v5551
        %v7616 = vrot.slane %v7613, 4
        %v7617 = vadd.f32 %v7613, %v7616
        %v7618 = vrot.slane %v7617, 2
        %v7619 = vadd.f32 %v7617, %v7618
        %v7620 = vrot.slane %v7619, 1
        %v7621 = vadd.f32 %v7619, %v7620
        %v7622 = vrot.slane %v7614, 4
        %v7623 = vadd.f32 %v7614, %v7622
        %v7624 = vrot.slane %v7623, 2
        %v7625 = vadd.f32 %v7623, %v7624
        %v7626 = vrot.slane %v7625, 1
        %v7627 = vadd.f32 %v7625, %v7626
        %v7628 = vrot.slane %v7615, 4
        %v7629 = vadd.f32 %v7615, %v7628
        %v7630 = vrot.slane %v7629, 2
        %v7631 = vadd.f32 %v7629, %v7630
        %v7632 = vrot.slane %v7631, 1
        %v7633 = vadd.f32 %v7631, %v7632
        %v7634 = vpack.c.bf16 %v6907, %v6907
        %v7635 = vpack.c.bf16 %v6908, %v6908
        %v7636 = vpack.c.bf16 %v6909, %v6909
        %s7637 = scalar_lea.vmem %s21, 576
        %v7638 = vld [vmem:[%s7637] sm:$0xff]
        %v7639 = vld [vmem:[%s7637 + $0x8] sm:$0xf]
        %v7640 = vld [vmem:[%s7637 + $0xc] sm:$0xff]
        %v7641 = vld [vmem:[%s7637 + $0x14] sm:$0xf]
        %v7642 = vld [vmem:[%s7637 + $0x18] sm:$0xff]
        %v7643 = vld [vmem:[%s7637 + $0x20] sm:$0xf]
        %v7644 = vld [vmem:[%s7637 + $0x24] sm:$0xff]
        %v7645 = vld [vmem:[%s7637 + $0x2c] sm:$0xf]
        %v7646 = vld [vmem:[%s7637 + $0x30] sm:$0xff]
        %v7647 = vld [vmem:[%s7637 + $0x38] sm:$0xf]
        %v7648 = vld [vmem:[%s7637 + $0x3c] sm:$0xff]
        %v7649 = vld [vmem:[%s7637 + $0x44] sm:$0xf]
        %v7650 = vld [vmem:[%s7637 + $0x48] sm:$0xff]
        %v7651 = vld [vmem:[%s7637 + $0x50] sm:$0xf]
        %v7652 = vld [vmem:[%s7637 + $0x54] sm:$0xff]
        %v7653 = vld [vmem:[%s7637 + $0x5c] sm:$0xf]
        %v7654 = vld [vmem:[%s7637 + $0x60] sm:$0xff]
        %v7655 = vld [vmem:[%s7637 + $0x68] sm:$0xf]
        %v7656 = vld [vmem:[%s7637 + $0x6c] sm:$0xff]
        %v7657 = vld [vmem:[%s7637 + $0x74] sm:$0xf]
        %v7658 = vld [vmem:[%s7637 + $0x78] sm:$0xff]
        %v7659 = vld [vmem:[%s7637 + $0x80] sm:$0xf]
        %v7660 = vld [vmem:[%s7637 + $0x84] sm:$0xff]
        %v7661 = vld [vmem:[%s7637 + $0x8c] sm:$0xf]
        %v7662 = vld [vmem:[%s7637 + $0x90] sm:$0xff]
        %v7663 = vld [vmem:[%s7637 + $0x98] sm:$0xf]
        %v7664 = vld [vmem:[%s7637 + $0x9c] sm:$0xff]
        %v7665 = vld [vmem:[%s7637 + $0xa4] sm:$0xf]
        %v7666 = vld [vmem:[%s7637 + $0xa8] sm:$0xff]
        %v7667 = vld [vmem:[%s7637 + $0xb0] sm:$0xf]
        %v7668 = vld [vmem:[%s7637 + $0xb4] sm:$0xff]
        %v7669 = vld [vmem:[%s7637 + $0xbc] sm:$0xf]
        %v7670 = vld [vmem:[%s7637 + $0xc0] sm:$0xff]
        %v7671 = vld [vmem:[%s7637 + $0xc8] sm:$0xf]
        %v7672 = vld [vmem:[%s7637 + $0xcc] sm:$0xff]
        %v7673 = vld [vmem:[%s7637 + $0xd4] sm:$0xf]
        %v7674 = vld [vmem:[%s7637 + $0xd8] sm:$0xff]
        %v7675 = vld [vmem:[%s7637 + $0xe0] sm:$0xf]
        %v7676 = vld [vmem:[%s7637 + $0xe4] sm:$0xff]
        %v7677 = vld [vmem:[%s7637 + $0xec] sm:$0xf]
        %v7678 = vld [vmem:[%s7637 + $0xf0] sm:$0xff]
        %v7679 = vld [vmem:[%s7637 + $0xf8] sm:$0xf]
        %v7680 = vld [vmem:[%s7637 + $0xfc] sm:$0xff]
        %v7681 = vld [vmem:[%s7637 + $0x104] sm:$0xf]
        %v7682 = vld [vmem:[%s7637 + $0x108] sm:$0xff]
        %v7683 = vld [vmem:[%s7637 + $0x110] sm:$0xf]
        %v7684 = vld [vmem:[%s7637 + $0x114] sm:$0xff]
        %v7685 = vld [vmem:[%s7637 + $0x11c] sm:$0xf]
        %v7686 = vld [vmem:[%s7637 + $0x120] sm:$0xff]
        %v7687 = vld [vmem:[%s7637 + $0x128] sm:$0xf]
        %v7688 = vld [vmem:[%s7637 + $0x12c] sm:$0xff]
        %v7689 = vld [vmem:[%s7637 + $0x134] sm:$0xf]
        %v7690 = vld [vmem:[%s7637 + $0x138] sm:$0xff]
        %v7691 = vld [vmem:[%s7637 + $0x140] sm:$0xf]
        %v7692 = vld [vmem:[%s7637 + $0x144] sm:$0xff]
        %v7693 = vld [vmem:[%s7637 + $0x14c] sm:$0xf]
        %v7694 = vld [vmem:[%s7637 + $0x150] sm:$0xff]
        %v7695 = vld [vmem:[%s7637 + $0x158] sm:$0xf]
        %v7696 = vld [vmem:[%s7637 + $0x15c] sm:$0xff]
        %v7697 = vld [vmem:[%s7637 + $0x164] sm:$0xf]
        %v7698 = vld [vmem:[%s7637 + $0x168] sm:$0xff]
        %v7699 = vld [vmem:[%s7637 + $0x170] sm:$0xf]
        %v7700 = vld [vmem:[%s7637 + $0x174] sm:$0xff]
        %v7701 = vld [vmem:[%s7637 + $0x17c] sm:$0xf]
        %v7702 = vld [vmem:[%s7637 + $0x180] sm:$0xff]
        %v7703 = vld [vmem:[%s7637 + $0x188] sm:$0xf]
        %v7704 = vld [vmem:[%s7637 + $0x18c] sm:$0xff]
        %v7705 = vld [vmem:[%s7637 + $0x194] sm:$0xf]
        %v7706 = vld [vmem:[%s7637 + $0x198] sm:$0xff]
        %v7707 = vld [vmem:[%s7637 + $0x1a0] sm:$0xf]
        %v7708 = vld [vmem:[%s7637 + $0x1a4] sm:$0xff]
        %v7709 = vld [vmem:[%s7637 + $0x1ac] sm:$0xf]
        %v7710 = vld [vmem:[%s7637 + $0x1b0] sm:$0xff]
        %v7711 = vld [vmem:[%s7637 + $0x1b8] sm:$0xf]
        %v7712 = vld [vmem:[%s7637 + $0x1bc] sm:$0xff]
        %v7713 = vld [vmem:[%s7637 + $0x1c4] sm:$0xf]
        %v7714 = vld [vmem:[%s7637 + $0x1c8] sm:$0xff]
        %v7715 = vld [vmem:[%s7637 + $0x1d0] sm:$0xf]
        %v7716 = vld [vmem:[%s7637 + $0x1d4] sm:$0xff]
        %v7717 = vld [vmem:[%s7637 + $0x1dc] sm:$0xf]
        %v7718 = vld [vmem:[%s7637 + $0x1e0] sm:$0xff]
        %v7719 = vld [vmem:[%s7637 + $0x1e8] sm:$0xf]
        %v7720 = vld [vmem:[%s7637 + $0x1ec] sm:$0xff]
        %v7721 = vld [vmem:[%s7637 + $0x1f4] sm:$0xf]
        %v7722 = vld [vmem:[%s7637 + $0x1f8] sm:$0xff]
        %v7723 = vld [vmem:[%s7637 + $0x200] sm:$0xf]
        %v7724 = vld [vmem:[%s7637 + $0x204] sm:$0xff]
        %v7725 = vld [vmem:[%s7637 + $0x20c] sm:$0xf]
        %v7726 = vld [vmem:[%s7637 + $0x210] sm:$0xff]
        %v7727 = vld [vmem:[%s7637 + $0x218] sm:$0xf]
        %v7728 = vld [vmem:[%s7637 + $0x21c] sm:$0xff]
        %v7729 = vld [vmem:[%s7637 + $0x224] sm:$0xf]
        %v7730 = vld [vmem:[%s7637 + $0x228] sm:$0xff]
        %v7731 = vld [vmem:[%s7637 + $0x230] sm:$0xf]
        %v7732 = vld [vmem:[%s7637 + $0x234] sm:$0xff]
        %v7733 = vld [vmem:[%s7637 + $0x23c] sm:$0xf]
        %s7734 = scalar_lea.vmem %s22, 3
        %v7735 = vld [vmem:[%s7734] sm:$0x7]
        %v7737 = vperm.slane %v7735, 0
        %v7738 = vperm.slane %v7735, 1
        %v7739 = vperm.slane %v7735, 2
        %v7839 = vunpack.c.l.b16 %v7638
        %v7840 = vunpack.c.h.b16 %v7638
        %v7841 = vunpack.c.l.b16 %v7639
        %v7842 = vunpack.c.l.b16 %v7640
        %v7843 = vunpack.c.h.b16 %v7640
        %v7844 = vunpack.c.l.b16 %v7641
        %v7845 = vunpack.c.l.b16 %v7642
        %v7846 = vunpack.c.h.b16 %v7642
        %v7847 = vunpack.c.l.b16 %v7643
        %v7848 = vunpack.c.l.b16 %v7644
        %v7849 = vunpack.c.h.b16 %v7644
        %v7850 = vunpack.c.l.b16 %v7645
        %v7851 = vunpack.c.l.b16 %v7646
        %v7852 = vunpack.c.h.b16 %v7646
        %v7853 = vunpack.c.l.b16 %v7647
        %v7854 = vunpack.c.l.b16 %v7648
        %v7855 = vunpack.c.h.b16 %v7648
        %v7856 = vunpack.c.l.b16 %v7649
        %v7857 = vunpack.c.l.b16 %v7650
        %v7858 = vunpack.c.h.b16 %v7650
        %v7859 = vunpack.c.l.b16 %v7651
        %v7860 = vunpack.c.l.b16 %v7652
        %v7861 = vunpack.c.h.b16 %v7652
        %v7862 = vunpack.c.l.b16 %v7653
        %v7863 = vunpack.c.l.b16 %v7654
        %v7864 = vunpack.c.h.b16 %v7654
        %v7865 = vunpack.c.l.b16 %v7655
        %v7866 = vunpack.c.l.b16 %v7656
        %v7867 = vunpack.c.h.b16 %v7656
        %v7868 = vunpack.c.l.b16 %v7657
        %v7869 = vunpack.c.l.b16 %v7658
        %v7870 = vunpack.c.h.b16 %v7658
        %v7871 = vunpack.c.l.b16 %v7659
        %v7872 = vunpack.c.l.b16 %v7660
        %v7873 = vunpack.c.h.b16 %v7660
        %v7874 = vunpack.c.l.b16 %v7661
        %v7875 = vunpack.c.l.b16 %v7662
        %v7876 = vunpack.c.h.b16 %v7662
        %v7877 = vunpack.c.l.b16 %v7663
        %v7878 = vunpack.c.l.b16 %v7664
        %v7879 = vunpack.c.h.b16 %v7664
        %v7880 = vunpack.c.l.b16 %v7665
        %v7881 = vunpack.c.l.b16 %v7666
        %v7882 = vunpack.c.h.b16 %v7666
        %v7883 = vunpack.c.l.b16 %v7667
        %v7884 = vunpack.c.l.b16 %v7668
        %v7885 = vunpack.c.h.b16 %v7668
        %v7886 = vunpack.c.l.b16 %v7669
        %v7887 = vunpack.c.l.b16 %v7670
        %v7888 = vunpack.c.h.b16 %v7670
        %v7889 = vunpack.c.l.b16 %v7671
        %v7890 = vunpack.c.l.b16 %v7672
        %v7891 = vunpack.c.h.b16 %v7672
        %v7892 = vunpack.c.l.b16 %v7673
        %v7893 = vunpack.c.l.b16 %v7674
        %v7894 = vunpack.c.h.b16 %v7674
        %v7895 = vunpack.c.l.b16 %v7675
        %v7896 = vunpack.c.l.b16 %v7676
        %v7897 = vunpack.c.h.b16 %v7676
        %v7898 = vunpack.c.l.b16 %v7677
        %v7899 = vunpack.c.l.b16 %v7678
        %v7900 = vunpack.c.h.b16 %v7678
        %v7901 = vunpack.c.l.b16 %v7679
        %v7902 = vunpack.c.l.b16 %v7680
        %v7903 = vunpack.c.h.b16 %v7680
        %v7904 = vunpack.c.l.b16 %v7681
        %v7905 = vunpack.c.l.b16 %v7682
        %v7906 = vunpack.c.h.b16 %v7682
        %v7907 = vunpack.c.l.b16 %v7683
        %v7908 = vunpack.c.l.b16 %v7684
        %v7909 = vunpack.c.h.b16 %v7684
        %v7910 = vunpack.c.l.b16 %v7685
        %v7911 = vunpack.c.l.b16 %v7686
        %v7912 = vunpack.c.h.b16 %v7686
        %v7913 = vunpack.c.l.b16 %v7687
        %v7914 = vunpack.c.l.b16 %v7688
        %v7915 = vunpack.c.h.b16 %v7688
        %v7916 = vunpack.c.l.b16 %v7689
        %v7917 = vunpack.c.l.b16 %v7690
        %v7918 = vunpack.c.h.b16 %v7690
        %v7919 = vunpack.c.l.b16 %v7691
        %v7920 = vunpack.c.l.b16 %v7692
        %v7921 = vunpack.c.h.b16 %v7692
        %v7922 = vunpack.c.l.b16 %v7693
        %v7923 = vunpack.c.l.b16 %v7694
        %v7924 = vunpack.c.h.b16 %v7694
        %v7925 = vunpack.c.l.b16 %v7695
        %v7926 = vunpack.c.l.b16 %v7696
        %v7927 = vunpack.c.h.b16 %v7696
        %v7928 = vunpack.c.l.b16 %v7697
        %v7929 = vunpack.c.l.b16 %v7698
        %v7930 = vunpack.c.h.b16 %v7698
        %v7931 = vunpack.c.l.b16 %v7699
        %v7932 = vunpack.c.l.b16 %v7700
        %v7933 = vunpack.c.h.b16 %v7700
        %v7934 = vunpack.c.l.b16 %v7701
        %v7935 = vunpack.c.l.b16 %v7702
        %v7936 = vunpack.c.h.b16 %v7702
        %v7937 = vunpack.c.l.b16 %v7703
        %v7938 = vunpack.c.l.b16 %v7704
        %v7939 = vunpack.c.h.b16 %v7704
        %v7940 = vunpack.c.l.b16 %v7705
        %v7941 = vunpack.c.l.b16 %v7706
        %v7942 = vunpack.c.h.b16 %v7706
        %v7943 = vunpack.c.l.b16 %v7707
        %v7944 = vunpack.c.l.b16 %v7708
        %v7945 = vunpack.c.h.b16 %v7708
        %v7946 = vunpack.c.l.b16 %v7709
        %v7947 = vunpack.c.l.b16 %v7710
        %v7948 = vunpack.c.h.b16 %v7710
        %v7949 = vunpack.c.l.b16 %v7711
        %v7950 = vunpack.c.l.b16 %v7712
        %v7951 = vunpack.c.h.b16 %v7712
        %v7952 = vunpack.c.l.b16 %v7713
        %v7953 = vunpack.c.l.b16 %v7714
        %v7954 = vunpack.c.h.b16 %v7714
        %v7955 = vunpack.c.l.b16 %v7715
        %v7956 = vunpack.c.l.b16 %v7716
        %v7957 = vunpack.c.h.b16 %v7716
        %v7958 = vunpack.c.l.b16 %v7717
        %v7959 = vunpack.c.l.b16 %v7718
        %v7960 = vunpack.c.h.b16 %v7718
        %v7961 = vunpack.c.l.b16 %v7719
        %v7962 = vunpack.c.l.b16 %v7720
        %v7963 = vunpack.c.h.b16 %v7720
        %v7964 = vunpack.c.l.b16 %v7721
        %v7965 = vunpack.c.l.b16 %v7722
        %v7966 = vunpack.c.h.b16 %v7722
        %v7967 = vunpack.c.l.b16 %v7723
        %v7968 = vunpack.c.l.b16 %v7724
        %v7969 = vunpack.c.h.b16 %v7724
        %v7970 = vunpack.c.l.b16 %v7725
        %v7971 = vunpack.c.l.b16 %v7726
        %v7972 = vunpack.c.h.b16 %v7726
        %v7973 = vunpack.c.l.b16 %v7727
        %v7974 = vunpack.c.l.b16 %v7728
        %v7975 = vunpack.c.h.b16 %v7728
        %v7976 = vunpack.c.l.b16 %v7729
        %v7977 = vunpack.c.l.b16 %v7730
        %v7978 = vunpack.c.h.b16 %v7730
        %v7979 = vunpack.c.l.b16 %v7731
        %v7980 = vunpack.c.l.b16 %v7732
        %v7981 = vunpack.c.h.b16 %v7732
        %v7982 = vunpack.c.l.b16 %v7733
        %v7983 = vpack.c.b16 %v7842, %v7839
        %v7984 = vpack.c.b16 %v7843, %v7840
        %v7985 = vpack.c.b16 %v7844, %v7841
        %v7986 = vpack.c.b16 %v7848, %v7845
        %v7987 = vpack.c.b16 %v7849, %v7846
        %v7988 = vpack.c.b16 %v7850, %v7847
        %v7989 = vpack.c.b16 %v7854, %v7851
        %v7990 = vpack.c.b16 %v7855, %v7852
        %v7991 = vpack.c.b16 %v7856, %v7853
        %v7992 = vpack.c.b16 %v7860, %v7857
        %v7993 = vpack.c.b16 %v7861, %v7858
        %v7994 = vpack.c.b16 %v7862, %v7859
        %v7995 = vpack.c.b16 %v7866, %v7863
        %v7996 = vpack.c.b16 %v7867, %v7864
        %v7997 = vpack.c.b16 %v7868, %v7865
        %v7998 = vpack.c.b16 %v7872, %v7869
        %v7999 = vpack.c.b16 %v7873, %v7870
        %v8000 = vpack.c.b16 %v7874, %v7871
        %v8001 = vpack.c.b16 %v7878, %v7875
        %v8002 = vpack.c.b16 %v7879, %v7876
        %v8003 = vpack.c.b16 %v7880, %v7877
        %v8004 = vpack.c.b16 %v7884, %v7881
        %v8005 = vpack.c.b16 %v7885, %v7882
        %v8006 = vpack.c.b16 %v7886, %v7883
        %v8007 = vpack.c.b16 %v7890, %v7887
        %v8008 = vpack.c.b16 %v7891, %v7888
        %v8009 = vpack.c.b16 %v7892, %v7889
        %v8010 = vpack.c.b16 %v7896, %v7893
        %v8011 = vpack.c.b16 %v7897, %v7894
        %v8012 = vpack.c.b16 %v7898, %v7895
        %v8013 = vpack.c.b16 %v7902, %v7899
        %v8014 = vpack.c.b16 %v7903, %v7900
        %v8015 = vpack.c.b16 %v7904, %v7901
        %v8016 = vpack.c.b16 %v7908, %v7905
        %v8017 = vpack.c.b16 %v7909, %v7906
        %v8018 = vpack.c.b16 %v7910, %v7907
        %v8019 = vpack.c.b16 %v7914, %v7911
        %v8020 = vpack.c.b16 %v7915, %v7912
        %v8021 = vpack.c.b16 %v7916, %v7913
        %v8022 = vpack.c.b16 %v7920, %v7917
        %v8023 = vpack.c.b16 %v7921, %v7918
        %v8024 = vpack.c.b16 %v7922, %v7919
        %v8025 = vpack.c.b16 %v7926, %v7923
        %v8026 = vpack.c.b16 %v7927, %v7924
        %v8027 = vpack.c.b16 %v7928, %v7925
        %v8028 = vpack.c.b16 %v7932, %v7929
        %v8029 = vpack.c.b16 %v7933, %v7930
        %v8030 = vpack.c.b16 %v7934, %v7931
        %v8031 = vpack.c.b16 %v7938, %v7935
        %v8032 = vpack.c.b16 %v7939, %v7936
        %v8033 = vpack.c.b16 %v7940, %v7937
        %v8034 = vpack.c.b16 %v7944, %v7941
        %v8035 = vpack.c.b16 %v7945, %v7942
        %v8036 = vpack.c.b16 %v7946, %v7943
        %v8037 = vpack.c.b16 %v7950, %v7947
        %v8038 = vpack.c.b16 %v7951, %v7948
        %v8039 = vpack.c.b16 %v7952, %v7949
        %v8040 = vpack.c.b16 %v7956, %v7953
        %v8041 = vpack.c.b16 %v7957, %v7954
        %v8042 = vpack.c.b16 %v7958, %v7955
        %v8043 = vpack.c.b16 %v7962, %v7959
        %v8044 = vpack.c.b16 %v7963, %v7960
        %v8045 = vpack.c.b16 %v7964, %v7961
        %v8046 = vpack.c.b16 %v7968, %v7965
        %v8047 = vpack.c.b16 %v7969, %v7966
        %v8048 = vpack.c.b16 %v7970, %v7967
        %v8049 = vpack.c.b16 %v7974, %v7971
        %v8050 = vpack.c.b16 %v7975, %v7972
        %v8051 = vpack.c.b16 %v7976, %v7973
        %v8052 = vpack.c.b16 %v7980, %v7977
        %v8053 = vpack.c.b16 %v7981, %v7978
        %v8054 = vpack.c.b16 %v7982, %v7979
        %8127 = vmatpush.bf16.msra.mxu0 %v8004
        %8128 = vmatpush.bf16.msra.mxu0 %v8001
        %8129 = vmatpush.bf16.msra.mxu0 %v7998
        %8130 = vmatpush.bf16.msra.mxu0 %v7995
        %8131 = vmatpush.bf16.msra.mxu0 %v7992
        %8132 = vmatpush.bf16.msra.mxu0 %v7989
        %8133 = vmatpush.bf16.msra.mxu0 %v7986
        %8134 = vmatpush.bf16.msra.mxu0 %v7983
        %8135 = vmatmul.bf16.gmra.mxu0 %v7634
        %v8136 = vpop.f32.mrf.mxu0
        %v8137 = vadd.f32 %v7737, %v8136
        %v8138 = vpop.f32.mrf.mxu0
        %8139 = vdwg.mxu0
        %8140 = vmatpush.bf16.msra.mxu0 %v8028
        %8141 = vmatpush.bf16.msra.mxu0 %v8025
        %8142 = vmatpush.bf16.msra.mxu0 %v8022
        %8143 = vmatpush.bf16.msra.mxu0 %v8019
        %8144 = vmatpush.bf16.msra.mxu0 %v8016
        %8145 = vmatpush.bf16.msra.mxu0 %v8013
        %8146 = vmatpush.bf16.msra.mxu0 %v8010
        %8147 = vmatpush.bf16.msra.mxu0 %v8007
        %8148 = vmatmul.bf16.gmra.mxu0 %v7635
        %v8149 = vpop.f32.mrf.mxu0
        %v8150 = vadd.f32 %v8137, %v8149
        %v8151 = vpop.f32.mrf.mxu0
        %8152 = vdwg.mxu0
        %8153 = vmatpush.bf16.msra.mxu0 %v8052
        %8154 = vmatpush.bf16.msra.mxu0 %v8049
        %8155 = vmatpush.bf16.msra.mxu0 %v8046
        %8156 = vmatpush.bf16.msra.mxu0 %v8043
        %8157 = vmatpush.bf16.msra.mxu0 %v8040
        %8158 = vmatpush.bf16.msra.mxu0 %v8037
        %8159 = vmatpush.bf16.msra.mxu0 %v8034
        %8160 = vmatpush.bf16.msra.mxu0 %v8031
        %8161 = vmatmul.bf16.gmra.mxu0 %v7636
        %v8162 = vpop.f32.mrf.mxu0
        %v8163 = vadd.f32 %v8150, %v8162
        %v8164 = vpop.f32.mrf.mxu0
        %8165 = vdwg.mxu0
        %8166 = vmatpush.bf16.msra.mxu0 %v8005
        %8167 = vmatpush.bf16.msra.mxu0 %v8002
        %8168 = vmatpush.bf16.msra.mxu0 %v7999
        %8169 = vmatpush.bf16.msra.mxu0 %v7996
        %8170 = vmatpush.bf16.msra.mxu0 %v7993
        %8171 = vmatpush.bf16.msra.mxu0 %v7990
        %8172 = vmatpush.bf16.msra.mxu0 %v7987
        %8173 = vmatpush.bf16.msra.mxu0 %v7984
        %8174 = vmatmul.bf16.gmra.mxu0 %v7634
        %v8175 = vpop.f32.mrf.mxu0
        %v8176 = vadd.f32 %v7738, %v8175
        %v8177 = vpop.f32.mrf.mxu0
        %8178 = vdwg.mxu0
        %8179 = vmatpush.bf16.msra.mxu0 %v8029
        %8180 = vmatpush.bf16.msra.mxu0 %v8026
        %8181 = vmatpush.bf16.msra.mxu0 %v8023
        %8182 = vmatpush.bf16.msra.mxu0 %v8020
        %8183 = vmatpush.bf16.msra.mxu0 %v8017
        %8184 = vmatpush.bf16.msra.mxu0 %v8014
        %8185 = vmatpush.bf16.msra.mxu0 %v8011
        %8186 = vmatpush.bf16.msra.mxu0 %v8008
        %8187 = vmatmul.bf16.gmra.mxu0 %v7635
        %v8188 = vpop.f32.mrf.mxu0
        %v8189 = vadd.f32 %v8176, %v8188
        %v8190 = vpop.f32.mrf.mxu0
        %8191 = vdwg.mxu0
        %8192 = vmatpush.bf16.msra.mxu0 %v8053
        %8193 = vmatpush.bf16.msra.mxu0 %v8050
        %8194 = vmatpush.bf16.msra.mxu0 %v8047
        %8195 = vmatpush.bf16.msra.mxu0 %v8044
        %8196 = vmatpush.bf16.msra.mxu0 %v8041
        %8197 = vmatpush.bf16.msra.mxu0 %v8038
        %8198 = vmatpush.bf16.msra.mxu0 %v8035
        %8199 = vmatpush.bf16.msra.mxu0 %v8032
        %8200 = vmatmul.bf16.gmra.mxu0 %v7636
        %v8201 = vpop.f32.mrf.mxu0
        %v8202 = vadd.f32 %v8189, %v8201
        %v8203 = vpop.f32.mrf.mxu0
        %8204 = vdwg.mxu0
        %8205 = vmatpush.bf16.msra.mxu0 %v8006
        %8206 = vmatpush.bf16.msra.mxu0 %v8003
        %8207 = vmatpush.bf16.msra.mxu0 %v8000
        %8208 = vmatpush.bf16.msra.mxu0 %v7997
        %8209 = vmatpush.bf16.msra.mxu0 %v7994
        %8210 = vmatpush.bf16.msra.mxu0 %v7991
        %8211 = vmatpush.bf16.msra.mxu0 %v7988
        %8212 = vmatpush.bf16.msra.mxu0 %v7985
        %8213 = vmatmul.bf16.gmra.mxu0 %v7634
        %v8214 = vpop.f32.mrf.mxu0
        %v8215 = vadd.f32 %v7739, %v8214
        %v8216 = vpop.f32.mrf.mxu0
        %8217 = vdwg.mxu0
        %8218 = vmatpush.bf16.msra.mxu0 %v8030
        %8219 = vmatpush.bf16.msra.mxu0 %v8027
        %8220 = vmatpush.bf16.msra.mxu0 %v8024
        %8221 = vmatpush.bf16.msra.mxu0 %v8021
        %8222 = vmatpush.bf16.msra.mxu0 %v8018
        %8223 = vmatpush.bf16.msra.mxu0 %v8015
        %8224 = vmatpush.bf16.msra.mxu0 %v8012
        %8225 = vmatpush.bf16.msra.mxu0 %v8009
        %8226 = vmatmul.bf16.gmra.mxu0 %v7635
        %v8227 = vpop.f32.mrf.mxu0
        %v8228 = vadd.f32 %v8215, %v8227
        %v8229 = vpop.f32.mrf.mxu0
        %8230 = vdwg.mxu0
        %8231 = vmatpush.bf16.msra.mxu0 %v8054
        %8232 = vmatpush.bf16.msra.mxu0 %v8051
        %8233 = vmatpush.bf16.msra.mxu0 %v8048
        %8234 = vmatpush.bf16.msra.mxu0 %v8045
        %8235 = vmatpush.bf16.msra.mxu0 %v8042
        %8236 = vmatpush.bf16.msra.mxu0 %v8039
        %8237 = vmatpush.bf16.msra.mxu0 %v8036
        %8238 = vmatpush.bf16.msra.mxu0 %v8033
        %8239 = vmatmul.bf16.gmra.mxu0 %v7636
        %v8240 = vpop.f32.mrf.mxu0
        %v8241 = vadd.f32 %v8228, %v8240
        %v8242 = vpop.f32.mrf.mxu0
        %8243 = vdwg.mxu0
        %v8244 = vsel %vm7519, -32752.0, %v8163
        %v8245 = vsel %vm7519, -32752.0, %v8202
        %v8246 = vsel %vm7519, -32752.0, %v8241
        %v8247 = vrot.slane %v8244, 4
        %v8248 = vmax.f32 %v8244, %v8247
        %v8249 = vrot.slane %v8248, 2
        %v8250 = vmax.f32 %v8248, %v8249
        %v8251 = vrot.slane %v8250, 1
        %v8252 = vmax.f32 %v8250, %v8251
        %v8253 = vrot.slane %v8245, 4
        %v8254 = vmax.f32 %v8245, %v8253
        %v8255 = vrot.slane %v8254, 2
        %v8256 = vmax.f32 %v8254, %v8255
        %v8257 = vrot.slane %v8256, 1
        %v8258 = vmax.f32 %v8256, %v8257
        %v8259 = vrot.slane %v8246, 4
        %v8260 = vmax.f32 %v8246, %v8259
        %v8261 = vrot.slane %v8260, 2
        %v8262 = vmax.f32 %v8260, %v8261
        %v8263 = vrot.slane %v8262, 1
        %v8264 = vmax.f32 %v8262, %v8263
        %v8265 = vsub.f32 %v8244, %v8252
        %v8266 = vsub.f32 %v8245, %v8258
        %v8267 = vsub.f32 %v8246, %v8264
        %v8268 = vmul.f32 %v8265, 1.442695
        %v8269 = vpow.pop %v8268
        %v8270 = vmul.f32 %v8266, 1.442695
        %v8271 = vpow.pop %v8270
        %v8272 = vmul.f32 %v8267, 1.442695
        %v8273 = vpow.pop %v8272
        %v8274 = vrot.slane %v8269, 4
        %v8275 = vadd.f32 %v8269, %v8274
        %v8276 = vrot.slane %v8275, 2
        %v8277 = vadd.f32 %v8275, %v8276
        %v8278 = vrot.slane %v8277, 1
        %v8279 = vadd.f32 %v8277, %v8278
        %v8280 = vrot.slane %v8271, 4
        %v8281 = vadd.f32 %v8271, %v8280
        %v8282 = vrot.slane %v8281, 2
        %v8283 = vadd.f32 %v8281, %v8282
        %v8284 = vrot.slane %v8283, 1
        %v8285 = vadd.f32 %v8283, %v8284
        %v8286 = vrot.slane %v8273, 4
        %v8287 = vadd.f32 %v8273, %v8286
        %v8288 = vrot.slane %v8287, 2
        %v8289 = vadd.f32 %v8287, %v8288
        %v8290 = vrot.slane %v8289, 1
        %v8291 = vadd.f32 %v8289, %v8290
        %v8292 = vrcp.pop %v8279
        %v8293 = vmul.f32 %v8279, %v8292
        %v8294 = vsub.f32 1.0, %v8293
        %v8295 = vmul.f32 %v8292, %v8294
        %v8296 = vadd.f32 %v8292, %v8295
        %vm8297 = vweird.f32 %v8279
        %vm8298 = vweird.f32 %v8292
        %vm8299 = vmor %vm8297, %vm8298
        %v8300 = vsel %vm8299, %v8292, %v8296
        %v8301 = vand.u32 2147483647, %v8279
        %vm8302 = vcmp.eq.f32.partialorder %v8301, 8.507059e+37
        %v8303 = vand.u32 %v8279, 2147483648
        %v8304 = vor.u32 1.1754944e-38, %v8303
        %v8305 = vsel %vm8302, %v8304, %v8300
        %v8306 = vmul.f32 %v8269, %v8305
        %v8307 = vrcp.pop %v8285
        %v8308 = vmul.f32 %v8285, %v8307
        %v8309 = vsub.f32 1.0, %v8308
        %v8310 = vmul.f32 %v8307, %v8309
        %v8311 = vadd.f32 %v8307, %v8310
        %vm8312 = vweird.f32 %v8285
        %vm8313 = vweird.f32 %v8307
        %vm8314 = vmor %vm8312, %vm8313
        %v8315 = vsel %vm8314, %v8307, %v8311
        %v8316 = vand.u32 2147483647, %v8285
        %vm8317 = vcmp.eq.f32.partialorder %v8316, 8.507059e+37
        %v8318 = vand.u32 %v8285, 2147483648
        %v8319 = vor.u32 1.1754944e-38, %v8318
        %v8320 = vsel %vm8317, %v8319, %v8315
        %v8321 = vmul.f32 %v8271, %v8320
        %v8322 = vrcp.pop %v8291
        %v8323 = vmul.f32 %v8291, %v8322
        %v8324 = vsub.f32 1.0, %v8323
        %v8325 = vmul.f32 %v8322, %v8324
        %v8326 = vadd.f32 %v8322, %v8325
        %vm8327 = vweird.f32 %v8291
        %vm8328 = vweird.f32 %v8322
        %vm8329 = vmor %vm8327, %vm8328
        %v8330 = vsel %vm8329, %v8322, %v8326
        %v8331 = vand.u32 2147483647, %v8291
        %vm8332 = vcmp.eq.f32.partialorder %v8331, 8.507059e+37
        %v8333 = vand.u32 %v8291, 2147483648
        %v8334 = vor.u32 1.1754944e-38, %v8333
        %v8335 = vsel %vm8332, %v8334, %v8330
        %v8336 = vmul.f32 %v8273, %v8335
        %v8337 = vmul.f32 %v8306, %v5549
        %v8338 = vmul.f32 %v8321, %v5550
        %v8339 = vmul.f32 %v8336, %v5551
        %v8340 = vrot.slane %v8337, 4
        %v8341 = vadd.f32 %v8337, %v8340
        %v8342 = vrot.slane %v8341, 2
        %v8343 = vadd.f32 %v8341, %v8342
        %v8344 = vrot.slane %v8343, 1
        %v8345 = vadd.f32 %v8343, %v8344
        %v8346 = vrot.slane %v8338, 4
        %v8347 = vadd.f32 %v8338, %v8346
        %v8348 = vrot.slane %v8347, 2
        %v8349 = vadd.f32 %v8347, %v8348
        %v8350 = vrot.slane %v8349, 1
        %v8351 = vadd.f32 %v8349, %v8350
        %v8352 = vrot.slane %v8339, 4
        %v8353 = vadd.f32 %v8339, %v8352
        %v8354 = vrot.slane %v8353, 2
        %v8355 = vadd.f32 %v8353, %v8354
        %v8356 = vrot.slane %v8355, 1
        %v8357 = vadd.f32 %v8355, %v8356
        %v8364 = vrot.slane %v7627, 7
        %v8365 = vrot.slane %v7633, 6
        %v8366 = vrot.slane %v8345, 5
        %v8367 = vrot.slane %v8351, 4
        %v8368 = vrot.slane %v8357, 3
        %vm8369 = vcmask 1040384
        %v8370 = vsel %vm8369, %v7621, %v8364
        %vm8371 = vcmask 1041408
        %v8372 = vsel %vm8371, %v8370, %v8365
        %vm8373 = vcmask 1043459
        %v8374 = vsel %vm8373, %v8366, %v8367
        %vm8375 = vcmask 1044483
        %v8376 = vsel %vm8375, %v8374, %v8368
        %vm8377 = vcmask 1042432
        %v8378 = vsel %vm8377, %v8372, %v8376
        %v8380 = vlaneseq
        %vm8381 = vcmp.ge.s32.totalorder %v8380, 0
        %vm8382 = vcmp.lt.s32.totalorder %v8380, 768
        %vm8383 = vmand %vm8381, %vm8382
        %8384 = vst.msk [vmem:[%s725] sm:$0x3f] %vm8383, %v8378
        %s8385 = sand.u32 %s522, 1
        %s8386 = scalar_lea.sflag [#allocation5], %s8385
        %s8387 = sand.u32 %s522, 1
        %s8388 = smul.addr %s8387, 24
        %s8389 = scalar_lea.vmem [#allocation4], %s8388
        %p8390 = scmp.lt.s32.totalorder %s47, 1
        %s8391 = scalar_select %p8390, %s47, 1
        %s8392 = smul.addr %s8391, 6
        %s8393 = scalar_lea.vmem %s24, %s8392
        // Predicated region
        $region109: #{transformer_legacy_forward.1} parent=107 // pred_check
          %p8394 = pneg %p532
        $region110: #{transformer_legacy_forward.1} parent=107 // pred_check_branch
          %8396 = sbr.rel (%p8394) target = $region112
        $region111: #{transformer_legacy_forward.1} parent=107 // pred_region
          %8398 = vsyncadd %s8386, 0
          %s8399 = smul.addr %s47, 3
          %s8400 = smul.addr %s8399, 8
          %s8401 = scalar_lea.hbm %s23, %s8400
          %s8403 = sshll.u32 %s8389, 4
          %s8404 = int_to_ptr.vmem [resolvable:$true] %s8403
          %s8405 = sshll.u32 %s8401, 4
          %s8406 = int_to_ptr.hbm [resolvable:$true] %s8405
          %8408 = dma.vmem_to_hbm [thread:$0]  %s8404, 384, %s8406, %s8386
        $region112: #{transformer_legacy_forward.1} parent=107 // pred_fallthru
          _
        // Predicated region
        $region113: #{transformer_legacy_forward.1} parent=107 // pred_check
          %p8409 = pneg %p558
        $region114: #{transformer_legacy_forward.1} parent=107 // pred_check_branch
          %8411 = sbr.rel (%p8409) target = $region116
        $region115: #{transformer_legacy_forward.1} parent=107 // pred_region
          _
        $region116: #{transformer_legacy_forward.1} parent=107 // pred_fallthru
          _
      $region108: #{transformer_legacy_forward.1} parent=5 // pred_fallthru
        _
      %p8412 = scmp.le.s32.totalorder 2, %s42
      // Predicated region
      $region117: #{transformer_legacy_forward.1} parent=5 // pred_check
        %p8413 = pneg %p8412
      $region118: #{transformer_legacy_forward.1} parent=5 // pred_check_branch
        %8415 = sbr.rel (%p8413) target = $region120
      $region119: #{transformer_legacy_forward.1} parent=5 // pred_region
        %s8416 = ssub.s32 %s42, 2
        // Predicated region
        $region121: #{transformer_legacy_forward.1} parent=119 // pred_check
          %p8417 = pneg %p538
        $region122: #{transformer_legacy_forward.1} parent=119 // pred_check_branch
          %8419 = sbr.rel (%p8417) target = $region124
        $region123: #{transformer_legacy_forward.1} parent=119 // pred_region
          %s8420 = sand.u32 %s523, 1
          %s8421 = scalar_lea.sflag [#allocation5], %s8420
          %s8422 = sand.u32 %s523, 1
          %s8423 = smul.addr %s8422, 24
          %s8424 = scalar_lea.vmem [#allocation4], %s8423
          %8426 = dma.done %s8421, 384
        $region124: #{transformer_legacy_forward.1} parent=119 // pred_fallthru
          _
        // Predicated region
        $region125: #{transformer_legacy_forward.1} parent=119 // pred_check
          %p8427 = pneg %p564
        $region126: #{transformer_legacy_forward.1} parent=119 // pred_check_branch
          %8429 = sbr.rel (%p8427) target = $region128
        $region127: #{transformer_legacy_forward.1} parent=119 // pred_region
          %p8430 = scmp.lt.s32.totalorder %s48, 1
          %s8431 = scalar_select %p8430, %s48, 1
          %s8432 = smul.addr %s8431, 6
          %s8433 = scalar_lea.vmem %s24, %s8432
        $region128: #{transformer_legacy_forward.1} parent=119 // pred_fallthru
          _
      $region120: #{transformer_legacy_forward.1} parent=5 // pred_fallthru
        _
    $region6: #{transformer_legacy_forward.1} parent=1 // loop_footer
      %s46 = sadd.s32 1, %s42
    $region7: #{transformer_legacy_forward.1} parent=1 // loop_footer_branch
      %41 = sbr.rel target = $region3
    $region8: #{transformer_legacy_forward.1} parent=1 // loop_exit
      _
    %8434 = vsyncpa [#allocation5], 1
    %s8435 = scalar_lea.sflag [#allocation5], 1
    %8436 = vsyncpa %s8435, 1

</llo_original>
